<compile_context>
chip_gen: v7x
topology: tpu7x:2x2x1
jax: 0.10.0
libtpu: 0.0.40
codegen_flags: <defaults>
</compile_context>

<pallas_src>
import functools

import jax
import jax.numpy as jnp
from jax import lax
from jax.experimental import pallas as pl
from jax.experimental.pallas import tpu as pltpu

_MXU_DTYPE = jnp.bfloat16            # MXU operand dtype; accumulation is f32
_VMEM_LIMIT = 48 * 1024 * 1024       # <= v7x physical 64 MiB, well under v5e/v6e 128 MiB
_TILE_BUDGET = 12 * 1024 * 1024      # rough per-kernel working-set budget for tile sizing


def _cparams(*sem):
    return pltpu.CompilerParams(dimension_semantics=sem,
                                vmem_limit_bytes=_VMEM_LIMIT)


def _divisor_tile(n, target):
    t = max(1, min(target, n))
    while n % t:
        t -= 1
    return t


def _fit_row_tile(n, target, per_row_bytes):
    """Largest divisor of n that is <= target and fits the VMEM tile budget."""
    cap = max(1, _TILE_BUDGET // max(per_row_bytes, 1))
    return _divisor_tile(n, min(target, cap))


# ---------------------------------------------------------------------------
# shared in-kernel helpers
# ---------------------------------------------------------------------------
def _conv3x3_rows(rows, w3_ref, TR, W2, Cout):
    """3x3 SAME conv of one row tile.

    rows   : (TR+2, W2, C) input rows r0-1 .. r0+TR (halo already masked).
    w3_ref : (3C, 3*Cout) weights; row = kh*C + c, col = kw*Cout + o.
    Returns f32 (TR, W2, Cout) partial output (no bias).
    """
    C = rows.shape[-1]
    N = TR * W2
    # kh grouping: K = 3C via a single lane-concat (no 9C im2col patch).
    P = jnp.concatenate([rows[0:TR], rows[1:TR + 1], rows[2:TR + 2]], axis=-1)
    Pf = P.reshape(N, 3 * C).astype(_MXU_DTYPE)
    # kw grouping: one wide matmul, N = 3*Cout.
    z = jnp.dot(Pf, w3_ref[...], preferred_element_type=jnp.float32)    # (N, 3*Cout)
    z0 = z[:, :Cout]             # kw = 0 -> contributes at column c-1
    z1 = z[:, Cout:2 * Cout]     # kw = 1 -> column c
    z2 = z[:, 2 * Cout:]         # kw = 2 -> column c+1
    zrow = jnp.zeros((1, Cout), jnp.float32)
    left = jnp.concatenate([zrow, z0[:-1]], axis=0)     # left[i]  = z0[i-1]
    right = jnp.concatenate([z2[1:], zrow], axis=0)     # right[i] = z2[i+1]
    # SAME left/right border columns via iota mask (row wrap is masked too).
    col = lax.broadcasted_iota(jnp.int32, (1, W2, Cout), 1)
    return (z1.reshape(TR, W2, Cout)
            + jnp.where(col != 0, left.reshape(TR, W2, Cout), 0.0)
            + jnp.where(col != W2 - 1, right.reshape(TR, W2, Cout), 0.0))


def _write_tile_stats(stats_ref, acc_flat):
    s = jnp.sum(acc_flat, axis=0, keepdims=True)                 # (1, C)
    ss = jnp.sum(acc_flat * acc_flat, axis=0, keepdims=True)     # (1, C)
    stats_ref[0, 0] = jnp.concatenate([s, ss], axis=0)           # (2, C)


# ---------------------------------------------------------------------------
# Kernel A: ConvTranspose2d(k=2, s=2, p=0).  Single fused matmul (N = 4*Cout),
# sub-pixel interleave done in-kernel, output stored bf16.
# ---------------------------------------------------------------------------
def _convt_kernel(x_ref, w_ref, b_ref, o_ref, *, TH, W):
    Cin = x_ref.shape[-1]
    Cout = o_ref.shape[-1]
    x = x_ref[0].reshape(TH * W, Cin).astype(_MXU_DTYPE)
    y = jnp.dot(x, w_ref[...], preferred_element_type=jnp.float32)   # (TH*W, 4*Cout)
    # phase p = di*2 + dj lives in aligned lane block [p*Cout, (p+1)*Cout).
    ph = [y[:, p * Cout:(p + 1) * Cout].reshape(TH, W, 1, Cout) for p in range(4)]
    r0 = jnp.concatenate([ph[0], ph[1]], axis=2).reshape(TH, 1, 2 * W, Cout)  # di=0
    r1 = jnp.concatenate([ph[2], ph[3]], axis=2).reshape(TH, 1, 2 * W, Cout)  # di=1
    out = jnp.concatenate([r0, r1], axis=1).reshape(2 * TH, 2 * W, Cout)
    o_ref[0] = (out + b_ref[...]).astype(o_ref.dtype)


def conv_transpose_2x2_s2(x, w_up, b_up, *, row_tile=16):
    """x: (B,H,W,Cin); w_up: (Cin,Cout,2,2) [torch ConvT layout]; b_up: (Cout,)."""
    B, H, W, Cin = x.shape
    Cout = w_up.shape[1]
    per_row = 4 * W * (2 * Cin + 24 * Cout)          # conservative VMEM per low-res row
    TH = _fit_row_tile(H, row_tile, per_row)
    # (Cin, Cout, di, dj) -> (Cin, [p=di*2+dj, Cout]) : one wide MXU matmul.
    w_f = jnp.transpose(w_up, (0, 2, 3, 1)).reshape(Cin, 4 * Cout).astype(_MXU_DTYPE)
    b2d = b_up.reshape(1, Cout).astype(jnp.float32)
    kernel = functools.partial(_convt_kernel, TH=TH, W=W)
    return pl.pallas_call(
        kernel,
        out_shape=jax.ShapeDtypeStruct((B, 2 * H, 2 * W, Cout), jnp.bfloat16),
        grid=(B, H // TH),
        in_specs=[
            pl.BlockSpec((1, TH, W, Cin), lambda b, t: (b, t, 0, 0)),
            pl.BlockSpec((Cin, 4 * Cout), lambda b, t: (0, 0)),
            pl.BlockSpec((1, Cout), lambda b, t: (0, 0)),
        ],
        out_specs=pl.BlockSpec((1, 2 * TH, 2 * W, Cout), lambda b, t: (b, t, 0, 0)),
        compiler_params=_cparams("parallel", "parallel"),
    )(x, w_f, b2d)


# ---------------------------------------------------------------------------
# Kernels B/C: 3x3 SAME conv + bias + per-tile BN partial stats.
# Halo rows arrive via 1-row BlockSpecs; out-of-range halos are masked to zero.
# ---------------------------------------------------------------------------
def _conv1_kernel(ub_ref, ut_ref, ud_ref, sb_ref, st_ref, sd_ref,
                  wu_ref, ws_ref, b_ref, y_ref, stats_ref, *, TR, W2):
    t = pl.program_id(1)
    last = pl.num_programs(1) - 1
    Cout = y_ref.shape[-1]

    def rows_of(body_ref, top_ref, bot_ref):
        top = jnp.where(t == 0, 0.0, top_ref[0])                 # (1, W2, C)
        bot = jnp.where(t == last, 0.0, bot_ref[0])              # (1, W2, C)
        return jnp.concatenate([top, body_ref[0], bot], axis=0)  # (TR+2, W2, C)

    acc = (_conv3x3_rows(rows_of(ub_ref, ut_ref, ud_ref), wu_ref, TR, W2, Cout)
           + _conv3x3_rows(rows_of(sb_ref, st_ref, sd_ref), ws_ref, TR, W2, Cout)
           + b_ref[...])                                         # (TR, W2, Cout)
    y_ref[0] = acc
    _write_tile_stats(stats_ref, acc.reshape(TR * W2, Cout))


def _conv2_kernel(xb_ref, xt_ref, xd_ref, sc_ref, sh_ref, w_ref, b_ref,
                  y_ref, stats_ref, *, TR, W2):
    t = pl.program_id(1)
    last = pl.num_programs(1) - 1
    Cout = y_ref.shape[-1]
    sc = sc_ref[...]
    sh = sh_ref[...]

    def act(v):   # BN1 affine + ReLU fused into the loads
        return jnp.maximum(v * sc + sh, 0.0)

    # SAME padding means zero rows *after* activation at the image border.
    top = jnp.where(t == 0, 0.0, act(xt_ref[0]))
    bot = jnp.where(t == last, 0.0, act(xd_ref[0]))
    rows = jnp.concatenate([top, act(xb_ref[0]), bot], axis=0)
    acc = _conv3x3_rows(rows, w_ref, TR, W2, Cout) + b_ref[...]
    y_ref[0] = acc
    _write_tile_stats(stats_ref, acc.reshape(TR * W2, Cout))


def _halo_specs(H2, W2, C, TR):
    body = pl.BlockSpec((1, TR, W2, C), lambda b, t: (b, t, 0, 0))
    top = pl.BlockSpec((1, 1, W2, C),
                       lambda b, t: (b, jnp.maximum(t * TR - 1, 0), 0, 0))
    bot = pl.BlockSpec((1, 1, W2, C),
                       lambda b, t: (b, jnp.minimum(t * TR + TR, H2 - 1), 0, 0))
    return body, top, bot


def _w3x3(w_part):
    """(kh, kw, C, Cout) -> (3C, 3*Cout) with row = kh*C+c, col = kw*Cout+o."""
    kh, kw, C, Cout = w_part.shape
    return jnp.transpose(w_part, (0, 2, 1, 3)).reshape(kh * C, kw * Cout).astype(_MXU_DTYPE)


def conv3x3_concat_stats(up, skip, w, bias, *, row_tile=32):
    """3x3 SAME conv over concat([up, skip], ch) + bias -> (pre-BN y, tile stats)."""
    B, H2, W2, Cu = up.shape
    Cs = skip.shape[-1]
    Cout = w.shape[-1]
    per_row = 4 * W2 * (6 * (Cu + Cs) + 12 * Cout)   # conservative VMEM per row
    TR = _fit_row_tile(H2, row_tile, per_row)
    nT = H2 // TR
    w_u3 = _w3x3(w[:, :, :Cu, :])
    w_s3 = _w3x3(w[:, :, Cu:, :])
    b2d = bias.reshape(1, Cout).astype(jnp.float32)
    kernel = functools.partial(_conv1_kernel, TR=TR, W2=W2)
    ub, ut, ud = _halo_specs(H2, W2, Cu, TR)
    sb, st, sd = _halo_specs(H2, W2, Cs, TR)
    # note: weight/bias blocks are constant-index; pl.Buffered(1) could reclaim a
    # little VMEM on v7x, but is unnecessary at these tile budgets.
    return pl.pallas_call(
        kernel,
        out_shape=(jax.ShapeDtypeStruct((B, H2, W2, Cout), jnp.float32),
                   jax.ShapeDtypeStruct((B, nT, 2, Cout), jnp.float32)),
        grid=(B, nT),
        in_specs=[ub, ut, ud, sb, st, sd,
                  pl.BlockSpec((3 * Cu, 3 * Cout), lambda b, t: (0, 0)),
                  pl.BlockSpec((3 * Cs, 3 * Cout), lambda b, t: (0, 0)),
                  pl.BlockSpec((1, Cout), lambda b, t: (0, 0))],
        out_specs=(pl.BlockSpec((1, TR, W2, Cout), lambda b, t: (b, t, 0, 0)),
                   pl.BlockSpec((1, 1, 2, Cout), lambda b, t: (b, t, 0, 0))),
        compiler_params=_cparams("parallel", "parallel"),
    )(up, up, up, skip, skip, skip, w_u3, w_s3, b2d)


def conv3x3_bnact_stats(x, scale, shift, w, bias, *, row_tile=32):
    """relu(x*scale+shift) fused into the load, then 3x3 SAME conv + bias."""
    B, H2, W2, C = x.shape
    Cout = w.shape[-1]
    per_row = 4 * W2 * (6 * C + 12 * Cout)
    TR = _fit_row_tile(H2, row_tile, per_row)
    nT = H2 // TR
    w3 = _w3x3(w)
    b2d = bias.reshape(1, Cout).astype(jnp.float32)
    kernel = functools.partial(_conv2_kernel, TR=TR, W2=W2)
    xb, xt, xd = _halo_specs(H2, W2, C, TR)
    return pl.pallas_call(
        kernel,
        out_shape=(jax.ShapeDtypeStruct((B, H2, W2, Cout), jnp.float32),
                   jax.ShapeDtypeStruct((B, nT, 2, Cout), jnp.float32)),
        grid=(B, nT),
        in_specs=[xb, xt, xd,
                  pl.BlockSpec((1, C), lambda b, t: (0, 0)),
                  pl.BlockSpec((1, C), lambda b, t: (0, 0)),
                  pl.BlockSpec((3 * C, 3 * Cout), lambda b, t: (0, 0)),
                  pl.BlockSpec((1, Cout), lambda b, t: (0, 0))],
        out_specs=(pl.BlockSpec((1, TR, W2, Cout), lambda b, t: (b, t, 0, 0)),
                   pl.BlockSpec((1, 1, 2, Cout), lambda b, t: (b, t, 0, 0))),
        compiler_params=_cparams("parallel", "parallel"),
    )(x, x, x, scale, shift, w3, b2d)


# ---------------------------------------------------------------------------
# Kernel D: BN (precomputed affine) + ReLU, tiled elementwise with large blocks.
# ---------------------------------------------------------------------------
def _bn_relu_kernel(x_ref, sc_ref, sh_ref, o_ref):
    o_ref[...] = jnp.maximum(x_ref[...] * sc_ref[...] + sh_ref[...], 0.0)


def bn_relu(x, scale, shift, *, row_tile=4096):
    B, H2, W2, C = x.shape
    M = B * H2 * W2
    x2 = x.reshape(M, C)
    cap = max(8, _TILE_BUDGET // (16 * C))           # ~ (in + out) x 2 buffers, f32
    target = min(row_tile, cap, M)
    TM = M
    for cand in range(target, 0, -1):
        if M % cand == 0 and (cand % 8 == 0 or cand == M):
            TM = cand
            break
    y2 = pl.pallas_call(
        _bn_relu_kernel,
        out_shape=jax.ShapeDtypeStruct((M, C), jnp.float32),
        grid=(M // TM,),
        in_specs=[pl.BlockSpec((TM, C), lambda i: (i, 0)),
                  pl.BlockSpec((1, C), lambda i: (0, 0)),
                  pl.BlockSpec((1, C), lambda i: (0, 0))],
        out_specs=pl.BlockSpec((TM, C), lambda i: (i, 0)),
        compiler_params=_cparams("parallel"),
    )(x2, scale, shift)
    return y2.reshape(B, H2, W2, C)


# ---------------------------------------------------------------------------
# BN finalize: turn per-tile (sum, sumsq) into per-channel scale/shift.
# ---------------------------------------------------------------------------
def _bn_affine(stats, count, gamma, beta, eps=1e-5):
    s = jnp.sum(stats[:, :, 0, :], axis=(0, 1))
    ss = jnp.sum(stats[:, :, 1, :], axis=(0, 1))
    mean = s / count
    var = jnp.maximum(ss / count - mean * mean, 0.0)    # biased (training-mode) var
    scale = gamma * lax.rsqrt(var + eps)
    shift = beta - mean * scale
    return scale.reshape(1, -1), shift.reshape(1, -1)


# ---------------------------------------------------------------------------
# decoder_block forward
# ---------------------------------------------------------------------------
def decoder_block_forward(inputs, skip, p):
    up = conv_transpose_2x2_s2(inputs, p["w_up"], p["b_up"])
    B, H2, W2, _ = up.shape
    count = B * H2 * W2
    y1, st1 = conv3x3_concat_stats(up, skip, p["w1"], p["b1"])
    sc1, sh1 = _bn_affine(st1, count, p["g1"], p["bt1"])
    y2, st2 = conv3x3_bnact_stats(y1, sc1, sh1, p["w2"], p["b2"])
    sc2, sh2 = _bn_affine(st2, count, p["g2"], p["bt2"])
    return bn_relu(y2, sc2, sh2)


# ---------------------------------------------------------------------------
# Pure-JAX reference (independent: einsum + lax.conv_general_dilated, all f32)
# ---------------------------------------------------------------------------
def reference_forward(inputs, skip, p):
    B, H, W, _ = inputs.shape
    Cout = p["w_up"].shape[1]
    up = jnp.einsum("nijc,coab->niajbo", inputs, p["w_up"],
                    precision=lax.Precision.HIGHEST)
    up = up.reshape(B, 2 * H, 2 * W, Cout) + p["b_up"]
    x = jnp.concatenate([up, skip], axis=-1)

    def cbr(x, w, b, g, bt):
        y = lax.conv_general_dilated(
            x, w, (1, 1), "SAME",
            dimension_numbers=("NHWC", "HWIO", "NHWC"),
            precision=lax.Precision.HIGHEST) + b
        mean = jnp.mean(y, axis=(0, 1, 2), keepdims=True)
        var = jnp.mean((y - mean) ** 2, axis=(0, 1, 2), keepdims=True)
        y = (y - mean) * lax.rsqrt(var + 1e-5) * g + bt
        return jnp.maximum(y, 0.0)

    x = cbr(x, p["w1"], p["b1"], p["g1"], p["bt1"])
    x = cbr(x, p["w2"], p["b2"], p["g2"], p["bt2"])
    return x


def init_params(key, in_c, out_c):
    ks = jax.random.split(key, 8)
    cat_c = out_c + out_c
    return {
        # ConvTranspose2d weight (in_c, out_c, 2, 2) and bias (out_c,)
        "w_up": 0.1 * jax.random.normal(ks[0], (in_c, out_c, 2, 2), jnp.float32),
        "b_up": 0.1 * jax.random.normal(ks[1], (out_c,), jnp.float32),
        # conv1: 3x3, (cat_c -> out_c), HWIO
        "w1": 0.1 * jax.random.normal(ks[2], (3, 3, cat_c, out_c), jnp.float32),
        "b1": 0.1 * jax.random.normal(ks[3], (out_c,), jnp.float32),
        "g1": 1.0 + 0.1 * jax.random.normal(ks[4], (out_c,), jnp.float32),
        "bt1": 0.1 * jax.random.normal(ks[5], (out_c,), jnp.float32),
        # conv2: 3x3, (out_c -> out_c), HWIO
        "w2": 0.1 * jax.random.normal(ks[6], (3, 3, out_c, out_c), jnp.float32),
        "b2": 0.1 * jax.random.normal(ks[7], (out_c,), jnp.float32),
        "g2": jnp.full((out_c,), 1.1, jnp.float32),
        "bt2": jnp.full((out_c,), -0.05, jnp.float32),
    }


if __name__ == "__main__":
    # lane-dense channel counts (out_c = 128 on the 128-lane axis), small spatial
    B, in_c, out_c = 2, 256, 128
    Hin = Win = 8                       # decoder input spatial; skip is 2x larger

    key = jax.random.PRNGKey(0)
    k_in, k_skip, k_par = jax.random.split(key, 3)
    inputs = jax.random.normal(k_in, (B, Hin, Win, in_c), jnp.float32)       # NHWC
    skip = jax.random.normal(k_skip, (B, 2 * Hin, 2 * Win, out_c), jnp.float32)
    params = init_params(k_par, in_c, out_c)

    fwd = jax.jit(decoder_block_forward)
    out = jax.block_until_ready(fwd(inputs, skip, params))
    assert out.shape == (B, 2 * Hin, 2 * Win, out_c), out.shape

    ref = jax.block_until_ready(reference_forward(inputs, skip, params))
    max_err = float(jnp.max(jnp.abs(out - ref)))
    # bf16 MXU operands + bf16 upsample intermediate (f32 accumulation): loosen
    # the f32 tolerance accordingly; real bugs show up as O(1) errors.
    assert max_err < 5e-2, f"mismatch vs reference: {max_err}"

    print("KERNEL_OK")
</pallas_src>

<mosaic_0001>
module attributes {stable_mosaic.version = 11 : i64} {
  func.func @_convt_kernel(%arg0: i32, %arg1: i32, %arg2: memref<1x8x8x256xf32, #tpu.memory_space<vmem>>, %arg3: memref<256x512xbf16, #tpu.memory_space<vmem>>, %arg4: memref<1x128xf32, #tpu.memory_space<vmem>>, %arg5: memref<1x16x16x128xbf16, #tpu.memory_space<vmem>>) attributes {dimension_semantics = [#tpu.dimension_semantics<parallel>, #tpu.dimension_semantics<parallel>], iteration_bounds = array<i64: 2, 1>, scalar_prefetch = 0 : i64, scratch_operands = 0 : i64, tpu.core_type = #tpu.core_type<tc>, window_params = [{transform_indices = @transform_0, window_bounds = array<i64: 1, 8, 8, 256>}, {pipeline_mode = #tpu.pipeline_mode<synchronous>, transform_indices = @transform_1, window_bounds = array<i64: 256, 512>}, {pipeline_mode = #tpu.pipeline_mode<synchronous>, transform_indices = @transform_2, window_bounds = array<i64: 1, 128>}, {transform_indices = @transform_3, window_bounds = array<i64: 1, 16, 16, 128>}]} {
    %c0 = arith.constant 0 : index
    %c0_0 = arith.constant 0 : index
    %c0_1 = arith.constant 0 : index
    %c0_2 = arith.constant 0 : index
    %0 = vector.load %arg2[%c0, %c0_0, %c0_1, %c0_2] : memref<1x8x8x256xf32, #tpu.memory_space<vmem>>, vector<1x8x8x256xf32>
    %1 = vector.shape_cast %0 : vector<1x8x8x256xf32> to vector<8x8x256xf32>
    %2 = vector.shape_cast %1 : vector<8x8x256xf32> to vector<64x256xf32>
    %3 = arith.truncf %2 : vector<64x256xf32> to vector<64x256xbf16>
    %c0_3 = arith.constant 0 : index
    %c0_4 = arith.constant 0 : index
    %4 = vector.load %arg3[%c0_3, %c0_4] : memref<256x512xbf16, #tpu.memory_space<vmem>>, vector<256x512xbf16>
    %cst = arith.constant dense<0.000000e+00> : vector<64x512xf32>
    %5 = tpu.matmul %3, %4, %cst {dimension_numbers = #tpu.dot_dimension_numbers<[1], [0], [0], [1], [0, 0, 1, 1], [], []>} : vector<64x256xbf16>, vector<256x512xbf16>, vector<64x512xf32> -> vector<64x512xf32>
    %6 = vector.extract_strided_slice %5 {offsets = [0, 0], sizes = [64, 128], strides = [1, 1]} : vector<64x512xf32> to vector<64x128xf32>
    %7 = vector.shape_cast %6 : vector<64x128xf32> to vector<8x8x1x128xf32>
    %8 = vector.extract_strided_slice %5 {offsets = [0, 128], sizes = [64, 128], strides = [1, 1]} : vector<64x512xf32> to vector<64x128xf32>
    %9 = vector.shape_cast %8 : vector<64x128xf32> to vector<8x8x1x128xf32>
    %10 = vector.extract_strided_slice %5 {offsets = [0, 256], sizes = [64, 128], strides = [1, 1]} : vector<64x512xf32> to vector<64x128xf32>
    %11 = vector.shape_cast %10 : vector<64x128xf32> to vector<8x8x1x128xf32>
    %12 = vector.extract_strided_slice %5 {offsets = [0, 384], sizes = [64, 128], strides = [1, 1]} : vector<64x512xf32> to vector<64x128xf32>
    %13 = vector.shape_cast %12 : vector<64x128xf32> to vector<8x8x1x128xf32>
    %14 = tpu.concatenate %7, %9 in 2 : vector<8x8x1x128xf32>, vector<8x8x1x128xf32> -> vector<8x8x2x128xf32>
    %15 = vector.shape_cast %14 : vector<8x8x2x128xf32> to vector<8x1x16x128xf32>
    %16 = tpu.concatenate %11, %13 in 2 : vector<8x8x1x128xf32>, vector<8x8x1x128xf32> -> vector<8x8x2x128xf32>
    %17 = vector.shape_cast %16 : vector<8x8x2x128xf32> to vector<8x1x16x128xf32>
    %18 = tpu.concatenate %15, %17 in 1 : vector<8x1x16x128xf32>, vector<8x1x16x128xf32> -> vector<8x2x16x128xf32>
    %19 = vector.shape_cast %18 : vector<8x2x16x128xf32> to vector<16x16x128xf32>
    %c0_5 = arith.constant 0 : index
    %c0_6 = arith.constant 0 : index
    %20 = vector.load %arg4[%c0_5, %c0_6] : memref<1x128xf32, #tpu.memory_space<vmem>>, vector<1x128xf32>
    %21 = vector.shape_cast %20 : vector<1x128xf32> to vector<1x1x128xf32>
    %22 = vector.broadcast %21 : vector<1x1x128xf32> to vector<16x16x128xf32>
    %23 = arith.addf %19, %22 : vector<16x16x128xf32>
    %24 = arith.truncf %23 : vector<16x16x128xf32> to vector<16x16x128xbf16>
    %c0_7 = arith.constant 0 : index
    %c0_8 = arith.constant 0 : index
    %c0_9 = arith.constant 0 : index
    %c0_10 = arith.constant 0 : index
    %25 = vector.load %arg5[%c0_7, %c0_8, %c0_9, %c0_10] : memref<1x16x16x128xbf16, #tpu.memory_space<vmem>>, vector<1x16x16x128xbf16>
    %26 = vector.shape_cast %25 : vector<1x16x16x128xbf16> to vector<16x16x128xbf16>
    %27 = vector.shape_cast %24 : vector<16x16x128xbf16> to vector<1x16x16x128xbf16>
    tpu.vector_store %arg5[%c0_7, %c0_8, %c0_9, %c0_10], %27 {strides = array<i32>} : memref<1x16x16x128xbf16, #tpu.memory_space<vmem>>, vector<1x16x16x128xbf16>,
    return
  }
  func.func @transform_0(%arg0: i32, %arg1: i32) -> (i32, i32, i32, i32) {
    %c0_i32 = arith.constant 0 : i32
    %c0_i32_0 = arith.constant 0 : i32
    %c0_i32_1 = arith.constant 0 : i32
    return %arg0, %arg1, %c0_i32, %c0_i32_0 : i32, i32, i32, i32
  }
  func.func @transform_1(%arg0: i32, %arg1: i32) -> (i32, i32) {
    %c0_i32 = arith.constant 0 : i32
    %c0_i32_0 = arith.constant 0 : i32
    %c0_i32_1 = arith.constant 0 : i32
    return %c0_i32, %c0_i32_0 : i32, i32
  }
  func.func @transform_2(%arg0: i32, %arg1: i32) -> (i32, i32) {
    %c0_i32 = arith.constant 0 : i32
    %c0_i32_0 = arith.constant 0 : i32
    %c0_i32_1 = arith.constant 0 : i32
    return %c0_i32, %c0_i32_0 : i32, i32
  }
  func.func @transform_3(%arg0: i32, %arg1: i32) -> (i32, i32, i32, i32) {
    %c0_i32 = arith.constant 0 : i32
    %c0_i32_0 = arith.constant 0 : i32
    %c0_i32_1 = arith.constant 0 : i32
    return %arg0, %arg1, %c0_i32, %c0_i32_0 : i32, i32, i32, i32
  }
}

module attributes {stable_mosaic.version = 11 : i64} {
  func.func @_conv1_kernel(%arg0: i32, %arg1: i32, %arg2: memref<1x16x16x128xbf16, #tpu.memory_space<vmem>>, %arg3: memref<1x1x16x128xbf16, #tpu.memory_space<vmem>>, %arg4: memref<1x1x16x128xbf16, #tpu.memory_space<vmem>>, %arg5: memref<1x16x16x128xf32, #tpu.memory_space<vmem>>, %arg6: memref<1x1x16x128xf32, #tpu.memory_space<vmem>>, %arg7: memref<1x1x16x128xf32, #tpu.memory_space<vmem>>, %arg8: memref<384x384xbf16, #tpu.memory_space<vmem>>, %arg9: memref<384x384xbf16, #tpu.memory_space<vmem>>, %arg10: memref<1x128xf32, #tpu.memory_space<vmem>>, %arg11: memref<1x16x16x128xf32, #tpu.memory_space<vmem>>, %arg12: memref<1x1x2x128xf32, #tpu.memory_space<vmem>>) attributes {dimension_semantics = [#tpu.dimension_semantics<parallel>, #tpu.dimension_semantics<parallel>], iteration_bounds = array<i64: 2, 1>, scalar_prefetch = 0 : i64, scratch_operands = 0 : i64, tpu.core_type = #tpu.core_type<tc>, window_params = [{transform_indices = @transform_0, window_bounds = array<i64: 1, 16, 16, 128>}, {transform_indices = @transform_1, window_bounds = array<i64: 1, 1, 16, 128>}, {transform_indices = @transform_2, window_bounds = array<i64: 1, 1, 16, 128>}, {transform_indices = @transform_3, window_bounds = array<i64: 1, 16, 16, 128>}, {transform_indices = @transform_4, window_bounds = array<i64: 1, 1, 16, 128>}, {transform_indices = @transform_5, window_bounds = array<i64: 1, 1, 16, 128>}, {pipeline_mode = #tpu.pipeline_mode<synchronous>, transform_indices = @transform_6, window_bounds = array<i64: 384, 384>}, {pipeline_mode = #tpu.pipeline_mode<synchronous>, transform_indices = @transform_7, window_bounds = array<i64: 384, 384>}, {pipeline_mode = #tpu.pipeline_mode<synchronous>, transform_indices = @transform_8, window_bounds = array<i64: 1, 128>}, {transform_indices = @transform_9, window_bounds = array<i64: 1, 16, 16, 128>}, {transform_indices = @transform_10, window_bounds = array<i64: 1, 1, 2, 128>}]} {
    %c0_i32 = arith.constant 0 : i32
    %0 = arith.cmpi eq, %arg1, %c0_i32 : i32
    %c0 = arith.constant 0 : index
    %c0_0 = arith.constant 0 : index
    %c0_1 = arith.constant 0 : index
    %c0_2 = arith.constant 0 : index
    %1 = vector.load %arg3[%c0, %c0_0, %c0_1, %c0_2] : memref<1x1x16x128xbf16, #tpu.memory_space<vmem>>, vector<1x1x16x128xbf16>
    %2 = vector.shape_cast %1 : vector<1x1x16x128xbf16> to vector<1x16x128xbf16>
    %cst = arith.constant 0.000000e+00 : f32
    %3 = arith.truncf %cst : f32 to bf16
    %4 = vector.broadcast %3 : bf16 to vector<1x16x128xbf16>
    %5 = arith.select %0, %4, %2 : vector<1x16x128xbf16>
    %c0_i32_3 = arith.constant 0 : i32
    %6 = arith.cmpi eq, %arg1, %c0_i32_3 : i32
    %c0_4 = arith.constant 0 : index
    %c0_5 = arith.constant 0 : index
    %c0_6 = arith.constant 0 : index
    %c0_7 = arith.constant 0 : index
    %7 = vector.load %arg4[%c0_4, %c0_5, %c0_6, %c0_7] : memref<1x1x16x128xbf16, #tpu.memory_space<vmem>>, vector<1x1x16x128xbf16>
    %8 = vector.shape_cast %7 : vector<1x1x16x128xbf16> to vector<1x16x128xbf16>
    %cst_8 = arith.constant 0.000000e+00 : f32
    %9 = arith.truncf %cst_8 : f32 to bf16
    %10 = vector.broadcast %9 : bf16 to vector<1x16x128xbf16>
    %11 = arith.select %6, %10, %8 : vector<1x16x128xbf16>
    %c0_9 = arith.constant 0 : index
    %c0_10 = arith.constant 0 : index
    %c0_11 = arith.constant 0 : index
    %c0_12 = arith.constant 0 : index
    %12 = vector.load %arg2[%c0_9, %c0_10, %c0_11, %c0_12] : memref<1x16x16x128xbf16, #tpu.memory_space<vmem>>, vector<1x16x16x128xbf16>
    %13 = vector.shape_cast %12 : vector<1x16x16x128xbf16> to vector<16x16x128xbf16>
    %14 = tpu.concatenate %5, %13, %11 in 0 : vector<1x16x128xbf16>, vector<16x16x128xbf16>, vector<1x16x128xbf16> -> vector<18x16x128xbf16>
    %15 = vector.extract_strided_slice %14 {offsets = [0, 0, 0], sizes = [16, 16, 128], strides = [1, 1, 1]} : vector<18x16x128xbf16> to vector<16x16x128xbf16>
    %16 = vector.extract_strided_slice %14 {offsets = [1, 0, 0], sizes = [16, 16, 128], strides = [1, 1, 1]} : vector<18x16x128xbf16> to vector<16x16x128xbf16>
    %17 = vector.extract_strided_slice %14 {offsets = [2, 0, 0], sizes = [16, 16, 128], strides = [1, 1, 1]} : vector<18x16x128xbf16> to vector<16x16x128xbf16>
    %18 = tpu.concatenate %15, %16, %17 in 2 : vector<16x16x128xbf16>, vector<16x16x128xbf16>, vector<16x16x128xbf16> -> vector<16x16x384xbf16>
    %19 = vector.shape_cast %18 : vector<16x16x384xbf16> to vector<256x384xbf16>
    %c0_13 = arith.constant 0 : index
    %c0_14 = arith.constant 0 : index
    %20 = vector.load %arg8[%c0_13, %c0_14] : memref<384x384xbf16, #tpu.memory_space<vmem>>, vector<384x384xbf16>
    %cst_15 = arith.constant dense<0.000000e+00> : vector<256x384xf32>
    %21 = tpu.matmul %19, %20, %cst_15 {dimension_numbers = #tpu.dot_dimension_numbers<[1], [0], [0], [1], [0, 0, 1, 1], [], []>} : vector<256x384xbf16>, vector<384x384xbf16>, vector<256x384xf32> -> vector<256x384xf32>
    %22 = vector.extract_strided_slice %21 {offsets = [0, 0], sizes = [256, 128], strides = [1, 1]} : vector<256x384xf32> to vector<256x128xf32>
    %23 = vector.extract_strided_slice %21 {offsets = [0, 128], sizes = [256, 128], strides = [1, 1]} : vector<256x384xf32> to vector<256x128xf32>
    %24 = vector.extract_strided_slice %21 {offsets = [0, 256], sizes = [256, 128], strides = [1, 1]} : vector<256x384xf32> to vector<256x128xf32>
    %cst_16 = arith.constant 0.000000e+00 : f32
    %25 = vector.broadcast %cst_16 : f32 to vector<1x128xf32>
    %26 = vector.extract_strided_slice %22 {offsets = [0, 0], sizes = [255, 128], strides = [1, 1]} : vector<256x128xf32> to vector<255x128xf32>
    %27 = tpu.concatenate %25, %26 in 0 : vector<1x128xf32>, vector<255x128xf32> -> vector<256x128xf32>
    %28 = vector.extract_strided_slice %24 {offsets = [1, 0], sizes = [255, 128], strides = [1, 1]} : vector<256x128xf32> to vector<255x128xf32>
    %29 = tpu.concatenate %28, %25 in 0 : vector<255x128xf32>, vector<1x128xf32> -> vector<256x128xf32>
    %30 = tpu.iota {dimensions = array<i32: 1>} : vector<1x16x128xi32>
    %31 = vector.shape_cast %23 : vector<256x128xf32> to vector<16x16x128xf32>
    %c0_i32_17 = arith.constant 0 : i32
    %32 = vector.broadcast %c0_i32_17 : i32 to vector<1x16x128xi32>
    %33 = arith.cmpi ne, %30, %32 : vector<1x16x128xi32>
    %34 = vector.shape_cast %27 : vector<256x128xf32> to vector<16x16x128xf32>
    %cst_18 = arith.constant 0.000000e+00 : f32
    %35 = vector.shape_cast %33 : vector<1x16x128xi1> to vector<1x16x128xi1>
    %36 = vector.broadcast %35 : vector<1x16x128xi1> to vector<16x16x128xi1>
    %37 = vector.broadcast %cst_18 : f32 to vector<16x16x128xf32>
    %38 = arith.select %36, %34, %37 : vector<16x16x128xi1>, vector<16x16x128xf32>
    %39 = arith.addf %31, %38 : vector<16x16x128xf32>
    %c15_i32 = arith.constant 15 : i32
    %40 = vector.broadcast %c15_i32 : i32 to vector<1x16x128xi32>
    %41 = arith.cmpi ne, %30, %40 : vector<1x16x128xi32>
    %42 = vector.shape_cast %29 : vector<256x128xf32> to vector<16x16x128xf32>
    %cst_19 = arith.constant 0.000000e+00 : f32
    %43 = vector.shape_cast %41 : vector<1x16x128xi1> to vector<1x16x128xi1>
    %44 = vector.broadcast %43 : vector<1x16x128xi1> to vector<16x16x128xi1>
    %45 = vector.broadcast %cst_19 : f32 to vector<16x16x128xf32>
    %46 = arith.select %44, %42, %45 : vector<16x16x128xi1>, vector<16x16x128xf32>
    %47 = arith.addf %39, %46 : vector<16x16x128xf32>
    %c0_i32_20 = arith.constant 0 : i32
    %48 = arith.cmpi eq, %arg1, %c0_i32_20 : i32
    %c0_21 = arith.constant 0 : index
    %c0_22 = arith.constant 0 : index
    %c0_23 = arith.constant 0 : index
    %c0_24 = arith.constant 0 : index
    %49 = vector.load %arg6[%c0_21, %c0_22, %c0_23, %c0_24] : memref<1x1x16x128xf32, #tpu.memory_space<vmem>>, vector<1x1x16x128xf32>
    %50 = vector.shape_cast %49 : vector<1x1x16x128xf32> to vector<1x16x128xf32>
    %cst_25 = arith.constant 0.000000e+00 : f32
    %51 = vector.broadcast %cst_25 : f32 to vector<1x16x128xf32>
    %52 = arith.select %48, %51, %50 : vector<1x16x128xf32>
    %c0_i32_26 = arith.constant 0 : i32
    %53 = arith.cmpi eq, %arg1, %c0_i32_26 : i32
    %c0_27 = arith.constant 0 : index
    %c0_28 = arith.constant 0 : index
    %c0_29 = arith.constant 0 : index
    %c0_30 = arith.constant 0 : index
    %54 = vector.load %arg7[%c0_27, %c0_28, %c0_29, %c0_30] : memref<1x1x16x128xf32, #tpu.memory_space<vmem>>, vector<1x1x16x128xf32>
    %55 = vector.shape_cast %54 : vector<1x1x16x128xf32> to vector<1x16x128xf32>
    %cst_31 = arith.constant 0.000000e+00 : f32
    %56 = vector.broadcast %cst_31 : f32 to vector<1x16x128xf32>
    %57 = arith.select %53, %56, %55 : vector<1x16x128xf32>
    %c0_32 = arith.constant 0 : index
    %c0_33 = arith.constant 0 : index
    %c0_34 = arith.constant 0 : index
    %c0_35 = arith.constant 0 : index
    %58 = vector.load %arg5[%c0_32, %c0_33, %c0_34, %c0_35] : memref<1x16x16x128xf32, #tpu.memory_space<vmem>>, vector<1x16x16x128xf32>
    %59 = vector.shape_cast %58 : vector<1x16x16x128xf32> to vector<16x16x128xf32>
    %60 = tpu.concatenate %52, %59, %57 in 0 : vector<1x16x128xf32>, vector<16x16x128xf32>, vector<1x16x128xf32> -> vector<18x16x128xf32>
    %61 = vector.extract_strided_slice %60 {offsets = [0, 0, 0], sizes = [16, 16, 128], strides = [1, 1, 1]} : vector<18x16x128xf32> to vector<16x16x128xf32>
    %62 = vector.extract_strided_slice %60 {offsets = [1, 0, 0], sizes = [16, 16, 128], strides = [1, 1, 1]} : vector<18x16x128xf32> to vector<16x16x128xf32>
    %63 = vector.extract_strided_slice %60 {offsets = [2, 0, 0], sizes = [16, 16, 128], strides = [1, 1, 1]} : vector<18x16x128xf32> to vector<16x16x128xf32>
    %64 = tpu.concatenate %61, %62, %63 in 2 : vector<16x16x128xf32>, vector<16x16x128xf32>, vector<16x16x128xf32> -> vector<16x16x384xf32>
    %65 = vector.shape_cast %64 : vector<16x16x384xf32> to vector<256x384xf32>
    %66 = arith.truncf %65 : vector<256x384xf32> to vector<256x384xbf16>
    %c0_36 = arith.constant 0 : index
    %c0_37 = arith.constant 0 : index
    %67 = vector.load %arg9[%c0_36, %c0_37] : memref<384x384xbf16, #tpu.memory_space<vmem>>, vector<384x384xbf16>
    %cst_38 = arith.constant dense<0.000000e+00> : vector<256x384xf32>
    %68 = tpu.matmul %66, %67, %cst_38 {dimension_numbers = #tpu.dot_dimension_numbers<[1], [0], [0], [1], [0, 0, 1, 1], [], []>} : vector<256x384xbf16>, vector<384x384xbf16>, vector<256x384xf32> -> vector<256x384xf32>
    %69 = vector.extract_strided_slice %68 {offsets = [0, 0], sizes = [256, 128], strides = [1, 1]} : vector<256x384xf32> to vector<256x128xf32>
    %70 = vector.extract_strided_slice %68 {offsets = [0, 128], sizes = [256, 128], strides = [1, 1]} : vector<256x384xf32> to vector<256x128xf32>
    %71 = vector.extract_strided_slice %68 {offsets = [0, 256], sizes = [256, 128], strides = [1, 1]} : vector<256x384xf32> to vector<256x128xf32>
    %cst_39 = arith.constant 0.000000e+00 : f32
    %72 = vector.broadcast %cst_39 : f32 to vector<1x128xf32>
    %73 = vector.extract_strided_slice %69 {offsets = [0, 0], sizes = [255, 128], strides = [1, 1]} : vector<256x128xf32> to vector<255x128xf32>
    %74 = tpu.concatenate %72, %73 in 0 : vector<1x128xf32>, vector<255x128xf32> -> vector<256x128xf32>
    %75 = vector.extract_strided_slice %71 {offsets = [1, 0], sizes = [255, 128], strides = [1, 1]} : vector<256x128xf32> to vector<255x128xf32>
    %76 = tpu.concatenate %75, %72 in 0 : vector<255x128xf32>, vector<1x128xf32> -> vector<256x128xf32>
    %77 = tpu.iota {dimensions = array<i32: 1>} : vector<1x16x128xi32>
    %78 = vector.shape_cast %70 : vector<256x128xf32> to vector<16x16x128xf32>
    %c0_i32_40 = arith.constant 0 : i32
    %79 = vector.broadcast %c0_i32_40 : i32 to vector<1x16x128xi32>
    %80 = arith.cmpi ne, %77, %79 : vector<1x16x128xi32>
    %81 = vector.shape_cast %74 : vector<256x128xf32> to vector<16x16x128xf32>
    %cst_41 = arith.constant 0.000000e+00 : f32
    %82 = vector.shape_cast %80 : vector<1x16x128xi1> to vector<1x16x128xi1>
    %83 = vector.broadcast %82 : vector<1x16x128xi1> to vector<16x16x128xi1>
    %84 = vector.broadcast %cst_41 : f32 to vector<16x16x128xf32>
    %85 = arith.select %83, %81, %84 : vector<16x16x128xi1>, vector<16x16x128xf32>
    %86 = arith.addf %78, %85 : vector<16x16x128xf32>
    %c15_i32_42 = arith.constant 15 : i32
    %87 = vector.broadcast %c15_i32_42 : i32 to vector<1x16x128xi32>
    %88 = arith.cmpi ne, %77, %87 : vector<1x16x128xi32>
    %89 = vector.shape_cast %76 : vector<256x128xf32> to vector<16x16x128xf32>
    %cst_43 = arith.constant 0.000000e+00 : f32
    %90 = vector.shape_cast %88 : vector<1x16x128xi1> to vector<1x16x128xi1>
    %91 = vector.broadcast %90 : vector<1x16x128xi1> to vector<16x16x128xi1>
    %92 = vector.broadcast %cst_43 : f32 to vector<16x16x128xf32>
    %93 = arith.select %91, %89, %92 : vector<16x16x128xi1>, vector<16x16x128xf32>
    %94 = arith.addf %86, %93 : vector<16x16x128xf32>
    %95 = arith.addf %47, %94 : vector<16x16x128xf32>
    %c0_44 = arith.constant 0 : index
    %c0_45 = arith.constant 0 : index
    %96 = vector.load %arg10[%c0_44, %c0_45] : memref<1x128xf32, #tpu.memory_space<vmem>>, vector<1x128xf32>
    %97 = vector.shape_cast %96 : vector<1x128xf32> to vector<1x1x128xf32>
    %98 = vector.broadcast %97 : vector<1x1x128xf32> to vector<16x16x128xf32>
    %99 = arith.addf %95, %98 : vector<16x16x128xf32>
    %c0_46 = arith.constant 0 : index
    %c0_47 = arith.constant 0 : index
    %c0_48 = arith.constant 0 : index
    %c0_49 = arith.constant 0 : index
    %100 = vector.load %arg11[%c0_46, %c0_47, %c0_48, %c0_49] : memref<1x16x16x128xf32, #tpu.memory_space<vmem>>, vector<1x16x16x128xf32>
    %101 = vector.shape_cast %100 : vector<1x16x16x128xf32> to vector<16x16x128xf32>
    %102 = vector.shape_cast %99 : vector<16x16x128xf32> to vector<1x16x16x128xf32>
    tpu.vector_store %arg11[%c0_46, %c0_47, %c0_48, %c0_49], %102 {strides = array<i32>} : memref<1x16x16x128xf32, #tpu.memory_space<vmem>>, vector<1x16x16x128xf32>,
    %103 = vector.shape_cast %99 : vector<16x16x128xf32> to vector<256x128xf32>
    %cst_50 = arith.constant dense<0.000000e+00> : vector<128xf32>
    %104 = vector.multi_reduction <add>, %103, %cst_50 [0] : vector<256x128xf32> to vector<128xf32>
    %105 = vector.shape_cast %104 : vector<128xf32> to vector<1x128xf32>
    %106 = arith.mulf %103, %103 : vector<256x128xf32>
    %cst_51 = arith.constant dense<0.000000e+00> : vector<128xf32>
    %107 = vector.multi_reduction <add>, %106, %cst_51 [0] : vector<256x128xf32> to vector<128xf32>
    %108 = vector.shape_cast %107 : vector<128xf32> to vector<1x128xf32>
    %109 = tpu.concatenate %105, %108 in 0 : vector<1x128xf32>, vector<1x128xf32> -> vector<2x128xf32>
    %c0_52 = arith.constant 0 : index
    %c0_53 = arith.constant 0 : index
    %c0_54 = arith.constant 0 : index
    %c0_55 = arith.constant 0 : index
    %110 = vector.load %arg12[%c0_52, %c0_53, %c0_54, %c0_55] : memref<1x1x2x128xf32, #tpu.memory_space<vmem>>, vector<1x1x2x128xf32>
    %111 = vector.shape_cast %110 : vector<1x1x2x128xf32> to vector<2x128xf32>
    %112 = vector.shape_cast %109 : vector<2x128xf32> to vector<1x1x2x128xf32>
    tpu.vector_store %arg12[%c0_52, %c0_53, %c0_54, %c0_55], %112 {strides = array<i32>} : memref<1x1x2x128xf32, #tpu.memory_space<vmem>>, vector<1x1x2x128xf32>,
    return
  }
  func.func @transform_0(%arg0: i32, %arg1: i32) -> (i32, i32, i32, i32) {
    %c0_i32 = arith.constant 0 : i32
    %c0_i32_0 = arith.constant 0 : i32
    %c0_i32_1 = arith.constant 0 : i32
    return %arg0, %arg1, %c0_i32, %c0_i32_0 : i32, i32, i32, i32
  }
  func.func @transform_1(%arg0: i32, %arg1: i32) -> (i32, i32, i32, i32) {
    %c16_i32 = arith.constant 16 : i32
    %0 = arith.muli %arg1, %c16_i32 : i32
    %c1_i32 = arith.constant 1 : i32
    %1 = arith.subi %0, %c1_i32 : i32
    %c0_i32 = arith.constant 0 : i32
    %2 = arith.maxsi %1, %c0_i32 : i32
    %c0_i32_0 = arith.constant 0 : i32
    %c0_i32_1 = arith.constant 0 : i32
    %c0_i32_2 = arith.constant 0 : i32
    return %arg0, %2, %c0_i32_0, %c0_i32_1 : i32, i32, i32, i32
  }
  func.func @transform_2(%arg0: i32, %arg1: i32) -> (i32, i32, i32, i32) {
    %c16_i32 = arith.constant 16 : i32
    %0 = arith.muli %arg1, %c16_i32 : i32
    %c16_i32_0 = arith.constant 16 : i32
    %1 = arith.addi %0, %c16_i32_0 : i32
    %c15_i32 = arith.constant 15 : i32
    %2 = arith.minsi %1, %c15_i32 : i32
    %c0_i32 = arith.constant 0 : i32
    %c0_i32_1 = arith.constant 0 : i32
    %c0_i32_2 = arith.constant 0 : i32
    return %arg0, %2, %c0_i32, %c0_i32_1 : i32, i32, i32, i32
  }
  func.func @transform_3(%arg0: i32, %arg1: i32) -> (i32, i32, i32, i32) {
    %c0_i32 = arith.constant 0 : i32
    %c0_i32_0 = arith.constant 0 : i32
    %c0_i32_1 = arith.constant 0 : i32
    return %arg0, %arg1, %c0_i32, %c0_i32_0 : i32, i32, i32, i32
  }
  func.func @transform_4(%arg0: i32, %arg1: i32) -> (i32, i32, i32, i32) {
    %c16_i32 = arith.constant 16 : i32
    %0 = arith.muli %arg1, %c16_i32 : i32
    %c1_i32 = arith.constant 1 : i32
    %1 = arith.subi %0, %c1_i32 : i32
    %c0_i32 = arith.constant 0 : i32
    %2 = arith.maxsi %1, %c0_i32 : i32
    %c0_i32_0 = arith.constant 0 : i32
    %c0_i32_1 = arith.constant 0 : i32
    %c0_i32_2 = arith.constant 0 : i32
    return %arg0, %2, %c0_i32_0, %c0_i32_1 : i32, i32, i32, i32
  }
  func.func @transform_5(%arg0: i32, %arg1: i32) -> (i32, i32, i32, i32) {
    %c16_i32 = arith.constant 16 : i32
    %0 = arith.muli %arg1, %c16_i32 : i32
    %c16_i32_0 = arith.constant 16 : i32
    %1 = arith.addi %0, %c16_i32_0 : i32
    %c15_i32 = arith.constant 15 : i32
    %2 = arith.minsi %1, %c15_i32 : i32
    %c0_i32 = arith.constant 0 : i32
    %c0_i32_1 = arith.constant 0 : i32
    %c0_i32_2 = arith.constant 0 : i32
    return %arg0, %2, %c0_i32, %c0_i32_1 : i32, i32, i32, i32
  }
  func.func @transform_6(%arg0: i32, %arg1: i32) -> (i32, i32) {
    %c0_i32 = arith.constant 0 : i32
    %c0_i32_0 = arith.constant 0 : i32
    %c0_i32_1 = arith.constant 0 : i32
    return %c0_i32, %c0_i32_0 : i32, i32
  }
  func.func @transform_7(%arg0: i32, %arg1: i32) -> (i32, i32) {
    %c0_i32 = arith.constant 0 : i32
    %c0_i32_0 = arith.constant 0 : i32
    %c0_i32_1 = arith.constant 0 : i32
    return %c0_i32, %c0_i32_0 : i32, i32
  }
  func.func @transform_8(%arg0: i32, %arg1: i32) -> (i32, i32) {
    %c0_i32 = arith.constant 0 : i32
    %c0_i32_0 = arith.constant 0 : i32
    %c0_i32_1 = arith.constant 0 : i32
    return %c0_i32, %c0_i32_0 : i32, i32
  }
  func.func @transform_9(%arg0: i32, %arg1: i32) -> (i32, i32, i32, i32) {
    %c0_i32 = arith.constant 0 : i32
    %c0_i32_0 = arith.constant 0 : i32
    %c0_i32_1 = arith.constant 0 : i32
    return %arg0, %arg1, %c0_i32, %c0_i32_0 : i32, i32, i32, i32
  }
  func.func @transform_10(%arg0: i32, %arg1: i32) -> (i32, i32, i32, i32) {
    %c0_i32 = arith.constant 0 : i32
    %c0_i32_0 = arith.constant 0 : i32
    %c0_i32_1 = arith.constant 0 : i32
    return %arg0, %arg1, %c0_i32, %c0_i32_0 : i32, i32, i32, i32
  }
}

module attributes {stable_mosaic.version = 11 : i64} {
  func.func @_bn_relu_kernel(%arg0: i32, %arg1: memref<512x128xf32, #tpu.memory_space<vmem>>, %arg2: memref<1x128xf32, #tpu.memory_space<vmem>>, %arg3: memref<1x128xf32, #tpu.memory_space<vmem>>, %arg4: memref<512x128xf32, #tpu.memory_space<vmem>>) attributes {dimension_semantics = [#tpu.dimension_semantics<parallel>], iteration_bounds = array<i64: 1>, scalar_prefetch = 0 : i64, scratch_operands = 0 : i64, tpu.core_type = #tpu.core_type<tc>, window_params = [{transform_indices = @transform_0, window_bounds = array<i64: 512, 128>}, {pipeline_mode = #tpu.pipeline_mode<synchronous>, transform_indices = @transform_1, window_bounds = array<i64: 1, 128>}, {pipeline_mode = #tpu.pipeline_mode<synchronous>, transform_indices = @transform_2, window_bounds = array<i64: 1, 128>}, {transform_indices = @transform_3, window_bounds = array<i64: 512, 128>}]} {
    %c0 = arith.constant 0 : index
    %c0_0 = arith.constant 0 : index
    %0 = vector.load %arg1[%c0, %c0_0] : memref<512x128xf32, #tpu.memory_space<vmem>>, vector<512x128xf32>
    %c0_1 = arith.constant 0 : index
    %c0_2 = arith.constant 0 : index
    %1 = vector.load %arg2[%c0_1, %c0_2] : memref<1x128xf32, #tpu.memory_space<vmem>>, vector<1x128xf32>
    %2 = vector.broadcast %1 : vector<1x128xf32> to vector<512x128xf32>
    %3 = arith.mulf %0, %2 : vector<512x128xf32>
    %c0_3 = arith.constant 0 : index
    %c0_4 = arith.constant 0 : index
    %4 = vector.load %arg3[%c0_3, %c0_4] : memref<1x128xf32, #tpu.memory_space<vmem>>, vector<1x128xf32>
    %5 = vector.broadcast %4 : vector<1x128xf32> to vector<512x128xf32>
    %6 = arith.addf %3, %5 : vector<512x128xf32>
    %cst = arith.constant 0.000000e+00 : f32
    %7 = vector.broadcast %cst : f32 to vector<512x128xf32>
    %8 = arith.maximumf %6, %7 : vector<512x128xf32>
    %c0_5 = arith.constant 0 : index
    %c0_6 = arith.constant 0 : index
    %9 = vector.load %arg4[%c0_5, %c0_6] : memref<512x128xf32, #tpu.memory_space<vmem>>, vector<512x128xf32>
    tpu.vector_store %arg4[%c0_5, %c0_6], %8 {strides = array<i32>} : memref<512x128xf32, #tpu.memory_space<vmem>>, vector<512x128xf32>,
    return
  }
  func.func @transform_0(%arg0: i32) -> (i32, i32) {
    %c0_i32 = arith.constant 0 : i32
    %c0_i32_0 = arith.constant 0 : i32
    return %arg0, %c0_i32 : i32, i32
  }
  func.func @transform_1(%arg0: i32) -> (i32, i32) {
    %c0_i32 = arith.constant 0 : i32
    %c0_i32_0 = arith.constant 0 : i32
    %c0_i32_1 = arith.constant 0 : i32
    return %c0_i32, %c0_i32_0 : i32, i32
  }
  func.func @transform_2(%arg0: i32) -> (i32, i32) {
    %c0_i32 = arith.constant 0 : i32
    %c0_i32_0 = arith.constant 0 : i32
    %c0_i32_1 = arith.constant 0 : i32
    return %c0_i32, %c0_i32_0 : i32, i32
  }
  func.func @transform_3(%arg0: i32) -> (i32, i32) {
    %c0_i32 = arith.constant 0 : i32
    %c0_i32_0 = arith.constant 0 : i32
    return %arg0, %c0_i32 : i32, i32
  }
}

module attributes {stable_mosaic.version = 11 : i64} {
  func.func @_conv2_kernel(%arg0: i32, %arg1: i32, %arg2: memref<1x16x16x128xf32, #tpu.memory_space<vmem>>, %arg3: memref<1x1x16x128xf32, #tpu.memory_space<vmem>>, %arg4: memref<1x1x16x128xf32, #tpu.memory_space<vmem>>, %arg5: memref<1x128xf32, #tpu.memory_space<vmem>>, %arg6: memref<1x128xf32, #tpu.memory_space<vmem>>, %arg7: memref<384x384xbf16, #tpu.memory_space<vmem>>, %arg8: memref<1x128xf32, #tpu.memory_space<vmem>>, %arg9: memref<1x16x16x128xf32, #tpu.memory_space<vmem>>, %arg10: memref<1x1x2x128xf32, #tpu.memory_space<vmem>>) attributes {dimension_semantics = [#tpu.dimension_semantics<parallel>, #tpu.dimension_semantics<parallel>], iteration_bounds = array<i64: 2, 1>, scalar_prefetch = 0 : i64, scratch_operands = 0 : i64, tpu.core_type = #tpu.core_type<tc>, window_params = [{transform_indices = @transform_0, window_bounds = array<i64: 1, 16, 16, 128>}, {transform_indices = @transform_1, window_bounds = array<i64: 1, 1, 16, 128>}, {transform_indices = @transform_2, window_bounds = array<i64: 1, 1, 16, 128>}, {pipeline_mode = #tpu.pipeline_mode<synchronous>, transform_indices = @transform_3, window_bounds = array<i64: 1, 128>}, {pipeline_mode = #tpu.pipeline_mode<synchronous>, transform_indices = @transform_4, window_bounds = array<i64: 1, 128>}, {pipeline_mode = #tpu.pipeline_mode<synchronous>, transform_indices = @transform_5, window_bounds = array<i64: 384, 384>}, {pipeline_mode = #tpu.pipeline_mode<synchronous>, transform_indices = @transform_6, window_bounds = array<i64: 1, 128>}, {transform_indices = @transform_7, window_bounds = array<i64: 1, 16, 16, 128>}, {transform_indices = @transform_8, window_bounds = array<i64: 1, 1, 2, 128>}]} {
    %c0 = arith.constant 0 : index
    %c0_0 = arith.constant 0 : index
    %0 = vector.load %arg5[%c0, %c0_0] : memref<1x128xf32, #tpu.memory_space<vmem>>, vector<1x128xf32>
    %c0_1 = arith.constant 0 : index
    %c0_2 = arith.constant 0 : index
    %1 = vector.load %arg6[%c0_1, %c0_2] : memref<1x128xf32, #tpu.memory_space<vmem>>, vector<1x128xf32>
    %c0_i32 = arith.constant 0 : i32
    %2 = arith.cmpi eq, %arg1, %c0_i32 : i32
    %c0_3 = arith.constant 0 : index
    %c0_4 = arith.constant 0 : index
    %c0_5 = arith.constant 0 : index
    %c0_6 = arith.constant 0 : index
    %3 = vector.load %arg3[%c0_3, %c0_4, %c0_5, %c0_6] : memref<1x1x16x128xf32, #tpu.memory_space<vmem>>, vector<1x1x16x128xf32>
    %4 = vector.shape_cast %3 : vector<1x1x16x128xf32> to vector<1x16x128xf32>
    %5 = vector.shape_cast %0 : vector<1x128xf32> to vector<1x1x128xf32>
    %6 = vector.broadcast %5 : vector<1x1x128xf32> to vector<1x16x128xf32>
    %7 = arith.mulf %4, %6 : vector<1x16x128xf32>
    %8 = vector.shape_cast %1 : vector<1x128xf32> to vector<1x1x128xf32>
    %9 = vector.broadcast %8 : vector<1x1x128xf32> to vector<1x16x128xf32>
    %10 = arith.addf %7, %9 : vector<1x16x128xf32>
    %cst = arith.constant 0.000000e+00 : f32
    %11 = vector.broadcast %cst : f32 to vector<1x16x128xf32>
    %12 = arith.maximumf %10, %11 : vector<1x16x128xf32>
    %cst_7 = arith.constant 0.000000e+00 : f32
    %13 = vector.broadcast %cst_7 : f32 to vector<1x16x128xf32>
    %14 = arith.select %2, %13, %12 : vector<1x16x128xf32>
    %c0_i32_8 = arith.constant 0 : i32
    %15 = arith.cmpi eq, %arg1, %c0_i32_8 : i32
    %c0_9 = arith.constant 0 : index
    %c0_10 = arith.constant 0 : index
    %c0_11 = arith.constant 0 : index
    %c0_12 = arith.constant 0 : index
    %16 = vector.load %arg4[%c0_9, %c0_10, %c0_11, %c0_12] : memref<1x1x16x128xf32, #tpu.memory_space<vmem>>, vector<1x1x16x128xf32>
    %17 = vector.shape_cast %16 : vector<1x1x16x128xf32> to vector<1x16x128xf32>
    %18 = vector.shape_cast %0 : vector<1x128xf32> to vector<1x1x128xf32>
    %19 = vector.broadcast %18 : vector<1x1x128xf32> to vector<1x16x128xf32>
    %20 = arith.mulf %17, %19 : vector<1x16x128xf32>
    %21 = vector.shape_cast %1 : vector<1x128xf32> to vector<1x1x128xf32>
    %22 = vector.broadcast %21 : vector<1x1x128xf32> to vector<1x16x128xf32>
    %23 = arith.addf %20, %22 : vector<1x16x128xf32>
    %cst_13 = arith.constant 0.000000e+00 : f32
    %24 = vector.broadcast %cst_13 : f32 to vector<1x16x128xf32>
    %25 = arith.maximumf %23, %24 : vector<1x16x128xf32>
    %cst_14 = arith.constant 0.000000e+00 : f32
    %26 = vector.broadcast %cst_14 : f32 to vector<1x16x128xf32>
    %27 = arith.select %15, %26, %25 : vector<1x16x128xf32>
    %c0_15 = arith.constant 0 : index
    %c0_16 = arith.constant 0 : index
    %c0_17 = arith.constant 0 : index
    %c0_18 = arith.constant 0 : index
    %28 = vector.load %arg2[%c0_15, %c0_16, %c0_17, %c0_18] : memref<1x16x16x128xf32, #tpu.memory_space<vmem>>, vector<1x16x16x128xf32>
    %29 = vector.shape_cast %28 : vector<1x16x16x128xf32> to vector<16x16x128xf32>
    %30 = vector.shape_cast %0 : vector<1x128xf32> to vector<1x1x128xf32>
    %31 = vector.broadcast %30 : vector<1x1x128xf32> to vector<16x16x128xf32>
    %32 = arith.mulf %29, %31 : vector<16x16x128xf32>
    %33 = vector.shape_cast %1 : vector<1x128xf32> to vector<1x1x128xf32>
    %34 = vector.broadcast %33 : vector<1x1x128xf32> to vector<16x16x128xf32>
    %35 = arith.addf %32, %34 : vector<16x16x128xf32>
    %cst_19 = arith.constant 0.000000e+00 : f32
    %36 = vector.broadcast %cst_19 : f32 to vector<16x16x128xf32>
    %37 = arith.maximumf %35, %36 : vector<16x16x128xf32>
    %38 = tpu.concatenate %14, %37, %27 in 0 : vector<1x16x128xf32>, vector<16x16x128xf32>, vector<1x16x128xf32> -> vector<18x16x128xf32>
    %39 = vector.extract_strided_slice %38 {offsets = [0, 0, 0], sizes = [16, 16, 128], strides = [1, 1, 1]} : vector<18x16x128xf32> to vector<16x16x128xf32>
    %40 = vector.extract_strided_slice %38 {offsets = [1, 0, 0], sizes = [16, 16, 128], strides = [1, 1, 1]} : vector<18x16x128xf32> to vector<16x16x128xf32>
    %41 = vector.extract_strided_slice %38 {offsets = [2, 0, 0], sizes = [16, 16, 128], strides = [1, 1, 1]} : vector<18x16x128xf32> to vector<16x16x128xf32>
    %42 = tpu.concatenate %39, %40, %41 in 2 : vector<16x16x128xf32>, vector<16x16x128xf32>, vector<16x16x128xf32> -> vector<16x16x384xf32>
    %43 = vector.shape_cast %42 : vector<16x16x384xf32> to vector<256x384xf32>
    %44 = arith.truncf %43 : vector<256x384xf32> to vector<256x384xbf16>
    %c0_20 = arith.constant 0 : index
    %c0_21 = arith.constant 0 : index
    %45 = vector.load %arg7[%c0_20, %c0_21] : memref<384x384xbf16, #tpu.memory_space<vmem>>, vector<384x384xbf16>
    %cst_22 = arith.constant dense<0.000000e+00> : vector<256x384xf32>
    %46 = tpu.matmul %44, %45, %cst_22 {dimension_numbers = #tpu.dot_dimension_numbers<[1], [0], [0], [1], [0, 0, 1, 1], [], []>} : vector<256x384xbf16>, vector<384x384xbf16>, vector<256x384xf32> -> vector<256x384xf32>
    %47 = vector.extract_strided_slice %46 {offsets = [0, 0], sizes = [256, 128], strides = [1, 1]} : vector<256x384xf32> to vector<256x128xf32>
    %48 = vector.extract_strided_slice %46 {offsets = [0, 128], sizes = [256, 128], strides = [1, 1]} : vector<256x384xf32> to vector<256x128xf32>
    %49 = vector.extract_strided_slice %46 {offsets = [0, 256], sizes = [256, 128], strides = [1, 1]} : vector<256x384xf32> to vector<256x128xf32>
    %cst_23 = arith.constant 0.000000e+00 : f32
    %50 = vector.broadcast %cst_23 : f32 to vector<1x128xf32>
    %51 = vector.extract_strided_slice %47 {offsets = [0, 0], sizes = [255, 128], strides = [1, 1]} : vector<256x128xf32> to vector<255x128xf32>
    %52 = tpu.concatenate %50, %51 in 0 : vector<1x128xf32>, vector<255x128xf32> -> vector<256x128xf32>
    %53 = vector.extract_strided_slice %49 {offsets = [1, 0], sizes = [255, 128], strides = [1, 1]} : vector<256x128xf32> to vector<255x128xf32>
    %54 = tpu.concatenate %53, %50 in 0 : vector<255x128xf32>, vector<1x128xf32> -> vector<256x128xf32>
    %55 = tpu.iota {dimensions = array<i32: 1>} : vector<1x16x128xi32>
    %56 = vector.shape_cast %48 : vector<256x128xf32> to vector<16x16x128xf32>
    %c0_i32_24 = arith.constant 0 : i32
    %57 = vector.broadcast %c0_i32_24 : i32 to vector<1x16x128xi32>
    %58 = arith.cmpi ne, %55, %57 : vector<1x16x128xi32>
    %59 = vector.shape_cast %52 : vector<256x128xf32> to vector<16x16x128xf32>
    %cst_25 = arith.constant 0.000000e+00 : f32
    %60 = vector.shape_cast %58 : vector<1x16x128xi1> to vector<1x16x128xi1>
    %61 = vector.broadcast %60 : vector<1x16x128xi1> to vector<16x16x128xi1>
    %62 = vector.broadcast %cst_25 : f32 to vector<16x16x128xf32>
    %63 = arith.select %61, %59, %62 : vector<16x16x128xi1>, vector<16x16x128xf32>
    %64 = arith.addf %56, %63 : vector<16x16x128xf32>
    %c15_i32 = arith.constant 15 : i32
    %65 = vector.broadcast %c15_i32 : i32 to vector<1x16x128xi32>
    %66 = arith.cmpi ne, %55, %65 : vector<1x16x128xi32>
    %67 = vector.shape_cast %54 : vector<256x128xf32> to vector<16x16x128xf32>
    %cst_26 = arith.constant 0.000000e+00 : f32
    %68 = vector.shape_cast %66 : vector<1x16x128xi1> to vector<1x16x128xi1>
    %69 = vector.broadcast %68 : vector<1x16x128xi1> to vector<16x16x128xi1>
    %70 = vector.broadcast %cst_26 : f32 to vector<16x16x128xf32>
    %71 = arith.select %69, %67, %70 : vector<16x16x128xi1>, vector<16x16x128xf32>
    %72 = arith.addf %64, %71 : vector<16x16x128xf32>
    %c0_27 = arith.constant 0 : index
    %c0_28 = arith.constant 0 : index
    %73 = vector.load %arg8[%c0_27, %c0_28] : memref<1x128xf32, #tpu.memory_space<vmem>>, vector<1x128xf32>
    %74 = vector.shape_cast %73 : vector<1x128xf32> to vector<1x1x128xf32>
    %75 = vector.broadcast %74 : vector<1x1x128xf32> to vector<16x16x128xf32>
    %76 = arith.addf %72, %75 : vector<16x16x128xf32>
    %c0_29 = arith.constant 0 : index
    %c0_30 = arith.constant 0 : index
    %c0_31 = arith.constant 0 : index
    %c0_32 = arith.constant 0 : index
    %77 = vector.load %arg9[%c0_29, %c0_30, %c0_31, %c0_32] : memref<1x16x16x128xf32, #tpu.memory_space<vmem>>, vector<1x16x16x128xf32>
    %78 = vector.shape_cast %77 : vector<1x16x16x128xf32> to vector<16x16x128xf32>
    %79 = vector.shape_cast %76 : vector<16x16x128xf32> to vector<1x16x16x128xf32>
    tpu.vector_store %arg9[%c0_29, %c0_30, %c0_31, %c0_32], %79 {strides = array<i32>} : memref<1x16x16x128xf32, #tpu.memory_space<vmem>>, vector<1x16x16x128xf32>,
    %80 = vector.shape_cast %76 : vector<16x16x128xf32> to vector<256x128xf32>
    %cst_33 = arith.constant dense<0.000000e+00> : vector<128xf32>
    %81 = vector.multi_reduction <add>, %80, %cst_33 [0] : vector<256x128xf32> to vector<128xf32>
    %82 = vector.shape_cast %81 : vector<128xf32> to vector<1x128xf32>
    %83 = arith.mulf %80, %80 : vector<256x128xf32>
    %cst_34 = arith.constant dense<0.000000e+00> : vector<128xf32>
    %84 = vector.multi_reduction <add>, %83, %cst_34 [0] : vector<256x128xf32> to vector<128xf32>
    %85 = vector.shape_cast %84 : vector<128xf32> to vector<1x128xf32>
    %86 = tpu.concatenate %82, %85 in 0 : vector<1x128xf32>, vector<1x128xf32> -> vector<2x128xf32>
    %c0_35 = arith.constant 0 : index
    %c0_36 = arith.constant 0 : index
    %c0_37 = arith.constant 0 : index
    %c0_38 = arith.constant 0 : index
    %87 = vector.load %arg10[%c0_35, %c0_36, %c0_37, %c0_38] : memref<1x1x2x128xf32, #tpu.memory_space<vmem>>, vector<1x1x2x128xf32>
    %88 = vector.shape_cast %87 : vector<1x1x2x128xf32> to vector<2x128xf32>
    %89 = vector.shape_cast %86 : vector<2x128xf32> to vector<1x1x2x128xf32>
    tpu.vector_store %arg10[%c0_35, %c0_36, %c0_37, %c0_38], %89 {strides = array<i32>} : memref<1x1x2x128xf32, #tpu.memory_space<vmem>>, vector<1x1x2x128xf32>,
    return
  }
  func.func @transform_0(%arg0: i32, %arg1: i32) -> (i32, i32, i32, i32) {
    %c0_i32 = arith.constant 0 : i32
    %c0_i32_0 = arith.constant 0 : i32
    %c0_i32_1 = arith.constant 0 : i32
    return %arg0, %arg1, %c0_i32, %c0_i32_0 : i32, i32, i32, i32
  }
  func.func @transform_1(%arg0: i32, %arg1: i32) -> (i32, i32, i32, i32) {
    %c16_i32 = arith.constant 16 : i32
    %0 = arith.muli %arg1, %c16_i32 : i32
    %c1_i32 = arith.constant 1 : i32
    %1 = arith.subi %0, %c1_i32 : i32
    %c0_i32 = arith.constant 0 : i32
    %2 = arith.maxsi %1, %c0_i32 : i32
    %c0_i32_0 = arith.constant 0 : i32
    %c0_i32_1 = arith.constant 0 : i32
    %c0_i32_2 = arith.constant 0 : i32
    return %arg0, %2, %c0_i32_0, %c0_i32_1 : i32, i32, i32, i32
  }
  func.func @transform_2(%arg0: i32, %arg1: i32) -> (i32, i32, i32, i32) {
    %c16_i32 = arith.constant 16 : i32
    %0 = arith.muli %arg1, %c16_i32 : i32
    %c16_i32_0 = arith.constant 16 : i32
    %1 = arith.addi %0, %c16_i32_0 : i32
    %c15_i32 = arith.constant 15 : i32
    %2 = arith.minsi %1, %c15_i32 : i32
    %c0_i32 = arith.constant 0 : i32
    %c0_i32_1 = arith.constant 0 : i32
    %c0_i32_2 = arith.constant 0 : i32
    return %arg0, %2, %c0_i32, %c0_i32_1 : i32, i32, i32, i32
  }
  func.func @transform_3(%arg0: i32, %arg1: i32) -> (i32, i32) {
    %c0_i32 = arith.constant 0 : i32
    %c0_i32_0 = arith.constant 0 : i32
    %c0_i32_1 = arith.constant 0 : i32
    return %c0_i32, %c0_i32_0 : i32, i32
  }
  func.func @transform_4(%arg0: i32, %arg1: i32) -> (i32, i32) {
    %c0_i32 = arith.constant 0 : i32
    %c0_i32_0 = arith.constant 0 : i32
    %c0_i32_1 = arith.constant 0 : i32
    return %c0_i32, %c0_i32_0 : i32, i32
  }
  func.func @transform_5(%arg0: i32, %arg1: i32) -> (i32, i32) {
    %c0_i32 = arith.constant 0 : i32
    %c0_i32_0 = arith.constant 0 : i32
    %c0_i32_1 = arith.constant 0 : i32
    return %c0_i32, %c0_i32_0 : i32, i32
  }
  func.func @transform_6(%arg0: i32, %arg1: i32) -> (i32, i32) {
    %c0_i32 = arith.constant 0 : i32
    %c0_i32_0 = arith.constant 0 : i32
    %c0_i32_1 = arith.constant 0 : i32
    return %c0_i32, %c0_i32_0 : i32, i32
  }
  func.func @transform_7(%arg0: i32, %arg1: i32) -> (i32, i32, i32, i32) {
    %c0_i32 = arith.constant 0 : i32
    %c0_i32_0 = arith.constant 0 : i32
    %c0_i32_1 = arith.constant 0 : i32
    return %arg0, %arg1, %c0_i32, %c0_i32_0 : i32, i32, i32, i32
  }
  func.func @transform_8(%arg0: i32, %arg1: i32) -> (i32, i32, i32, i32) {
    %c0_i32 = arith.constant 0 : i32
    %c0_i32_0 = arith.constant 0 : i32
    %c0_i32_1 = arith.constant 0 : i32
    return %arg0, %arg1, %c0_i32, %c0_i32_0 : i32, i32, i32, i32
  }
}

</mosaic_0001>

<llo_original>
// kernel: decoder_block_forward.4
$region0: #{decoder_block_forward.4}
  #allocation0 [shape = 'u32[]', space=smem, size = 0x4, offset = 0x4, fixed_abs, tag = 'smem constant byte address 0x4 - core index']
  #allocation1 [shape = 'u32[144,128]{1,0:T(1,128)}', space=vmem, size = 0x12000, scoped, tag = 'internal scratch']
  %s0 = inlined_call_operand.vmem [shape: f32[2,8,8,256], index: 0, kind: input, shape index: {}]
  %s1 = inlined_call_operand.vmem [shape: bf16[256,512], index: 1, kind: input, shape index: {}]
  %s2 = inlined_call_operand.vmem [shape: f32[1,128], index: 2, kind: input, shape index: {}]
  %s3 = inlined_call_operand.vmem [shape: bf16[2,16,16,128], index: 3, kind: output, shape index: {}]
  %s4 = sld [smem:[#allocation0]]
  $region45: #{decoder_block_forward.4} parent=0
    _
  %s6 = ssub.s32 1, %s4
  %s7 = scalar_select 0, %s6, %s4
  loop: start=0, step=1, limit=4
  $region2: #{decoder_block_forward.4} parent=0 // loop_pre_header
    _
  $region3: #{decoder_block_forward.4} parent=0 // loop_header
    %s9 = sphi 0, %s13
    %p10 = scmp.ge.s32.totalorder %s9, 4
    %s16 = sphi 0, %s28
    %s17 = sphi 0, %s24
    %s18 = sphi 0, %s16
    %s19 = sphi 0, %s17
    %s20 = sphi 0, %s18
    %s21 = sphi 0, %s19
    %s33 = sphi 0, %s35
    %s36 = sphi 0, %s33
    %s37 = sphi 0, %s36
    %s53 = sphi 0, %s37
    %s57 = sphi 0, %s57
    %s59 = sphi 0, %s57
    %s60 = sphi 0, %s59
    %s74 = sphi 0, %s60
    %s78 = sphi 0, %s78
    %s80 = sphi 0, %s78
    %s81 = sphi 0, %s80
    %s95 = sphi 0, %s81
    %s103 = sphi 0, %s105
    %s106 = sphi 0, %s103
    %s107 = sphi 0, %s106
    %s123 = sphi 0, %s107
  $region4: #{decoder_block_forward.4} parent=0 // loop_header_branch
    %12 = sbr.rel (%p10) target = $region8
  $region5: #{decoder_block_forward.4} parent=0 // loop_body
    %s14 = ssub.s32 %s9, 1
    %s15 = ssub.s32 %s9, 2
    %s22 = sadd.s32 1, %s17
    %p23 = scmp.ge.s32.totalorder %s22, 1
    %s24 = scalar_select %p23, 0, %s22
    %s25 = sadd.s32 1, %s16
    %s26 = scalar_select %p23, %s25, %s16
    %p27 = scmp.ge.s32.totalorder %s26, 2
    %s28 = scalar_select %p27, 0, %s26
    %s29 = ssub.s32 %s16, %s28
    %s30 = ssub.s32 %s17, %s24
    %s31 = sor.u32 %s29, %s30
    %p32 = scmp.eq.s32.totalorder %s31, 0
    %s34 = sadd.s32 %s33, 1
    %s35 = scalar_select %p32, %s33, %s34
    %p38 = pneg %p32
    %p39 = scmp.eq.s32.totalorder %s9, 1
    %p40 = por %p38, %p39
    %p41 = scmp.ne.s32.totalorder %s33, %s36
    %p42 = scmp.eq.s32.totalorder %s9, 0
    %p43 = por %p41, %p42
    %p44 = scmp.ne.s32.totalorder %s33, %s36
    %p45 = scmp.eq.s32.totalorder %s14, 1
    %p46 = por %p44, %p45
    %p47 = scmp.ne.s32.totalorder %s36, %s37
    %p48 = scmp.eq.s32.totalorder %s14, 0
    %p49 = por %p47, %p48
    %p50 = scmp.ne.s32.totalorder %s36, %s37
    %p51 = scmp.eq.s32.totalorder %s15, 1
    %p52 = por %p50, %p51
    %p54 = scmp.ne.s32.totalorder %s37, %s53
    %p55 = scmp.eq.s32.totalorder %s15, 0
    %p56 = por %p54, %p55
    %s58 = sadd.s32 %s57, 1
    %p61 = scmp.eq.s32.totalorder %s9, 1
    %p62 = scmp.ne.s32.totalorder %s57, %s59
    %p63 = scmp.eq.s32.totalorder %s9, 0
    %p64 = por %p62, %p63
    %p65 = scmp.ne.s32.totalorder %s57, %s59
    %p66 = scmp.eq.s32.totalorder %s14, 1
    %p67 = por %p65, %p66
    %p68 = scmp.ne.s32.totalorder %s59, %s60
    %p69 = scmp.eq.s32.totalorder %s14, 0
    %p70 = por %p68, %p69
    %p71 = scmp.ne.s32.totalorder %s59, %s60
    %p72 = scmp.eq.s32.totalorder %s15, 1
    %p73 = por %p71, %p72
    %p75 = scmp.ne.s32.totalorder %s60, %s74
    %p76 = scmp.eq.s32.totalorder %s15, 0
    %p77 = por %p75, %p76
    %s79 = sadd.s32 %s78, 1
    %p82 = scmp.eq.s32.totalorder %s9, 1
    %p83 = scmp.ne.s32.totalorder %s78, %s80
    %p84 = scmp.eq.s32.totalorder %s9, 0
    %p85 = por %p83, %p84
    %p86 = scmp.ne.s32.totalorder %s78, %s80
    %p87 = scmp.eq.s32.totalorder %s14, 1
    %p88 = por %p86, %p87
    %p89 = scmp.ne.s32.totalorder %s80, %s81
    %p90 = scmp.eq.s32.totalorder %s14, 0
    %p91 = por %p89, %p90
    %p92 = scmp.ne.s32.totalorder %s80, %s81
    %p93 = scmp.eq.s32.totalorder %s15, 1
    %p94 = por %p92, %p93
    %p96 = scmp.ne.s32.totalorder %s81, %s95
    %p97 = scmp.eq.s32.totalorder %s15, 0
    %p98 = por %p96, %p97
    %s99 = ssub.s32 %s16, %s28
    %s100 = ssub.s32 %s17, %s24
    %s101 = sor.u32 %s99, %s100
    %p102 = scmp.eq.s32.totalorder %s101, 0
    %s104 = sadd.s32 %s103, 1
    %s105 = scalar_select %p102, %s103, %s104
    %p108 = pneg %p102
    %p109 = scmp.eq.s32.totalorder %s9, 1
    %p110 = por %p108, %p109
    %p111 = scmp.ne.s32.totalorder %s103, %s106
    %p112 = scmp.eq.s32.totalorder %s9, 0
    %p113 = por %p111, %p112
    %p114 = scmp.ne.s32.totalorder %s103, %s106
    %p115 = scmp.eq.s32.totalorder %s14, 1
    %p116 = por %p114, %p115
    %p117 = scmp.ne.s32.totalorder %s106, %s107
    %p118 = scmp.eq.s32.totalorder %s14, 0
    %p119 = por %p117, %p118
    %p120 = scmp.ne.s32.totalorder %s106, %s107
    %p121 = scmp.eq.s32.totalorder %s15, 1
    %p122 = por %p120, %p121
    %p124 = scmp.ne.s32.totalorder %s107, %s123
    %p125 = scmp.eq.s32.totalorder %s15, 0
    %p126 = por %p124, %p125
    %p127 = scmp.le.s32.totalorder 1, %s9
    %p128 = scmp.lt.s32.totalorder %s9, 3
    %p129 = pnand %p127, %p128
    %p130 = pneg %p129
    // Predicated region
    $region9: #{decoder_block_forward.4} parent=5 // pred_check
      _
    $region10: #{decoder_block_forward.4} parent=5 // pred_check_branch
      %132 = sbr.rel (%p129) target = $region12
    $region11: #{decoder_block_forward.4} parent=5 // pred_region
      %s133 = ssub.s32 %s9, 1
      // Predicated region
      $region13: #{decoder_block_forward.4} parent=11 // pred_check
        %p134 = pneg %p70
      $region14: #{decoder_block_forward.4} parent=11 // pred_check_branch
        %136 = sbr.rel (%p134) target = $region16
      $region15: #{decoder_block_forward.4} parent=11 // pred_region
        _
      $region16: #{decoder_block_forward.4} parent=11 // pred_fallthru
        _
      // Predicated region
      $region17: #{decoder_block_forward.4} parent=11 // pred_check
        %p137 = pneg %p91
      $region18: #{decoder_block_forward.4} parent=11 // pred_check_branch
        %139 = sbr.rel (%p137) target = $region20
      $region19: #{decoder_block_forward.4} parent=11 // pred_region
        _
      $region20: #{decoder_block_forward.4} parent=11 // pred_fallthru
        _
    $region12: #{decoder_block_forward.4} parent=5 // pred_fallthru
      _
    %p140 = scmp.lt.s32.totalorder %s9, 2
    // Predicated region
    $region21: #{decoder_block_forward.4} parent=5 // pred_check
      %p141 = pneg %p140
    $region22: #{decoder_block_forward.4} parent=5 // pred_check_branch
      %143 = sbr.rel (%p141) target = $region24
    $region23: #{decoder_block_forward.4} parent=5 // pred_region
      // Predicated region
      $region25: #{decoder_block_forward.4} parent=23 // pred_check
        %p144 = pneg %p43
      $region26: #{decoder_block_forward.4} parent=23 // pred_check_branch
        %146 = sbr.rel (%p144) target = $region28
      $region27: #{decoder_block_forward.4} parent=23 // pred_region
        %s147 = smul.u32 8, %s17
        %p148 = scmp.lt.s32.totalorder %s16, 1
        %s149 = scalar_select %p148, %s16, 1
        %p150 = scmp.lt.s32.totalorder %s147, 7
        %s151 = scalar_select %p150, %s147, 7
        %s152 = smul.addr %s151, 2
        %s153 = smul.addr %s149, 16
        %s154 = sadd.s32 %s152, %s153
        %s155 = smul.addr %s154, 8
        %s156 = scalar_lea.vmem %s0, %s155
        %s157 = smul.u32 8, %s17
      $region28: #{decoder_block_forward.4} parent=23 // pred_fallthru
        _
    $region24: #{decoder_block_forward.4} parent=5 // pred_fallthru
      _
    %p158 = scmp.le.s32.totalorder 1, %s9
    %p159 = scmp.lt.s32.totalorder %s9, 3
    %p160 = pnand %p158, %p159
    %p161 = pneg %p160
    // Predicated region
    $region29: #{decoder_block_forward.4} parent=5 // pred_check
      _
    $region30: #{decoder_block_forward.4} parent=5 // pred_check_branch
      %163 = sbr.rel (%p160) target = $region32
    $region31: #{decoder_block_forward.4} parent=5 // pred_region
      %s164 = ssub.s32 %s9, 1
      %s165 = smul.u32 8, %s19
      %p166 = scmp.lt.s32.totalorder %s18, 1
      %s167 = scalar_select %p166, %s18, 1
      %p168 = scmp.lt.s32.totalorder %s165, 7
      %s169 = scalar_select %p168, %s165, 7
      %s170 = smul.addr %s169, 2
      %s171 = smul.addr %s167, 16
      %s172 = sadd.s32 %s170, %s171
      %s173 = smul.addr %s172, 8
      %s174 = scalar_lea.vmem %s0, %s173
      %p175 = pneg %p49
      %p176 = pneg %p46
      %p177 = pneg %p70
      %p178 = pneg %p67
      %p179 = pneg %p91
      %p180 = pneg %p88
      %p181 = pneg %p119
      %p182 = pneg %p116
      %s183 = smul.u32 16, %s19
      %p184 = scmp.lt.s32.totalorder %s18, 1
      %s185 = scalar_select %p184, %s18, 1
      %p186 = scmp.lt.s32.totalorder %s183, 15
      %s187 = scalar_select %p186, %s183, 15
      %s188 = smul.addr %s187, 2
      %s189 = smul.addr %s185, 32
      %s190 = sadd.s32 %s188, %s189
      %s191 = smul.addr %s190, 4
      %s192 = scalar_lea.vmem %s3, %s191
      %s193 = smul.u32 8, %s19
      %p194 = scmp.lt.s32.totalorder %s18, 1
      %s195 = scalar_select %p194, %s18, 1
      %p196 = scmp.lt.s32.totalorder %s193, 7
      %s197 = scalar_select %p196, %s193, 7
      %s198 = smul.addr %s197, 2
      %s199 = smul.addr %s195, 16
      %s200 = sadd.s32 %s198, %s199
      %s201 = smul.addr %s200, 8
      %s202 = scalar_lea.vmem %s0, %s201
      %s203 = smul.u32 8, %s19
      %s204 = smul.u32 16, %s19
      %p205 = scmp.lt.s32.totalorder %s18, 1
      %s206 = scalar_select %p205, %s18, 1
      %p207 = scmp.lt.s32.totalorder %s204, 15
      %s208 = scalar_select %p207, %s204, 15
      %s209 = smul.addr %s208, 2
      %s210 = smul.addr %s206, 32
      %s211 = sadd.s32 %s209, %s210
      %s212 = smul.addr %s211, 4
      %s213 = scalar_lea.vmem %s3, %s212
      %s214 = smul.u32 16, %s19
      %v215 = vld [vmem:[%s202] sm:$0xff]
      %v216 = vld [vmem:[%s202 + $0x8] sm:$0xff]
      %v217 = vld [vmem:[%s202 + $0x10] sm:$0xff]
      %v218 = vld [vmem:[%s202 + $0x18] sm:$0xff]
      %v219 = vld [vmem:[%s202 + $0x20] sm:$0xff]
      %v220 = vld [vmem:[%s202 + $0x28] sm:$0xff]
      %v221 = vld [vmem:[%s202 + $0x30] sm:$0xff]
      %v222 = vld [vmem:[%s202 + $0x38] sm:$0xff]
      %v223 = vld [vmem:[%s202 + $0x40] sm:$0xff]
      %v224 = vld [vmem:[%s202 + $0x48] sm:$0xff]
      %v225 = vld [vmem:[%s202 + $0x50] sm:$0xff]
      %v226 = vld [vmem:[%s202 + $0x58] sm:$0xff]
      %v227 = vld [vmem:[%s202 + $0x60] sm:$0xff]
      %v228 = vld [vmem:[%s202 + $0x68] sm:$0xff]
      %v229 = vld [vmem:[%s202 + $0x70] sm:$0xff]
      %v230 = vld [vmem:[%s202 + $0x78] sm:$0xff]
      %v231 = vpack.c.bf16 %v217, %v215
      %v232 = vpack.c.bf16 %v218, %v216
      %v233 = vpack.c.bf16 %v221, %v219
      %v234 = vpack.c.bf16 %v222, %v220
      %v235 = vpack.c.bf16 %v225, %v223
      %v236 = vpack.c.bf16 %v226, %v224
      %v237 = vpack.c.bf16 %v229, %v227
      %v238 = vpack.c.bf16 %v230, %v228
      %v239 = vld [vmem:[%s1] sm:$0xff]
      %v240 = vld [vmem:[%s1 + $0x8] sm:$0xff]
      %v241 = vld [vmem:[%s1 + $0x10] sm:$0xff]
      %v242 = vld [vmem:[%s1 + $0x18] sm:$0xff]
      %v243 = vld [vmem:[%s1 + $0x20] sm:$0xff]
      %v244 = vld [vmem:[%s1 + $0x28] sm:$0xff]
      %v245 = vld [vmem:[%s1 + $0x30] sm:$0xff]
      %v246 = vld [vmem:[%s1 + $0x38] sm:$0xff]
      %v247 = vld [vmem:[%s1 + $0x40] sm:$0xff]
      %v248 = vld [vmem:[%s1 + $0x48] sm:$0xff]
      %v249 = vld [vmem:[%s1 + $0x50] sm:$0xff]
      %v250 = vld [vmem:[%s1 + $0x58] sm:$0xff]
      %v251 = vld [vmem:[%s1 + $0x60] sm:$0xff]
      %v252 = vld [vmem:[%s1 + $0x68] sm:$0xff]
      %v253 = vld [vmem:[%s1 + $0x70] sm:$0xff]
      %v254 = vld [vmem:[%s1 + $0x78] sm:$0xff]
      %v255 = vld [vmem:[%s1 + $0x80] sm:$0xff]
      %v256 = vld [vmem:[%s1 + $0x88] sm:$0xff]
      %v257 = vld [vmem:[%s1 + $0x90] sm:$0xff]
      %v258 = vld [vmem:[%s1 + $0x98] sm:$0xff]
      %v259 = vld [vmem:[%s1 + $0xa0] sm:$0xff]
      %v260 = vld [vmem:[%s1 + $0xa8] sm:$0xff]
      %v261 = vld [vmem:[%s1 + $0xb0] sm:$0xff]
      %v262 = vld [vmem:[%s1 + $0xb8] sm:$0xff]
      %v263 = vld [vmem:[%s1 + $0xc0] sm:$0xff]
      %v264 = vld [vmem:[%s1 + $0xc8] sm:$0xff]
      %v265 = vld [vmem:[%s1 + $0xd0] sm:$0xff]
      %v266 = vld [vmem:[%s1 + $0xd8] sm:$0xff]
      %v267 = vld [vmem:[%s1 + $0xe0] sm:$0xff]
      %v268 = vld [vmem:[%s1 + $0xe8] sm:$0xff]
      %v269 = vld [vmem:[%s1 + $0xf0] sm:$0xff]
      %v270 = vld [vmem:[%s1 + $0xf8] sm:$0xff]
      %v271 = vld [vmem:[%s1 + $0x100] sm:$0xff]
      %v272 = vld [vmem:[%s1 + $0x108] sm:$0xff]
      %v273 = vld [vmem:[%s1 + $0x110] sm:$0xff]
      %v274 = vld [vmem:[%s1 + $0x118] sm:$0xff]
      %v275 = vld [vmem:[%s1 + $0x120] sm:$0xff]
      %v276 = vld [vmem:[%s1 + $0x128] sm:$0xff]
      %v277 = vld [vmem:[%s1 + $0x130] sm:$0xff]
      %v278 = vld [vmem:[%s1 + $0x138] sm:$0xff]
      %v279 = vld [vmem:[%s1 + $0x140] sm:$0xff]
      %v280 = vld [vmem:[%s1 + $0x148] sm:$0xff]
      %v281 = vld [vmem:[%s1 + $0x150] sm:$0xff]
      %v282 = vld [vmem:[%s1 + $0x158] sm:$0xff]
      %v283 = vld [vmem:[%s1 + $0x160] sm:$0xff]
      %v284 = vld [vmem:[%s1 + $0x168] sm:$0xff]
      %v285 = vld [vmem:[%s1 + $0x170] sm:$0xff]
      %v286 = vld [vmem:[%s1 + $0x178] sm:$0xff]
      %v287 = vld [vmem:[%s1 + $0x180] sm:$0xff]
      %v288 = vld [vmem:[%s1 + $0x188] sm:$0xff]
      %v289 = vld [vmem:[%s1 + $0x190] sm:$0xff]
      %v290 = vld [vmem:[%s1 + $0x198] sm:$0xff]
      %v291 = vld [vmem:[%s1 + $0x1a0] sm:$0xff]
      %v292 = vld [vmem:[%s1 + $0x1a8] sm:$0xff]
      %v293 = vld [vmem:[%s1 + $0x1b0] sm:$0xff]
      %v294 = vld [vmem:[%s1 + $0x1b8] sm:$0xff]
      %v295 = vld [vmem:[%s1 + $0x1c0] sm:$0xff]
      %v296 = vld [vmem:[%s1 + $0x1c8] sm:$0xff]
      %v297 = vld [vmem:[%s1 + $0x1d0] sm:$0xff]
      %v298 = vld [vmem:[%s1 + $0x1d8] sm:$0xff]
      %v299 = vld [vmem:[%s1 + $0x1e0] sm:$0xff]
      %v300 = vld [vmem:[%s1 + $0x1e8] sm:$0xff]
      %v301 = vld [vmem:[%s1 + $0x1f0] sm:$0xff]
      %v302 = vld [vmem:[%s1 + $0x1f8] sm:$0xff]
      %v367 = vunpack.c.l.b16 %v239
      %v368 = vunpack.c.h.b16 %v239
      %v369 = vunpack.c.l.b16 %v240
      %v370 = vunpack.c.h.b16 %v240
      %v371 = vunpack.c.l.b16 %v241
      %v372 = vunpack.c.h.b16 %v241
      %v373 = vunpack.c.l.b16 %v242
      %v374 = vunpack.c.h.b16 %v242
      %v375 = vunpack.c.l.b16 %v243
      %v376 = vunpack.c.h.b16 %v243
      %v377 = vunpack.c.l.b16 %v244
      %v378 = vunpack.c.h.b16 %v244
      %v379 = vunpack.c.l.b16 %v245
      %v380 = vunpack.c.h.b16 %v245
      %v381 = vunpack.c.l.b16 %v246
      %v382 = vunpack.c.h.b16 %v246
      %v383 = vunpack.c.l.b16 %v247
      %v384 = vunpack.c.h.b16 %v247
      %v385 = vunpack.c.l.b16 %v248
      %v386 = vunpack.c.h.b16 %v248
      %v387 = vunpack.c.l.b16 %v249
      %v388 = vunpack.c.h.b16 %v249
      %v389 = vunpack.c.l.b16 %v250
      %v390 = vunpack.c.h.b16 %v250
      %v391 = vunpack.c.l.b16 %v251
      %v392 = vunpack.c.h.b16 %v251
      %v393 = vunpack.c.l.b16 %v252
      %v394 = vunpack.c.h.b16 %v252
      %v395 = vunpack.c.l.b16 %v253
      %v396 = vunpack.c.h.b16 %v253
      %v397 = vunpack.c.l.b16 %v254
      %v398 = vunpack.c.h.b16 %v254
      %v399 = vunpack.c.l.b16 %v255
      %v400 = vunpack.c.h.b16 %v255
      %v401 = vunpack.c.l.b16 %v256
      %v402 = vunpack.c.h.b16 %v256
      %v403 = vunpack.c.l.b16 %v257
      %v404 = vunpack.c.h.b16 %v257
      %v405 = vunpack.c.l.b16 %v258
      %v406 = vunpack.c.h.b16 %v258
      %v407 = vunpack.c.l.b16 %v259
      %v408 = vunpack.c.h.b16 %v259
      %v409 = vunpack.c.l.b16 %v260
      %v410 = vunpack.c.h.b16 %v260
      %v411 = vunpack.c.l.b16 %v261
      %v412 = vunpack.c.h.b16 %v261
      %v413 = vunpack.c.l.b16 %v262
      %v414 = vunpack.c.h.b16 %v262
      %v415 = vunpack.c.l.b16 %v263
      %v416 = vunpack.c.h.b16 %v263
      %v417 = vunpack.c.l.b16 %v264
      %v418 = vunpack.c.h.b16 %v264
      %v419 = vunpack.c.l.b16 %v265
      %v420 = vunpack.c.h.b16 %v265
      %v421 = vunpack.c.l.b16 %v266
      %v422 = vunpack.c.h.b16 %v266
      %v423 = vunpack.c.l.b16 %v267
      %v424 = vunpack.c.h.b16 %v267
      %v425 = vunpack.c.l.b16 %v268
      %v426 = vunpack.c.h.b16 %v268
      %v427 = vunpack.c.l.b16 %v269
      %v428 = vunpack.c.h.b16 %v269
      %v429 = vunpack.c.l.b16 %v270
      %v430 = vunpack.c.h.b16 %v270
      %v431 = vunpack.c.l.b16 %v271
      %v432 = vunpack.c.h.b16 %v271
      %v433 = vunpack.c.l.b16 %v272
      %v434 = vunpack.c.h.b16 %v272
      %v435 = vunpack.c.l.b16 %v273
      %v436 = vunpack.c.h.b16 %v273
      %v437 = vunpack.c.l.b16 %v274
      %v438 = vunpack.c.h.b16 %v274
      %v439 = vunpack.c.l.b16 %v275
      %v440 = vunpack.c.h.b16 %v275
      %v441 = vunpack.c.l.b16 %v276
      %v442 = vunpack.c.h.b16 %v276
      %v443 = vunpack.c.l.b16 %v277
      %v444 = vunpack.c.h.b16 %v277
      %v445 = vunpack.c.l.b16 %v278
      %v446 = vunpack.c.h.b16 %v278
      %v447 = vunpack.c.l.b16 %v279
      %v448 = vunpack.c.h.b16 %v279
      %v449 = vunpack.c.l.b16 %v280
      %v450 = vunpack.c.h.b16 %v280
      %v451 = vunpack.c.l.b16 %v281
      %v452 = vunpack.c.h.b16 %v281
      %v453 = vunpack.c.l.b16 %v282
      %v454 = vunpack.c.h.b16 %v282
      %v455 = vunpack.c.l.b16 %v283
      %v456 = vunpack.c.h.b16 %v283
      %v457 = vunpack.c.l.b16 %v284
      %v458 = vunpack.c.h.b16 %v284
      %v459 = vunpack.c.l.b16 %v285
      %v460 = vunpack.c.h.b16 %v285
      %v461 = vunpack.c.l.b16 %v286
      %v462 = vunpack.c.h.b16 %v286
      %v463 = vunpack.c.l.b16 %v287
      %v464 = vunpack.c.h.b16 %v287
      %v465 = vunpack.c.l.b16 %v288
      %v466 = vunpack.c.h.b16 %v288
      %v467 = vunpack.c.l.b16 %v289
      %v468 = vunpack.c.h.b16 %v289
      %v469 = vunpack.c.l.b16 %v290
      %v470 = vunpack.c.h.b16 %v290
      %v471 = vunpack.c.l.b16 %v291
      %v472 = vunpack.c.h.b16 %v291
      %v473 = vunpack.c.l.b16 %v292
      %v474 = vunpack.c.h.b16 %v292
      %v475 = vunpack.c.l.b16 %v293
      %v476 = vunpack.c.h.b16 %v293
      %v477 = vunpack.c.l.b16 %v294
      %v478 = vunpack.c.h.b16 %v294
      %v479 = vunpack.c.l.b16 %v295
      %v480 = vunpack.c.h.b16 %v295
      %v481 = vunpack.c.l.b16 %v296
      %v482 = vunpack.c.h.b16 %v296
      %v483 = vunpack.c.l.b16 %v297
      %v484 = vunpack.c.h.b16 %v297
      %v485 = vunpack.c.l.b16 %v298
      %v486 = vunpack.c.h.b16 %v298
      %v487 = vunpack.c.l.b16 %v299
      %v488 = vunpack.c.h.b16 %v299
      %v489 = vunpack.c.l.b16 %v300
      %v490 = vunpack.c.h.b16 %v300
      %v491 = vunpack.c.l.b16 %v301
      %v492 = vunpack.c.h.b16 %v301
      %v493 = vunpack.c.l.b16 %v302
      %v494 = vunpack.c.h.b16 %v302
      %v495 = vpack.c.b16 %v371, %v367
      %v496 = vpack.c.b16 %v372, %v368
      %v497 = vpack.c.b16 %v373, %v369
      %v498 = vpack.c.b16 %v374, %v370
      %v499 = vpack.c.b16 %v379, %v375
      %v500 = vpack.c.b16 %v380, %v376
      %v501 = vpack.c.b16 %v381, %v377
      %v502 = vpack.c.b16 %v382, %v378
      %v503 = vpack.c.b16 %v387, %v383
      %v504 = vpack.c.b16 %v388, %v384
      %v505 = vpack.c.b16 %v389, %v385
      %v506 = vpack.c.b16 %v390, %v386
      %v507 = vpack.c.b16 %v395, %v391
      %v508 = vpack.c.b16 %v396, %v392
      %v509 = vpack.c.b16 %v397, %v393
      %v510 = vpack.c.b16 %v398, %v394
      %v511 = vpack.c.b16 %v403, %v399
      %v512 = vpack.c.b16 %v404, %v400
      %v513 = vpack.c.b16 %v405, %v401
      %v514 = vpack.c.b16 %v406, %v402
      %v515 = vpack.c.b16 %v411, %v407
      %v516 = vpack.c.b16 %v412, %v408
      %v517 = vpack.c.b16 %v413, %v409
      %v518 = vpack.c.b16 %v414, %v410
      %v519 = vpack.c.b16 %v419, %v415
      %v520 = vpack.c.b16 %v420, %v416
      %v521 = vpack.c.b16 %v421, %v417
      %v522 = vpack.c.b16 %v422, %v418
      %v523 = vpack.c.b16 %v427, %v423
      %v524 = vpack.c.b16 %v428, %v424
      %v525 = vpack.c.b16 %v429, %v425
      %v526 = vpack.c.b16 %v430, %v426
      %v527 = vpack.c.b16 %v435, %v431
      %v528 = vpack.c.b16 %v436, %v432
      %v529 = vpack.c.b16 %v437, %v433
      %v530 = vpack.c.b16 %v438, %v434
      %v531 = vpack.c.b16 %v443, %v439
      %v532 = vpack.c.b16 %v444, %v440
      %v533 = vpack.c.b16 %v445, %v441
      %v534 = vpack.c.b16 %v446, %v442
      %v535 = vpack.c.b16 %v451, %v447
      %v536 = vpack.c.b16 %v452, %v448
      %v537 = vpack.c.b16 %v453, %v449
      %v538 = vpack.c.b16 %v454, %v450
      %v539 = vpack.c.b16 %v459, %v455
      %v540 = vpack.c.b16 %v460, %v456
      %v541 = vpack.c.b16 %v461, %v457
      %v542 = vpack.c.b16 %v462, %v458
      %v543 = vpack.c.b16 %v467, %v463
      %v544 = vpack.c.b16 %v468, %v464
      %v545 = vpack.c.b16 %v469, %v465
      %v546 = vpack.c.b16 %v470, %v466
      %v547 = vpack.c.b16 %v475, %v471
      %v548 = vpack.c.b16 %v476, %v472
      %v549 = vpack.c.b16 %v477, %v473
      %v550 = vpack.c.b16 %v478, %v474
      %v551 = vpack.c.b16 %v483, %v479
      %v552 = vpack.c.b16 %v484, %v480
      %v553 = vpack.c.b16 %v485, %v481
      %v554 = vpack.c.b16 %v486, %v482
      %v555 = vpack.c.b16 %v491, %v487
      %v556 = vpack.c.b16 %v492, %v488
      %v557 = vpack.c.b16 %v493, %v489
      %v558 = vpack.c.b16 %v494, %v490
      %623 = vmatprep.subr.bf16.mxu0 %v496
      %624 = vmatpush1.bf16.msra.mxu0 %v495
      %625 = vmatprep.subr.bf16.mxu0 %v500
      %626 = vmatpush1.bf16.msra.mxu0 %v499
      %627 = vmatprep.subr.bf16.mxu0 %v504
      %628 = vmatpush1.bf16.msra.mxu0 %v503
      %629 = vmatprep.subr.bf16.mxu0 %v508
      %630 = vmatpush1.bf16.msra.mxu0 %v507
      %631 = vmatprep.subr.bf16.mxu0 %v512
      %632 = vmatpush1.bf16.msra.mxu0 %v511
      %633 = vmatprep.subr.bf16.mxu0 %v516
      %634 = vmatpush1.bf16.msra.mxu0 %v515
      %635 = vmatprep.subr.bf16.mxu0 %v520
      %636 = vmatpush1.bf16.msra.mxu0 %v519
      %637 = vmatprep.subr.bf16.mxu0 %v524
      %638 = vmatpush1.bf16.msra.mxu0 %v523
      %639 = vmatprep.subr.bf16.mxu0 %v528
      %640 = vmatpush1.bf16.msra.mxu0 %v527
      %641 = vmatprep.subr.bf16.mxu0 %v532
      %642 = vmatpush1.bf16.msra.mxu0 %v531
      %643 = vmatprep.subr.bf16.mxu0 %v536
      %644 = vmatpush1.bf16.msra.mxu0 %v535
      %645 = vmatprep.subr.bf16.mxu0 %v540
      %646 = vmatpush1.bf16.msra.mxu0 %v539
      %647 = vmatprep.subr.bf16.mxu0 %v544
      %648 = vmatpush1.bf16.msra.mxu0 %v543
      %649 = vmatprep.subr.bf16.mxu0 %v548
      %650 = vmatpush1.bf16.msra.mxu0 %v547
      %651 = vmatprep.subr.bf16.mxu0 %v552
      %652 = vmatpush1.bf16.msra.mxu0 %v551
      %653 = vmatprep.subr.bf16.mxu0 %v556
      %654 = vmatpush1.bf16.msra.mxu0 %v555
      %655 = vmatprep.mubr.bf16.mxu0 %v232
      %656 = vmatmul.mubr.bf16.gmra.mrb[0].mxu0 %v231
      %v657 = vpop.f32.mrb[0].mxu0
      %v658 = vadd.f32 0.0, %v657
      %v659 = vpop.f32.mrb[0].mxu0
      %v660 = vadd.f32 0.0, %v659
      %v661 = vpop.f32.mrb[0].mxu0
      %v662 = vadd.f32 0.0, %v661
      %v663 = vpop.f32.mrb[0].mxu0
      %v664 = vadd.f32 0.0, %v663
      %665 = vmatprep.mubr.bf16.mxu0 %v234
      %666 = vmatmul.mubr.bf16.gmra.mrb[0].mxu0 %v233
      %v667 = vpop.f32.mrb[0].mxu0
      %v668 = vadd.f32 0.0, %v667
      %v669 = vpop.f32.mrb[0].mxu0
      %v670 = vadd.f32 0.0, %v669
      %v671 = vpop.f32.mrb[0].mxu0
      %v672 = vadd.f32 0.0, %v671
      %v673 = vpop.f32.mrb[0].mxu0
      %v674 = vadd.f32 0.0, %v673
      %675 = vmatprep.mubr.bf16.mxu0 %v236
      %676 = vmatmul.mubr.bf16.gmra.mrb[0].mxu0 %v235
      %v677 = vpop.f32.mrb[0].mxu0
      %v678 = vadd.f32 0.0, %v677
      %v679 = vpop.f32.mrb[0].mxu0
      %v680 = vadd.f32 0.0, %v679
      %v681 = vpop.f32.mrb[0].mxu0
      %v682 = vadd.f32 0.0, %v681
      %v683 = vpop.f32.mrb[0].mxu0
      %v684 = vadd.f32 0.0, %v683
      %685 = vmatprep.mubr.bf16.mxu0 %v238
      %686 = vmatmul.mubr.bf16.gmra.mrb[0].mxu0 %v237
      %v687 = vpop.f32.mrb[0].mxu0
      %v688 = vadd.f32 0.0, %v687
      %v689 = vpop.f32.mrb[0].mxu0
      %v690 = vadd.f32 0.0, %v689
      %v691 = vpop.f32.mrb[0].mxu0
      %v692 = vadd.f32 0.0, %v691
      %v693 = vpop.f32.mrb[0].mxu0
      %v694 = vadd.f32 0.0, %v693
      %695 = vdwg.mxu0
      %696 = vmatprep.subr.bf16.mxu0 %v498
      %697 = vmatpush1.bf16.msra.mxu0 %v497
      %698 = vmatprep.subr.bf16.mxu0 %v502
      %699 = vmatpush1.bf16.msra.mxu0 %v501
      %700 = vmatprep.subr.bf16.mxu0 %v506
      %701 = vmatpush1.bf16.msra.mxu0 %v505
      %702 = vmatprep.subr.bf16.mxu0 %v510
      %703 = vmatpush1.bf16.msra.mxu0 %v509
      %704 = vmatprep.subr.bf16.mxu0 %v514
      %705 = vmatpush1.bf16.msra.mxu0 %v513
      %706 = vmatprep.subr.bf16.mxu0 %v518
      %707 = vmatpush1.bf16.msra.mxu0 %v517
      %708 = vmatprep.subr.bf16.mxu0 %v522
      %709 = vmatpush1.bf16.msra.mxu0 %v521
      %710 = vmatprep.subr.bf16.mxu0 %v526
      %711 = vmatpush1.bf16.msra.mxu0 %v525
      %712 = vmatprep.subr.bf16.mxu0 %v530
      %713 = vmatpush1.bf16.msra.mxu0 %v529
      %714 = vmatprep.subr.bf16.mxu0 %v534
      %715 = vmatpush1.bf16.msra.mxu0 %v533
      %716 = vmatprep.subr.bf16.mxu0 %v538
      %717 = vmatpush1.bf16.msra.mxu0 %v537
      %718 = vmatprep.subr.bf16.mxu0 %v542
      %719 = vmatpush1.bf16.msra.mxu0 %v541
      %720 = vmatprep.subr.bf16.mxu0 %v546
      %721 = vmatpush1.bf16.msra.mxu0 %v545
      %722 = vmatprep.subr.bf16.mxu0 %v550
      %723 = vmatpush1.bf16.msra.mxu0 %v549
      %724 = vmatprep.subr.bf16.mxu0 %v554
      %725 = vmatpush1.bf16.msra.mxu0 %v553
      %726 = vmatprep.subr.bf16.mxu0 %v558
      %727 = vmatpush1.bf16.msra.mxu0 %v557
      %728 = vmatprep.mubr.bf16.mxu0 %v232
      %729 = vmatmul.mubr.bf16.gmra.mrb[0].mxu0 %v231
      %v730 = vpop.f32.mrb[0].mxu0
      %v731 = vadd.f32 0.0, %v730
      %v732 = vpop.f32.mrb[0].mxu0
      %v733 = vadd.f32 0.0, %v732
      %v734 = vpop.f32.mrb[0].mxu0
      %v735 = vadd.f32 0.0, %v734
      %v736 = vpop.f32.mrb[0].mxu0
      %v737 = vadd.f32 0.0, %v736
      %738 = vmatprep.mubr.bf16.mxu0 %v234
      %739 = vmatmul.mubr.bf16.gmra.mrb[0].mxu0 %v233
      %v740 = vpop.f32.mrb[0].mxu0
      %v741 = vadd.f32 0.0, %v740
      %v742 = vpop.f32.mrb[0].mxu0
      %v743 = vadd.f32 0.0, %v742
      %v744 = vpop.f32.mrb[0].mxu0
      %v745 = vadd.f32 0.0, %v744
      %v746 = vpop.f32.mrb[0].mxu0
      %v747 = vadd.f32 0.0, %v746
      %748 = vmatprep.mubr.bf16.mxu0 %v236
      %749 = vmatmul.mubr.bf16.gmra.mrb[0].mxu0 %v235
      %v750 = vpop.f32.mrb[0].mxu0
      %v751 = vadd.f32 0.0, %v750
      %v752 = vpop.f32.mrb[0].mxu0
      %v753 = vadd.f32 0.0, %v752
      %v754 = vpop.f32.mrb[0].mxu0
      %v755 = vadd.f32 0.0, %v754
      %v756 = vpop.f32.mrb[0].mxu0
      %v757 = vadd.f32 0.0, %v756
      %758 = vmatprep.mubr.bf16.mxu0 %v238
      %759 = vmatmul.mubr.bf16.gmra.mrb[0].mxu0 %v237
      %v760 = vpop.f32.mrb[0].mxu0
      %v761 = vadd.f32 0.0, %v760
      %v762 = vpop.f32.mrb[0].mxu0
      %v763 = vadd.f32 0.0, %v762
      %v764 = vpop.f32.mrb[0].mxu0
      %v765 = vadd.f32 0.0, %v764
      %v766 = vpop.f32.mrb[0].mxu0
      %v767 = vadd.f32 0.0, %v766
      %768 = vdwg.mxu0
      %v777 = vcombine.high %v658, %v658
      %v779 = vunpack.c.l.s4 1966171168
      %v780 = vunpack.c.0.s8 %v779
      %v781 = vlaneseq
      %v782 = vshrl.u32 %v781, 7
      %v783 = vsub.s32 %v780, %v782
      %v784 = vrot.slane %v658, %v783
      %v786 = vunpack.c.l.s4 1966171168
      %v787 = vunpack.c.0.s8 %v786
      %v788 = vlaneseq
      %v789 = vshrl.u32 %v788, 7
      %v790 = vsub.s32 %v787, %v789
      %v791 = vrot.slane %v777, %v790
      %v792 = vcombine.high %v784, %v784
      %v793 = vcombine.high %v791, %v791
      %v795 = vunpack.c.l.s4 1966171168
      %v796 = vunpack.c.0.s8 %v795
      %v797 = vlaneseq
      %v798 = vshrl.u32 %v797, 7
      %v799 = vsub.s32 %v796, %v798
      %v800 = vrot.slane %v784, %v799
      %v802 = vunpack.c.l.s4 1966171168
      %v803 = vunpack.c.0.s8 %v802
      %v804 = vlaneseq
      %v805 = vshrl.u32 %v804, 7
      %v806 = vsub.s32 %v803, %v805
      %v807 = vrot.slane %v791, %v806
      %v809 = vunpack.c.l.s4 1966171168
      %v810 = vunpack.c.0.s8 %v809
      %v811 = vlaneseq
      %v812 = vshrl.u32 %v811, 7
      %v813 = vsub.s32 %v810, %v812
      %v814 = vrot.slane %v792, %v813
      %v816 = vunpack.c.l.s4 1966171168
      %v817 = vunpack.c.0.s8 %v816
      %v818 = vlaneseq
      %v819 = vshrl.u32 %v818, 7
      %v820 = vsub.s32 %v817, %v819
      %v821 = vrot.slane %v793, %v820
      %v822 = vcombine.high %v800, %v800
      %v823 = vcombine.high %v807, %v807
      %v824 = vcombine.high %v814, %v814
      %v825 = vcombine.high %v821, %v821
      %v826 = vcombine.high %v662, %v662
      %v828 = vunpack.c.l.s4 1966171168
      %v829 = vunpack.c.0.s8 %v828
      %v830 = vlaneseq
      %v831 = vshrl.u32 %v830, 7
      %v832 = vsub.s32 %v829, %v831
      %v833 = vrot.slane %v662, %v832
      %v835 = vunpack.c.l.s4 1966171168
      %v836 = vunpack.c.0.s8 %v835
      %v837 = vlaneseq
      %v838 = vshrl.u32 %v837, 7
      %v839 = vsub.s32 %v836, %v838
      %v840 = vrot.slane %v826, %v839
      %v841 = vcombine.high %v833, %v833
      %v842 = vcombine.high %v840, %v840
      %v844 = vunpack.c.l.s4 1966171168
      %v845 = vunpack.c.0.s8 %v844
      %v846 = vlaneseq
      %v847 = vshrl.u32 %v846, 7
      %v848 = vsub.s32 %v845, %v847
      %v849 = vrot.slane %v833, %v848
      %v851 = vunpack.c.l.s4 1966171168
      %v852 = vunpack.c.0.s8 %v851
      %v853 = vlaneseq
      %v854 = vshrl.u32 %v853, 7
      %v855 = vsub.s32 %v852, %v854
      %v856 = vrot.slane %v840, %v855
      %v858 = vunpack.c.l.s4 1966171168
      %v859 = vunpack.c.0.s8 %v858
      %v860 = vlaneseq
      %v861 = vshrl.u32 %v860, 7
      %v862 = vsub.s32 %v859, %v861
      %v863 = vrot.slane %v841, %v862
      %v865 = vunpack.c.l.s4 1966171168
      %v866 = vunpack.c.0.s8 %v865
      %v867 = vlaneseq
      %v868 = vshrl.u32 %v867, 7
      %v869 = vsub.s32 %v866, %v868
      %v870 = vrot.slane %v842, %v869
      %v871 = vcombine.high %v849, %v849
      %v872 = vcombine.high %v856, %v856
      %v873 = vcombine.high %v863, %v863
      %v874 = vcombine.high %v870, %v870
      %v875 = vcombine.high %v668, %v668
      %v877 = vunpack.c.l.s4 1966171168
      %v878 = vunpack.c.0.s8 %v877
      %v879 = vlaneseq
      %v880 = vshrl.u32 %v879, 7
      %v881 = vsub.s32 %v878, %v880
      %v882 = vrot.slane %v668, %v881
      %v884 = vunpack.c.l.s4 1966171168
      %v885 = vunpack.c.0.s8 %v884
      %v886 = vlaneseq
      %v887 = vshrl.u32 %v886, 7
      %v888 = vsub.s32 %v885, %v887
      %v889 = vrot.slane %v875, %v888
      %v890 = vcombine.high %v882, %v882
      %v891 = vcombine.high %v889, %v889
      %v893 = vunpack.c.l.s4 1966171168
      %v894 = vunpack.c.0.s8 %v893
      %v895 = vlaneseq
      %v896 = vshrl.u32 %v895, 7
      %v897 = vsub.s32 %v894, %v896
      %v898 = vrot.slane %v882, %v897
      %v900 = vunpack.c.l.s4 1966171168
      %v901 = vunpack.c.0.s8 %v900
      %v902 = vlaneseq
      %v903 = vshrl.u32 %v902, 7
      %v904 = vsub.s32 %v901, %v903
      %v905 = vrot.slane %v889, %v904
      %v907 = vunpack.c.l.s4 1966171168
      %v908 = vunpack.c.0.s8 %v907
      %v909 = vlaneseq
      %v910 = vshrl.u32 %v909, 7
      %v911 = vsub.s32 %v908, %v910
      %v912 = vrot.slane %v890, %v911
      %v914 = vunpack.c.l.s4 1966171168
      %v915 = vunpack.c.0.s8 %v914
      %v916 = vlaneseq
      %v917 = vshrl.u32 %v916, 7
      %v918 = vsub.s32 %v915, %v917
      %v919 = vrot.slane %v891, %v918
      %v920 = vcombine.high %v898, %v898
      %v921 = vcombine.high %v905, %v905
      %v922 = vcombine.high %v912, %v912
      %v923 = vcombine.high %v919, %v919
      %v924 = vcombine.high %v672, %v672
      %v926 = vunpack.c.l.s4 1966171168
      %v927 = vunpack.c.0.s8 %v926
      %v928 = vlaneseq
      %v929 = vshrl.u32 %v928, 7
      %v930 = vsub.s32 %v927, %v929
      %v931 = vrot.slane %v672, %v930
      %v933 = vunpack.c.l.s4 1966171168
      %v934 = vunpack.c.0.s8 %v933
      %v935 = vlaneseq
      %v936 = vshrl.u32 %v935, 7
      %v937 = vsub.s32 %v934, %v936
      %v938 = vrot.slane %v924, %v937
      %v939 = vcombine.high %v931, %v931
      %v940 = vcombine.high %v938, %v938
      %v942 = vunpack.c.l.s4 1966171168
      %v943 = vunpack.c.0.s8 %v942
      %v944 = vlaneseq
      %v945 = vshrl.u32 %v944, 7
      %v946 = vsub.s32 %v943, %v945
      %v947 = vrot.slane %v931, %v946
      %v949 = vunpack.c.l.s4 1966171168
      %v950 = vunpack.c.0.s8 %v949
      %v951 = vlaneseq
      %v952 = vshrl.u32 %v951, 7
      %v953 = vsub.s32 %v950, %v952
      %v954 = vrot.slane %v938, %v953
      %v956 = vunpack.c.l.s4 1966171168
      %v957 = vunpack.c.0.s8 %v956
      %v958 = vlaneseq
      %v959 = vshrl.u32 %v958, 7
      %v960 = vsub.s32 %v957, %v959
      %v961 = vrot.slane %v939, %v960
      %v963 = vunpack.c.l.s4 1966171168
      %v964 = vunpack.c.0.s8 %v963
      %v965 = vlaneseq
      %v966 = vshrl.u32 %v965, 7
      %v967 = vsub.s32 %v964, %v966
      %v968 = vrot.slane %v940, %v967
      %v969 = vcombine.high %v947, %v947
      %v970 = vcombine.high %v954, %v954
      %v971 = vcombine.high %v961, %v961
      %v972 = vcombine.high %v968, %v968
      %v973 = vcombine.high %v678, %v678
      %v975 = vunpack.c.l.s4 1966171168
      %v976 = vunpack.c.0.s8 %v975
      %v977 = vlaneseq
      %v978 = vshrl.u32 %v977, 7
      %v979 = vsub.s32 %v976, %v978
      %v980 = vrot.slane %v678, %v979
      %v982 = vunpack.c.l.s4 1966171168
      %v983 = vunpack.c.0.s8 %v982
      %v984 = vlaneseq
      %v985 = vshrl.u32 %v984, 7
      %v986 = vsub.s32 %v983, %v985
      %v987 = vrot.slane %v973, %v986
      %v988 = vcombine.high %v980, %v980
      %v989 = vcombine.high %v987, %v987
      %v991 = vunpack.c.l.s4 1966171168
      %v992 = vunpack.c.0.s8 %v991
      %v993 = vlaneseq
      %v994 = vshrl.u32 %v993, 7
      %v995 = vsub.s32 %v992, %v994
      %v996 = vrot.slane %v980, %v995
      %v998 = vunpack.c.l.s4 1966171168
      %v999 = vunpack.c.0.s8 %v998
      %v1000 = vlaneseq
      %v1001 = vshrl.u32 %v1000, 7
      %v1002 = vsub.s32 %v999, %v1001
      %v1003 = vrot.slane %v987, %v1002
      %v1005 = vunpack.c.l.s4 1966171168
      %v1006 = vunpack.c.0.s8 %v1005
      %v1007 = vlaneseq
      %v1008 = vshrl.u32 %v1007, 7
      %v1009 = vsub.s32 %v1006, %v1008
      %v1010 = vrot.slane %v988, %v1009
      %v1012 = vunpack.c.l.s4 1966171168
      %v1013 = vunpack.c.0.s8 %v1012
      %v1014 = vlaneseq
      %v1015 = vshrl.u32 %v1014, 7
      %v1016 = vsub.s32 %v1013, %v1015
      %v1017 = vrot.slane %v989, %v1016
      %v1018 = vcombine.high %v996, %v996
      %v1019 = vcombine.high %v1003, %v1003
      %v1020 = vcombine.high %v1010, %v1010
      %v1021 = vcombine.high %v1017, %v1017
      %v1022 = vcombine.high %v682, %v682
      %v1024 = vunpack.c.l.s4 1966171168
      %v1025 = vunpack.c.0.s8 %v1024
      %v1026 = vlaneseq
      %v1027 = vshrl.u32 %v1026, 7
      %v1028 = vsub.s32 %v1025, %v1027
      %v1029 = vrot.slane %v682, %v1028
      %v1031 = vunpack.c.l.s4 1966171168
      %v1032 = vunpack.c.0.s8 %v1031
      %v1033 = vlaneseq
      %v1034 = vshrl.u32 %v1033, 7
      %v1035 = vsub.s32 %v1032, %v1034
      %v1036 = vrot.slane %v1022, %v1035
      %v1037 = vcombine.high %v1029, %v1029
      %v1038 = vcombine.high %v1036, %v1036
      %v1040 = vunpack.c.l.s4 1966171168
      %v1041 = vunpack.c.0.s8 %v1040
      %v1042 = vlaneseq
      %v1043 = vshrl.u32 %v1042, 7
      %v1044 = vsub.s32 %v1041, %v1043
      %v1045 = vrot.slane %v1029, %v1044
      %v1047 = vunpack.c.l.s4 1966171168
      %v1048 = vunpack.c.0.s8 %v1047
      %v1049 = vlaneseq
      %v1050 = vshrl.u32 %v1049, 7
      %v1051 = vsub.s32 %v1048, %v1050
      %v1052 = vrot.slane %v1036, %v1051
      %v1054 = vunpack.c.l.s4 1966171168
      %v1055 = vunpack.c.0.s8 %v1054
      %v1056 = vlaneseq
      %v1057 = vshrl.u32 %v1056, 7
      %v1058 = vsub.s32 %v1055, %v1057
      %v1059 = vrot.slane %v1037, %v1058
      %v1061 = vunpack.c.l.s4 1966171168
      %v1062 = vunpack.c.0.s8 %v1061
      %v1063 = vlaneseq
      %v1064 = vshrl.u32 %v1063, 7
      %v1065 = vsub.s32 %v1062, %v1064
      %v1066 = vrot.slane %v1038, %v1065
      %v1067 = vcombine.high %v1045, %v1045
      %v1068 = vcombine.high %v1052, %v1052
      %v1069 = vcombine.high %v1059, %v1059
      %v1070 = vcombine.high %v1066, %v1066
      %v1071 = vcombine.high %v688, %v688
      %v1073 = vunpack.c.l.s4 1966171168
      %v1074 = vunpack.c.0.s8 %v1073
      %v1075 = vlaneseq
      %v1076 = vshrl.u32 %v1075, 7
      %v1077 = vsub.s32 %v1074, %v1076
      %v1078 = vrot.slane %v688, %v1077
      %v1080 = vunpack.c.l.s4 1966171168
      %v1081 = vunpack.c.0.s8 %v1080
      %v1082 = vlaneseq
      %v1083 = vshrl.u32 %v1082, 7
      %v1084 = vsub.s32 %v1081, %v1083
      %v1085 = vrot.slane %v1071, %v1084
      %v1086 = vcombine.high %v1078, %v1078
      %v1087 = vcombine.high %v1085, %v1085
      %v1089 = vunpack.c.l.s4 1966171168
      %v1090 = vunpack.c.0.s8 %v1089
      %v1091 = vlaneseq
      %v1092 = vshrl.u32 %v1091, 7
      %v1093 = vsub.s32 %v1090, %v1092
      %v1094 = vrot.slane %v1078, %v1093
      %v1096 = vunpack.c.l.s4 1966171168
      %v1097 = vunpack.c.0.s8 %v1096
      %v1098 = vlaneseq
      %v1099 = vshrl.u32 %v1098, 7
      %v1100 = vsub.s32 %v1097, %v1099
      %v1101 = vrot.slane %v1085, %v1100
      %v1103 = vunpack.c.l.s4 1966171168
      %v1104 = vunpack.c.0.s8 %v1103
      %v1105 = vlaneseq
      %v1106 = vshrl.u32 %v1105, 7
      %v1107 = vsub.s32 %v1104, %v1106
      %v1108 = vrot.slane %v1086, %v1107
      %v1110 = vunpack.c.l.s4 1966171168
      %v1111 = vunpack.c.0.s8 %v1110
      %v1112 = vlaneseq
      %v1113 = vshrl.u32 %v1112, 7
      %v1114 = vsub.s32 %v1111, %v1113
      %v1115 = vrot.slane %v1087, %v1114
      %v1116 = vcombine.high %v1094, %v1094
      %v1117 = vcombine.high %v1101, %v1101
      %v1118 = vcombine.high %v1108, %v1108
      %v1119 = vcombine.high %v1115, %v1115
      %v1120 = vcombine.high %v692, %v692
      %v1122 = vunpack.c.l.s4 1966171168
      %v1123 = vunpack.c.0.s8 %v1122
      %v1124 = vlaneseq
      %v1125 = vshrl.u32 %v1124, 7
      %v1126 = vsub.s32 %v1123, %v1125
      %v1127 = vrot.slane %v692, %v1126
      %v1129 = vunpack.c.l.s4 1966171168
      %v1130 = vunpack.c.0.s8 %v1129
      %v1131 = vlaneseq
      %v1132 = vshrl.u32 %v1131, 7
      %v1133 = vsub.s32 %v1130, %v1132
      %v1134 = vrot.slane %v1120, %v1133
      %v1135 = vcombine.high %v1127, %v1127
      %v1136 = vcombine.high %v1134, %v1134
      %v1138 = vunpack.c.l.s4 1966171168
      %v1139 = vunpack.c.0.s8 %v1138
      %v1140 = vlaneseq
      %v1141 = vshrl.u32 %v1140, 7
      %v1142 = vsub.s32 %v1139, %v1141
      %v1143 = vrot.slane %v1127, %v1142
      %v1145 = vunpack.c.l.s4 1966171168
      %v1146 = vunpack.c.0.s8 %v1145
      %v1147 = vlaneseq
      %v1148 = vshrl.u32 %v1147, 7
      %v1149 = vsub.s32 %v1146, %v1148
      %v1150 = vrot.slane %v1134, %v1149
      %v1152 = vunpack.c.l.s4 1966171168
      %v1153 = vunpack.c.0.s8 %v1152
      %v1154 = vlaneseq
      %v1155 = vshrl.u32 %v1154, 7
      %v1156 = vsub.s32 %v1153, %v1155
      %v1157 = vrot.slane %v1135, %v1156
      %v1159 = vunpack.c.l.s4 1966171168
      %v1160 = vunpack.c.0.s8 %v1159
      %v1161 = vlaneseq
      %v1162 = vshrl.u32 %v1161, 7
      %v1163 = vsub.s32 %v1160, %v1162
      %v1164 = vrot.slane %v1136, %v1163
      %v1165 = vcombine.high %v1143, %v1143
      %v1166 = vcombine.high %v1150, %v1150
      %v1167 = vcombine.high %v1157, %v1157
      %v1168 = vcombine.high %v1164, %v1164
      %v1241 = vcombine.high %v660, %v660
      %v1243 = vunpack.c.l.s4 1966171168
      %v1244 = vunpack.c.0.s8 %v1243
      %v1245 = vlaneseq
      %v1246 = vshrl.u32 %v1245, 7
      %v1247 = vsub.s32 %v1244, %v1246
      %v1248 = vrot.slane %v660, %v1247
      %v1250 = vunpack.c.l.s4 1966171168
      %v1251 = vunpack.c.0.s8 %v1250
      %v1252 = vlaneseq
      %v1253 = vshrl.u32 %v1252, 7
      %v1254 = vsub.s32 %v1251, %v1253
      %v1255 = vrot.slane %v1241, %v1254
      %v1256 = vcombine.high %v1248, %v1248
      %v1257 = vcombine.high %v1255, %v1255
      %v1259 = vunpack.c.l.s4 1966171168
      %v1260 = vunpack.c.0.s8 %v1259
      %v1261 = vlaneseq
      %v1262 = vshrl.u32 %v1261, 7
      %v1263 = vsub.s32 %v1260, %v1262
      %v1264 = vrot.slane %v1248, %v1263
      %v1266 = vunpack.c.l.s4 1966171168
      %v1267 = vunpack.c.0.s8 %v1266
      %v1268 = vlaneseq
      %v1269 = vshrl.u32 %v1268, 7
      %v1270 = vsub.s32 %v1267, %v1269
      %v1271 = vrot.slane %v1255, %v1270
      %v1273 = vunpack.c.l.s4 1966171168
      %v1274 = vunpack.c.0.s8 %v1273
      %v1275 = vlaneseq
      %v1276 = vshrl.u32 %v1275, 7
      %v1277 = vsub.s32 %v1274, %v1276
      %v1278 = vrot.slane %v1256, %v1277
      %v1280 = vunpack.c.l.s4 1966171168
      %v1281 = vunpack.c.0.s8 %v1280
      %v1282 = vlaneseq
      %v1283 = vshrl.u32 %v1282, 7
      %v1284 = vsub.s32 %v1281, %v1283
      %v1285 = vrot.slane %v1257, %v1284
      %v1286 = vcombine.high %v1264, %v1264
      %v1287 = vcombine.high %v1271, %v1271
      %v1288 = vcombine.high %v1278, %v1278
      %v1289 = vcombine.high %v1285, %v1285
      %v1290 = vcombine.high %v664, %v664
      %v1292 = vunpack.c.l.s4 1966171168
      %v1293 = vunpack.c.0.s8 %v1292
      %v1294 = vlaneseq
      %v1295 = vshrl.u32 %v1294, 7
      %v1296 = vsub.s32 %v1293, %v1295
      %v1297 = vrot.slane %v664, %v1296
      %v1299 = vunpack.c.l.s4 1966171168
      %v1300 = vunpack.c.0.s8 %v1299
      %v1301 = vlaneseq
      %v1302 = vshrl.u32 %v1301, 7
      %v1303 = vsub.s32 %v1300, %v1302
      %v1304 = vrot.slane %v1290, %v1303
      %v1305 = vcombine.high %v1297, %v1297
      %v1306 = vcombine.high %v1304, %v1304
      %v1308 = vunpack.c.l.s4 1966171168
      %v1309 = vunpack.c.0.s8 %v1308
      %v1310 = vlaneseq
      %v1311 = vshrl.u32 %v1310, 7
      %v1312 = vsub.s32 %v1309, %v1311
      %v1313 = vrot.slane %v1297, %v1312
      %v1315 = vunpack.c.l.s4 1966171168
      %v1316 = vunpack.c.0.s8 %v1315
      %v1317 = vlaneseq
      %v1318 = vshrl.u32 %v1317, 7
      %v1319 = vsub.s32 %v1316, %v1318
      %v1320 = vrot.slane %v1304, %v1319
      %v1322 = vunpack.c.l.s4 1966171168
      %v1323 = vunpack.c.0.s8 %v1322
      %v1324 = vlaneseq
      %v1325 = vshrl.u32 %v1324, 7
      %v1326 = vsub.s32 %v1323, %v1325
      %v1327 = vrot.slane %v1305, %v1326
      %v1329 = vunpack.c.l.s4 1966171168
      %v1330 = vunpack.c.0.s8 %v1329
      %v1331 = vlaneseq
      %v1332 = vshrl.u32 %v1331, 7
      %v1333 = vsub.s32 %v1330, %v1332
      %v1334 = vrot.slane %v1306, %v1333
      %v1335 = vcombine.high %v1313, %v1313
      %v1336 = vcombine.high %v1320, %v1320
      %v1337 = vcombine.high %v1327, %v1327
      %v1338 = vcombine.high %v1334, %v1334
      %v1339 = vcombine.high %v670, %v670
      %v1341 = vunpack.c.l.s4 1966171168
      %v1342 = vunpack.c.0.s8 %v1341
      %v1343 = vlaneseq
      %v1344 = vshrl.u32 %v1343, 7
      %v1345 = vsub.s32 %v1342, %v1344
      %v1346 = vrot.slane %v670, %v1345
      %v1348 = vunpack.c.l.s4 1966171168
      %v1349 = vunpack.c.0.s8 %v1348
      %v1350 = vlaneseq
      %v1351 = vshrl.u32 %v1350, 7
      %v1352 = vsub.s32 %v1349, %v1351
      %v1353 = vrot.slane %v1339, %v1352
      %v1354 = vcombine.high %v1346, %v1346
      %v1355 = vcombine.high %v1353, %v1353
      %v1357 = vunpack.c.l.s4 1966171168
      %v1358 = vunpack.c.0.s8 %v1357
      %v1359 = vlaneseq
      %v1360 = vshrl.u32 %v1359, 7
      %v1361 = vsub.s32 %v1358, %v1360
      %v1362 = vrot.slane %v1346, %v1361
      %v1364 = vunpack.c.l.s4 1966171168
      %v1365 = vunpack.c.0.s8 %v1364
      %v1366 = vlaneseq
      %v1367 = vshrl.u32 %v1366, 7
      %v1368 = vsub.s32 %v1365, %v1367
      %v1369 = vrot.slane %v1353, %v1368
      %v1371 = vunpack.c.l.s4 1966171168
      %v1372 = vunpack.c.0.s8 %v1371
      %v1373 = vlaneseq
      %v1374 = vshrl.u32 %v1373, 7
      %v1375 = vsub.s32 %v1372, %v1374
      %v1376 = vrot.slane %v1354, %v1375
      %v1378 = vunpack.c.l.s4 1966171168
      %v1379 = vunpack.c.0.s8 %v1378
      %v1380 = vlaneseq
      %v1381 = vshrl.u32 %v1380, 7
      %v1382 = vsub.s32 %v1379, %v1381
      %v1383 = vrot.slane %v1355, %v1382
      %v1384 = vcombine.high %v1362, %v1362
      %v1385 = vcombine.high %v1369, %v1369
      %v1386 = vcombine.high %v1376, %v1376
      %v1387 = vcombine.high %v1383, %v1383
      %v1388 = vcombine.high %v674, %v674
      %v1390 = vunpack.c.l.s4 1966171168
      %v1391 = vunpack.c.0.s8 %v1390
      %v1392 = vlaneseq
      %v1393 = vshrl.u32 %v1392, 7
      %v1394 = vsub.s32 %v1391, %v1393
      %v1395 = vrot.slane %v674, %v1394
      %v1397 = vunpack.c.l.s4 1966171168
      %v1398 = vunpack.c.0.s8 %v1397
      %v1399 = vlaneseq
      %v1400 = vshrl.u32 %v1399, 7
      %v1401 = vsub.s32 %v1398, %v1400
      %v1402 = vrot.slane %v1388, %v1401
      %v1403 = vcombine.high %v1395, %v1395
      %v1404 = vcombine.high %v1402, %v1402
      %v1406 = vunpack.c.l.s4 1966171168
      %v1407 = vunpack.c.0.s8 %v1406
      %v1408 = vlaneseq
      %v1409 = vshrl.u32 %v1408, 7
      %v1410 = vsub.s32 %v1407, %v1409
      %v1411 = vrot.slane %v1395, %v1410
      %v1413 = vunpack.c.l.s4 1966171168
      %v1414 = vunpack.c.0.s8 %v1413
      %v1415 = vlaneseq
      %v1416 = vshrl.u32 %v1415, 7
      %v1417 = vsub.s32 %v1414, %v1416
      %v1418 = vrot.slane %v1402, %v1417
      %v1420 = vunpack.c.l.s4 1966171168
      %v1421 = vunpack.c.0.s8 %v1420
      %v1422 = vlaneseq
      %v1423 = vshrl.u32 %v1422, 7
      %v1424 = vsub.s32 %v1421, %v1423
      %v1425 = vrot.slane %v1403, %v1424
      %v1427 = vunpack.c.l.s4 1966171168
      %v1428 = vunpack.c.0.s8 %v1427
      %v1429 = vlaneseq
      %v1430 = vshrl.u32 %v1429, 7
      %v1431 = vsub.s32 %v1428, %v1430
      %v1432 = vrot.slane %v1404, %v1431
      %v1433 = vcombine.high %v1411, %v1411
      %v1434 = vcombine.high %v1418, %v1418
      %v1435 = vcombine.high %v1425, %v1425
      %v1436 = vcombine.high %v1432, %v1432
      %v1437 = vcombine.high %v680, %v680
      %v1439 = vunpack.c.l.s4 1966171168
      %v1440 = vunpack.c.0.s8 %v1439
      %v1441 = vlaneseq
      %v1442 = vshrl.u32 %v1441, 7
      %v1443 = vsub.s32 %v1440, %v1442
      %v1444 = vrot.slane %v680, %v1443
      %v1446 = vunpack.c.l.s4 1966171168
      %v1447 = vunpack.c.0.s8 %v1446
      %v1448 = vlaneseq
      %v1449 = vshrl.u32 %v1448, 7
      %v1450 = vsub.s32 %v1447, %v1449
      %v1451 = vrot.slane %v1437, %v1450
      %v1452 = vcombine.high %v1444, %v1444
      %v1453 = vcombine.high %v1451, %v1451
      %v1455 = vunpack.c.l.s4 1966171168
      %v1456 = vunpack.c.0.s8 %v1455
      %v1457 = vlaneseq
      %v1458 = vshrl.u32 %v1457, 7
      %v1459 = vsub.s32 %v1456, %v1458
      %v1460 = vrot.slane %v1444, %v1459
      %v1462 = vunpack.c.l.s4 1966171168
      %v1463 = vunpack.c.0.s8 %v1462
      %v1464 = vlaneseq
      %v1465 = vshrl.u32 %v1464, 7
      %v1466 = vsub.s32 %v1463, %v1465
      %v1467 = vrot.slane %v1451, %v1466
      %v1469 = vunpack.c.l.s4 1966171168
      %v1470 = vunpack.c.0.s8 %v1469
      %v1471 = vlaneseq
      %v1472 = vshrl.u32 %v1471, 7
      %v1473 = vsub.s32 %v1470, %v1472
      %v1474 = vrot.slane %v1452, %v1473
      %v1476 = vunpack.c.l.s4 1966171168
      %v1477 = vunpack.c.0.s8 %v1476
      %v1478 = vlaneseq
      %v1479 = vshrl.u32 %v1478, 7
      %v1480 = vsub.s32 %v1477, %v1479
      %v1481 = vrot.slane %v1453, %v1480
      %v1482 = vcombine.high %v1460, %v1460
      %v1483 = vcombine.high %v1467, %v1467
      %v1484 = vcombine.high %v1474, %v1474
      %v1485 = vcombine.high %v1481, %v1481
      %v1486 = vcombine.high %v684, %v684
      %v1488 = vunpack.c.l.s4 1966171168
      %v1489 = vunpack.c.0.s8 %v1488
      %v1490 = vlaneseq
      %v1491 = vshrl.u32 %v1490, 7
      %v1492 = vsub.s32 %v1489, %v1491
      %v1493 = vrot.slane %v684, %v1492
      %v1495 = vunpack.c.l.s4 1966171168
      %v1496 = vunpack.c.0.s8 %v1495
      %v1497 = vlaneseq
      %v1498 = vshrl.u32 %v1497, 7
      %v1499 = vsub.s32 %v1496, %v1498
      %v1500 = vrot.slane %v1486, %v1499
      %v1501 = vcombine.high %v1493, %v1493
      %v1502 = vcombine.high %v1500, %v1500
      %v1504 = vunpack.c.l.s4 1966171168
      %v1505 = vunpack.c.0.s8 %v1504
      %v1506 = vlaneseq
      %v1507 = vshrl.u32 %v1506, 7
      %v1508 = vsub.s32 %v1505, %v1507
      %v1509 = vrot.slane %v1493, %v1508
      %v1511 = vunpack.c.l.s4 1966171168
      %v1512 = vunpack.c.0.s8 %v1511
      %v1513 = vlaneseq
      %v1514 = vshrl.u32 %v1513, 7
      %v1515 = vsub.s32 %v1512, %v1514
      %v1516 = vrot.slane %v1500, %v1515
      %v1518 = vunpack.c.l.s4 1966171168
      %v1519 = vunpack.c.0.s8 %v1518
      %v1520 = vlaneseq
      %v1521 = vshrl.u32 %v1520, 7
      %v1522 = vsub.s32 %v1519, %v1521
      %v1523 = vrot.slane %v1501, %v1522
      %v1525 = vunpack.c.l.s4 1966171168
      %v1526 = vunpack.c.0.s8 %v1525
      %v1527 = vlaneseq
      %v1528 = vshrl.u32 %v1527, 7
      %v1529 = vsub.s32 %v1526, %v1528
      %v1530 = vrot.slane %v1502, %v1529
      %v1531 = vcombine.high %v1509, %v1509
      %v1532 = vcombine.high %v1516, %v1516
      %v1533 = vcombine.high %v1523, %v1523
      %v1534 = vcombine.high %v1530, %v1530
      %v1535 = vcombine.high %v690, %v690
      %v1537 = vunpack.c.l.s4 1966171168
      %v1538 = vunpack.c.0.s8 %v1537
      %v1539 = vlaneseq
      %v1540 = vshrl.u32 %v1539, 7
      %v1541 = vsub.s32 %v1538, %v1540
      %v1542 = vrot.slane %v690, %v1541
      %v1544 = vunpack.c.l.s4 1966171168
      %v1545 = vunpack.c.0.s8 %v1544
      %v1546 = vlaneseq
      %v1547 = vshrl.u32 %v1546, 7
      %v1548 = vsub.s32 %v1545, %v1547
      %v1549 = vrot.slane %v1535, %v1548
      %v1550 = vcombine.high %v1542, %v1542
      %v1551 = vcombine.high %v1549, %v1549
      %v1553 = vunpack.c.l.s4 1966171168
      %v1554 = vunpack.c.0.s8 %v1553
      %v1555 = vlaneseq
      %v1556 = vshrl.u32 %v1555, 7
      %v1557 = vsub.s32 %v1554, %v1556
      %v1558 = vrot.slane %v1542, %v1557
      %v1560 = vunpack.c.l.s4 1966171168
      %v1561 = vunpack.c.0.s8 %v1560
      %v1562 = vlaneseq
      %v1563 = vshrl.u32 %v1562, 7
      %v1564 = vsub.s32 %v1561, %v1563
      %v1565 = vrot.slane %v1549, %v1564
      %v1567 = vunpack.c.l.s4 1966171168
      %v1568 = vunpack.c.0.s8 %v1567
      %v1569 = vlaneseq
      %v1570 = vshrl.u32 %v1569, 7
      %v1571 = vsub.s32 %v1568, %v1570
      %v1572 = vrot.slane %v1550, %v1571
      %v1574 = vunpack.c.l.s4 1966171168
      %v1575 = vunpack.c.0.s8 %v1574
      %v1576 = vlaneseq
      %v1577 = vshrl.u32 %v1576, 7
      %v1578 = vsub.s32 %v1575, %v1577
      %v1579 = vrot.slane %v1551, %v1578
      %v1580 = vcombine.high %v1558, %v1558
      %v1581 = vcombine.high %v1565, %v1565
      %v1582 = vcombine.high %v1572, %v1572
      %v1583 = vcombine.high %v1579, %v1579
      %v1584 = vcombine.high %v694, %v694
      %v1586 = vunpack.c.l.s4 1966171168
      %v1587 = vunpack.c.0.s8 %v1586
      %v1588 = vlaneseq
      %v1589 = vshrl.u32 %v1588, 7
      %v1590 = vsub.s32 %v1587, %v1589
      %v1591 = vrot.slane %v694, %v1590
      %v1593 = vunpack.c.l.s4 1966171168
      %v1594 = vunpack.c.0.s8 %v1593
      %v1595 = vlaneseq
      %v1596 = vshrl.u32 %v1595, 7
      %v1597 = vsub.s32 %v1594, %v1596
      %v1598 = vrot.slane %v1584, %v1597
      %v1599 = vcombine.high %v1591, %v1591
      %v1600 = vcombine.high %v1598, %v1598
      %v1602 = vunpack.c.l.s4 1966171168
      %v1603 = vunpack.c.0.s8 %v1602
      %v1604 = vlaneseq
      %v1605 = vshrl.u32 %v1604, 7
      %v1606 = vsub.s32 %v1603, %v1605
      %v1607 = vrot.slane %v1591, %v1606
      %v1609 = vunpack.c.l.s4 1966171168
      %v1610 = vunpack.c.0.s8 %v1609
      %v1611 = vlaneseq
      %v1612 = vshrl.u32 %v1611, 7
      %v1613 = vsub.s32 %v1610, %v1612
      %v1614 = vrot.slane %v1598, %v1613
      %v1616 = vunpack.c.l.s4 1966171168
      %v1617 = vunpack.c.0.s8 %v1616
      %v1618 = vlaneseq
      %v1619 = vshrl.u32 %v1618, 7
      %v1620 = vsub.s32 %v1617, %v1619
      %v1621 = vrot.slane %v1599, %v1620
      %v1623 = vunpack.c.l.s4 1966171168
      %v1624 = vunpack.c.0.s8 %v1623
      %v1625 = vlaneseq
      %v1626 = vshrl.u32 %v1625, 7
      %v1627 = vsub.s32 %v1624, %v1626
      %v1628 = vrot.slane %v1600, %v1627
      %v1629 = vcombine.high %v1607, %v1607
      %v1630 = vcombine.high %v1614, %v1614
      %v1631 = vcombine.high %v1621, %v1621
      %v1632 = vcombine.high %v1628, %v1628
      %v1641 = vcombine.high %v731, %v731
      %v1643 = vunpack.c.l.s4 1966171168
      %v1644 = vunpack.c.0.s8 %v1643
      %v1645 = vlaneseq
      %v1646 = vshrl.u32 %v1645, 7
      %v1647 = vsub.s32 %v1644, %v1646
      %v1648 = vrot.slane %v731, %v1647
      %v1650 = vunpack.c.l.s4 1966171168
      %v1651 = vunpack.c.0.s8 %v1650
      %v1652 = vlaneseq
      %v1653 = vshrl.u32 %v1652, 7
      %v1654 = vsub.s32 %v1651, %v1653
      %v1655 = vrot.slane %v1641, %v1654
      %v1656 = vcombine.high %v1648, %v1648
      %v1657 = vcombine.high %v1655, %v1655
      %v1659 = vunpack.c.l.s4 1966171168
      %v1660 = vunpack.c.0.s8 %v1659
      %v1661 = vlaneseq
      %v1662 = vshrl.u32 %v1661, 7
      %v1663 = vsub.s32 %v1660, %v1662
      %v1664 = vrot.slane %v1648, %v1663
      %v1666 = vunpack.c.l.s4 1966171168
      %v1667 = vunpack.c.0.s8 %v1666
      %v1668 = vlaneseq
      %v1669 = vshrl.u32 %v1668, 7
      %v1670 = vsub.s32 %v1667, %v1669
      %v1671 = vrot.slane %v1655, %v1670
      %v1673 = vunpack.c.l.s4 1966171168
      %v1674 = vunpack.c.0.s8 %v1673
      %v1675 = vlaneseq
      %v1676 = vshrl.u32 %v1675, 7
      %v1677 = vsub.s32 %v1674, %v1676
      %v1678 = vrot.slane %v1656, %v1677
      %v1680 = vunpack.c.l.s4 1966171168
      %v1681 = vunpack.c.0.s8 %v1680
      %v1682 = vlaneseq
      %v1683 = vshrl.u32 %v1682, 7
      %v1684 = vsub.s32 %v1681, %v1683
      %v1685 = vrot.slane %v1657, %v1684
      %v1686 = vcombine.high %v1664, %v1664
      %v1687 = vcombine.high %v1671, %v1671
      %v1688 = vcombine.high %v1678, %v1678
      %v1689 = vcombine.high %v1685, %v1685
      %v1690 = vcombine.high %v735, %v735
      %v1692 = vunpack.c.l.s4 1966171168
      %v1693 = vunpack.c.0.s8 %v1692
      %v1694 = vlaneseq
      %v1695 = vshrl.u32 %v1694, 7
      %v1696 = vsub.s32 %v1693, %v1695
      %v1697 = vrot.slane %v735, %v1696
      %v1699 = vunpack.c.l.s4 1966171168
      %v1700 = vunpack.c.0.s8 %v1699
      %v1701 = vlaneseq
      %v1702 = vshrl.u32 %v1701, 7
      %v1703 = vsub.s32 %v1700, %v1702
      %v1704 = vrot.slane %v1690, %v1703
      %v1705 = vcombine.high %v1697, %v1697
      %v1706 = vcombine.high %v1704, %v1704
      %v1708 = vunpack.c.l.s4 1966171168
      %v1709 = vunpack.c.0.s8 %v1708
      %v1710 = vlaneseq
      %v1711 = vshrl.u32 %v1710, 7
      %v1712 = vsub.s32 %v1709, %v1711
      %v1713 = vrot.slane %v1697, %v1712
      %v1715 = vunpack.c.l.s4 1966171168
      %v1716 = vunpack.c.0.s8 %v1715
      %v1717 = vlaneseq
      %v1718 = vshrl.u32 %v1717, 7
      %v1719 = vsub.s32 %v1716, %v1718
      %v1720 = vrot.slane %v1704, %v1719
      %v1722 = vunpack.c.l.s4 1966171168
      %v1723 = vunpack.c.0.s8 %v1722
      %v1724 = vlaneseq
      %v1725 = vshrl.u32 %v1724, 7
      %v1726 = vsub.s32 %v1723, %v1725
      %v1727 = vrot.slane %v1705, %v1726
      %v1729 = vunpack.c.l.s4 1966171168
      %v1730 = vunpack.c.0.s8 %v1729
      %v1731 = vlaneseq
      %v1732 = vshrl.u32 %v1731, 7
      %v1733 = vsub.s32 %v1730, %v1732
      %v1734 = vrot.slane %v1706, %v1733
      %v1735 = vcombine.high %v1713, %v1713
      %v1736 = vcombine.high %v1720, %v1720
      %v1737 = vcombine.high %v1727, %v1727
      %v1738 = vcombine.high %v1734, %v1734
      %v1739 = vcombine.high %v741, %v741
      %v1741 = vunpack.c.l.s4 1966171168
      %v1742 = vunpack.c.0.s8 %v1741
      %v1743 = vlaneseq
      %v1744 = vshrl.u32 %v1743, 7
      %v1745 = vsub.s32 %v1742, %v1744
      %v1746 = vrot.slane %v741, %v1745
      %v1748 = vunpack.c.l.s4 1966171168
      %v1749 = vunpack.c.0.s8 %v1748
      %v1750 = vlaneseq
      %v1751 = vshrl.u32 %v1750, 7
      %v1752 = vsub.s32 %v1749, %v1751
      %v1753 = vrot.slane %v1739, %v1752
      %v1754 = vcombine.high %v1746, %v1746
      %v1755 = vcombine.high %v1753, %v1753
      %v1757 = vunpack.c.l.s4 1966171168
      %v1758 = vunpack.c.0.s8 %v1757
      %v1759 = vlaneseq
      %v1760 = vshrl.u32 %v1759, 7
      %v1761 = vsub.s32 %v1758, %v1760
      %v1762 = vrot.slane %v1746, %v1761
      %v1764 = vunpack.c.l.s4 1966171168
      %v1765 = vunpack.c.0.s8 %v1764
      %v1766 = vlaneseq
      %v1767 = vshrl.u32 %v1766, 7
      %v1768 = vsub.s32 %v1765, %v1767
      %v1769 = vrot.slane %v1753, %v1768
      %v1771 = vunpack.c.l.s4 1966171168
      %v1772 = vunpack.c.0.s8 %v1771
      %v1773 = vlaneseq
      %v1774 = vshrl.u32 %v1773, 7
      %v1775 = vsub.s32 %v1772, %v1774
      %v1776 = vrot.slane %v1754, %v1775
      %v1778 = vunpack.c.l.s4 1966171168
      %v1779 = vunpack.c.0.s8 %v1778
      %v1780 = vlaneseq
      %v1781 = vshrl.u32 %v1780, 7
      %v1782 = vsub.s32 %v1779, %v1781
      %v1783 = vrot.slane %v1755, %v1782
      %v1784 = vcombine.high %v1762, %v1762
      %v1785 = vcombine.high %v1769, %v1769
      %v1786 = vcombine.high %v1776, %v1776
      %v1787 = vcombine.high %v1783, %v1783
      %v1788 = vcombine.high %v745, %v745
      %v1790 = vunpack.c.l.s4 1966171168
      %v1791 = vunpack.c.0.s8 %v1790
      %v1792 = vlaneseq
      %v1793 = vshrl.u32 %v1792, 7
      %v1794 = vsub.s32 %v1791, %v1793
      %v1795 = vrot.slane %v745, %v1794
      %v1797 = vunpack.c.l.s4 1966171168
      %v1798 = vunpack.c.0.s8 %v1797
      %v1799 = vlaneseq
      %v1800 = vshrl.u32 %v1799, 7
      %v1801 = vsub.s32 %v1798, %v1800
      %v1802 = vrot.slane %v1788, %v1801
      %v1803 = vcombine.high %v1795, %v1795
      %v1804 = vcombine.high %v1802, %v1802
      %v1806 = vunpack.c.l.s4 1966171168
      %v1807 = vunpack.c.0.s8 %v1806
      %v1808 = vlaneseq
      %v1809 = vshrl.u32 %v1808, 7
      %v1810 = vsub.s32 %v1807, %v1809
      %v1811 = vrot.slane %v1795, %v1810
      %v1813 = vunpack.c.l.s4 1966171168
      %v1814 = vunpack.c.0.s8 %v1813
      %v1815 = vlaneseq
      %v1816 = vshrl.u32 %v1815, 7
      %v1817 = vsub.s32 %v1814, %v1816
      %v1818 = vrot.slane %v1802, %v1817
      %v1820 = vunpack.c.l.s4 1966171168
      %v1821 = vunpack.c.0.s8 %v1820
      %v1822 = vlaneseq
      %v1823 = vshrl.u32 %v1822, 7
      %v1824 = vsub.s32 %v1821, %v1823
      %v1825 = vrot.slane %v1803, %v1824
      %v1827 = vunpack.c.l.s4 1966171168
      %v1828 = vunpack.c.0.s8 %v1827
      %v1829 = vlaneseq
      %v1830 = vshrl.u32 %v1829, 7
      %v1831 = vsub.s32 %v1828, %v1830
      %v1832 = vrot.slane %v1804, %v1831
      %v1833 = vcombine.high %v1811, %v1811
      %v1834 = vcombine.high %v1818, %v1818
      %v1835 = vcombine.high %v1825, %v1825
      %v1836 = vcombine.high %v1832, %v1832
      %v1837 = vcombine.high %v751, %v751
      %v1839 = vunpack.c.l.s4 1966171168
      %v1840 = vunpack.c.0.s8 %v1839
      %v1841 = vlaneseq
      %v1842 = vshrl.u32 %v1841, 7
      %v1843 = vsub.s32 %v1840, %v1842
      %v1844 = vrot.slane %v751, %v1843
      %v1846 = vunpack.c.l.s4 1966171168
      %v1847 = vunpack.c.0.s8 %v1846
      %v1848 = vlaneseq
      %v1849 = vshrl.u32 %v1848, 7
      %v1850 = vsub.s32 %v1847, %v1849
      %v1851 = vrot.slane %v1837, %v1850
      %v1852 = vcombine.high %v1844, %v1844
      %v1853 = vcombine.high %v1851, %v1851
      %v1855 = vunpack.c.l.s4 1966171168
      %v1856 = vunpack.c.0.s8 %v1855
      %v1857 = vlaneseq
      %v1858 = vshrl.u32 %v1857, 7
      %v1859 = vsub.s32 %v1856, %v1858
      %v1860 = vrot.slane %v1844, %v1859
      %v1862 = vunpack.c.l.s4 1966171168
      %v1863 = vunpack.c.0.s8 %v1862
      %v1864 = vlaneseq
      %v1865 = vshrl.u32 %v1864, 7
      %v1866 = vsub.s32 %v1863, %v1865
      %v1867 = vrot.slane %v1851, %v1866
      %v1869 = vunpack.c.l.s4 1966171168
      %v1870 = vunpack.c.0.s8 %v1869
      %v1871 = vlaneseq
      %v1872 = vshrl.u32 %v1871, 7
      %v1873 = vsub.s32 %v1870, %v1872
      %v1874 = vrot.slane %v1852, %v1873
      %v1876 = vunpack.c.l.s4 1966171168
      %v1877 = vunpack.c.0.s8 %v1876
      %v1878 = vlaneseq
      %v1879 = vshrl.u32 %v1878, 7
      %v1880 = vsub.s32 %v1877, %v1879
      %v1881 = vrot.slane %v1853, %v1880
      %v1882 = vcombine.high %v1860, %v1860
      %v1883 = vcombine.high %v1867, %v1867
      %v1884 = vcombine.high %v1874, %v1874
      %v1885 = vcombine.high %v1881, %v1881
      %v1886 = vcombine.high %v755, %v755
      %v1888 = vunpack.c.l.s4 1966171168
      %v1889 = vunpack.c.0.s8 %v1888
      %v1890 = vlaneseq
      %v1891 = vshrl.u32 %v1890, 7
      %v1892 = vsub.s32 %v1889, %v1891
      %v1893 = vrot.slane %v755, %v1892
      %v1895 = vunpack.c.l.s4 1966171168
      %v1896 = vunpack.c.0.s8 %v1895
      %v1897 = vlaneseq
      %v1898 = vshrl.u32 %v1897, 7
      %v1899 = vsub.s32 %v1896, %v1898
      %v1900 = vrot.slane %v1886, %v1899
      %v1901 = vcombine.high %v1893, %v1893
      %v1902 = vcombine.high %v1900, %v1900
      %v1904 = vunpack.c.l.s4 1966171168
      %v1905 = vunpack.c.0.s8 %v1904
      %v1906 = vlaneseq
      %v1907 = vshrl.u32 %v1906, 7
      %v1908 = vsub.s32 %v1905, %v1907
      %v1909 = vrot.slane %v1893, %v1908
      %v1911 = vunpack.c.l.s4 1966171168
      %v1912 = vunpack.c.0.s8 %v1911
      %v1913 = vlaneseq
      %v1914 = vshrl.u32 %v1913, 7
      %v1915 = vsub.s32 %v1912, %v1914
      %v1916 = vrot.slane %v1900, %v1915
      %v1918 = vunpack.c.l.s4 1966171168
      %v1919 = vunpack.c.0.s8 %v1918
      %v1920 = vlaneseq
      %v1921 = vshrl.u32 %v1920, 7
      %v1922 = vsub.s32 %v1919, %v1921
      %v1923 = vrot.slane %v1901, %v1922
      %v1925 = vunpack.c.l.s4 1966171168
      %v1926 = vunpack.c.0.s8 %v1925
      %v1927 = vlaneseq
      %v1928 = vshrl.u32 %v1927, 7
      %v1929 = vsub.s32 %v1926, %v1928
      %v1930 = vrot.slane %v1902, %v1929
      %v1931 = vcombine.high %v1909, %v1909
      %v1932 = vcombine.high %v1916, %v1916
      %v1933 = vcombine.high %v1923, %v1923
      %v1934 = vcombine.high %v1930, %v1930
      %v1935 = vcombine.high %v761, %v761
      %v1937 = vunpack.c.l.s4 1966171168
      %v1938 = vunpack.c.0.s8 %v1937
      %v1939 = vlaneseq
      %v1940 = vshrl.u32 %v1939, 7
      %v1941 = vsub.s32 %v1938, %v1940
      %v1942 = vrot.slane %v761, %v1941
      %v1944 = vunpack.c.l.s4 1966171168
      %v1945 = vunpack.c.0.s8 %v1944
      %v1946 = vlaneseq
      %v1947 = vshrl.u32 %v1946, 7
      %v1948 = vsub.s32 %v1945, %v1947
      %v1949 = vrot.slane %v1935, %v1948
      %v1950 = vcombine.high %v1942, %v1942
      %v1951 = vcombine.high %v1949, %v1949
      %v1953 = vunpack.c.l.s4 1966171168
      %v1954 = vunpack.c.0.s8 %v1953
      %v1955 = vlaneseq
      %v1956 = vshrl.u32 %v1955, 7
      %v1957 = vsub.s32 %v1954, %v1956
      %v1958 = vrot.slane %v1942, %v1957
      %v1960 = vunpack.c.l.s4 1966171168
      %v1961 = vunpack.c.0.s8 %v1960
      %v1962 = vlaneseq
      %v1963 = vshrl.u32 %v1962, 7
      %v1964 = vsub.s32 %v1961, %v1963
      %v1965 = vrot.slane %v1949, %v1964
      %v1967 = vunpack.c.l.s4 1966171168
      %v1968 = vunpack.c.0.s8 %v1967
      %v1969 = vlaneseq
      %v1970 = vshrl.u32 %v1969, 7
      %v1971 = vsub.s32 %v1968, %v1970
      %v1972 = vrot.slane %v1950, %v1971
      %v1974 = vunpack.c.l.s4 1966171168
      %v1975 = vunpack.c.0.s8 %v1974
      %v1976 = vlaneseq
      %v1977 = vshrl.u32 %v1976, 7
      %v1978 = vsub.s32 %v1975, %v1977
      %v1979 = vrot.slane %v1951, %v1978
      %v1980 = vcombine.high %v1958, %v1958
      %v1981 = vcombine.high %v1965, %v1965
      %v1982 = vcombine.high %v1972, %v1972
      %v1983 = vcombine.high %v1979, %v1979
      %v1984 = vcombine.high %v765, %v765
      %v1986 = vunpack.c.l.s4 1966171168
      %v1987 = vunpack.c.0.s8 %v1986
      %v1988 = vlaneseq
      %v1989 = vshrl.u32 %v1988, 7
      %v1990 = vsub.s32 %v1987, %v1989
      %v1991 = vrot.slane %v765, %v1990
      %v1993 = vunpack.c.l.s4 1966171168
      %v1994 = vunpack.c.0.s8 %v1993
      %v1995 = vlaneseq
      %v1996 = vshrl.u32 %v1995, 7
      %v1997 = vsub.s32 %v1994, %v1996
      %v1998 = vrot.slane %v1984, %v1997
      %v1999 = vcombine.high %v1991, %v1991
      %v2000 = vcombine.high %v1998, %v1998
      %v2002 = vunpack.c.l.s4 1966171168
      %v2003 = vunpack.c.0.s8 %v2002
      %v2004 = vlaneseq
      %v2005 = vshrl.u32 %v2004, 7
      %v2006 = vsub.s32 %v2003, %v2005
      %v2007 = vrot.slane %v1991, %v2006
      %v2009 = vunpack.c.l.s4 1966171168
      %v2010 = vunpack.c.0.s8 %v2009
      %v2011 = vlaneseq
      %v2012 = vshrl.u32 %v2011, 7
      %v2013 = vsub.s32 %v2010, %v2012
      %v2014 = vrot.slane %v1998, %v2013
      %v2016 = vunpack.c.l.s4 1966171168
      %v2017 = vunpack.c.0.s8 %v2016
      %v2018 = vlaneseq
      %v2019 = vshrl.u32 %v2018, 7
      %v2020 = vsub.s32 %v2017, %v2019
      %v2021 = vrot.slane %v1999, %v2020
      %v2023 = vunpack.c.l.s4 1966171168
      %v2024 = vunpack.c.0.s8 %v2023
      %v2025 = vlaneseq
      %v2026 = vshrl.u32 %v2025, 7
      %v2027 = vsub.s32 %v2024, %v2026
      %v2028 = vrot.slane %v2000, %v2027
      %v2029 = vcombine.high %v2007, %v2007
      %v2030 = vcombine.high %v2014, %v2014
      %v2031 = vcombine.high %v2021, %v2021
      %v2032 = vcombine.high %v2028, %v2028
      %v2105 = vcombine.high %v733, %v733
      %v2107 = vunpack.c.l.s4 1966171168
      %v2108 = vunpack.c.0.s8 %v2107
      %v2109 = vlaneseq
      %v2110 = vshrl.u32 %v2109, 7
      %v2111 = vsub.s32 %v2108, %v2110
      %v2112 = vrot.slane %v733, %v2111
      %v2114 = vunpack.c.l.s4 1966171168
      %v2115 = vunpack.c.0.s8 %v2114
      %v2116 = vlaneseq
      %v2117 = vshrl.u32 %v2116, 7
      %v2118 = vsub.s32 %v2115, %v2117
      %v2119 = vrot.slane %v2105, %v2118
      %v2120 = vcombine.high %v2112, %v2112
      %v2121 = vcombine.high %v2119, %v2119
      %v2123 = vunpack.c.l.s4 1966171168
      %v2124 = vunpack.c.0.s8 %v2123
      %v2125 = vlaneseq
      %v2126 = vshrl.u32 %v2125, 7
      %v2127 = vsub.s32 %v2124, %v2126
      %v2128 = vrot.slane %v2112, %v2127
      %v2130 = vunpack.c.l.s4 1966171168
      %v2131 = vunpack.c.0.s8 %v2130
      %v2132 = vlaneseq
      %v2133 = vshrl.u32 %v2132, 7
      %v2134 = vsub.s32 %v2131, %v2133
      %v2135 = vrot.slane %v2119, %v2134
      %v2137 = vunpack.c.l.s4 1966171168
      %v2138 = vunpack.c.0.s8 %v2137
      %v2139 = vlaneseq
      %v2140 = vshrl.u32 %v2139, 7
      %v2141 = vsub.s32 %v2138, %v2140
      %v2142 = vrot.slane %v2120, %v2141
      %v2144 = vunpack.c.l.s4 1966171168
      %v2145 = vunpack.c.0.s8 %v2144
      %v2146 = vlaneseq
      %v2147 = vshrl.u32 %v2146, 7
      %v2148 = vsub.s32 %v2145, %v2147
      %v2149 = vrot.slane %v2121, %v2148
      %v2150 = vcombine.high %v2128, %v2128
      %v2151 = vcombine.high %v2135, %v2135
      %v2152 = vcombine.high %v2142, %v2142
      %v2153 = vcombine.high %v2149, %v2149
      %v2154 = vcombine.high %v737, %v737
      %v2156 = vunpack.c.l.s4 1966171168
      %v2157 = vunpack.c.0.s8 %v2156
      %v2158 = vlaneseq
      %v2159 = vshrl.u32 %v2158, 7
      %v2160 = vsub.s32 %v2157, %v2159
      %v2161 = vrot.slane %v737, %v2160
      %v2163 = vunpack.c.l.s4 1966171168
      %v2164 = vunpack.c.0.s8 %v2163
      %v2165 = vlaneseq
      %v2166 = vshrl.u32 %v2165, 7
      %v2167 = vsub.s32 %v2164, %v2166
      %v2168 = vrot.slane %v2154, %v2167
      %v2169 = vcombine.high %v2161, %v2161
      %v2170 = vcombine.high %v2168, %v2168
      %v2172 = vunpack.c.l.s4 1966171168
      %v2173 = vunpack.c.0.s8 %v2172
      %v2174 = vlaneseq
      %v2175 = vshrl.u32 %v2174, 7
      %v2176 = vsub.s32 %v2173, %v2175
      %v2177 = vrot.slane %v2161, %v2176
      %v2179 = vunpack.c.l.s4 1966171168
      %v2180 = vunpack.c.0.s8 %v2179
      %v2181 = vlaneseq
      %v2182 = vshrl.u32 %v2181, 7
      %v2183 = vsub.s32 %v2180, %v2182
      %v2184 = vrot.slane %v2168, %v2183
      %v2186 = vunpack.c.l.s4 1966171168
      %v2187 = vunpack.c.0.s8 %v2186
      %v2188 = vlaneseq
      %v2189 = vshrl.u32 %v2188, 7
      %v2190 = vsub.s32 %v2187, %v2189
      %v2191 = vrot.slane %v2169, %v2190
      %v2193 = vunpack.c.l.s4 1966171168
      %v2194 = vunpack.c.0.s8 %v2193
      %v2195 = vlaneseq
      %v2196 = vshrl.u32 %v2195, 7
      %v2197 = vsub.s32 %v2194, %v2196
      %v2198 = vrot.slane %v2170, %v2197
      %v2199 = vcombine.high %v2177, %v2177
      %v2200 = vcombine.high %v2184, %v2184
      %v2201 = vcombine.high %v2191, %v2191
      %v2202 = vcombine.high %v2198, %v2198
      %v2203 = vcombine.high %v743, %v743
      %v2205 = vunpack.c.l.s4 1966171168
      %v2206 = vunpack.c.0.s8 %v2205
      %v2207 = vlaneseq
      %v2208 = vshrl.u32 %v2207, 7
      %v2209 = vsub.s32 %v2206, %v2208
      %v2210 = vrot.slane %v743, %v2209
      %v2212 = vunpack.c.l.s4 1966171168
      %v2213 = vunpack.c.0.s8 %v2212
      %v2214 = vlaneseq
      %v2215 = vshrl.u32 %v2214, 7
      %v2216 = vsub.s32 %v2213, %v2215
      %v2217 = vrot.slane %v2203, %v2216
      %v2218 = vcombine.high %v2210, %v2210
      %v2219 = vcombine.high %v2217, %v2217
      %v2221 = vunpack.c.l.s4 1966171168
      %v2222 = vunpack.c.0.s8 %v2221
      %v2223 = vlaneseq
      %v2224 = vshrl.u32 %v2223, 7
      %v2225 = vsub.s32 %v2222, %v2224
      %v2226 = vrot.slane %v2210, %v2225
      %v2228 = vunpack.c.l.s4 1966171168
      %v2229 = vunpack.c.0.s8 %v2228
      %v2230 = vlaneseq
      %v2231 = vshrl.u32 %v2230, 7
      %v2232 = vsub.s32 %v2229, %v2231
      %v2233 = vrot.slane %v2217, %v2232
      %v2235 = vunpack.c.l.s4 1966171168
      %v2236 = vunpack.c.0.s8 %v2235
      %v2237 = vlaneseq
      %v2238 = vshrl.u32 %v2237, 7
      %v2239 = vsub.s32 %v2236, %v2238
      %v2240 = vrot.slane %v2218, %v2239
      %v2242 = vunpack.c.l.s4 1966171168
      %v2243 = vunpack.c.0.s8 %v2242
      %v2244 = vlaneseq
      %v2245 = vshrl.u32 %v2244, 7
      %v2246 = vsub.s32 %v2243, %v2245
      %v2247 = vrot.slane %v2219, %v2246
      %v2248 = vcombine.high %v2226, %v2226
      %v2249 = vcombine.high %v2233, %v2233
      %v2250 = vcombine.high %v2240, %v2240
      %v2251 = vcombine.high %v2247, %v2247
      %v2252 = vcombine.high %v747, %v747
      %v2254 = vunpack.c.l.s4 1966171168
      %v2255 = vunpack.c.0.s8 %v2254
      %v2256 = vlaneseq
      %v2257 = vshrl.u32 %v2256, 7
      %v2258 = vsub.s32 %v2255, %v2257
      %v2259 = vrot.slane %v747, %v2258
      %v2261 = vunpack.c.l.s4 1966171168
      %v2262 = vunpack.c.0.s8 %v2261
      %v2263 = vlaneseq
      %v2264 = vshrl.u32 %v2263, 7
      %v2265 = vsub.s32 %v2262, %v2264
      %v2266 = vrot.slane %v2252, %v2265
      %v2267 = vcombine.high %v2259, %v2259
      %v2268 = vcombine.high %v2266, %v2266
      %v2270 = vunpack.c.l.s4 1966171168
      %v2271 = vunpack.c.0.s8 %v2270
      %v2272 = vlaneseq
      %v2273 = vshrl.u32 %v2272, 7
      %v2274 = vsub.s32 %v2271, %v2273
      %v2275 = vrot.slane %v2259, %v2274
      %v2277 = vunpack.c.l.s4 1966171168
      %v2278 = vunpack.c.0.s8 %v2277
      %v2279 = vlaneseq
      %v2280 = vshrl.u32 %v2279, 7
      %v2281 = vsub.s32 %v2278, %v2280
      %v2282 = vrot.slane %v2266, %v2281
      %v2284 = vunpack.c.l.s4 1966171168
      %v2285 = vunpack.c.0.s8 %v2284
      %v2286 = vlaneseq
      %v2287 = vshrl.u32 %v2286, 7
      %v2288 = vsub.s32 %v2285, %v2287
      %v2289 = vrot.slane %v2267, %v2288
      %v2291 = vunpack.c.l.s4 1966171168
      %v2292 = vunpack.c.0.s8 %v2291
      %v2293 = vlaneseq
      %v2294 = vshrl.u32 %v2293, 7
      %v2295 = vsub.s32 %v2292, %v2294
      %v2296 = vrot.slane %v2268, %v2295
      %v2297 = vcombine.high %v2275, %v2275
      %v2298 = vcombine.high %v2282, %v2282
      %v2299 = vcombine.high %v2289, %v2289
      %v2300 = vcombine.high %v2296, %v2296
      %v2301 = vcombine.high %v753, %v753
      %v2303 = vunpack.c.l.s4 1966171168
      %v2304 = vunpack.c.0.s8 %v2303
      %v2305 = vlaneseq
      %v2306 = vshrl.u32 %v2305, 7
      %v2307 = vsub.s32 %v2304, %v2306
      %v2308 = vrot.slane %v753, %v2307
      %v2310 = vunpack.c.l.s4 1966171168
      %v2311 = vunpack.c.0.s8 %v2310
      %v2312 = vlaneseq
      %v2313 = vshrl.u32 %v2312, 7
      %v2314 = vsub.s32 %v2311, %v2313
      %v2315 = vrot.slane %v2301, %v2314
      %v2316 = vcombine.high %v2308, %v2308
      %v2317 = vcombine.high %v2315, %v2315
      %v2319 = vunpack.c.l.s4 1966171168
      %v2320 = vunpack.c.0.s8 %v2319
      %v2321 = vlaneseq
      %v2322 = vshrl.u32 %v2321, 7
      %v2323 = vsub.s32 %v2320, %v2322
      %v2324 = vrot.slane %v2308, %v2323
      %v2326 = vunpack.c.l.s4 1966171168
      %v2327 = vunpack.c.0.s8 %v2326
      %v2328 = vlaneseq
      %v2329 = vshrl.u32 %v2328, 7
      %v2330 = vsub.s32 %v2327, %v2329
      %v2331 = vrot.slane %v2315, %v2330
      %v2333 = vunpack.c.l.s4 1966171168
      %v2334 = vunpack.c.0.s8 %v2333
      %v2335 = vlaneseq
      %v2336 = vshrl.u32 %v2335, 7
      %v2337 = vsub.s32 %v2334, %v2336
      %v2338 = vrot.slane %v2316, %v2337
      %v2340 = vunpack.c.l.s4 1966171168
      %v2341 = vunpack.c.0.s8 %v2340
      %v2342 = vlaneseq
      %v2343 = vshrl.u32 %v2342, 7
      %v2344 = vsub.s32 %v2341, %v2343
      %v2345 = vrot.slane %v2317, %v2344
      %v2346 = vcombine.high %v2324, %v2324
      %v2347 = vcombine.high %v2331, %v2331
      %v2348 = vcombine.high %v2338, %v2338
      %v2349 = vcombine.high %v2345, %v2345
      %v2350 = vcombine.high %v757, %v757
      %v2352 = vunpack.c.l.s4 1966171168
      %v2353 = vunpack.c.0.s8 %v2352
      %v2354 = vlaneseq
      %v2355 = vshrl.u32 %v2354, 7
      %v2356 = vsub.s32 %v2353, %v2355
      %v2357 = vrot.slane %v757, %v2356
      %v2359 = vunpack.c.l.s4 1966171168
      %v2360 = vunpack.c.0.s8 %v2359
      %v2361 = vlaneseq
      %v2362 = vshrl.u32 %v2361, 7
      %v2363 = vsub.s32 %v2360, %v2362
      %v2364 = vrot.slane %v2350, %v2363
      %v2365 = vcombine.high %v2357, %v2357
      %v2366 = vcombine.high %v2364, %v2364
      %v2368 = vunpack.c.l.s4 1966171168
      %v2369 = vunpack.c.0.s8 %v2368
      %v2370 = vlaneseq
      %v2371 = vshrl.u32 %v2370, 7
      %v2372 = vsub.s32 %v2369, %v2371
      %v2373 = vrot.slane %v2357, %v2372
      %v2375 = vunpack.c.l.s4 1966171168
      %v2376 = vunpack.c.0.s8 %v2375
      %v2377 = vlaneseq
      %v2378 = vshrl.u32 %v2377, 7
      %v2379 = vsub.s32 %v2376, %v2378
      %v2380 = vrot.slane %v2364, %v2379
      %v2382 = vunpack.c.l.s4 1966171168
      %v2383 = vunpack.c.0.s8 %v2382
      %v2384 = vlaneseq
      %v2385 = vshrl.u32 %v2384, 7
      %v2386 = vsub.s32 %v2383, %v2385
      %v2387 = vrot.slane %v2365, %v2386
      %v2389 = vunpack.c.l.s4 1966171168
      %v2390 = vunpack.c.0.s8 %v2389
      %v2391 = vlaneseq
      %v2392 = vshrl.u32 %v2391, 7
      %v2393 = vsub.s32 %v2390, %v2392
      %v2394 = vrot.slane %v2366, %v2393
      %v2395 = vcombine.high %v2373, %v2373
      %v2396 = vcombine.high %v2380, %v2380
      %v2397 = vcombine.high %v2387, %v2387
      %v2398 = vcombine.high %v2394, %v2394
      %v2399 = vcombine.high %v763, %v763
      %v2401 = vunpack.c.l.s4 1966171168
      %v2402 = vunpack.c.0.s8 %v2401
      %v2403 = vlaneseq
      %v2404 = vshrl.u32 %v2403, 7
      %v2405 = vsub.s32 %v2402, %v2404
      %v2406 = vrot.slane %v763, %v2405
      %v2408 = vunpack.c.l.s4 1966171168
      %v2409 = vunpack.c.0.s8 %v2408
      %v2410 = vlaneseq
      %v2411 = vshrl.u32 %v2410, 7
      %v2412 = vsub.s32 %v2409, %v2411
      %v2413 = vrot.slane %v2399, %v2412
      %v2414 = vcombine.high %v2406, %v2406
      %v2415 = vcombine.high %v2413, %v2413
      %v2417 = vunpack.c.l.s4 1966171168
      %v2418 = vunpack.c.0.s8 %v2417
      %v2419 = vlaneseq
      %v2420 = vshrl.u32 %v2419, 7
      %v2421 = vsub.s32 %v2418, %v2420
      %v2422 = vrot.slane %v2406, %v2421
      %v2424 = vunpack.c.l.s4 1966171168
      %v2425 = vunpack.c.0.s8 %v2424
      %v2426 = vlaneseq
      %v2427 = vshrl.u32 %v2426, 7
      %v2428 = vsub.s32 %v2425, %v2427
      %v2429 = vrot.slane %v2413, %v2428
      %v2431 = vunpack.c.l.s4 1966171168
      %v2432 = vunpack.c.0.s8 %v2431
      %v2433 = vlaneseq
      %v2434 = vshrl.u32 %v2433, 7
      %v2435 = vsub.s32 %v2432, %v2434
      %v2436 = vrot.slane %v2414, %v2435
      %v2438 = vunpack.c.l.s4 1966171168
      %v2439 = vunpack.c.0.s8 %v2438
      %v2440 = vlaneseq
      %v2441 = vshrl.u32 %v2440, 7
      %v2442 = vsub.s32 %v2439, %v2441
      %v2443 = vrot.slane %v2415, %v2442
      %v2444 = vcombine.high %v2422, %v2422
      %v2445 = vcombine.high %v2429, %v2429
      %v2446 = vcombine.high %v2436, %v2436
      %v2447 = vcombine.high %v2443, %v2443
      %v2448 = vcombine.high %v767, %v767
      %v2450 = vunpack.c.l.s4 1966171168
      %v2451 = vunpack.c.0.s8 %v2450
      %v2452 = vlaneseq
      %v2453 = vshrl.u32 %v2452, 7
      %v2454 = vsub.s32 %v2451, %v2453
      %v2455 = vrot.slane %v767, %v2454
      %v2457 = vunpack.c.l.s4 1966171168
      %v2458 = vunpack.c.0.s8 %v2457
      %v2459 = vlaneseq
      %v2460 = vshrl.u32 %v2459, 7
      %v2461 = vsub.s32 %v2458, %v2460
      %v2462 = vrot.slane %v2448, %v2461
      %v2463 = vcombine.high %v2455, %v2455
      %v2464 = vcombine.high %v2462, %v2462
      %v2466 = vunpack.c.l.s4 1966171168
      %v2467 = vunpack.c.0.s8 %v2466
      %v2468 = vlaneseq
      %v2469 = vshrl.u32 %v2468, 7
      %v2470 = vsub.s32 %v2467, %v2469
      %v2471 = vrot.slane %v2455, %v2470
      %v2473 = vunpack.c.l.s4 1966171168
      %v2474 = vunpack.c.0.s8 %v2473
      %v2475 = vlaneseq
      %v2476 = vshrl.u32 %v2475, 7
      %v2477 = vsub.s32 %v2474, %v2476
      %v2478 = vrot.slane %v2462, %v2477
      %v2480 = vunpack.c.l.s4 1966171168
      %v2481 = vunpack.c.0.s8 %v2480
      %v2482 = vlaneseq
      %v2483 = vshrl.u32 %v2482, 7
      %v2484 = vsub.s32 %v2481, %v2483
      %v2485 = vrot.slane %v2463, %v2484
      %v2487 = vunpack.c.l.s4 1966171168
      %v2488 = vunpack.c.0.s8 %v2487
      %v2489 = vlaneseq
      %v2490 = vshrl.u32 %v2489, 7
      %v2491 = vsub.s32 %v2488, %v2490
      %v2492 = vrot.slane %v2464, %v2491
      %v2493 = vcombine.high %v2471, %v2471
      %v2494 = vcombine.high %v2478, %v2478
      %v2495 = vcombine.high %v2485, %v2485
      %v2496 = vcombine.high %v2492, %v2492
      %v2497 = vlaneseq
      %v2498 = vshrl.u32 %v2497, 7
      %v2499 = vsub.s32 0, %v2498
      %v2500 = vrot.slane %v1264, %v2499
      %v2501 = vlaneseq
      %v2502 = vshrl.u32 %v2501, 7
      %v2503 = vsub.s32 0, %v2502
      %v2504 = vrot.slane %v1278, %v2503
      %v2505 = vlaneseq
      %v2506 = vshrl.u32 %v2505, 7
      %v2507 = vsub.s32 0, %v2506
      %v2508 = vrot.slane %v1286, %v2507
      %v2509 = vlaneseq
      %v2510 = vshrl.u32 %v2509, 7
      %v2511 = vsub.s32 0, %v2510
      %v2512 = vrot.slane %v1288, %v2511
      %v2513 = vlaneseq
      %v2514 = vshrl.u32 %v2513, 7
      %v2515 = vsub.s32 0, %v2514
      %v2516 = vrot.slane %v1271, %v2515
      %v2517 = vlaneseq
      %v2518 = vshrl.u32 %v2517, 7
      %v2519 = vsub.s32 0, %v2518
      %v2520 = vrot.slane %v1285, %v2519
      %v2521 = vlaneseq
      %v2522 = vshrl.u32 %v2521, 7
      %v2523 = vsub.s32 0, %v2522
      %v2524 = vrot.slane %v1287, %v2523
      %v2525 = vlaneseq
      %v2526 = vshrl.u32 %v2525, 7
      %v2527 = vsub.s32 0, %v2526
      %v2528 = vrot.slane %v1289, %v2527
      %v2529 = vlaneseq
      %v2530 = vshrl.u32 %v2529, 7
      %v2531 = vsub.s32 0, %v2530
      %v2532 = vrot.slane %v1313, %v2531
      %v2533 = vlaneseq
      %v2534 = vshrl.u32 %v2533, 7
      %v2535 = vsub.s32 0, %v2534
      %v2536 = vrot.slane %v1327, %v2535
      %v2537 = vlaneseq
      %v2538 = vshrl.u32 %v2537, 7
      %v2539 = vsub.s32 0, %v2538
      %v2540 = vrot.slane %v1335, %v2539
      %v2541 = vlaneseq
      %v2542 = vshrl.u32 %v2541, 7
      %v2543 = vsub.s32 0, %v2542
      %v2544 = vrot.slane %v1337, %v2543
      %v2545 = vlaneseq
      %v2546 = vshrl.u32 %v2545, 7
      %v2547 = vsub.s32 0, %v2546
      %v2548 = vrot.slane %v1320, %v2547
      %v2549 = vlaneseq
      %v2550 = vshrl.u32 %v2549, 7
      %v2551 = vsub.s32 0, %v2550
      %v2552 = vrot.slane %v1334, %v2551
      %v2553 = vlaneseq
      %v2554 = vshrl.u32 %v2553, 7
      %v2555 = vsub.s32 0, %v2554
      %v2556 = vrot.slane %v1336, %v2555
      %v2557 = vlaneseq
      %v2558 = vshrl.u32 %v2557, 7
      %v2559 = vsub.s32 0, %v2558
      %v2560 = vrot.slane %v1338, %v2559
      %v2561 = vlaneseq
      %v2562 = vshrl.u32 %v2561, 7
      %v2563 = vsub.s32 0, %v2562
      %v2564 = vrot.slane %v1362, %v2563
      %v2565 = vlaneseq
      %v2566 = vshrl.u32 %v2565, 7
      %v2567 = vsub.s32 0, %v2566
      %v2568 = vrot.slane %v1376, %v2567
      %v2569 = vlaneseq
      %v2570 = vshrl.u32 %v2569, 7
      %v2571 = vsub.s32 0, %v2570
      %v2572 = vrot.slane %v1384, %v2571
      %v2573 = vlaneseq
      %v2574 = vshrl.u32 %v2573, 7
      %v2575 = vsub.s32 0, %v2574
      %v2576 = vrot.slane %v1386, %v2575
      %v2577 = vlaneseq
      %v2578 = vshrl.u32 %v2577, 7
      %v2579 = vsub.s32 0, %v2578
      %v2580 = vrot.slane %v1369, %v2579
      %v2581 = vlaneseq
      %v2582 = vshrl.u32 %v2581, 7
      %v2583 = vsub.s32 0, %v2582
      %v2584 = vrot.slane %v1383, %v2583
      %v2585 = vlaneseq
      %v2586 = vshrl.u32 %v2585, 7
      %v2587 = vsub.s32 0, %v2586
      %v2588 = vrot.slane %v1385, %v2587
      %v2589 = vlaneseq
      %v2590 = vshrl.u32 %v2589, 7
      %v2591 = vsub.s32 0, %v2590
      %v2592 = vrot.slane %v1387, %v2591
      %v2593 = vlaneseq
      %v2594 = vshrl.u32 %v2593, 7
      %v2595 = vsub.s32 0, %v2594
      %v2596 = vrot.slane %v1411, %v2595
      %v2597 = vlaneseq
      %v2598 = vshrl.u32 %v2597, 7
      %v2599 = vsub.s32 0, %v2598
      %v2600 = vrot.slane %v1425, %v2599
      %v2601 = vlaneseq
      %v2602 = vshrl.u32 %v2601, 7
      %v2603 = vsub.s32 0, %v2602
      %v2604 = vrot.slane %v1433, %v2603
      %v2605 = vlaneseq
      %v2606 = vshrl.u32 %v2605, 7
      %v2607 = vsub.s32 0, %v2606
      %v2608 = vrot.slane %v1435, %v2607
      %v2609 = vlaneseq
      %v2610 = vshrl.u32 %v2609, 7
      %v2611 = vsub.s32 0, %v2610
      %v2612 = vrot.slane %v1418, %v2611
      %v2613 = vlaneseq
      %v2614 = vshrl.u32 %v2613, 7
      %v2615 = vsub.s32 0, %v2614
      %v2616 = vrot.slane %v1432, %v2615
      %v2617 = vlaneseq
      %v2618 = vshrl.u32 %v2617, 7
      %v2619 = vsub.s32 0, %v2618
      %v2620 = vrot.slane %v1434, %v2619
      %v2621 = vlaneseq
      %v2622 = vshrl.u32 %v2621, 7
      %v2623 = vsub.s32 0, %v2622
      %v2624 = vrot.slane %v1436, %v2623
      %v2625 = vlaneseq
      %v2626 = vshrl.u32 %v2625, 7
      %v2627 = vsub.s32 0, %v2626
      %v2628 = vrot.slane %v1460, %v2627
      %v2629 = vlaneseq
      %v2630 = vshrl.u32 %v2629, 7
      %v2631 = vsub.s32 0, %v2630
      %v2632 = vrot.slane %v1474, %v2631
      %v2633 = vlaneseq
      %v2634 = vshrl.u32 %v2633, 7
      %v2635 = vsub.s32 0, %v2634
      %v2636 = vrot.slane %v1482, %v2635
      %v2637 = vlaneseq
      %v2638 = vshrl.u32 %v2637, 7
      %v2639 = vsub.s32 0, %v2638
      %v2640 = vrot.slane %v1484, %v2639
      %v2641 = vlaneseq
      %v2642 = vshrl.u32 %v2641, 7
      %v2643 = vsub.s32 0, %v2642
      %v2644 = vrot.slane %v1467, %v2643
      %v2645 = vlaneseq
      %v2646 = vshrl.u32 %v2645, 7
      %v2647 = vsub.s32 0, %v2646
      %v2648 = vrot.slane %v1481, %v2647
      %v2649 = vlaneseq
      %v2650 = vshrl.u32 %v2649, 7
      %v2651 = vsub.s32 0, %v2650
      %v2652 = vrot.slane %v1483, %v2651
      %v2653 = vlaneseq
      %v2654 = vshrl.u32 %v2653, 7
      %v2655 = vsub.s32 0, %v2654
      %v2656 = vrot.slane %v1485, %v2655
      %v2657 = vlaneseq
      %v2658 = vshrl.u32 %v2657, 7
      %v2659 = vsub.s32 0, %v2658
      %v2660 = vrot.slane %v1509, %v2659
      %v2661 = vlaneseq
      %v2662 = vshrl.u32 %v2661, 7
      %v2663 = vsub.s32 0, %v2662
      %v2664 = vrot.slane %v1523, %v2663
      %v2665 = vlaneseq
      %v2666 = vshrl.u32 %v2665, 7
      %v2667 = vsub.s32 0, %v2666
      %v2668 = vrot.slane %v1531, %v2667
      %v2669 = vlaneseq
      %v2670 = vshrl.u32 %v2669, 7
      %v2671 = vsub.s32 0, %v2670
      %v2672 = vrot.slane %v1533, %v2671
      %v2673 = vlaneseq
      %v2674 = vshrl.u32 %v2673, 7
      %v2675 = vsub.s32 0, %v2674
      %v2676 = vrot.slane %v1516, %v2675
      %v2677 = vlaneseq
      %v2678 = vshrl.u32 %v2677, 7
      %v2679 = vsub.s32 0, %v2678
      %v2680 = vrot.slane %v1530, %v2679
      %v2681 = vlaneseq
      %v2682 = vshrl.u32 %v2681, 7
      %v2683 = vsub.s32 0, %v2682
      %v2684 = vrot.slane %v1532, %v2683
      %v2685 = vlaneseq
      %v2686 = vshrl.u32 %v2685, 7
      %v2687 = vsub.s32 0, %v2686
      %v2688 = vrot.slane %v1534, %v2687
      %v2689 = vlaneseq
      %v2690 = vshrl.u32 %v2689, 7
      %v2691 = vsub.s32 0, %v2690
      %v2692 = vrot.slane %v1558, %v2691
      %v2693 = vlaneseq
      %v2694 = vshrl.u32 %v2693, 7
      %v2695 = vsub.s32 0, %v2694
      %v2696 = vrot.slane %v1572, %v2695
      %v2697 = vlaneseq
      %v2698 = vshrl.u32 %v2697, 7
      %v2699 = vsub.s32 0, %v2698
      %v2700 = vrot.slane %v1580, %v2699
      %v2701 = vlaneseq
      %v2702 = vshrl.u32 %v2701, 7
      %v2703 = vsub.s32 0, %v2702
      %v2704 = vrot.slane %v1582, %v2703
      %v2705 = vlaneseq
      %v2706 = vshrl.u32 %v2705, 7
      %v2707 = vsub.s32 0, %v2706
      %v2708 = vrot.slane %v1565, %v2707
      %v2709 = vlaneseq
      %v2710 = vshrl.u32 %v2709, 7
      %v2711 = vsub.s32 0, %v2710
      %v2712 = vrot.slane %v1579, %v2711
      %v2713 = vlaneseq
      %v2714 = vshrl.u32 %v2713, 7
      %v2715 = vsub.s32 0, %v2714
      %v2716 = vrot.slane %v1581, %v2715
      %v2717 = vlaneseq
      %v2718 = vshrl.u32 %v2717, 7
      %v2719 = vsub.s32 0, %v2718
      %v2720 = vrot.slane %v1583, %v2719
      %v2721 = vlaneseq
      %v2722 = vshrl.u32 %v2721, 7
      %v2723 = vsub.s32 0, %v2722
      %v2724 = vrot.slane %v1607, %v2723
      %v2725 = vlaneseq
      %v2726 = vshrl.u32 %v2725, 7
      %v2727 = vsub.s32 0, %v2726
      %v2728 = vrot.slane %v1621, %v2727
      %v2729 = vlaneseq
      %v2730 = vshrl.u32 %v2729, 7
      %v2731 = vsub.s32 0, %v2730
      %v2732 = vrot.slane %v1629, %v2731
      %v2733 = vlaneseq
      %v2734 = vshrl.u32 %v2733, 7
      %v2735 = vsub.s32 0, %v2734
      %v2736 = vrot.slane %v1631, %v2735
      %v2737 = vlaneseq
      %v2738 = vshrl.u32 %v2737, 7
      %v2739 = vsub.s32 0, %v2738
      %v2740 = vrot.slane %v1614, %v2739
      %v2741 = vlaneseq
      %v2742 = vshrl.u32 %v2741, 7
      %v2743 = vsub.s32 0, %v2742
      %v2744 = vrot.slane %v1628, %v2743
      %v2745 = vlaneseq
      %v2746 = vshrl.u32 %v2745, 7
      %v2747 = vsub.s32 0, %v2746
      %v2748 = vrot.slane %v1630, %v2747
      %v2749 = vlaneseq
      %v2750 = vshrl.u32 %v2749, 7
      %v2751 = vsub.s32 0, %v2750
      %v2752 = vrot.slane %v1632, %v2751
      %vm2817 = vcmask 1040384
      %v2818 = vsel %vm2817, %v800, %v2500
      %v2819 = vsel %vm2817, %v814, %v2504
      %v2820 = vsel %vm2817, %v822, %v2508
      %v2821 = vsel %vm2817, %v824, %v2512
      %v2822 = vsel %vm2817, %v807, %v2516
      %v2823 = vsel %vm2817, %v821, %v2520
      %v2824 = vsel %vm2817, %v823, %v2524
      %v2825 = vsel %vm2817, %v825, %v2528
      %v2826 = vsel %vm2817, %v849, %v2532
      %v2827 = vsel %vm2817, %v863, %v2536
      %v2828 = vsel %vm2817, %v871, %v2540
      %v2829 = vsel %vm2817, %v873, %v2544
      %v2830 = vsel %vm2817, %v856, %v2548
      %v2831 = vsel %vm2817, %v870, %v2552
      %v2832 = vsel %vm2817, %v872, %v2556
      %v2833 = vsel %vm2817, %v874, %v2560
      %v2834 = vsel %vm2817, %v898, %v2564
      %v2835 = vsel %vm2817, %v912, %v2568
      %v2836 = vsel %vm2817, %v920, %v2572
      %v2837 = vsel %vm2817, %v922, %v2576
      %v2838 = vsel %vm2817, %v905, %v2580
      %v2839 = vsel %vm2817, %v919, %v2584
      %v2840 = vsel %vm2817, %v921, %v2588
      %v2841 = vsel %vm2817, %v923, %v2592
      %v2842 = vsel %vm2817, %v947, %v2596
      %v2843 = vsel %vm2817, %v961, %v2600
      %v2844 = vsel %vm2817, %v969, %v2604
      %v2845 = vsel %vm2817, %v971, %v2608
      %v2846 = vsel %vm2817, %v954, %v2612
      %v2847 = vsel %vm2817, %v968, %v2616
      %v2848 = vsel %vm2817, %v970, %v2620
      %v2849 = vsel %vm2817, %v972, %v2624
      %v2850 = vsel %vm2817, %v996, %v2628
      %v2851 = vsel %vm2817, %v1010, %v2632
      %v2852 = vsel %vm2817, %v1018, %v2636
      %v2853 = vsel %vm2817, %v1020, %v2640
      %v2854 = vsel %vm2817, %v1003, %v2644
      %v2855 = vsel %vm2817, %v1017, %v2648
      %v2856 = vsel %vm2817, %v1019, %v2652
      %v2857 = vsel %vm2817, %v1021, %v2656
      %v2858 = vsel %vm2817, %v1045, %v2660
      %v2859 = vsel %vm2817, %v1059, %v2664
      %v2860 = vsel %vm2817, %v1067, %v2668
      %v2861 = vsel %vm2817, %v1069, %v2672
      %v2862 = vsel %vm2817, %v1052, %v2676
      %v2863 = vsel %vm2817, %v1066, %v2680
      %v2864 = vsel %vm2817, %v1068, %v2684
      %v2865 = vsel %vm2817, %v1070, %v2688
      %v2866 = vsel %vm2817, %v1094, %v2692
      %v2867 = vsel %vm2817, %v1108, %v2696
      %v2868 = vsel %vm2817, %v1116, %v2700
      %v2869 = vsel %vm2817, %v1118, %v2704
      %v2870 = vsel %vm2817, %v1101, %v2708
      %v2871 = vsel %vm2817, %v1115, %v2712
      %v2872 = vsel %vm2817, %v1117, %v2716
      %v2873 = vsel %vm2817, %v1119, %v2720
      %v2874 = vsel %vm2817, %v1143, %v2724
      %v2875 = vsel %vm2817, %v1157, %v2728
      %v2876 = vsel %vm2817, %v1165, %v2732
      %v2877 = vsel %vm2817, %v1167, %v2736
      %v2878 = vsel %vm2817, %v1150, %v2740
      %v2879 = vsel %vm2817, %v1164, %v2744
      %v2880 = vsel %vm2817, %v1166, %v2748
      %v2881 = vsel %vm2817, %v1168, %v2752
      %v2882 = vlaneseq
      %v2883 = vshrl.u32 %v2882, 7
      %v2884 = vsub.s32 0, %v2883
      %v2885 = vrot.slane %v2128, %v2884
      %v2886 = vlaneseq
      %v2887 = vshrl.u32 %v2886, 7
      %v2888 = vsub.s32 0, %v2887
      %v2889 = vrot.slane %v2142, %v2888
      %v2890 = vlaneseq
      %v2891 = vshrl.u32 %v2890, 7
      %v2892 = vsub.s32 0, %v2891
      %v2893 = vrot.slane %v2150, %v2892
      %v2894 = vlaneseq
      %v2895 = vshrl.u32 %v2894, 7
      %v2896 = vsub.s32 0, %v2895
      %v2897 = vrot.slane %v2152, %v2896
      %v2898 = vlaneseq
      %v2899 = vshrl.u32 %v2898, 7
      %v2900 = vsub.s32 0, %v2899
      %v2901 = vrot.slane %v2135, %v2900
      %v2902 = vlaneseq
      %v2903 = vshrl.u32 %v2902, 7
      %v2904 = vsub.s32 0, %v2903
      %v2905 = vrot.slane %v2149, %v2904
      %v2906 = vlaneseq
      %v2907 = vshrl.u32 %v2906, 7
      %v2908 = vsub.s32 0, %v2907
      %v2909 = vrot.slane %v2151, %v2908
      %v2910 = vlaneseq
      %v2911 = vshrl.u32 %v2910, 7
      %v2912 = vsub.s32 0, %v2911
      %v2913 = vrot.slane %v2153, %v2912
      %v2914 = vlaneseq
      %v2915 = vshrl.u32 %v2914, 7
      %v2916 = vsub.s32 0, %v2915
      %v2917 = vrot.slane %v2177, %v2916
      %v2918 = vlaneseq
      %v2919 = vshrl.u32 %v2918, 7
      %v2920 = vsub.s32 0, %v2919
      %v2921 = vrot.slane %v2191, %v2920
      %v2922 = vlaneseq
      %v2923 = vshrl.u32 %v2922, 7
      %v2924 = vsub.s32 0, %v2923
      %v2925 = vrot.slane %v2199, %v2924
      %v2926 = vlaneseq
      %v2927 = vshrl.u32 %v2926, 7
      %v2928 = vsub.s32 0, %v2927
      %v2929 = vrot.slane %v2201, %v2928
      %v2930 = vlaneseq
      %v2931 = vshrl.u32 %v2930, 7
      %v2932 = vsub.s32 0, %v2931
      %v2933 = vrot.slane %v2184, %v2932
      %v2934 = vlaneseq
      %v2935 = vshrl.u32 %v2934, 7
      %v2936 = vsub.s32 0, %v2935
      %v2937 = vrot.slane %v2198, %v2936
      %v2938 = vlaneseq
      %v2939 = vshrl.u32 %v2938, 7
      %v2940 = vsub.s32 0, %v2939
      %v2941 = vrot.slane %v2200, %v2940
      %v2942 = vlaneseq
      %v2943 = vshrl.u32 %v2942, 7
      %v2944 = vsub.s32 0, %v2943
      %v2945 = vrot.slane %v2202, %v2944
      %v2946 = vlaneseq
      %v2947 = vshrl.u32 %v2946, 7
      %v2948 = vsub.s32 0, %v2947
      %v2949 = vrot.slane %v2226, %v2948
      %v2950 = vlaneseq
      %v2951 = vshrl.u32 %v2950, 7
      %v2952 = vsub.s32 0, %v2951
      %v2953 = vrot.slane %v2240, %v2952
      %v2954 = vlaneseq
      %v2955 = vshrl.u32 %v2954, 7
      %v2956 = vsub.s32 0, %v2955
      %v2957 = vrot.slane %v2248, %v2956
      %v2958 = vlaneseq
      %v2959 = vshrl.u32 %v2958, 7
      %v2960 = vsub.s32 0, %v2959
      %v2961 = vrot.slane %v2250, %v2960
      %v2962 = vlaneseq
      %v2963 = vshrl.u32 %v2962, 7
      %v2964 = vsub.s32 0, %v2963
      %v2965 = vrot.slane %v2233, %v2964
      %v2966 = vlaneseq
      %v2967 = vshrl.u32 %v2966, 7
      %v2968 = vsub.s32 0, %v2967
      %v2969 = vrot.slane %v2247, %v2968
      %v2970 = vlaneseq
      %v2971 = vshrl.u32 %v2970, 7
      %v2972 = vsub.s32 0, %v2971
      %v2973 = vrot.slane %v2249, %v2972
      %v2974 = vlaneseq
      %v2975 = vshrl.u32 %v2974, 7
      %v2976 = vsub.s32 0, %v2975
      %v2977 = vrot.slane %v2251, %v2976
      %v2978 = vlaneseq
      %v2979 = vshrl.u32 %v2978, 7
      %v2980 = vsub.s32 0, %v2979
      %v2981 = vrot.slane %v2275, %v2980
      %v2982 = vlaneseq
      %v2983 = vshrl.u32 %v2982, 7
      %v2984 = vsub.s32 0, %v2983
      %v2985 = vrot.slane %v2289, %v2984
      %v2986 = vlaneseq
      %v2987 = vshrl.u32 %v2986, 7
      %v2988 = vsub.s32 0, %v2987
      %v2989 = vrot.slane %v2297, %v2988
      %v2990 = vlaneseq
      %v2991 = vshrl.u32 %v2990, 7
      %v2992 = vsub.s32 0, %v2991
      %v2993 = vrot.slane %v2299, %v2992
      %v2994 = vlaneseq
      %v2995 = vshrl.u32 %v2994, 7
      %v2996 = vsub.s32 0, %v2995
      %v2997 = vrot.slane %v2282, %v2996
      %v2998 = vlaneseq
      %v2999 = vshrl.u32 %v2998, 7
      %v3000 = vsub.s32 0, %v2999
      %v3001 = vrot.slane %v2296, %v3000
      %v3002 = vlaneseq
      %v3003 = vshrl.u32 %v3002, 7
      %v3004 = vsub.s32 0, %v3003
      %v3005 = vrot.slane %v2298, %v3004
      %v3006 = vlaneseq
      %v3007 = vshrl.u32 %v3006, 7
      %v3008 = vsub.s32 0, %v3007
      %v3009 = vrot.slane %v2300, %v3008
      %v3010 = vlaneseq
      %v3011 = vshrl.u32 %v3010, 7
      %v3012 = vsub.s32 0, %v3011
      %v3013 = vrot.slane %v2324, %v3012
      %v3014 = vlaneseq
      %v3015 = vshrl.u32 %v3014, 7
      %v3016 = vsub.s32 0, %v3015
      %v3017 = vrot.slane %v2338, %v3016
      %v3018 = vlaneseq
      %v3019 = vshrl.u32 %v3018, 7
      %v3020 = vsub.s32 0, %v3019
      %v3021 = vrot.slane %v2346, %v3020
      %v3022 = vlaneseq
      %v3023 = vshrl.u32 %v3022, 7
      %v3024 = vsub.s32 0, %v3023
      %v3025 = vrot.slane %v2348, %v3024
      %v3026 = vlaneseq
      %v3027 = vshrl.u32 %v3026, 7
      %v3028 = vsub.s32 0, %v3027
      %v3029 = vrot.slane %v2331, %v3028
      %v3030 = vlaneseq
      %v3031 = vshrl.u32 %v3030, 7
      %v3032 = vsub.s32 0, %v3031
      %v3033 = vrot.slane %v2345, %v3032
      %v3034 = vlaneseq
      %v3035 = vshrl.u32 %v3034, 7
      %v3036 = vsub.s32 0, %v3035
      %v3037 = vrot.slane %v2347, %v3036
      %v3038 = vlaneseq
      %v3039 = vshrl.u32 %v3038, 7
      %v3040 = vsub.s32 0, %v3039
      %v3041 = vrot.slane %v2349, %v3040
      %v3042 = vlaneseq
      %v3043 = vshrl.u32 %v3042, 7
      %v3044 = vsub.s32 0, %v3043
      %v3045 = vrot.slane %v2373, %v3044
      %v3046 = vlaneseq
      %v3047 = vshrl.u32 %v3046, 7
      %v3048 = vsub.s32 0, %v3047
      %v3049 = vrot.slane %v2387, %v3048
      %v3050 = vlaneseq
      %v3051 = vshrl.u32 %v3050, 7
      %v3052 = vsub.s32 0, %v3051
      %v3053 = vrot.slane %v2395, %v3052
      %v3054 = vlaneseq
      %v3055 = vshrl.u32 %v3054, 7
      %v3056 = vsub.s32 0, %v3055
      %v3057 = vrot.slane %v2397, %v3056
      %v3058 = vlaneseq
      %v3059 = vshrl.u32 %v3058, 7
      %v3060 = vsub.s32 0, %v3059
      %v3061 = vrot.slane %v2380, %v3060
      %v3062 = vlaneseq
      %v3063 = vshrl.u32 %v3062, 7
      %v3064 = vsub.s32 0, %v3063
      %v3065 = vrot.slane %v2394, %v3064
      %v3066 = vlaneseq
      %v3067 = vshrl.u32 %v3066, 7
      %v3068 = vsub.s32 0, %v3067
      %v3069 = vrot.slane %v2396, %v3068
      %v3070 = vlaneseq
      %v3071 = vshrl.u32 %v3070, 7
      %v3072 = vsub.s32 0, %v3071
      %v3073 = vrot.slane %v2398, %v3072
      %v3074 = vlaneseq
      %v3075 = vshrl.u32 %v3074, 7
      %v3076 = vsub.s32 0, %v3075
      %v3077 = vrot.slane %v2422, %v3076
      %v3078 = vlaneseq
      %v3079 = vshrl.u32 %v3078, 7
      %v3080 = vsub.s32 0, %v3079
      %v3081 = vrot.slane %v2436, %v3080
      %v3082 = vlaneseq
      %v3083 = vshrl.u32 %v3082, 7
      %v3084 = vsub.s32 0, %v3083
      %v3085 = vrot.slane %v2444, %v3084
      %v3086 = vlaneseq
      %v3087 = vshrl.u32 %v3086, 7
      %v3088 = vsub.s32 0, %v3087
      %v3089 = vrot.slane %v2446, %v3088
      %v3090 = vlaneseq
      %v3091 = vshrl.u32 %v3090, 7
      %v3092 = vsub.s32 0, %v3091
      %v3093 = vrot.slane %v2429, %v3092
      %v3094 = vlaneseq
      %v3095 = vshrl.u32 %v3094, 7
      %v3096 = vsub.s32 0, %v3095
      %v3097 = vrot.slane %v2443, %v3096
      %v3098 = vlaneseq
      %v3099 = vshrl.u32 %v3098, 7
      %v3100 = vsub.s32 0, %v3099
      %v3101 = vrot.slane %v2445, %v3100
      %v3102 = vlaneseq
      %v3103 = vshrl.u32 %v3102, 7
      %v3104 = vsub.s32 0, %v3103
      %v3105 = vrot.slane %v2447, %v3104
      %v3106 = vlaneseq
      %v3107 = vshrl.u32 %v3106, 7
      %v3108 = vsub.s32 0, %v3107
      %v3109 = vrot.slane %v2471, %v3108
      %v3110 = vlaneseq
      %v3111 = vshrl.u32 %v3110, 7
      %v3112 = vsub.s32 0, %v3111
      %v3113 = vrot.slane %v2485, %v3112
      %v3114 = vlaneseq
      %v3115 = vshrl.u32 %v3114, 7
      %v3116 = vsub.s32 0, %v3115
      %v3117 = vrot.slane %v2493, %v3116
      %v3118 = vlaneseq
      %v3119 = vshrl.u32 %v3118, 7
      %v3120 = vsub.s32 0, %v3119
      %v3121 = vrot.slane %v2495, %v3120
      %v3122 = vlaneseq
      %v3123 = vshrl.u32 %v3122, 7
      %v3124 = vsub.s32 0, %v3123
      %v3125 = vrot.slane %v2478, %v3124
      %v3126 = vlaneseq
      %v3127 = vshrl.u32 %v3126, 7
      %v3128 = vsub.s32 0, %v3127
      %v3129 = vrot.slane %v2492, %v3128
      %v3130 = vlaneseq
      %v3131 = vshrl.u32 %v3130, 7
      %v3132 = vsub.s32 0, %v3131
      %v3133 = vrot.slane %v2494, %v3132
      %v3134 = vlaneseq
      %v3135 = vshrl.u32 %v3134, 7
      %v3136 = vsub.s32 0, %v3135
      %v3137 = vrot.slane %v2496, %v3136
      %v3202 = vsel %vm2817, %v1664, %v2885
      %v3203 = vsel %vm2817, %v1678, %v2889
      %v3204 = vsel %vm2817, %v1686, %v2893
      %v3205 = vsel %vm2817, %v1688, %v2897
      %v3206 = vsel %vm2817, %v1671, %v2901
      %v3207 = vsel %vm2817, %v1685, %v2905
      %v3208 = vsel %vm2817, %v1687, %v2909
      %v3209 = vsel %vm2817, %v1689, %v2913
      %v3210 = vsel %vm2817, %v1713, %v2917
      %v3211 = vsel %vm2817, %v1727, %v2921
      %v3212 = vsel %vm2817, %v1735, %v2925
      %v3213 = vsel %vm2817, %v1737, %v2929
      %v3214 = vsel %vm2817, %v1720, %v2933
      %v3215 = vsel %vm2817, %v1734, %v2937
      %v3216 = vsel %vm2817, %v1736, %v2941
      %v3217 = vsel %vm2817, %v1738, %v2945
      %v3218 = vsel %vm2817, %v1762, %v2949
      %v3219 = vsel %vm2817, %v1776, %v2953
      %v3220 = vsel %vm2817, %v1784, %v2957
      %v3221 = vsel %vm2817, %v1786, %v2961
      %v3222 = vsel %vm2817, %v1769, %v2965
      %v3223 = vsel %vm2817, %v1783, %v2969
      %v3224 = vsel %vm2817, %v1785, %v2973
      %v3225 = vsel %vm2817, %v1787, %v2977
      %v3226 = vsel %vm2817, %v1811, %v2981
      %v3227 = vsel %vm2817, %v1825, %v2985
      %v3228 = vsel %vm2817, %v1833, %v2989
      %v3229 = vsel %vm2817, %v1835, %v2993
      %v3230 = vsel %vm2817, %v1818, %v2997
      %v3231 = vsel %vm2817, %v1832, %v3001
      %v3232 = vsel %vm2817, %v1834, %v3005
      %v3233 = vsel %vm2817, %v1836, %v3009
      %v3234 = vsel %vm2817, %v1860, %v3013
      %v3235 = vsel %vm2817, %v1874, %v3017
      %v3236 = vsel %vm2817, %v1882, %v3021
      %v3237 = vsel %vm2817, %v1884, %v3025
      %v3238 = vsel %vm2817, %v1867, %v3029
      %v3239 = vsel %vm2817, %v1881, %v3033
      %v3240 = vsel %vm2817, %v1883, %v3037
      %v3241 = vsel %vm2817, %v1885, %v3041
      %v3242 = vsel %vm2817, %v1909, %v3045
      %v3243 = vsel %vm2817, %v1923, %v3049
      %v3244 = vsel %vm2817, %v1931, %v3053
      %v3245 = vsel %vm2817, %v1933, %v3057
      %v3246 = vsel %vm2817, %v1916, %v3061
      %v3247 = vsel %vm2817, %v1930, %v3065
      %v3248 = vsel %vm2817, %v1932, %v3069
      %v3249 = vsel %vm2817, %v1934, %v3073
      %v3250 = vsel %vm2817, %v1958, %v3077
      %v3251 = vsel %vm2817, %v1972, %v3081
      %v3252 = vsel %vm2817, %v1980, %v3085
      %v3253 = vsel %vm2817, %v1982, %v3089
      %v3254 = vsel %vm2817, %v1965, %v3093
      %v3255 = vsel %vm2817, %v1979, %v3097
      %v3256 = vsel %vm2817, %v1981, %v3101
      %v3257 = vsel %vm2817, %v1983, %v3105
      %v3258 = vsel %vm2817, %v2007, %v3109
      %v3259 = vsel %vm2817, %v2021, %v3113
      %v3260 = vsel %vm2817, %v2029, %v3117
      %v3261 = vsel %vm2817, %v2031, %v3121
      %v3262 = vsel %vm2817, %v2014, %v3125
      %v3263 = vsel %vm2817, %v2028, %v3129
      %v3264 = vsel %vm2817, %v2030, %v3133
      %v3265 = vsel %vm2817, %v2032, %v3137
      %v3266 = vld [vmem:[%s2] sm:$0x1]
      %v3268 = vlaneseq
      %v3269 = vshrl.u32 %v3268, 7
      %v3270 = vsub.s32 0, %v3269
      %v3271 = vrot.slane %v3266, %v3270
      %v3272 = vcombine.high %v3271, %v3271
      %v3274 = vunpack.c.l.s4 1983009808
      %v3275 = vunpack.c.0.s8 %v3274
      %v3276 = vlaneseq
      %v3277 = vshrl.u32 %v3276, 7
      %v3278 = vsub.s32 %v3275, %v3277
      %v3279 = vrot.slane %v3271, %v3278
      %v3281 = vunpack.c.l.s4 1983009808
      %v3282 = vunpack.c.0.s8 %v3281
      %v3283 = vlaneseq
      %v3284 = vshrl.u32 %v3283, 7
      %v3285 = vsub.s32 %v3282, %v3284
      %v3286 = vrot.slane %v3272, %v3285
      %v3287 = vcombine.high %v3279, %v3279
      %v3288 = vcombine.high %v3286, %v3286
      %v3293 = vadd.f32 %v2818, %v3279
      %v3294 = vadd.f32 %v2819, %v3287
      %v3295 = vadd.f32 %v2820, %v3286
      %v3296 = vadd.f32 %v2821, %v3288
      %v3297 = vadd.f32 %v2822, %v3279
      %v3298 = vadd.f32 %v2823, %v3287
      %v3299 = vadd.f32 %v2824, %v3286
      %v3300 = vadd.f32 %v2825, %v3288
      %v3301 = vadd.f32 %v3202, %v3279
      %v3302 = vadd.f32 %v3203, %v3287
      %v3303 = vadd.f32 %v3204, %v3286
      %v3304 = vadd.f32 %v3205, %v3288
      %v3305 = vadd.f32 %v3206, %v3279
      %v3306 = vadd.f32 %v3207, %v3287
      %v3307 = vadd.f32 %v3208, %v3286
      %v3308 = vadd.f32 %v3209, %v3288
      %v3309 = vadd.f32 %v2826, %v3279
      %v3310 = vadd.f32 %v2827, %v3287
      %v3311 = vadd.f32 %v2828, %v3286
      %v3312 = vadd.f32 %v2829, %v3288
      %v3313 = vadd.f32 %v2830, %v3279
      %v3314 = vadd.f32 %v2831, %v3287
      %v3315 = vadd.f32 %v2832, %v3286
      %v3316 = vadd.f32 %v2833, %v3288
      %v3317 = vadd.f32 %v3210, %v3279
      %v3318 = vadd.f32 %v3211, %v3287
      %v3319 = vadd.f32 %v3212, %v3286
      %v3320 = vadd.f32 %v3213, %v3288
      %v3321 = vadd.f32 %v3214, %v3279
      %v3322 = vadd.f32 %v3215, %v3287
      %v3323 = vadd.f32 %v3216, %v3286
      %v3324 = vadd.f32 %v3217, %v3288
      %v3325 = vadd.f32 %v2834, %v3279
      %v3326 = vadd.f32 %v2835, %v3287
      %v3327 = vadd.f32 %v2836, %v3286
      %v3328 = vadd.f32 %v2837, %v3288
      %v3329 = vadd.f32 %v2838, %v3279
      %v3330 = vadd.f32 %v2839, %v3287
      %v3331 = vadd.f32 %v2840, %v3286
      %v3332 = vadd.f32 %v2841, %v3288
      %v3333 = vadd.f32 %v3218, %v3279
      %v3334 = vadd.f32 %v3219, %v3287
      %v3335 = vadd.f32 %v3220, %v3286
      %v3336 = vadd.f32 %v3221, %v3288
      %v3337 = vadd.f32 %v3222, %v3279
      %v3338 = vadd.f32 %v3223, %v3287
      %v3339 = vadd.f32 %v3224, %v3286
      %v3340 = vadd.f32 %v3225, %v3288
      %v3341 = vadd.f32 %v2842, %v3279
      %v3342 = vadd.f32 %v2843, %v3287
      %v3343 = vadd.f32 %v2844, %v3286
      %v3344 = vadd.f32 %v2845, %v3288
      %v3345 = vadd.f32 %v2846, %v3279
      %v3346 = vadd.f32 %v2847, %v3287
      %v3347 = vadd.f32 %v2848, %v3286
      %v3348 = vadd.f32 %v2849, %v3288
      %v3349 = vadd.f32 %v3226, %v3279
      %v3350 = vadd.f32 %v3227, %v3287
      %v3351 = vadd.f32 %v3228, %v3286
      %v3352 = vadd.f32 %v3229, %v3288
      %v3353 = vadd.f32 %v3230, %v3279
      %v3354 = vadd.f32 %v3231, %v3287
      %v3355 = vadd.f32 %v3232, %v3286
      %v3356 = vadd.f32 %v3233, %v3288
      %v3357 = vadd.f32 %v2850, %v3279
      %v3358 = vadd.f32 %v2851, %v3287
      %v3359 = vadd.f32 %v2852, %v3286
      %v3360 = vadd.f32 %v2853, %v3288
      %v3361 = vadd.f32 %v2854, %v3279
      %v3362 = vadd.f32 %v2855, %v3287
      %v3363 = vadd.f32 %v2856, %v3286
      %v3364 = vadd.f32 %v2857, %v3288
      %v3365 = vadd.f32 %v3234, %v3279
      %v3366 = vadd.f32 %v3235, %v3287
      %v3367 = vadd.f32 %v3236, %v3286
      %v3368 = vadd.f32 %v3237, %v3288
      %v3369 = vadd.f32 %v3238, %v3279
      %v3370 = vadd.f32 %v3239, %v3287
      %v3371 = vadd.f32 %v3240, %v3286
      %v3372 = vadd.f32 %v3241, %v3288
      %v3373 = vadd.f32 %v2858, %v3279
      %v3374 = vadd.f32 %v2859, %v3287
      %v3375 = vadd.f32 %v2860, %v3286
      %v3376 = vadd.f32 %v2861, %v3288
      %v3377 = vadd.f32 %v2862, %v3279
      %v3378 = vadd.f32 %v2863, %v3287
      %v3379 = vadd.f32 %v2864, %v3286
      %v3380 = vadd.f32 %v2865, %v3288
      %v3381 = vadd.f32 %v3242, %v3279
      %v3382 = vadd.f32 %v3243, %v3287
      %v3383 = vadd.f32 %v3244, %v3286
      %v3384 = vadd.f32 %v3245, %v3288
      %v3385 = vadd.f32 %v3246, %v3279
      %v3386 = vadd.f32 %v3247, %v3287
      %v3387 = vadd.f32 %v3248, %v3286
      %v3388 = vadd.f32 %v3249, %v3288
      %v3389 = vadd.f32 %v2866, %v3279
      %v3390 = vadd.f32 %v2867, %v3287
      %v3391 = vadd.f32 %v2868, %v3286
      %v3392 = vadd.f32 %v2869, %v3288
      %v3393 = vadd.f32 %v2870, %v3279
      %v3394 = vadd.f32 %v2871, %v3287
      %v3395 = vadd.f32 %v2872, %v3286
      %v3396 = vadd.f32 %v2873, %v3288
      %v3397 = vadd.f32 %v3250, %v3279
      %v3398 = vadd.f32 %v3251, %v3287
      %v3399 = vadd.f32 %v3252, %v3286
      %v3400 = vadd.f32 %v3253, %v3288
      %v3401 = vadd.f32 %v3254, %v3279
      %v3402 = vadd.f32 %v3255, %v3287
      %v3403 = vadd.f32 %v3256, %v3286
      %v3404 = vadd.f32 %v3257, %v3288
      %v3405 = vadd.f32 %v2874, %v3279
      %v3406 = vadd.f32 %v2875, %v3287
      %v3407 = vadd.f32 %v2876, %v3286
      %v3408 = vadd.f32 %v2877, %v3288
      %v3409 = vadd.f32 %v2878, %v3279
      %v3410 = vadd.f32 %v2879, %v3287
      %v3411 = vadd.f32 %v2880, %v3286
      %v3412 = vadd.f32 %v2881, %v3288
      %v3413 = vadd.f32 %v3258, %v3279
      %v3414 = vadd.f32 %v3259, %v3287
      %v3415 = vadd.f32 %v3260, %v3286
      %v3416 = vadd.f32 %v3261, %v3288
      %v3417 = vadd.f32 %v3262, %v3279
      %v3418 = vadd.f32 %v3263, %v3287
      %v3419 = vadd.f32 %v3264, %v3286
      %v3420 = vadd.f32 %v3265, %v3288
      %v3549 = vcombine.low %v3293, %v3294
      %v3550 = vcombine.low %v3295, %v3296
      %v3552 = vunpack.c.l.s4 1983009808
      %v3553 = vunpack.c.0.s8 %v3552
      %v3554 = vlaneseq
      %v3555 = vshrl.u32 %v3554, 7
      %v3556 = vsub.s32 %v3553, %v3555
      %v3557 = vrot.slane %v3549, %v3556
      %v3559 = vunpack.c.l.s4 1983009808
      %v3560 = vunpack.c.0.s8 %v3559
      %v3561 = vlaneseq
      %v3562 = vshrl.u32 %v3561, 7
      %v3563 = vsub.s32 %v3560, %v3562
      %v3564 = vrot.slane %v3550, %v3563
      %v3565 = vcombine.low %v3557, %v3564
      %v3566 = vcombine.low %v3297, %v3298
      %v3567 = vcombine.low %v3299, %v3300
      %v3569 = vunpack.c.l.s4 1983009808
      %v3570 = vunpack.c.0.s8 %v3569
      %v3571 = vlaneseq
      %v3572 = vshrl.u32 %v3571, 7
      %v3573 = vsub.s32 %v3570, %v3572
      %v3574 = vrot.slane %v3566, %v3573
      %v3576 = vunpack.c.l.s4 1983009808
      %v3577 = vunpack.c.0.s8 %v3576
      %v3578 = vlaneseq
      %v3579 = vshrl.u32 %v3578, 7
      %v3580 = vsub.s32 %v3577, %v3579
      %v3581 = vrot.slane %v3567, %v3580
      %v3582 = vcombine.low %v3574, %v3581
      %v3583 = vcombine.low %v3301, %v3302
      %v3584 = vcombine.low %v3303, %v3304
      %v3586 = vunpack.c.l.s4 1983009808
      %v3587 = vunpack.c.0.s8 %v3586
      %v3588 = vlaneseq
      %v3589 = vshrl.u32 %v3588, 7
      %v3590 = vsub.s32 %v3587, %v3589
      %v3591 = vrot.slane %v3583, %v3590
      %v3593 = vunpack.c.l.s4 1983009808
      %v3594 = vunpack.c.0.s8 %v3593
      %v3595 = vlaneseq
      %v3596 = vshrl.u32 %v3595, 7
      %v3597 = vsub.s32 %v3594, %v3596
      %v3598 = vrot.slane %v3584, %v3597
      %v3599 = vcombine.low %v3591, %v3598
      %v3600 = vcombine.low %v3305, %v3306
      %v3601 = vcombine.low %v3307, %v3308
      %v3603 = vunpack.c.l.s4 1983009808
      %v3604 = vunpack.c.0.s8 %v3603
      %v3605 = vlaneseq
      %v3606 = vshrl.u32 %v3605, 7
      %v3607 = vsub.s32 %v3604, %v3606
      %v3608 = vrot.slane %v3600, %v3607
      %v3610 = vunpack.c.l.s4 1983009808
      %v3611 = vunpack.c.0.s8 %v3610
      %v3612 = vlaneseq
      %v3613 = vshrl.u32 %v3612, 7
      %v3614 = vsub.s32 %v3611, %v3613
      %v3615 = vrot.slane %v3601, %v3614
      %v3616 = vcombine.low %v3608, %v3615
      %v3617 = vcombine.low %v3309, %v3310
      %v3618 = vcombine.low %v3311, %v3312
      %v3620 = vunpack.c.l.s4 1983009808
      %v3621 = vunpack.c.0.s8 %v3620
      %v3622 = vlaneseq
      %v3623 = vshrl.u32 %v3622, 7
      %v3624 = vsub.s32 %v3621, %v3623
      %v3625 = vrot.slane %v3617, %v3624
      %v3627 = vunpack.c.l.s4 1983009808
      %v3628 = vunpack.c.0.s8 %v3627
      %v3629 = vlaneseq
      %v3630 = vshrl.u32 %v3629, 7
      %v3631 = vsub.s32 %v3628, %v3630
      %v3632 = vrot.slane %v3618, %v3631
      %v3633 = vcombine.low %v3625, %v3632
      %v3634 = vcombine.low %v3313, %v3314
      %v3635 = vcombine.low %v3315, %v3316
      %v3637 = vunpack.c.l.s4 1983009808
      %v3638 = vunpack.c.0.s8 %v3637
      %v3639 = vlaneseq
      %v3640 = vshrl.u32 %v3639, 7
      %v3641 = vsub.s32 %v3638, %v3640
      %v3642 = vrot.slane %v3634, %v3641
      %v3644 = vunpack.c.l.s4 1983009808
      %v3645 = vunpack.c.0.s8 %v3644
      %v3646 = vlaneseq
      %v3647 = vshrl.u32 %v3646, 7
      %v3648 = vsub.s32 %v3645, %v3647
      %v3649 = vrot.slane %v3635, %v3648
      %v3650 = vcombine.low %v3642, %v3649
      %v3651 = vcombine.low %v3317, %v3318
      %v3652 = vcombine.low %v3319, %v3320
      %v3654 = vunpack.c.l.s4 1983009808
      %v3655 = vunpack.c.0.s8 %v3654
      %v3656 = vlaneseq
      %v3657 = vshrl.u32 %v3656, 7
      %v3658 = vsub.s32 %v3655, %v3657
      %v3659 = vrot.slane %v3651, %v3658
      %v3661 = vunpack.c.l.s4 1983009808
      %v3662 = vunpack.c.0.s8 %v3661
      %v3663 = vlaneseq
      %v3664 = vshrl.u32 %v3663, 7
      %v3665 = vsub.s32 %v3662, %v3664
      %v3666 = vrot.slane %v3652, %v3665
      %v3667 = vcombine.low %v3659, %v3666
      %v3668 = vcombine.low %v3321, %v3322
      %v3669 = vcombine.low %v3323, %v3324
      %v3671 = vunpack.c.l.s4 1983009808
      %v3672 = vunpack.c.0.s8 %v3671
      %v3673 = vlaneseq
      %v3674 = vshrl.u32 %v3673, 7
      %v3675 = vsub.s32 %v3672, %v3674
      %v3676 = vrot.slane %v3668, %v3675
      %v3678 = vunpack.c.l.s4 1983009808
      %v3679 = vunpack.c.0.s8 %v3678
      %v3680 = vlaneseq
      %v3681 = vshrl.u32 %v3680, 7
      %v3682 = vsub.s32 %v3679, %v3681
      %v3683 = vrot.slane %v3669, %v3682
      %v3684 = vcombine.low %v3676, %v3683
      %v3685 = vcombine.low %v3325, %v3326
      %v3686 = vcombine.low %v3327, %v3328
      %v3688 = vunpack.c.l.s4 1983009808
      %v3689 = vunpack.c.0.s8 %v3688
      %v3690 = vlaneseq
      %v3691 = vshrl.u32 %v3690, 7
      %v3692 = vsub.s32 %v3689, %v3691
      %v3693 = vrot.slane %v3685, %v3692
      %v3695 = vunpack.c.l.s4 1983009808
      %v3696 = vunpack.c.0.s8 %v3695
      %v3697 = vlaneseq
      %v3698 = vshrl.u32 %v3697, 7
      %v3699 = vsub.s32 %v3696, %v3698
      %v3700 = vrot.slane %v3686, %v3699
      %v3701 = vcombine.low %v3693, %v3700
      %v3702 = vcombine.low %v3329, %v3330
      %v3703 = vcombine.low %v3331, %v3332
      %v3705 = vunpack.c.l.s4 1983009808
      %v3706 = vunpack.c.0.s8 %v3705
      %v3707 = vlaneseq
      %v3708 = vshrl.u32 %v3707, 7
      %v3709 = vsub.s32 %v3706, %v3708
      %v3710 = vrot.slane %v3702, %v3709
      %v3712 = vunpack.c.l.s4 1983009808
      %v3713 = vunpack.c.0.s8 %v3712
      %v3714 = vlaneseq
      %v3715 = vshrl.u32 %v3714, 7
      %v3716 = vsub.s32 %v3713, %v3715
      %v3717 = vrot.slane %v3703, %v3716
      %v3718 = vcombine.low %v3710, %v3717
      %v3719 = vcombine.low %v3333, %v3334
      %v3720 = vcombine.low %v3335, %v3336
      %v3722 = vunpack.c.l.s4 1983009808
      %v3723 = vunpack.c.0.s8 %v3722
      %v3724 = vlaneseq
      %v3725 = vshrl.u32 %v3724, 7
      %v3726 = vsub.s32 %v3723, %v3725
      %v3727 = vrot.slane %v3719, %v3726
      %v3729 = vunpack.c.l.s4 1983009808
      %v3730 = vunpack.c.0.s8 %v3729
      %v3731 = vlaneseq
      %v3732 = vshrl.u32 %v3731, 7
      %v3733 = vsub.s32 %v3730, %v3732
      %v3734 = vrot.slane %v3720, %v3733
      %v3735 = vcombine.low %v3727, %v3734
      %v3736 = vcombine.low %v3337, %v3338
      %v3737 = vcombine.low %v3339, %v3340
      %v3739 = vunpack.c.l.s4 1983009808
      %v3740 = vunpack.c.0.s8 %v3739
      %v3741 = vlaneseq
      %v3742 = vshrl.u32 %v3741, 7
      %v3743 = vsub.s32 %v3740, %v3742
      %v3744 = vrot.slane %v3736, %v3743
      %v3746 = vunpack.c.l.s4 1983009808
      %v3747 = vunpack.c.0.s8 %v3746
      %v3748 = vlaneseq
      %v3749 = vshrl.u32 %v3748, 7
      %v3750 = vsub.s32 %v3747, %v3749
      %v3751 = vrot.slane %v3737, %v3750
      %v3752 = vcombine.low %v3744, %v3751
      %v3753 = vcombine.low %v3341, %v3342
      %v3754 = vcombine.low %v3343, %v3344
      %v3756 = vunpack.c.l.s4 1983009808
      %v3757 = vunpack.c.0.s8 %v3756
      %v3758 = vlaneseq
      %v3759 = vshrl.u32 %v3758, 7
      %v3760 = vsub.s32 %v3757, %v3759
      %v3761 = vrot.slane %v3753, %v3760
      %v3763 = vunpack.c.l.s4 1983009808
      %v3764 = vunpack.c.0.s8 %v3763
      %v3765 = vlaneseq
      %v3766 = vshrl.u32 %v3765, 7
      %v3767 = vsub.s32 %v3764, %v3766
      %v3768 = vrot.slane %v3754, %v3767
      %v3769 = vcombine.low %v3761, %v3768
      %v3770 = vcombine.low %v3345, %v3346
      %v3771 = vcombine.low %v3347, %v3348
      %v3773 = vunpack.c.l.s4 1983009808
      %v3774 = vunpack.c.0.s8 %v3773
      %v3775 = vlaneseq
      %v3776 = vshrl.u32 %v3775, 7
      %v3777 = vsub.s32 %v3774, %v3776
      %v3778 = vrot.slane %v3770, %v3777
      %v3780 = vunpack.c.l.s4 1983009808
      %v3781 = vunpack.c.0.s8 %v3780
      %v3782 = vlaneseq
      %v3783 = vshrl.u32 %v3782, 7
      %v3784 = vsub.s32 %v3781, %v3783
      %v3785 = vrot.slane %v3771, %v3784
      %v3786 = vcombine.low %v3778, %v3785
      %v3787 = vcombine.low %v3349, %v3350
      %v3788 = vcombine.low %v3351, %v3352
      %v3790 = vunpack.c.l.s4 1983009808
      %v3791 = vunpack.c.0.s8 %v3790
      %v3792 = vlaneseq
      %v3793 = vshrl.u32 %v3792, 7
      %v3794 = vsub.s32 %v3791, %v3793
      %v3795 = vrot.slane %v3787, %v3794
      %v3797 = vunpack.c.l.s4 1983009808
      %v3798 = vunpack.c.0.s8 %v3797
      %v3799 = vlaneseq
      %v3800 = vshrl.u32 %v3799, 7
      %v3801 = vsub.s32 %v3798, %v3800
      %v3802 = vrot.slane %v3788, %v3801
      %v3803 = vcombine.low %v3795, %v3802
      %v3804 = vcombine.low %v3353, %v3354
      %v3805 = vcombine.low %v3355, %v3356
      %v3807 = vunpack.c.l.s4 1983009808
      %v3808 = vunpack.c.0.s8 %v3807
      %v3809 = vlaneseq
      %v3810 = vshrl.u32 %v3809, 7
      %v3811 = vsub.s32 %v3808, %v3810
      %v3812 = vrot.slane %v3804, %v3811
      %v3814 = vunpack.c.l.s4 1983009808
      %v3815 = vunpack.c.0.s8 %v3814
      %v3816 = vlaneseq
      %v3817 = vshrl.u32 %v3816, 7
      %v3818 = vsub.s32 %v3815, %v3817
      %v3819 = vrot.slane %v3805, %v3818
      %v3820 = vcombine.low %v3812, %v3819
      %v3821 = vcombine.low %v3357, %v3358
      %v3822 = vcombine.low %v3359, %v3360
      %v3824 = vunpack.c.l.s4 1983009808
      %v3825 = vunpack.c.0.s8 %v3824
      %v3826 = vlaneseq
      %v3827 = vshrl.u32 %v3826, 7
      %v3828 = vsub.s32 %v3825, %v3827
      %v3829 = vrot.slane %v3821, %v3828
      %v3831 = vunpack.c.l.s4 1983009808
      %v3832 = vunpack.c.0.s8 %v3831
      %v3833 = vlaneseq
      %v3834 = vshrl.u32 %v3833, 7
      %v3835 = vsub.s32 %v3832, %v3834
      %v3836 = vrot.slane %v3822, %v3835
      %v3837 = vcombine.low %v3829, %v3836
      %v3838 = vcombine.low %v3361, %v3362
      %v3839 = vcombine.low %v3363, %v3364
      %v3841 = vunpack.c.l.s4 1983009808
      %v3842 = vunpack.c.0.s8 %v3841
      %v3843 = vlaneseq
      %v3844 = vshrl.u32 %v3843, 7
      %v3845 = vsub.s32 %v3842, %v3844
      %v3846 = vrot.slane %v3838, %v3845
      %v3848 = vunpack.c.l.s4 1983009808
      %v3849 = vunpack.c.0.s8 %v3848
      %v3850 = vlaneseq
      %v3851 = vshrl.u32 %v3850, 7
      %v3852 = vsub.s32 %v3849, %v3851
      %v3853 = vrot.slane %v3839, %v3852
      %v3854 = vcombine.low %v3846, %v3853
      %v3855 = vcombine.low %v3365, %v3366
      %v3856 = vcombine.low %v3367, %v3368
      %v3858 = vunpack.c.l.s4 1983009808
      %v3859 = vunpack.c.0.s8 %v3858
      %v3860 = vlaneseq
      %v3861 = vshrl.u32 %v3860, 7
      %v3862 = vsub.s32 %v3859, %v3861
      %v3863 = vrot.slane %v3855, %v3862
      %v3865 = vunpack.c.l.s4 1983009808
      %v3866 = vunpack.c.0.s8 %v3865
      %v3867 = vlaneseq
      %v3868 = vshrl.u32 %v3867, 7
      %v3869 = vsub.s32 %v3866, %v3868
      %v3870 = vrot.slane %v3856, %v3869
      %v3871 = vcombine.low %v3863, %v3870
      %v3872 = vcombine.low %v3369, %v3370
      %v3873 = vcombine.low %v3371, %v3372
      %v3875 = vunpack.c.l.s4 1983009808
      %v3876 = vunpack.c.0.s8 %v3875
      %v3877 = vlaneseq
      %v3878 = vshrl.u32 %v3877, 7
      %v3879 = vsub.s32 %v3876, %v3878
      %v3880 = vrot.slane %v3872, %v3879
      %v3882 = vunpack.c.l.s4 1983009808
      %v3883 = vunpack.c.0.s8 %v3882
      %v3884 = vlaneseq
      %v3885 = vshrl.u32 %v3884, 7
      %v3886 = vsub.s32 %v3883, %v3885
      %v3887 = vrot.slane %v3873, %v3886
      %v3888 = vcombine.low %v3880, %v3887
      %v3889 = vcombine.low %v3373, %v3374
      %v3890 = vcombine.low %v3375, %v3376
      %v3892 = vunpack.c.l.s4 1983009808
      %v3893 = vunpack.c.0.s8 %v3892
      %v3894 = vlaneseq
      %v3895 = vshrl.u32 %v3894, 7
      %v3896 = vsub.s32 %v3893, %v3895
      %v3897 = vrot.slane %v3889, %v3896
      %v3899 = vunpack.c.l.s4 1983009808
      %v3900 = vunpack.c.0.s8 %v3899
      %v3901 = vlaneseq
      %v3902 = vshrl.u32 %v3901, 7
      %v3903 = vsub.s32 %v3900, %v3902
      %v3904 = vrot.slane %v3890, %v3903
      %v3905 = vcombine.low %v3897, %v3904
      %v3906 = vcombine.low %v3377, %v3378
      %v3907 = vcombine.low %v3379, %v3380
      %v3909 = vunpack.c.l.s4 1983009808
      %v3910 = vunpack.c.0.s8 %v3909
      %v3911 = vlaneseq
      %v3912 = vshrl.u32 %v3911, 7
      %v3913 = vsub.s32 %v3910, %v3912
      %v3914 = vrot.slane %v3906, %v3913
      %v3916 = vunpack.c.l.s4 1983009808
      %v3917 = vunpack.c.0.s8 %v3916
      %v3918 = vlaneseq
      %v3919 = vshrl.u32 %v3918, 7
      %v3920 = vsub.s32 %v3917, %v3919
      %v3921 = vrot.slane %v3907, %v3920
      %v3922 = vcombine.low %v3914, %v3921
      %v3923 = vcombine.low %v3381, %v3382
      %v3924 = vcombine.low %v3383, %v3384
      %v3926 = vunpack.c.l.s4 1983009808
      %v3927 = vunpack.c.0.s8 %v3926
      %v3928 = vlaneseq
      %v3929 = vshrl.u32 %v3928, 7
      %v3930 = vsub.s32 %v3927, %v3929
      %v3931 = vrot.slane %v3923, %v3930
      %v3933 = vunpack.c.l.s4 1983009808
      %v3934 = vunpack.c.0.s8 %v3933
      %v3935 = vlaneseq
      %v3936 = vshrl.u32 %v3935, 7
      %v3937 = vsub.s32 %v3934, %v3936
      %v3938 = vrot.slane %v3924, %v3937
      %v3939 = vcombine.low %v3931, %v3938
      %v3940 = vcombine.low %v3385, %v3386
      %v3941 = vcombine.low %v3387, %v3388
      %v3943 = vunpack.c.l.s4 1983009808
      %v3944 = vunpack.c.0.s8 %v3943
      %v3945 = vlaneseq
      %v3946 = vshrl.u32 %v3945, 7
      %v3947 = vsub.s32 %v3944, %v3946
      %v3948 = vrot.slane %v3940, %v3947
      %v3950 = vunpack.c.l.s4 1983009808
      %v3951 = vunpack.c.0.s8 %v3950
      %v3952 = vlaneseq
      %v3953 = vshrl.u32 %v3952, 7
      %v3954 = vsub.s32 %v3951, %v3953
      %v3955 = vrot.slane %v3941, %v3954
      %v3956 = vcombine.low %v3948, %v3955
      %v3957 = vcombine.low %v3389, %v3390
      %v3958 = vcombine.low %v3391, %v3392
      %v3960 = vunpack.c.l.s4 1983009808
      %v3961 = vunpack.c.0.s8 %v3960
      %v3962 = vlaneseq
      %v3963 = vshrl.u32 %v3962, 7
      %v3964 = vsub.s32 %v3961, %v3963
      %v3965 = vrot.slane %v3957, %v3964
      %v3967 = vunpack.c.l.s4 1983009808
      %v3968 = vunpack.c.0.s8 %v3967
      %v3969 = vlaneseq
      %v3970 = vshrl.u32 %v3969, 7
      %v3971 = vsub.s32 %v3968, %v3970
      %v3972 = vrot.slane %v3958, %v3971
      %v3973 = vcombine.low %v3965, %v3972
      %v3974 = vcombine.low %v3393, %v3394
      %v3975 = vcombine.low %v3395, %v3396
      %v3977 = vunpack.c.l.s4 1983009808
      %v3978 = vunpack.c.0.s8 %v3977
      %v3979 = vlaneseq
      %v3980 = vshrl.u32 %v3979, 7
      %v3981 = vsub.s32 %v3978, %v3980
      %v3982 = vrot.slane %v3974, %v3981
      %v3984 = vunpack.c.l.s4 1983009808
      %v3985 = vunpack.c.0.s8 %v3984
      %v3986 = vlaneseq
      %v3987 = vshrl.u32 %v3986, 7
      %v3988 = vsub.s32 %v3985, %v3987
      %v3989 = vrot.slane %v3975, %v3988
      %v3990 = vcombine.low %v3982, %v3989
      %v3991 = vcombine.low %v3397, %v3398
      %v3992 = vcombine.low %v3399, %v3400
      %v3994 = vunpack.c.l.s4 1983009808
      %v3995 = vunpack.c.0.s8 %v3994
      %v3996 = vlaneseq
      %v3997 = vshrl.u32 %v3996, 7
      %v3998 = vsub.s32 %v3995, %v3997
      %v3999 = vrot.slane %v3991, %v3998
      %v4001 = vunpack.c.l.s4 1983009808
      %v4002 = vunpack.c.0.s8 %v4001
      %v4003 = vlaneseq
      %v4004 = vshrl.u32 %v4003, 7
      %v4005 = vsub.s32 %v4002, %v4004
      %v4006 = vrot.slane %v3992, %v4005
      %v4007 = vcombine.low %v3999, %v4006
      %v4008 = vcombine.low %v3401, %v3402
      %v4009 = vcombine.low %v3403, %v3404
      %v4011 = vunpack.c.l.s4 1983009808
      %v4012 = vunpack.c.0.s8 %v4011
      %v4013 = vlaneseq
      %v4014 = vshrl.u32 %v4013, 7
      %v4015 = vsub.s32 %v4012, %v4014
      %v4016 = vrot.slane %v4008, %v4015
      %v4018 = vunpack.c.l.s4 1983009808
      %v4019 = vunpack.c.0.s8 %v4018
      %v4020 = vlaneseq
      %v4021 = vshrl.u32 %v4020, 7
      %v4022 = vsub.s32 %v4019, %v4021
      %v4023 = vrot.slane %v4009, %v4022
      %v4024 = vcombine.low %v4016, %v4023
      %v4025 = vcombine.low %v3405, %v3406
      %v4026 = vcombine.low %v3407, %v3408
      %v4028 = vunpack.c.l.s4 1983009808
      %v4029 = vunpack.c.0.s8 %v4028
      %v4030 = vlaneseq
      %v4031 = vshrl.u32 %v4030, 7
      %v4032 = vsub.s32 %v4029, %v4031
      %v4033 = vrot.slane %v4025, %v4032
      %v4035 = vunpack.c.l.s4 1983009808
      %v4036 = vunpack.c.0.s8 %v4035
      %v4037 = vlaneseq
      %v4038 = vshrl.u32 %v4037, 7
      %v4039 = vsub.s32 %v4036, %v4038
      %v4040 = vrot.slane %v4026, %v4039
      %v4041 = vcombine.low %v4033, %v4040
      %v4042 = vcombine.low %v3409, %v3410
      %v4043 = vcombine.low %v3411, %v3412
      %v4045 = vunpack.c.l.s4 1983009808
      %v4046 = vunpack.c.0.s8 %v4045
      %v4047 = vlaneseq
      %v4048 = vshrl.u32 %v4047, 7
      %v4049 = vsub.s32 %v4046, %v4048
      %v4050 = vrot.slane %v4042, %v4049
      %v4052 = vunpack.c.l.s4 1983009808
      %v4053 = vunpack.c.0.s8 %v4052
      %v4054 = vlaneseq
      %v4055 = vshrl.u32 %v4054, 7
      %v4056 = vsub.s32 %v4053, %v4055
      %v4057 = vrot.slane %v4043, %v4056
      %v4058 = vcombine.low %v4050, %v4057
      %v4059 = vcombine.low %v3413, %v3414
      %v4060 = vcombine.low %v3415, %v3416
      %v4062 = vunpack.c.l.s4 1983009808
      %v4063 = vunpack.c.0.s8 %v4062
      %v4064 = vlaneseq
      %v4065 = vshrl.u32 %v4064, 7
      %v4066 = vsub.s32 %v4063, %v4065
      %v4067 = vrot.slane %v4059, %v4066
      %v4069 = vunpack.c.l.s4 1983009808
      %v4070 = vunpack.c.0.s8 %v4069
      %v4071 = vlaneseq
      %v4072 = vshrl.u32 %v4071, 7
      %v4073 = vsub.s32 %v4070, %v4072
      %v4074 = vrot.slane %v4060, %v4073
      %v4075 = vcombine.low %v4067, %v4074
      %v4076 = vcombine.low %v3417, %v3418
      %v4077 = vcombine.low %v3419, %v3420
      %v4079 = vunpack.c.l.s4 1983009808
      %v4080 = vunpack.c.0.s8 %v4079
      %v4081 = vlaneseq
      %v4082 = vshrl.u32 %v4081, 7
      %v4083 = vsub.s32 %v4080, %v4082
      %v4084 = vrot.slane %v4076, %v4083
      %v4086 = vunpack.c.l.s4 1983009808
      %v4087 = vunpack.c.0.s8 %v4086
      %v4088 = vlaneseq
      %v4089 = vshrl.u32 %v4088, 7
      %v4090 = vsub.s32 %v4087, %v4089
      %v4091 = vrot.slane %v4077, %v4090
      %v4092 = vcombine.low %v4084, %v4091
      %v4125 = vpack.c.bf16 %v3582, %v3565
      %v4126 = vpack.c.bf16 %v3616, %v3599
      %v4127 = vpack.c.bf16 %v3650, %v3633
      %v4128 = vpack.c.bf16 %v3684, %v3667
      %v4129 = vpack.c.bf16 %v3718, %v3701
      %v4130 = vpack.c.bf16 %v3752, %v3735
      %v4131 = vpack.c.bf16 %v3786, %v3769
      %v4132 = vpack.c.bf16 %v3820, %v3803
      %v4133 = vpack.c.bf16 %v3854, %v3837
      %v4134 = vpack.c.bf16 %v3888, %v3871
      %v4135 = vpack.c.bf16 %v3922, %v3905
      %v4136 = vpack.c.bf16 %v3956, %v3939
      %v4137 = vpack.c.bf16 %v3990, %v3973
      %v4138 = vpack.c.bf16 %v4024, %v4007
      %v4139 = vpack.c.bf16 %v4058, %v4041
      %v4140 = vpack.c.bf16 %v4092, %v4075
      %v4157 = vunpack.c.l.b16 %v4125
      %v4158 = vunpack.c.h.b16 %v4125
      %v4159 = vunpack.c.l.b16 %v4126
      %v4160 = vunpack.c.h.b16 %v4126
      %v4161 = vunpack.c.l.b16 %v4127
      %v4162 = vunpack.c.h.b16 %v4127
      %v4163 = vunpack.c.l.b16 %v4128
      %v4164 = vunpack.c.h.b16 %v4128
      %v4165 = vunpack.c.l.b16 %v4129
      %v4166 = vunpack.c.h.b16 %v4129
      %v4167 = vunpack.c.l.b16 %v4130
      %v4168 = vunpack.c.h.b16 %v4130
      %v4169 = vunpack.c.l.b16 %v4131
      %v4170 = vunpack.c.h.b16 %v4131
      %v4171 = vunpack.c.l.b16 %v4132
      %v4172 = vunpack.c.h.b16 %v4132
      %v4173 = vunpack.c.l.b16 %v4133
      %v4174 = vunpack.c.h.b16 %v4133
      %v4175 = vunpack.c.l.b16 %v4134
      %v4176 = vunpack.c.h.b16 %v4134
      %v4177 = vunpack.c.l.b16 %v4135
      %v4178 = vunpack.c.h.b16 %v4135
      %v4179 = vunpack.c.l.b16 %v4136
      %v4180 = vunpack.c.h.b16 %v4136
      %v4181 = vunpack.c.l.b16 %v4137
      %v4182 = vunpack.c.h.b16 %v4137
      %v4183 = vunpack.c.l.b16 %v4138
      %v4184 = vunpack.c.h.b16 %v4138
      %v4185 = vunpack.c.l.b16 %v4139
      %v4186 = vunpack.c.h.b16 %v4139
      %v4187 = vunpack.c.l.b16 %v4140
      %v4188 = vunpack.c.h.b16 %v4140
      %v4189 = vpack.c.b16 %v4157, %v4157
      %v4190 = vpack.c.b16 %v4158, %v4158
      %v4191 = vpack.c.b16 %v4159, %v4159
      %v4192 = vpack.c.b16 %v4160, %v4160
      %v4193 = vpack.c.b16 %v4161, %v4161
      %v4194 = vpack.c.b16 %v4162, %v4162
      %v4195 = vpack.c.b16 %v4163, %v4163
      %v4196 = vpack.c.b16 %v4164, %v4164
      %v4197 = vpack.c.b16 %v4165, %v4165
      %v4198 = vpack.c.b16 %v4166, %v4166
      %v4199 = vpack.c.b16 %v4167, %v4167
      %v4200 = vpack.c.b16 %v4168, %v4168
      %v4201 = vpack.c.b16 %v4169, %v4169
      %v4202 = vpack.c.b16 %v4170, %v4170
      %v4203 = vpack.c.b16 %v4171, %v4171
      %v4204 = vpack.c.b16 %v4172, %v4172
      %v4205 = vpack.c.b16 %v4173, %v4173
      %v4206 = vpack.c.b16 %v4174, %v4174
      %v4207 = vpack.c.b16 %v4175, %v4175
      %v4208 = vpack.c.b16 %v4176, %v4176
      %v4209 = vpack.c.b16 %v4177, %v4177
      %v4210 = vpack.c.b16 %v4178, %v4178
      %v4211 = vpack.c.b16 %v4179, %v4179
      %v4212 = vpack.c.b16 %v4180, %v4180
      %v4213 = vpack.c.b16 %v4181, %v4181
      %v4214 = vpack.c.b16 %v4182, %v4182
      %v4215 = vpack.c.b16 %v4183, %v4183
      %v4216 = vpack.c.b16 %v4184, %v4184
      %v4217 = vpack.c.b16 %v4185, %v4185
      %v4218 = vpack.c.b16 %v4186, %v4186
      %v4219 = vpack.c.b16 %v4187, %v4187
      %v4220 = vpack.c.b16 %v4188, %v4188
      %4253 = vst [vmem:[%s213] sm:$0xf] %v4189
      %4254 = vst [vmem:[%s213 + $0x4] sm:$0xf] %v4190
      %4255 = vst [vmem:[%s213 + $0x8] sm:$0xf] %v4191
      %4256 = vst [vmem:[%s213 + $0xc] sm:$0xf] %v4192
      %4257 = vst [vmem:[%s213 + $0x10] sm:$0xf] %v4193
      %4258 = vst [vmem:[%s213 + $0x14] sm:$0xf] %v4194
      %4259 = vst [vmem:[%s213 + $0x18] sm:$0xf] %v4195
      %4260 = vst [vmem:[%s213 + $0x1c] sm:$0xf] %v4196
      %4261 = vst [vmem:[%s213 + $0x20] sm:$0xf] %v4197
      %4262 = vst [vmem:[%s213 + $0x24] sm:$0xf] %v4198
      %4263 = vst [vmem:[%s213 + $0x28] sm:$0xf] %v4199
      %4264 = vst [vmem:[%s213 + $0x2c] sm:$0xf] %v4200
      %4265 = vst [vmem:[%s213 + $0x30] sm:$0xf] %v4201
      %4266 = vst [vmem:[%s213 + $0x34] sm:$0xf] %v4202
      %4267 = vst [vmem:[%s213 + $0x38] sm:$0xf] %v4203
      %4268 = vst [vmem:[%s213 + $0x3c] sm:$0xf] %v4204
      %4269 = vst [vmem:[%s213 + $0x40] sm:$0xf] %v4205
      %4270 = vst [vmem:[%s213 + $0x44] sm:$0xf] %v4206
      %4271 = vst [vmem:[%s213 + $0x48] sm:$0xf] %v4207
      %4272 = vst [vmem:[%s213 + $0x4c] sm:$0xf] %v4208
      %4273 = vst [vmem:[%s213 + $0x50] sm:$0xf] %v4209
      %4274 = vst [vmem:[%s213 + $0x54] sm:$0xf] %v4210
      %4275 = vst [vmem:[%s213 + $0x58] sm:$0xf] %v4211
      %4276 = vst [vmem:[%s213 + $0x5c] sm:$0xf] %v4212
      %4277 = vst [vmem:[%s213 + $0x60] sm:$0xf] %v4213
      %4278 = vst [vmem:[%s213 + $0x64] sm:$0xf] %v4214
      %4279 = vst [vmem:[%s213 + $0x68] sm:$0xf] %v4215
      %4280 = vst [vmem:[%s213 + $0x6c] sm:$0xf] %v4216
      %4281 = vst [vmem:[%s213 + $0x70] sm:$0xf] %v4217
      %4282 = vst [vmem:[%s213 + $0x74] sm:$0xf] %v4218
      %4283 = vst [vmem:[%s213 + $0x78] sm:$0xf] %v4219
      %4284 = vst [vmem:[%s213 + $0x7c] sm:$0xf] %v4220
      %s4285 = smul.u32 16, %s19
      %p4286 = scmp.lt.s32.totalorder %s18, 1
      %s4287 = scalar_select %p4286, %s18, 1
      %p4288 = scmp.lt.s32.totalorder %s4285, 15
      %s4289 = scalar_select %p4288, %s4285, 15
      %s4290 = smul.addr %s4289, 2
      %s4291 = smul.addr %s4287, 32
      %s4292 = sadd.s32 %s4290, %s4291
      %s4293 = smul.addr %s4292, 4
      %s4294 = scalar_lea.vmem %s3, %s4293
      // Predicated region
      $region33: #{decoder_block_forward.4} parent=31 // pred_check
        %p4295 = pneg %p116
      $region34: #{decoder_block_forward.4} parent=31 // pred_check_branch
        %4297 = sbr.rel (%p4295) target = $region36
      $region35: #{decoder_block_forward.4} parent=31 // pred_region
        %s4298 = smul.u32 16, %s19
      $region36: #{decoder_block_forward.4} parent=31 // pred_fallthru
        _
    $region32: #{decoder_block_forward.4} parent=5 // pred_fallthru
      _
    %p4299 = scmp.le.s32.totalorder 2, %s9
    // Predicated region
    $region37: #{decoder_block_forward.4} parent=5 // pred_check
      %p4300 = pneg %p4299
    $region38: #{decoder_block_forward.4} parent=5 // pred_check_branch
      %4302 = sbr.rel (%p4300) target = $region40
    $region39: #{decoder_block_forward.4} parent=5 // pred_region
      %s4303 = ssub.s32 %s9, 2
      // Predicated region
      $region41: #{decoder_block_forward.4} parent=39 // pred_check
        %p4304 = pneg %p122
      $region42: #{decoder_block_forward.4} parent=39 // pred_check_branch
        %4306 = sbr.rel (%p4304) target = $region44
      $region43: #{decoder_block_forward.4} parent=39 // pred_region
        %s4307 = smul.u32 16, %s21
        %p4308 = scmp.lt.s32.totalorder %s20, 1
        %s4309 = scalar_select %p4308, %s20, 1
        %p4310 = scmp.lt.s32.totalorder %s4307, 15
        %s4311 = scalar_select %p4310, %s4307, 15
        %s4312 = smul.addr %s4311, 2
        %s4313 = smul.addr %s4309, 32
        %s4314 = sadd.s32 %s4312, %s4313
        %s4315 = smul.addr %s4314, 4
        %s4316 = scalar_lea.vmem %s3, %s4315
      $region44: #{decoder_block_forward.4} parent=39 // pred_fallthru
        _
    $region40: #{decoder_block_forward.4} parent=5 // pred_fallthru
      _
  $region6: #{decoder_block_forward.4} parent=0 // loop_footer
    %s13 = sadd.s32 1, %s9
  $region7: #{decoder_block_forward.4} parent=0 // loop_footer_branch
    %8 = sbr.rel target = $region3
  $region8: #{decoder_block_forward.4} parent=0 // loop_exit
    _

// kernel: decoder_block_forward.7
$region0: #{decoder_block_forward.7}
  #allocation0 [shape = 'u32[]', space=smem, size = 0x4, offset = 0x4, fixed_abs, tag = 'smem constant byte address 0x4 - core index']
  #allocation1 [shape = 'u32[144,128]{1,0:T(1,128)}', space=vmem, size = 0x12000, scoped, tag = 'internal scratch']
  %s0 = inlined_call_operand.vmem [shape: f32[512,128], index: 0, kind: input, shape index: {}]
  %s1 = inlined_call_operand.vmem [shape: f32[1,128], index: 1, kind: input, shape index: {}]
  %s2 = inlined_call_operand.vmem [shape: f32[1,128], index: 2, kind: input, shape index: {}]
  %s3 = inlined_call_operand.hbm [shape: f32[512,128], index: 3, kind: output, shape index: {}]
  %s4 = sld [smem:[#allocation0]]
  $region22: #{decoder_block_forward.7} parent=0
    _
  %s6 = ssub.s32 1, %s4
  %s7 = scalar_select 0, %s6, %s4
  $region1: #{decoder_block_forward.7} parent=0
    #allocation2 [shape = 'u8[262144]{0}', space=vmem, size = 0x40000, scoped, tag = 'output window, operand 0, single buffered']
    #allocation3 [shape = 's32[1]{0}', space=sflag, size = 0x4, scoped, tag = 'scoped memory for decoder_block_forward.7']
    %8 = vsyncpa [#allocation3], 0
    // Predicated region
    $region2: #{decoder_block_forward.7} parent=1 // pred_check
      _
    $region3: #{decoder_block_forward.7} parent=1 // pred_check_branch
      %10 = sbr.rel (0) target = $region5
    $region4: #{decoder_block_forward.7} parent=1 // pred_region
      _
    $region5: #{decoder_block_forward.7} parent=1 // pred_fallthru
      _
    // Predicated region
    $region6: #{decoder_block_forward.7} parent=1 // pred_check
      _
    $region7: #{decoder_block_forward.7} parent=1 // pred_check_branch
      %12 = sbr.rel (0) target = $region9
    $region8: #{decoder_block_forward.7} parent=1 // pred_region
      _
    $region9: #{decoder_block_forward.7} parent=1 // pred_fallthru
      _
    // Predicated region
    $region10: #{decoder_block_forward.7} parent=1 // pred_check
      _
    $region11: #{decoder_block_forward.7} parent=1 // pred_check_branch
      %14 = sbr.rel (0) target = $region13
    $region12: #{decoder_block_forward.7} parent=1 // pred_region
      _
    $region13: #{decoder_block_forward.7} parent=1 // pred_fallthru
      _
    %v15 = vld [vmem:[%s0] sm:$0xff]
    %v16 = vld [vmem:[%s0 + $0x8] sm:$0xff]
    %v17 = vld [vmem:[%s0 + $0x10] sm:$0xff]
    %v18 = vld [vmem:[%s0 + $0x18] sm:$0xff]
    %v19 = vld [vmem:[%s0 + $0x20] sm:$0xff]
    %v20 = vld [vmem:[%s0 + $0x28] sm:$0xff]
    %v21 = vld [vmem:[%s0 + $0x30] sm:$0xff]
    %v22 = vld [vmem:[%s0 + $0x38] sm:$0xff]
    %v23 = vld [vmem:[%s0 + $0x40] sm:$0xff]
    %v24 = vld [vmem:[%s0 + $0x48] sm:$0xff]
    %v25 = vld [vmem:[%s0 + $0x50] sm:$0xff]
    %v26 = vld [vmem:[%s0 + $0x58] sm:$0xff]
    %v27 = vld [vmem:[%s0 + $0x60] sm:$0xff]
    %v28 = vld [vmem:[%s0 + $0x68] sm:$0xff]
    %v29 = vld [vmem:[%s0 + $0x70] sm:$0xff]
    %v30 = vld [vmem:[%s0 + $0x78] sm:$0xff]
    %v31 = vld [vmem:[%s0 + $0x80] sm:$0xff]
    %v32 = vld [vmem:[%s0 + $0x88] sm:$0xff]
    %v33 = vld [vmem:[%s0 + $0x90] sm:$0xff]
    %v34 = vld [vmem:[%s0 + $0x98] sm:$0xff]
    %v35 = vld [vmem:[%s0 + $0xa0] sm:$0xff]
    %v36 = vld [vmem:[%s0 + $0xa8] sm:$0xff]
    %v37 = vld [vmem:[%s0 + $0xb0] sm:$0xff]
    %v38 = vld [vmem:[%s0 + $0xb8] sm:$0xff]
    %v39 = vld [vmem:[%s0 + $0xc0] sm:$0xff]
    %v40 = vld [vmem:[%s0 + $0xc8] sm:$0xff]
    %v41 = vld [vmem:[%s0 + $0xd0] sm:$0xff]
    %v42 = vld [vmem:[%s0 + $0xd8] sm:$0xff]
    %v43 = vld [vmem:[%s0 + $0xe0] sm:$0xff]
    %v44 = vld [vmem:[%s0 + $0xe8] sm:$0xff]
    %v45 = vld [vmem:[%s0 + $0xf0] sm:$0xff]
    %v46 = vld [vmem:[%s0 + $0xf8] sm:$0xff]
    %v47 = vld [vmem:[%s0 + $0x100] sm:$0xff]
    %v48 = vld [vmem:[%s0 + $0x108] sm:$0xff]
    %v49 = vld [vmem:[%s0 + $0x110] sm:$0xff]
    %v50 = vld [vmem:[%s0 + $0x118] sm:$0xff]
    %v51 = vld [vmem:[%s0 + $0x120] sm:$0xff]
    %v52 = vld [vmem:[%s0 + $0x128] sm:$0xff]
    %v53 = vld [vmem:[%s0 + $0x130] sm:$0xff]
    %v54 = vld [vmem:[%s0 + $0x138] sm:$0xff]
    %v55 = vld [vmem:[%s0 + $0x140] sm:$0xff]
    %v56 = vld [vmem:[%s0 + $0x148] sm:$0xff]
    %v57 = vld [vmem:[%s0 + $0x150] sm:$0xff]
    %v58 = vld [vmem:[%s0 + $0x158] sm:$0xff]
    %v59 = vld [vmem:[%s0 + $0x160] sm:$0xff]
    %v60 = vld [vmem:[%s0 + $0x168] sm:$0xff]
    %v61 = vld [vmem:[%s0 + $0x170] sm:$0xff]
    %v62 = vld [vmem:[%s0 + $0x178] sm:$0xff]
    %v63 = vld [vmem:[%s0 + $0x180] sm:$0xff]
    %v64 = vld [vmem:[%s0 + $0x188] sm:$0xff]
    %v65 = vld [vmem:[%s0 + $0x190] sm:$0xff]
    %v66 = vld [vmem:[%s0 + $0x198] sm:$0xff]
    %v67 = vld [vmem:[%s0 + $0x1a0] sm:$0xff]
    %v68 = vld [vmem:[%s0 + $0x1a8] sm:$0xff]
    %v69 = vld [vmem:[%s0 + $0x1b0] sm:$0xff]
    %v70 = vld [vmem:[%s0 + $0x1b8] sm:$0xff]
    %v71 = vld [vmem:[%s0 + $0x1c0] sm:$0xff]
    %v72 = vld [vmem:[%s0 + $0x1c8] sm:$0xff]
    %v73 = vld [vmem:[%s0 + $0x1d0] sm:$0xff]
    %v74 = vld [vmem:[%s0 + $0x1d8] sm:$0xff]
    %v75 = vld [vmem:[%s0 + $0x1e0] sm:$0xff]
    %v76 = vld [vmem:[%s0 + $0x1e8] sm:$0xff]
    %v77 = vld [vmem:[%s0 + $0x1f0] sm:$0xff]
    %v78 = vld [vmem:[%s0 + $0x1f8] sm:$0xff]
    %v79 = vld [vmem:[%s1] sm:$0x1]
    %v81 = vlaneseq
    %v82 = vshrl.u32 %v81, 7
    %v83 = vsub.s32 0, %v82
    %v84 = vrot.slane %v79, %v83
    %v86 = vmul.f32 %v15, %v84
    %v87 = vmul.f32 %v16, %v84
    %v88 = vmul.f32 %v17, %v84
    %v89 = vmul.f32 %v18, %v84
    %v90 = vmul.f32 %v19, %v84
    %v91 = vmul.f32 %v20, %v84
    %v92 = vmul.f32 %v21, %v84
    %v93 = vmul.f32 %v22, %v84
    %v94 = vmul.f32 %v23, %v84
    %v95 = vmul.f32 %v24, %v84
    %v96 = vmul.f32 %v25, %v84
    %v97 = vmul.f32 %v26, %v84
    %v98 = vmul.f32 %v27, %v84
    %v99 = vmul.f32 %v28, %v84
    %v100 = vmul.f32 %v29, %v84
    %v101 = vmul.f32 %v30, %v84
    %v102 = vmul.f32 %v31, %v84
    %v103 = vmul.f32 %v32, %v84
    %v104 = vmul.f32 %v33, %v84
    %v105 = vmul.f32 %v34, %v84
    %v106 = vmul.f32 %v35, %v84
    %v107 = vmul.f32 %v36, %v84
    %v108 = vmul.f32 %v37, %v84
    %v109 = vmul.f32 %v38, %v84
    %v110 = vmul.f32 %v39, %v84
    %v111 = vmul.f32 %v40, %v84
    %v112 = vmul.f32 %v41, %v84
    %v113 = vmul.f32 %v42, %v84
    %v114 = vmul.f32 %v43, %v84
    %v115 = vmul.f32 %v44, %v84
    %v116 = vmul.f32 %v45, %v84
    %v117 = vmul.f32 %v46, %v84
    %v118 = vmul.f32 %v47, %v84
    %v119 = vmul.f32 %v48, %v84
    %v120 = vmul.f32 %v49, %v84
    %v121 = vmul.f32 %v50, %v84
    %v122 = vmul.f32 %v51, %v84
    %v123 = vmul.f32 %v52, %v84
    %v124 = vmul.f32 %v53, %v84
    %v125 = vmul.f32 %v54, %v84
    %v126 = vmul.f32 %v55, %v84
    %v127 = vmul.f32 %v56, %v84
    %v128 = vmul.f32 %v57, %v84
    %v129 = vmul.f32 %v58, %v84
    %v130 = vmul.f32 %v59, %v84
    %v131 = vmul.f32 %v60, %v84
    %v132 = vmul.f32 %v61, %v84
    %v133 = vmul.f32 %v62, %v84
    %v134 = vmul.f32 %v63, %v84
    %v135 = vmul.f32 %v64, %v84
    %v136 = vmul.f32 %v65, %v84
    %v137 = vmul.f32 %v66, %v84
    %v138 = vmul.f32 %v67, %v84
    %v139 = vmul.f32 %v68, %v84
    %v140 = vmul.f32 %v69, %v84
    %v141 = vmul.f32 %v70, %v84
    %v142 = vmul.f32 %v71, %v84
    %v143 = vmul.f32 %v72, %v84
    %v144 = vmul.f32 %v73, %v84
    %v145 = vmul.f32 %v74, %v84
    %v146 = vmul.f32 %v75, %v84
    %v147 = vmul.f32 %v76, %v84
    %v148 = vmul.f32 %v77, %v84
    %v149 = vmul.f32 %v78, %v84
    %v150 = vld [vmem:[%s2] sm:$0x1]
    %v152 = vlaneseq
    %v153 = vshrl.u32 %v152, 7
    %v154 = vsub.s32 0, %v153
    %v155 = vrot.slane %v150, %v154
    %v157 = vadd.f32 %v86, %v155
    %v158 = vadd.f32 %v87, %v155
    %v159 = vadd.f32 %v88, %v155
    %v160 = vadd.f32 %v89, %v155
    %v161 = vadd.f32 %v90, %v155
    %v162 = vadd.f32 %v91, %v155
    %v163 = vadd.f32 %v92, %v155
    %v164 = vadd.f32 %v93, %v155
    %v165 = vadd.f32 %v94, %v155
    %v166 = vadd.f32 %v95, %v155
    %v167 = vadd.f32 %v96, %v155
    %v168 = vadd.f32 %v97, %v155
    %v169 = vadd.f32 %v98, %v155
    %v170 = vadd.f32 %v99, %v155
    %v171 = vadd.f32 %v100, %v155
    %v172 = vadd.f32 %v101, %v155
    %v173 = vadd.f32 %v102, %v155
    %v174 = vadd.f32 %v103, %v155
    %v175 = vadd.f32 %v104, %v155
    %v176 = vadd.f32 %v105, %v155
    %v177 = vadd.f32 %v106, %v155
    %v178 = vadd.f32 %v107, %v155
    %v179 = vadd.f32 %v108, %v155
    %v180 = vadd.f32 %v109, %v155
    %v181 = vadd.f32 %v110, %v155
    %v182 = vadd.f32 %v111, %v155
    %v183 = vadd.f32 %v112, %v155
    %v184 = vadd.f32 %v113, %v155
    %v185 = vadd.f32 %v114, %v155
    %v186 = vadd.f32 %v115, %v155
    %v187 = vadd.f32 %v116, %v155
    %v188 = vadd.f32 %v117, %v155
    %v189 = vadd.f32 %v118, %v155
    %v190 = vadd.f32 %v119, %v155
    %v191 = vadd.f32 %v120, %v155
    %v192 = vadd.f32 %v121, %v155
    %v193 = vadd.f32 %v122, %v155
    %v194 = vadd.f32 %v123, %v155
    %v195 = vadd.f32 %v124, %v155
    %v196 = vadd.f32 %v125, %v155
    %v197 = vadd.f32 %v126, %v155
    %v198 = vadd.f32 %v127, %v155
    %v199 = vadd.f32 %v128, %v155
    %v200 = vadd.f32 %v129, %v155
    %v201 = vadd.f32 %v130, %v155
    %v202 = vadd.f32 %v131, %v155
    %v203 = vadd.f32 %v132, %v155
    %v204 = vadd.f32 %v133, %v155
    %v205 = vadd.f32 %v134, %v155
    %v206 = vadd.f32 %v135, %v155
    %v207 = vadd.f32 %v136, %v155
    %v208 = vadd.f32 %v137, %v155
    %v209 = vadd.f32 %v138, %v155
    %v210 = vadd.f32 %v139, %v155
    %v211 = vadd.f32 %v140, %v155
    %v212 = vadd.f32 %v141, %v155
    %v213 = vadd.f32 %v142, %v155
    %v214 = vadd.f32 %v143, %v155
    %v215 = vadd.f32 %v144, %v155
    %v216 = vadd.f32 %v145, %v155
    %v217 = vadd.f32 %v146, %v155
    %v218 = vadd.f32 %v147, %v155
    %v219 = vadd.f32 %v148, %v155
    %v220 = vadd.f32 %v149, %v155
    %v221 = vmax.f32 %v157, 0.0
    %v222 = vmax.f32 %v158, 0.0
    %v223 = vmax.f32 %v159, 0.0
    %v224 = vmax.f32 %v160, 0.0
    %v225 = vmax.f32 %v161, 0.0
    %v226 = vmax.f32 %v162, 0.0
    %v227 = vmax.f32 %v163, 0.0
    %v228 = vmax.f32 %v164, 0.0
    %v229 = vmax.f32 %v165, 0.0
    %v230 = vmax.f32 %v166, 0.0
    %v231 = vmax.f32 %v167, 0.0
    %v232 = vmax.f32 %v168, 0.0
    %v233 = vmax.f32 %v169, 0.0
    %v234 = vmax.f32 %v170, 0.0
    %v235 = vmax.f32 %v171, 0.0
    %v236 = vmax.f32 %v172, 0.0
    %v237 = vmax.f32 %v173, 0.0
    %v238 = vmax.f32 %v174, 0.0
    %v239 = vmax.f32 %v175, 0.0
    %v240 = vmax.f32 %v176, 0.0
    %v241 = vmax.f32 %v177, 0.0
    %v242 = vmax.f32 %v178, 0.0
    %v243 = vmax.f32 %v179, 0.0
    %v244 = vmax.f32 %v180, 0.0
    %v245 = vmax.f32 %v181, 0.0
    %v246 = vmax.f32 %v182, 0.0
    %v247 = vmax.f32 %v183, 0.0
    %v248 = vmax.f32 %v184, 0.0
    %v249 = vmax.f32 %v185, 0.0
    %v250 = vmax.f32 %v186, 0.0
    %v251 = vmax.f32 %v187, 0.0
    %v252 = vmax.f32 %v188, 0.0
    %v253 = vmax.f32 %v189, 0.0
    %v254 = vmax.f32 %v190, 0.0
    %v255 = vmax.f32 %v191, 0.0
    %v256 = vmax.f32 %v192, 0.0
    %v257 = vmax.f32 %v193, 0.0
    %v258 = vmax.f32 %v194, 0.0
    %v259 = vmax.f32 %v195, 0.0
    %v260 = vmax.f32 %v196, 0.0
    %v261 = vmax.f32 %v197, 0.0
    %v262 = vmax.f32 %v198, 0.0
    %v263 = vmax.f32 %v199, 0.0
    %v264 = vmax.f32 %v200, 0.0
    %v265 = vmax.f32 %v201, 0.0
    %v266 = vmax.f32 %v202, 0.0
    %v267 = vmax.f32 %v203, 0.0
    %v268 = vmax.f32 %v204, 0.0
    %v269 = vmax.f32 %v205, 0.0
    %v270 = vmax.f32 %v206, 0.0
    %v271 = vmax.f32 %v207, 0.0
    %v272 = vmax.f32 %v208, 0.0
    %v273 = vmax.f32 %v209, 0.0
    %v274 = vmax.f32 %v210, 0.0
    %v275 = vmax.f32 %v211, 0.0
    %v276 = vmax.f32 %v212, 0.0
    %v277 = vmax.f32 %v213, 0.0
    %v278 = vmax.f32 %v214, 0.0
    %v279 = vmax.f32 %v215, 0.0
    %v280 = vmax.f32 %v216, 0.0
    %v281 = vmax.f32 %v217, 0.0
    %v282 = vmax.f32 %v218, 0.0
    %v283 = vmax.f32 %v219, 0.0
    %v284 = vmax.f32 %v220, 0.0
    %285 = vst [vmem:[#allocation2] sm:$0xff] %v221
    %286 = vst [vmem:[#allocation2 + $0x8] sm:$0xff] %v222
    %287 = vst [vmem:[#allocation2 + $0x10] sm:$0xff] %v223
    %288 = vst [vmem:[#allocation2 + $0x18] sm:$0xff] %v224
    %289 = vst [vmem:[#allocation2 + $0x20] sm:$0xff] %v225
    %290 = vst [vmem:[#allocation2 + $0x28] sm:$0xff] %v226
    %291 = vst [vmem:[#allocation2 + $0x30] sm:$0xff] %v227
    %292 = vst [vmem:[#allocation2 + $0x38] sm:$0xff] %v228
    %293 = vst [vmem:[#allocation2 + $0x40] sm:$0xff] %v229
    %294 = vst [vmem:[#allocation2 + $0x48] sm:$0xff] %v230
    %295 = vst [vmem:[#allocation2 + $0x50] sm:$0xff] %v231
    %296 = vst [vmem:[#allocation2 + $0x58] sm:$0xff] %v232
    %297 = vst [vmem:[#allocation2 + $0x60] sm:$0xff] %v233
    %298 = vst [vmem:[#allocation2 + $0x68] sm:$0xff] %v234
    %299 = vst [vmem:[#allocation2 + $0x70] sm:$0xff] %v235
    %300 = vst [vmem:[#allocation2 + $0x78] sm:$0xff] %v236
    %301 = vst [vmem:[#allocation2 + $0x80] sm:$0xff] %v237
    %302 = vst [vmem:[#allocation2 + $0x88] sm:$0xff] %v238
    %303 = vst [vmem:[#allocation2 + $0x90] sm:$0xff] %v239
    %304 = vst [vmem:[#allocation2 + $0x98] sm:$0xff] %v240
    %305 = vst [vmem:[#allocation2 + $0xa0] sm:$0xff] %v241
    %306 = vst [vmem:[#allocation2 + $0xa8] sm:$0xff] %v242
    %307 = vst [vmem:[#allocation2 + $0xb0] sm:$0xff] %v243
    %308 = vst [vmem:[#allocation2 + $0xb8] sm:$0xff] %v244
    %309 = vst [vmem:[#allocation2 + $0xc0] sm:$0xff] %v245
    %310 = vst [vmem:[#allocation2 + $0xc8] sm:$0xff] %v246
    %311 = vst [vmem:[#allocation2 + $0xd0] sm:$0xff] %v247
    %312 = vst [vmem:[#allocation2 + $0xd8] sm:$0xff] %v248
    %313 = vst [vmem:[#allocation2 + $0xe0] sm:$0xff] %v249
    %314 = vst [vmem:[#allocation2 + $0xe8] sm:$0xff] %v250
    %315 = vst [vmem:[#allocation2 + $0xf0] sm:$0xff] %v251
    %316 = vst [vmem:[#allocation2 + $0xf8] sm:$0xff] %v252
    %317 = vst [vmem:[#allocation2 + $0x100] sm:$0xff] %v253
    %318 = vst [vmem:[#allocation2 + $0x108] sm:$0xff] %v254
    %319 = vst [vmem:[#allocation2 + $0x110] sm:$0xff] %v255
    %320 = vst [vmem:[#allocation2 + $0x118] sm:$0xff] %v256
    %321 = vst [vmem:[#allocation2 + $0x120] sm:$0xff] %v257
    %322 = vst [vmem:[#allocation2 + $0x128] sm:$0xff] %v258
    %323 = vst [vmem:[#allocation2 + $0x130] sm:$0xff] %v259
    %324 = vst [vmem:[#allocation2 + $0x138] sm:$0xff] %v260
    %325 = vst [vmem:[#allocation2 + $0x140] sm:$0xff] %v261
    %326 = vst [vmem:[#allocation2 + $0x148] sm:$0xff] %v262
    %327 = vst [vmem:[#allocation2 + $0x150] sm:$0xff] %v263
    %328 = vst [vmem:[#allocation2 + $0x158] sm:$0xff] %v264
    %329 = vst [vmem:[#allocation2 + $0x160] sm:$0xff] %v265
    %330 = vst [vmem:[#allocation2 + $0x168] sm:$0xff] %v266
    %331 = vst [vmem:[#allocation2 + $0x170] sm:$0xff] %v267
    %332 = vst [vmem:[#allocation2 + $0x178] sm:$0xff] %v268
    %333 = vst [vmem:[#allocation2 + $0x180] sm:$0xff] %v269
    %334 = vst [vmem:[#allocation2 + $0x188] sm:$0xff] %v270
    %335 = vst [vmem:[#allocation2 + $0x190] sm:$0xff] %v271
    %336 = vst [vmem:[#allocation2 + $0x198] sm:$0xff] %v272
    %337 = vst [vmem:[#allocation2 + $0x1a0] sm:$0xff] %v273
    %338 = vst [vmem:[#allocation2 + $0x1a8] sm:$0xff] %v274
    %339 = vst [vmem:[#allocation2 + $0x1b0] sm:$0xff] %v275
    %340 = vst [vmem:[#allocation2 + $0x1b8] sm:$0xff] %v276
    %341 = vst [vmem:[#allocation2 + $0x1c0] sm:$0xff] %v277
    %342 = vst [vmem:[#allocation2 + $0x1c8] sm:$0xff] %v278
    %343 = vst [vmem:[#allocation2 + $0x1d0] sm:$0xff] %v279
    %344 = vst [vmem:[#allocation2 + $0x1d8] sm:$0xff] %v280
    %345 = vst [vmem:[#allocation2 + $0x1e0] sm:$0xff] %v281
    %346 = vst [vmem:[#allocation2 + $0x1e8] sm:$0xff] %v282
    %347 = vst [vmem:[#allocation2 + $0x1f0] sm:$0xff] %v283
    %348 = vst [vmem:[#allocation2 + $0x1f8] sm:$0xff] %v284
    // Predicated region
    $region14: #{decoder_block_forward.7} parent=1 // pred_check
      _
    $region15: #{decoder_block_forward.7} parent=1 // pred_check_branch
      %350 = sbr.rel (0) target = $region17
    $region16: #{decoder_block_forward.7} parent=1 // pred_region
      %s352 = ssub.s32 8192, 8192
      %353 = vsyncadd [#allocation3], %s352
      %s354 = sshll.u32 [#allocation2], 4
      %s355 = int_to_ptr.vmem [resolvable:$true] %s354
      %360 = dma.vmem_to_hbm [thread:$0]  %s355, 8192, %s3, [#allocation3], 128, 128, 8
    $region17: #{decoder_block_forward.7} parent=1 // pred_fallthru
      _
    // Predicated region
    $region18: #{decoder_block_forward.7} parent=1 // pred_check
      _
    $region19: #{decoder_block_forward.7} parent=1 // pred_check_branch
      %362 = sbr.rel (0) target = $region21
    $region20: #{decoder_block_forward.7} parent=1 // pred_region
      %363 = dma.done [#allocation3], 8192
    $region21: #{decoder_block_forward.7} parent=1 // pred_fallthru
      _
    %364 = vsyncpa [#allocation3], 1

// kernel: decoder_block_forward.5
$region0: #{decoder_block_forward.5}
  #allocation0 [shape = 'u32[]', space=smem, size = 0x4, offset = 0x4, fixed_abs, tag = 'smem constant byte address 0x4 - core index']
  #allocation1 [shape = 'u32[144,128]{1,0:T(1,128)}', space=vmem, size = 0x12000, scoped, tag = 'internal scratch']
  %s0 = inlined_call_operand.vmem [shape: bf16[2,16,16,128], index: 0, kind: input, shape index: {}, may-alias: {0,1,2}]
  %s1 = inlined_call_operand.vmem [shape: bf16[2,16,16,128], index: 1, kind: input, shape index: {}, may-alias: {0,1,2}]
  %s2 = inlined_call_operand.vmem [shape: bf16[2,16,16,128], index: 2, kind: input, shape index: {}, may-alias: {0,1,2}]
  %s3 = inlined_call_operand.vmem [shape: f32[2,16,16,128], index: 3, kind: input, shape index: {}, may-alias: {3,4,5}]
  %s4 = inlined_call_operand.vmem [shape: f32[2,16,16,128], index: 4, kind: input, shape index: {}, may-alias: {3,4,5}]
  %s5 = inlined_call_operand.vmem [shape: f32[2,16,16,128], index: 5, kind: input, shape index: {}, may-alias: {3,4,5}]
  %s6 = inlined_call_operand.vmem [shape: bf16[384,384], index: 6, kind: input, shape index: {}]
  %s7 = inlined_call_operand.vmem [shape: bf16[384,384], index: 7, kind: input, shape index: {}]
  %s8 = inlined_call_operand.vmem [shape: f32[1,128], index: 8, kind: input, shape index: {}]
  %s9 = inlined_call_operand.vmem [shape: f32[2,16,16,128], index: 9, kind: output, shape index: {0}]
  %s10 = inlined_call_operand.vmem [shape: f32[2,1,2,128], index: 10, kind: output, shape index: {1}]
  %11 = xla_tuple %s9, %s10
  %s12 = sld [smem:[#allocation0]]
  $region77: #{decoder_block_forward.5} parent=0
    _
  %s14 = ssub.s32 1, %s12
  %s15 = scalar_select 0, %s14, %s12
  loop: start=0, step=1, limit=4
  $region2: #{decoder_block_forward.5} parent=0 // loop_pre_header
    _
  $region3: #{decoder_block_forward.5} parent=0 // loop_header
    %s17 = sphi 0, %s21
    %p18 = scmp.ge.s32.totalorder %s17, 4
    %s24 = sphi 0, %s36
    %s25 = sphi 0, %s32
    %s26 = sphi 0, %s24
    %s27 = sphi 0, %s25
    %s28 = sphi 0, %s26
    %s29 = sphi 0, %s27
    %s41 = sphi 0, %s43
    %s44 = sphi 0, %s41
    %s45 = sphi 0, %s44
    %s61 = sphi 0, %s45
    %s77 = sphi 0, %s79
    %s80 = sphi 0, %s77
    %s81 = sphi 0, %s80
    %s97 = sphi 0, %s81
    %s113 = sphi 0, %s115
    %s116 = sphi 0, %s113
    %s117 = sphi 0, %s116
    %s133 = sphi 0, %s117
    %s141 = sphi 0, %s143
    %s144 = sphi 0, %s141
    %s145 = sphi 0, %s144
    %s161 = sphi 0, %s145
    %s177 = sphi 0, %s179
    %s180 = sphi 0, %s177
    %s181 = sphi 0, %s180
    %s197 = sphi 0, %s181
    %s213 = sphi 0, %s215
    %s216 = sphi 0, %s213
    %s217 = sphi 0, %s216
    %s233 = sphi 0, %s217
    %s237 = sphi 0, %s237
    %s239 = sphi 0, %s237
    %s240 = sphi 0, %s239
    %s254 = sphi 0, %s240
    %s258 = sphi 0, %s258
    %s260 = sphi 0, %s258
    %s261 = sphi 0, %s260
    %s275 = sphi 0, %s261
    %s279 = sphi 0, %s279
    %s281 = sphi 0, %s279
    %s282 = sphi 0, %s281
    %s296 = sphi 0, %s282
    %s304 = sphi 0, %s306
    %s307 = sphi 0, %s304
    %s308 = sphi 0, %s307
    %s324 = sphi 0, %s308
    %s332 = sphi 0, %s334
    %s335 = sphi 0, %s332
    %s336 = sphi 0, %s335
    %s352 = sphi 0, %s336
  $region4: #{decoder_block_forward.5} parent=0 // loop_header_branch
    %20 = sbr.rel (%p18) target = $region8
  $region5: #{decoder_block_forward.5} parent=0 // loop_body
    %s22 = ssub.s32 %s17, 1
    %s23 = ssub.s32 %s17, 2
    %s30 = sadd.s32 1, %s25
    %p31 = scmp.ge.s32.totalorder %s30, 1
    %s32 = scalar_select %p31, 0, %s30
    %s33 = sadd.s32 1, %s24
    %s34 = scalar_select %p31, %s33, %s24
    %p35 = scmp.ge.s32.totalorder %s34, 2
    %s36 = scalar_select %p35, 0, %s34
    %s37 = ssub.s32 %s24, %s36
    %s38 = ssub.s32 %s25, %s32
    %s39 = sor.u32 %s37, %s38
    %p40 = scmp.eq.s32.totalorder %s39, 0
    %s42 = sadd.s32 %s41, 1
    %s43 = scalar_select %p40, %s41, %s42
    %p46 = pneg %p40
    %p47 = scmp.eq.s32.totalorder %s17, 1
    %p48 = por %p46, %p47
    %p49 = scmp.ne.s32.totalorder %s41, %s44
    %p50 = scmp.eq.s32.totalorder %s17, 0
    %p51 = por %p49, %p50
    %p52 = scmp.ne.s32.totalorder %s41, %s44
    %p53 = scmp.eq.s32.totalorder %s22, 1
    %p54 = por %p52, %p53
    %p55 = scmp.ne.s32.totalorder %s44, %s45
    %p56 = scmp.eq.s32.totalorder %s22, 0
    %p57 = por %p55, %p56
    %p58 = scmp.ne.s32.totalorder %s44, %s45
    %p59 = scmp.eq.s32.totalorder %s23, 1
    %p60 = por %p58, %p59
    %p62 = scmp.ne.s32.totalorder %s45, %s61
    %p63 = scmp.eq.s32.totalorder %s23, 0
    %p64 = por %p62, %p63
    %s65 = smul.u32 %s25, 16
    %s66 = ssub.s32 %s65, 1
    %p67 = scmp.gt.s32.totalorder %s66, 0
    %s68 = scalar_select %p67, %s66, 0
    %s69 = smul.u32 %s32, 16
    %s70 = ssub.s32 %s69, 1
    %p71 = scmp.gt.s32.totalorder %s70, 0
    %s72 = scalar_select %p71, %s70, 0
    %s73 = ssub.s32 %s24, %s36
    %s74 = ssub.s32 %s68, %s72
    %s75 = sor.u32 %s73, %s74
    %p76 = scmp.eq.s32.totalorder %s75, 0
    %s78 = sadd.s32 %s77, 1
    %s79 = scalar_select %p76, %s77, %s78
    %p82 = pneg %p76
    %p83 = scmp.eq.s32.totalorder %s17, 1
    %p84 = por %p82, %p83
    %p85 = scmp.ne.s32.totalorder %s77, %s80
    %p86 = scmp.eq.s32.totalorder %s17, 0
    %p87 = por %p85, %p86
    %p88 = scmp.ne.s32.totalorder %s77, %s80
    %p89 = scmp.eq.s32.totalorder %s22, 1
    %p90 = por %p88, %p89
    %p91 = scmp.ne.s32.totalorder %s80, %s81
    %p92 = scmp.eq.s32.totalorder %s22, 0
    %p93 = por %p91, %p92
    %p94 = scmp.ne.s32.totalorder %s80, %s81
    %p95 = scmp.eq.s32.totalorder %s23, 1
    %p96 = por %p94, %p95
    %p98 = scmp.ne.s32.totalorder %s81, %s97
    %p99 = scmp.eq.s32.totalorder %s23, 0
    %p100 = por %p98, %p99
    %s101 = smul.u32 %s25, 16
    %s102 = sadd.s32 %s101, 16
    %p103 = scmp.lt.s32.totalorder %s102, 15
    %s104 = scalar_select %p103, %s102, 15
    %s105 = smul.u32 %s32, 16
    %s106 = sadd.s32 %s105, 16
    %p107 = scmp.lt.s32.totalorder %s106, 15
    %s108 = scalar_select %p107, %s106, 15
    %s109 = ssub.s32 %s24, %s36
    %s110 = ssub.s32 %s104, %s108
    %s111 = sor.u32 %s109, %s110
    %p112 = scmp.eq.s32.totalorder %s111, 0
    %s114 = sadd.s32 %s113, 1
    %s115 = scalar_select %p112, %s113, %s114
    %p118 = pneg %p112
    %p119 = scmp.eq.s32.totalorder %s17, 1
    %p120 = por %p118, %p119
    %p121 = scmp.ne.s32.totalorder %s113, %s116
    %p122 = scmp.eq.s32.totalorder %s17, 0
    %p123 = por %p121, %p122
    %p124 = scmp.ne.s32.totalorder %s113, %s116
    %p125 = scmp.eq.s32.totalorder %s22, 1
    %p126 = por %p124, %p125
    %p127 = scmp.ne.s32.totalorder %s116, %s117
    %p128 = scmp.eq.s32.totalorder %s22, 0
    %p129 = por %p127, %p128
    %p130 = scmp.ne.s32.totalorder %s116, %s117
    %p131 = scmp.eq.s32.totalorder %s23, 1
    %p132 = por %p130, %p131
    %p134 = scmp.ne.s32.totalorder %s117, %s133
    %p135 = scmp.eq.s32.totalorder %s23, 0
    %p136 = por %p134, %p135
    %s137 = ssub.s32 %s24, %s36
    %s138 = ssub.s32 %s25, %s32
    %s139 = sor.u32 %s137, %s138
    %p140 = scmp.eq.s32.totalorder %s139, 0
    %s142 = sadd.s32 %s141, 1
    %s143 = scalar_select %p140, %s141, %s142
    %p146 = pneg %p140
    %p147 = scmp.eq.s32.totalorder %s17, 1
    %p148 = por %p146, %p147
    %p149 = scmp.ne.s32.totalorder %s141, %s144
    %p150 = scmp.eq.s32.totalorder %s17, 0
    %p151 = por %p149, %p150
    %p152 = scmp.ne.s32.totalorder %s141, %s144
    %p153 = scmp.eq.s32.totalorder %s22, 1
    %p154 = por %p152, %p153
    %p155 = scmp.ne.s32.totalorder %s144, %s145
    %p156 = scmp.eq.s32.totalorder %s22, 0
    %p157 = por %p155, %p156
    %p158 = scmp.ne.s32.totalorder %s144, %s145
    %p159 = scmp.eq.s32.totalorder %s23, 1
    %p160 = por %p158, %p159
    %p162 = scmp.ne.s32.totalorder %s145, %s161
    %p163 = scmp.eq.s32.totalorder %s23, 0
    %p164 = por %p162, %p163
    %s165 = smul.u32 %s25, 16
    %s166 = ssub.s32 %s165, 1
    %p167 = scmp.gt.s32.totalorder %s166, 0
    %s168 = scalar_select %p167, %s166, 0
    %s169 = smul.u32 %s32, 16
    %s170 = ssub.s32 %s169, 1
    %p171 = scmp.gt.s32.totalorder %s170, 0
    %s172 = scalar_select %p171, %s170, 0
    %s173 = ssub.s32 %s24, %s36
    %s174 = ssub.s32 %s168, %s172
    %s175 = sor.u32 %s173, %s174
    %p176 = scmp.eq.s32.totalorder %s175, 0
    %s178 = sadd.s32 %s177, 1
    %s179 = scalar_select %p176, %s177, %s178
    %p182 = pneg %p176
    %p183 = scmp.eq.s32.totalorder %s17, 1
    %p184 = por %p182, %p183
    %p185 = scmp.ne.s32.totalorder %s177, %s180
    %p186 = scmp.eq.s32.totalorder %s17, 0
    %p187 = por %p185, %p186
    %p188 = scmp.ne.s32.totalorder %s177, %s180
    %p189 = scmp.eq.s32.totalorder %s22, 1
    %p190 = por %p188, %p189
    %p191 = scmp.ne.s32.totalorder %s180, %s181
    %p192 = scmp.eq.s32.totalorder %s22, 0
    %p193 = por %p191, %p192
    %p194 = scmp.ne.s32.totalorder %s180, %s181
    %p195 = scmp.eq.s32.totalorder %s23, 1
    %p196 = por %p194, %p195
    %p198 = scmp.ne.s32.totalorder %s181, %s197
    %p199 = scmp.eq.s32.totalorder %s23, 0
    %p200 = por %p198, %p199
    %s201 = smul.u32 %s25, 16
    %s202 = sadd.s32 %s201, 16
    %p203 = scmp.lt.s32.totalorder %s202, 15
    %s204 = scalar_select %p203, %s202, 15
    %s205 = smul.u32 %s32, 16
    %s206 = sadd.s32 %s205, 16
    %p207 = scmp.lt.s32.totalorder %s206, 15
    %s208 = scalar_select %p207, %s206, 15
    %s209 = ssub.s32 %s24, %s36
    %s210 = ssub.s32 %s204, %s208
    %s211 = sor.u32 %s209, %s210
    %p212 = scmp.eq.s32.totalorder %s211, 0
    %s214 = sadd.s32 %s213, 1
    %s215 = scalar_select %p212, %s213, %s214
    %p218 = pneg %p212
    %p219 = scmp.eq.s32.totalorder %s17, 1
    %p220 = por %p218, %p219
    %p221 = scmp.ne.s32.totalorder %s213, %s216
    %p222 = scmp.eq.s32.totalorder %s17, 0
    %p223 = por %p221, %p222
    %p224 = scmp.ne.s32.totalorder %s213, %s216
    %p225 = scmp.eq.s32.totalorder %s22, 1
    %p226 = por %p224, %p225
    %p227 = scmp.ne.s32.totalorder %s216, %s217
    %p228 = scmp.eq.s32.totalorder %s22, 0
    %p229 = por %p227, %p228
    %p230 = scmp.ne.s32.totalorder %s216, %s217
    %p231 = scmp.eq.s32.totalorder %s23, 1
    %p232 = por %p230, %p231
    %p234 = scmp.ne.s32.totalorder %s217, %s233
    %p235 = scmp.eq.s32.totalorder %s23, 0
    %p236 = por %p234, %p235
    %s238 = sadd.s32 %s237, 1
    %p241 = scmp.eq.s32.totalorder %s17, 1
    %p242 = scmp.ne.s32.totalorder %s237, %s239
    %p243 = scmp.eq.s32.totalorder %s17, 0
    %p244 = por %p242, %p243
    %p245 = scmp.ne.s32.totalorder %s237, %s239
    %p246 = scmp.eq.s32.totalorder %s22, 1
    %p247 = por %p245, %p246
    %p248 = scmp.ne.s32.totalorder %s239, %s240
    %p249 = scmp.eq.s32.totalorder %s22, 0
    %p250 = por %p248, %p249
    %p251 = scmp.ne.s32.totalorder %s239, %s240
    %p252 = scmp.eq.s32.totalorder %s23, 1
    %p253 = por %p251, %p252
    %p255 = scmp.ne.s32.totalorder %s240, %s254
    %p256 = scmp.eq.s32.totalorder %s23, 0
    %p257 = por %p255, %p256
    %s259 = sadd.s32 %s258, 1
    %p262 = scmp.eq.s32.totalorder %s17, 1
    %p263 = scmp.ne.s32.totalorder %s258, %s260
    %p264 = scmp.eq.s32.totalorder %s17, 0
    %p265 = por %p263, %p264
    %p266 = scmp.ne.s32.totalorder %s258, %s260
    %p267 = scmp.eq.s32.totalorder %s22, 1
    %p268 = por %p266, %p267
    %p269 = scmp.ne.s32.totalorder %s260, %s261
    %p270 = scmp.eq.s32.totalorder %s22, 0
    %p271 = por %p269, %p270
    %p272 = scmp.ne.s32.totalorder %s260, %s261
    %p273 = scmp.eq.s32.totalorder %s23, 1
    %p274 = por %p272, %p273
    %p276 = scmp.ne.s32.totalorder %s261, %s275
    %p277 = scmp.eq.s32.totalorder %s23, 0
    %p278 = por %p276, %p277
    %s280 = sadd.s32 %s279, 1
    %p283 = scmp.eq.s32.totalorder %s17, 1
    %p284 = scmp.ne.s32.totalorder %s279, %s281
    %p285 = scmp.eq.s32.totalorder %s17, 0
    %p286 = por %p284, %p285
    %p287 = scmp.ne.s32.totalorder %s279, %s281
    %p288 = scmp.eq.s32.totalorder %s22, 1
    %p289 = por %p287, %p288
    %p290 = scmp.ne.s32.totalorder %s281, %s282
    %p291 = scmp.eq.s32.totalorder %s22, 0
    %p292 = por %p290, %p291
    %p293 = scmp.ne.s32.totalorder %s281, %s282
    %p294 = scmp.eq.s32.totalorder %s23, 1
    %p295 = por %p293, %p294
    %p297 = scmp.ne.s32.totalorder %s282, %s296
    %p298 = scmp.eq.s32.totalorder %s23, 0
    %p299 = por %p297, %p298
    %s300 = ssub.s32 %s24, %s36
    %s301 = ssub.s32 %s25, %s32
    %s302 = sor.u32 %s300, %s301
    %p303 = scmp.eq.s32.totalorder %s302, 0
    %s305 = sadd.s32 %s304, 1
    %s306 = scalar_select %p303, %s304, %s305
    %p309 = pneg %p303
    %p310 = scmp.eq.s32.totalorder %s17, 1
    %p311 = por %p309, %p310
    %p312 = scmp.ne.s32.totalorder %s304, %s307
    %p313 = scmp.eq.s32.totalorder %s17, 0
    %p314 = por %p312, %p313
    %p315 = scmp.ne.s32.totalorder %s304, %s307
    %p316 = scmp.eq.s32.totalorder %s22, 1
    %p317 = por %p315, %p316
    %p318 = scmp.ne.s32.totalorder %s307, %s308
    %p319 = scmp.eq.s32.totalorder %s22, 0
    %p320 = por %p318, %p319
    %p321 = scmp.ne.s32.totalorder %s307, %s308
    %p322 = scmp.eq.s32.totalorder %s23, 1
    %p323 = por %p321, %p322
    %p325 = scmp.ne.s32.totalorder %s308, %s324
    %p326 = scmp.eq.s32.totalorder %s23, 0
    %p327 = por %p325, %p326
    %s328 = ssub.s32 %s24, %s36
    %s329 = ssub.s32 %s25, %s32
    %s330 = sor.u32 %s328, %s329
    %p331 = scmp.eq.s32.totalorder %s330, 0
    %s333 = sadd.s32 %s332, 1
    %s334 = scalar_select %p331, %s332, %s333
    %p337 = pneg %p331
    %p338 = scmp.eq.s32.totalorder %s17, 1
    %p339 = por %p337, %p338
    %p340 = scmp.ne.s32.totalorder %s332, %s335
    %p341 = scmp.eq.s32.totalorder %s17, 0
    %p342 = por %p340, %p341
    %p343 = scmp.ne.s32.totalorder %s332, %s335
    %p344 = scmp.eq.s32.totalorder %s22, 1
    %p345 = por %p343, %p344
    %p346 = scmp.ne.s32.totalorder %s335, %s336
    %p347 = scmp.eq.s32.totalorder %s22, 0
    %p348 = por %p346, %p347
    %p349 = scmp.ne.s32.totalorder %s335, %s336
    %p350 = scmp.eq.s32.totalorder %s23, 1
    %p351 = por %p349, %p350
    %p353 = scmp.ne.s32.totalorder %s336, %s352
    %p354 = scmp.eq.s32.totalorder %s23, 0
    %p355 = por %p353, %p354
    %p356 = scmp.le.s32.totalorder 1, %s17
    %p357 = scmp.lt.s32.totalorder %s17, 3
    %p358 = pnand %p356, %p357
    %p359 = pneg %p358
    // Predicated region
    $region9: #{decoder_block_forward.5} parent=5 // pred_check
      _
    $region10: #{decoder_block_forward.5} parent=5 // pred_check_branch
      %361 = sbr.rel (%p358) target = $region12
    $region11: #{decoder_block_forward.5} parent=5 // pred_region
      %s362 = ssub.s32 %s17, 1
      // Predicated region
      $region13: #{decoder_block_forward.5} parent=11 // pred_check
        %p363 = pneg %p250
      $region14: #{decoder_block_forward.5} parent=11 // pred_check_branch
        %365 = sbr.rel (%p363) target = $region16
      $region15: #{decoder_block_forward.5} parent=11 // pred_region
        _
      $region16: #{decoder_block_forward.5} parent=11 // pred_fallthru
        _
      // Predicated region
      $region17: #{decoder_block_forward.5} parent=11 // pred_check
        %p366 = pneg %p271
      $region18: #{decoder_block_forward.5} parent=11 // pred_check_branch
        %368 = sbr.rel (%p366) target = $region20
      $region19: #{decoder_block_forward.5} parent=11 // pred_region
        _
      $region20: #{decoder_block_forward.5} parent=11 // pred_fallthru
        _
      // Predicated region
      $region21: #{decoder_block_forward.5} parent=11 // pred_check
        %p369 = pneg %p292
      $region22: #{decoder_block_forward.5} parent=11 // pred_check_branch
        %371 = sbr.rel (%p369) target = $region24
      $region23: #{decoder_block_forward.5} parent=11 // pred_region
        _
      $region24: #{decoder_block_forward.5} parent=11 // pred_fallthru
        _
    $region12: #{decoder_block_forward.5} parent=5 // pred_fallthru
      _
    %p372 = scmp.lt.s32.totalorder %s17, 2
    // Predicated region
    $region25: #{decoder_block_forward.5} parent=5 // pred_check
      %p373 = pneg %p372
    $region26: #{decoder_block_forward.5} parent=5 // pred_check_branch
      %375 = sbr.rel (%p373) target = $region28
    $region27: #{decoder_block_forward.5} parent=5 // pred_region
      // Predicated region
      $region29: #{decoder_block_forward.5} parent=27 // pred_check
        %p376 = pneg %p51
      $region30: #{decoder_block_forward.5} parent=27 // pred_check_branch
        %378 = sbr.rel (%p376) target = $region32
      $region31: #{decoder_block_forward.5} parent=27 // pred_region
        %s379 = smul.u32 16, %s25
        %p380 = scmp.lt.s32.totalorder %s24, 1
        %s381 = scalar_select %p380, %s24, 1
        %p382 = scmp.lt.s32.totalorder %s379, 15
        %s383 = scalar_select %p382, %s379, 15
        %s384 = smul.addr %s383, 2
        %s385 = smul.addr %s381, 32
        %s386 = sadd.s32 %s384, %s385
        %s387 = smul.addr %s386, 4
        %s388 = scalar_lea.vmem %s0, %s387
        %s389 = smul.u32 16, %s25
      $region32: #{decoder_block_forward.5} parent=27 // pred_fallthru
        _
      // Predicated region
      $region33: #{decoder_block_forward.5} parent=27 // pred_check
        %p390 = pneg %p87
      $region34: #{decoder_block_forward.5} parent=27 // pred_check_branch
        %392 = sbr.rel (%p390) target = $region36
      $region35: #{decoder_block_forward.5} parent=27 // pred_region
        %s393 = smul.u32 %s25, 16
        %s394 = ssub.s32 %s393, 1
        %p395 = scmp.gt.s32.totalorder %s394, 0
        %s396 = scalar_select %p395, %s394, 0
        %p397 = scmp.lt.s32.totalorder %s24, 1
        %s398 = scalar_select %p397, %s24, 1
        %p399 = scmp.lt.s32.totalorder %s396, 15
        %s400 = scalar_select %p399, %s396, 15
        %s401 = smul.addr %s400, 2
        %s402 = smul.addr %s398, 32
        %s403 = sadd.s32 %s401, %s402
        %s404 = smul.addr %s403, 4
        %s405 = scalar_lea.vmem %s1, %s404
        %s406 = smul.u32 %s25, 16
        %s407 = ssub.s32 %s406, 1
        %p408 = scmp.gt.s32.totalorder %s407, 0
        %s409 = scalar_select %p408, %s407, 0
      $region36: #{decoder_block_forward.5} parent=27 // pred_fallthru
        _
      // Predicated region
      $region37: #{decoder_block_forward.5} parent=27 // pred_check
        %p410 = pneg %p123
      $region38: #{decoder_block_forward.5} parent=27 // pred_check_branch
        %412 = sbr.rel (%p410) target = $region40
      $region39: #{decoder_block_forward.5} parent=27 // pred_region
        %s413 = smul.u32 %s25, 16
        %s414 = sadd.s32 %s413, 16
        %p415 = scmp.lt.s32.totalorder %s414, 15
        %s416 = scalar_select %p415, %s414, 15
        %p417 = scmp.lt.s32.totalorder %s24, 1
        %s418 = scalar_select %p417, %s24, 1
        %p419 = scmp.lt.s32.totalorder %s416, 15
        %s420 = scalar_select %p419, %s416, 15
        %s421 = smul.addr %s420, 2
        %s422 = smul.addr %s418, 32
        %s423 = sadd.s32 %s421, %s422
        %s424 = smul.addr %s423, 4
        %s425 = scalar_lea.vmem %s2, %s424
        %s426 = smul.u32 %s25, 16
        %s427 = sadd.s32 %s426, 16
        %p428 = scmp.lt.s32.totalorder %s427, 15
        %s429 = scalar_select %p428, %s427, 15
      $region40: #{decoder_block_forward.5} parent=27 // pred_fallthru
        _
      // Predicated region
      $region41: #{decoder_block_forward.5} parent=27 // pred_check
        %p430 = pneg %p151
      $region42: #{decoder_block_forward.5} parent=27 // pred_check_branch
        %432 = sbr.rel (%p430) target = $region44
      $region43: #{decoder_block_forward.5} parent=27 // pred_region
        %s433 = smul.u32 16, %s25
        %p434 = scmp.lt.s32.totalorder %s24, 1
        %s435 = scalar_select %p434, %s24, 1
        %p436 = scmp.lt.s32.totalorder %s433, 15
        %s437 = scalar_select %p436, %s433, 15
        %s438 = smul.addr %s437, 2
        %s439 = smul.addr %s435, 32
        %s440 = sadd.s32 %s438, %s439
        %s441 = smul.addr %s440, 8
        %s442 = scalar_lea.vmem %s3, %s441
        %s443 = smul.u32 16, %s25
      $region44: #{decoder_block_forward.5} parent=27 // pred_fallthru
        _
      // Predicated region
      $region45: #{decoder_block_forward.5} parent=27 // pred_check
        %p444 = pneg %p187
      $region46: #{decoder_block_forward.5} parent=27 // pred_check_branch
        %446 = sbr.rel (%p444) target = $region48
      $region47: #{decoder_block_forward.5} parent=27 // pred_region
        %s447 = smul.u32 %s25, 16
        %s448 = ssub.s32 %s447, 1
        %p449 = scmp.gt.s32.totalorder %s448, 0
        %s450 = scalar_select %p449, %s448, 0
        %p451 = scmp.lt.s32.totalorder %s24, 1
        %s452 = scalar_select %p451, %s24, 1
        %p453 = scmp.lt.s32.totalorder %s450, 15
        %s454 = scalar_select %p453, %s450, 15
        %s455 = smul.addr %s454, 2
        %s456 = smul.addr %s452, 32
        %s457 = sadd.s32 %s455, %s456
        %s458 = smul.addr %s457, 8
        %s459 = scalar_lea.vmem %s4, %s458
        %s460 = smul.u32 %s25, 16
        %s461 = ssub.s32 %s460, 1
        %p462 = scmp.gt.s32.totalorder %s461, 0
        %s463 = scalar_select %p462, %s461, 0
      $region48: #{decoder_block_forward.5} parent=27 // pred_fallthru
        _
      // Predicated region
      $region49: #{decoder_block_forward.5} parent=27 // pred_check
        %p464 = pneg %p223
      $region50: #{decoder_block_forward.5} parent=27 // pred_check_branch
        %466 = sbr.rel (%p464) target = $region52
      $region51: #{decoder_block_forward.5} parent=27 // pred_region
        %s467 = smul.u32 %s25, 16
        %s468 = sadd.s32 %s467, 16
        %p469 = scmp.lt.s32.totalorder %s468, 15
        %s470 = scalar_select %p469, %s468, 15
        %p471 = scmp.lt.s32.totalorder %s24, 1
        %s472 = scalar_select %p471, %s24, 1
        %p473 = scmp.lt.s32.totalorder %s470, 15
        %s474 = scalar_select %p473, %s470, 15
        %s475 = smul.addr %s474, 2
        %s476 = smul.addr %s472, 32
        %s477 = sadd.s32 %s475, %s476
        %s478 = smul.addr %s477, 8
        %s479 = scalar_lea.vmem %s5, %s478
        %s480 = smul.u32 %s25, 16
        %s481 = sadd.s32 %s480, 16
        %p482 = scmp.lt.s32.totalorder %s481, 15
        %s483 = scalar_select %p482, %s481, 15
      $region52: #{decoder_block_forward.5} parent=27 // pred_fallthru
        _
    $region28: #{decoder_block_forward.5} parent=5 // pred_fallthru
      _
    %p484 = scmp.le.s32.totalorder 1, %s17
    %p485 = scmp.lt.s32.totalorder %s17, 3
    %p486 = pnand %p484, %p485
    %p487 = pneg %p486
    // Predicated region
    $region53: #{decoder_block_forward.5} parent=5 // pred_check
      _
    $region54: #{decoder_block_forward.5} parent=5 // pred_check_branch
      %489 = sbr.rel (%p486) target = $region56
    $region55: #{decoder_block_forward.5} parent=5 // pred_region
      %s490 = ssub.s32 %s17, 1
      %s491 = smul.u32 16, %s27
      %p492 = scmp.lt.s32.totalorder %s26, 1
      %s493 = scalar_select %p492, %s26, 1
      %p494 = scmp.lt.s32.totalorder %s491, 15
      %s495 = scalar_select %p494, %s491, 15
      %s496 = smul.addr %s495, 2
      %s497 = smul.addr %s493, 32
      %s498 = sadd.s32 %s496, %s497
      %s499 = smul.addr %s498, 4
      %s500 = scalar_lea.vmem %s0, %s499
      %p501 = pneg %p57
      %p502 = pneg %p54
      %s503 = smul.u32 %s27, 16
      %s504 = ssub.s32 %s503, 1
      %p505 = scmp.gt.s32.totalorder %s504, 0
      %s506 = scalar_select %p505, %s504, 0
      %p507 = scmp.lt.s32.totalorder %s26, 1
      %s508 = scalar_select %p507, %s26, 1
      %p509 = scmp.lt.s32.totalorder %s506, 15
      %s510 = scalar_select %p509, %s506, 15
      %s511 = smul.addr %s510, 2
      %s512 = smul.addr %s508, 32
      %s513 = sadd.s32 %s511, %s512
      %s514 = smul.addr %s513, 4
      %s515 = scalar_lea.vmem %s1, %s514
      %p516 = pneg %p93
      %p517 = pneg %p90
      %s518 = smul.u32 %s27, 16
      %s519 = sadd.s32 %s518, 16
      %p520 = scmp.lt.s32.totalorder %s519, 15
      %s521 = scalar_select %p520, %s519, 15
      %p522 = scmp.lt.s32.totalorder %s26, 1
      %s523 = scalar_select %p522, %s26, 1
      %p524 = scmp.lt.s32.totalorder %s521, 15
      %s525 = scalar_select %p524, %s521, 15
      %s526 = smul.addr %s525, 2
      %s527 = smul.addr %s523, 32
      %s528 = sadd.s32 %s526, %s527
      %s529 = smul.addr %s528, 4
      %s530 = scalar_lea.vmem %s2, %s529
      %p531 = pneg %p129
      %p532 = pneg %p126
      %s533 = smul.u32 16, %s27
      %p534 = scmp.lt.s32.totalorder %s26, 1
      %s535 = scalar_select %p534, %s26, 1
      %p536 = scmp.lt.s32.totalorder %s533, 15
      %s537 = scalar_select %p536, %s533, 15
      %s538 = smul.addr %s537, 2
      %s539 = smul.addr %s535, 32
      %s540 = sadd.s32 %s538, %s539
      %s541 = smul.addr %s540, 8
      %s542 = scalar_lea.vmem %s3, %s541
      %p543 = pneg %p157
      %p544 = pneg %p154
      %s545 = smul.u32 %s27, 16
      %s546 = ssub.s32 %s545, 1
      %p547 = scmp.gt.s32.totalorder %s546, 0
      %s548 = scalar_select %p547, %s546, 0
      %p549 = scmp.lt.s32.totalorder %s26, 1
      %s550 = scalar_select %p549, %s26, 1
      %p551 = scmp.lt.s32.totalorder %s548, 15
      %s552 = scalar_select %p551, %s548, 15
      %s553 = smul.addr %s552, 2
      %s554 = smul.addr %s550, 32
      %s555 = sadd.s32 %s553, %s554
      %s556 = smul.addr %s555, 8
      %s557 = scalar_lea.vmem %s4, %s556
      %p558 = pneg %p193
      %p559 = pneg %p190
      %s560 = smul.u32 %s27, 16
      %s561 = sadd.s32 %s560, 16
      %p562 = scmp.lt.s32.totalorder %s561, 15
      %s563 = scalar_select %p562, %s561, 15
      %p564 = scmp.lt.s32.totalorder %s26, 1
      %s565 = scalar_select %p564, %s26, 1
      %p566 = scmp.lt.s32.totalorder %s563, 15
      %s567 = scalar_select %p566, %s563, 15
      %s568 = smul.addr %s567, 2
      %s569 = smul.addr %s565, 32
      %s570 = sadd.s32 %s568, %s569
      %s571 = smul.addr %s570, 8
      %s572 = scalar_lea.vmem %s5, %s571
      %p573 = pneg %p229
      %p574 = pneg %p226
      %p575 = pneg %p250
      %p576 = pneg %p247
      %p577 = pneg %p271
      %p578 = pneg %p268
      %p579 = pneg %p292
      %p580 = pneg %p289
      %p581 = pneg %p320
      %p582 = pneg %p317
      %s583 = smul.u32 16, %s27
      %p584 = scmp.lt.s32.totalorder %s26, 1
      %s585 = scalar_select %p584, %s26, 1
      %p586 = scmp.lt.s32.totalorder %s583, 15
      %s587 = scalar_select %p586, %s583, 15
      %s588 = smul.addr %s587, 2
      %s589 = smul.addr %s585, 32
      %s590 = sadd.s32 %s588, %s589
      %s591 = smul.addr %s590, 8
      %s592 = scalar_lea.vmem %s9, %s591
      %p593 = pneg %p348
      %p594 = pneg %p345
      %p595 = scmp.lt.s32.totalorder %s26, 1
      %s596 = scalar_select %p595, %s26, 1
      %p597 = scmp.lt.s32.totalorder %s27, 0
      %s598 = scalar_select %p597, %s27, 0
      %s599 = sadd.s32 %s598, %s596
      %s600 = smul.addr %s599, 2
      %s601 = scalar_lea.vmem %s10, %s600
      %s602 = smul.u32 16, %s27
      %p603 = scmp.lt.s32.totalorder %s26, 1
      %s604 = scalar_select %p603, %s26, 1
      %p605 = scmp.lt.s32.totalorder %s602, 15
      %s606 = scalar_select %p605, %s602, 15
      %s607 = smul.addr %s606, 2
      %s608 = smul.addr %s604, 32
      %s609 = sadd.s32 %s607, %s608
      %s610 = smul.addr %s609, 4
      %s611 = scalar_lea.vmem %s0, %s610
      %s612 = smul.u32 16, %s27
      %s613 = smul.u32 %s27, 16
      %s614 = ssub.s32 %s613, 1
      %p615 = scmp.gt.s32.totalorder %s614, 0
      %s616 = scalar_select %p615, %s614, 0
      %p617 = scmp.lt.s32.totalorder %s26, 1
      %s618 = scalar_select %p617, %s26, 1
      %p619 = scmp.lt.s32.totalorder %s616, 15
      %s620 = scalar_select %p619, %s616, 15
      %s621 = smul.addr %s620, 2
      %s622 = smul.addr %s618, 32
      %s623 = sadd.s32 %s621, %s622
      %s624 = smul.addr %s623, 4
      %s625 = scalar_lea.vmem %s1, %s624
      %s626 = smul.u32 %s27, 16
      %s627 = ssub.s32 %s626, 1
      %p628 = scmp.gt.s32.totalorder %s627, 0
      %s629 = scalar_select %p628, %s627, 0
      %s630 = smul.u32 %s27, 16
      %s631 = sadd.s32 %s630, 16
      %p632 = scmp.lt.s32.totalorder %s631, 15
      %s633 = scalar_select %p632, %s631, 15
      %p634 = scmp.lt.s32.totalorder %s26, 1
      %s635 = scalar_select %p634, %s26, 1
      %p636 = scmp.lt.s32.totalorder %s633, 15
      %s637 = scalar_select %p636, %s633, 15
      %s638 = smul.addr %s637, 2
      %s639 = smul.addr %s635, 32
      %s640 = sadd.s32 %s638, %s639
      %s641 = smul.addr %s640, 4
      %s642 = scalar_lea.vmem %s2, %s641
      %s643 = smul.u32 %s27, 16
      %s644 = sadd.s32 %s643, 16
      %p645 = scmp.lt.s32.totalorder %s644, 15
      %s646 = scalar_select %p645, %s644, 15
      %s647 = smul.u32 16, %s27
      %p648 = scmp.lt.s32.totalorder %s26, 1
      %s649 = scalar_select %p648, %s26, 1
      %p650 = scmp.lt.s32.totalorder %s647, 15
      %s651 = scalar_select %p650, %s647, 15
      %s652 = smul.addr %s651, 2
      %s653 = smul.addr %s649, 32
      %s654 = sadd.s32 %s652, %s653
      %s655 = smul.addr %s654, 8
      %s656 = scalar_lea.vmem %s3, %s655
      %s657 = smul.u32 16, %s27
      %s658 = smul.u32 %s27, 16
      %s659 = ssub.s32 %s658, 1
      %p660 = scmp.gt.s32.totalorder %s659, 0
      %s661 = scalar_select %p660, %s659, 0
      %p662 = scmp.lt.s32.totalorder %s26, 1
      %s663 = scalar_select %p662, %s26, 1
      %p664 = scmp.lt.s32.totalorder %s661, 15
      %s665 = scalar_select %p664, %s661, 15
      %s666 = smul.addr %s665, 2
      %s667 = smul.addr %s663, 32
      %s668 = sadd.s32 %s666, %s667
      %s669 = smul.addr %s668, 8
      %s670 = scalar_lea.vmem %s4, %s669
      %s671 = smul.u32 %s27, 16
      %s672 = ssub.s32 %s671, 1
      %p673 = scmp.gt.s32.totalorder %s672, 0
      %s674 = scalar_select %p673, %s672, 0
      %s675 = smul.u32 %s27, 16
      %s676 = sadd.s32 %s675, 16
      %p677 = scmp.lt.s32.totalorder %s676, 15
      %s678 = scalar_select %p677, %s676, 15
      %p679 = scmp.lt.s32.totalorder %s26, 1
      %s680 = scalar_select %p679, %s26, 1
      %p681 = scmp.lt.s32.totalorder %s678, 15
      %s682 = scalar_select %p681, %s678, 15
      %s683 = smul.addr %s682, 2
      %s684 = smul.addr %s680, 32
      %s685 = sadd.s32 %s683, %s684
      %s686 = smul.addr %s685, 8
      %s687 = scalar_lea.vmem %s5, %s686
      %s688 = smul.u32 %s27, 16
      %s689 = sadd.s32 %s688, 16
      %p690 = scmp.lt.s32.totalorder %s689, 15
      %s691 = scalar_select %p690, %s689, 15
      %s692 = smul.u32 16, %s27
      %p693 = scmp.lt.s32.totalorder %s26, 1
      %s694 = scalar_select %p693, %s26, 1
      %p695 = scmp.lt.s32.totalorder %s692, 15
      %s696 = scalar_select %p695, %s692, 15
      %s697 = smul.addr %s696, 2
      %s698 = smul.addr %s694, 32
      %s699 = sadd.s32 %s697, %s698
      %s700 = smul.addr %s699, 8
      %s701 = scalar_lea.vmem %s9, %s700
      %s702 = smul.u32 16, %s27
      %p703 = scmp.lt.s32.totalorder %s26, 1
      %s704 = scalar_select %p703, %s26, 1
      %p705 = scmp.lt.s32.totalorder %s27, 0
      %s706 = scalar_select %p705, %s27, 0
      %s707 = sadd.s32 %s706, %s704
      %s708 = smul.addr %s707, 2
      %s709 = scalar_lea.vmem %s10, %s708
      %p711 = scmp.eq.s32.totalorder %s27, 0
      %v712 = vld [vmem:[%s625] sm:$0xf]
      %v713 = vld [vmem:[%s625 + $0x4] sm:$0xf]
      %s714 = scalar_select %p711, 1, 0
      %v715 = vstv %s714
      %vm716 = vcmp.eq.s32.totalorder %v715, 1
      %v717 = vsel %vm716, 0, %v712
      %v718 = vsel %vm716, 0, %v713
      %v719 = vld [vmem:[%s642] sm:$0xf]
      %v720 = vld [vmem:[%s642 + $0x4] sm:$0xf]
      %v721 = vsel %vm716, 0, %v719
      %v722 = vsel %vm716, 0, %v720
      %v723 = vld [vmem:[%s611] sm:$0xf]
      %v724 = vld [vmem:[%s611 + $0x4] sm:$0xf]
      %v725 = vld [vmem:[%s611 + $0x8] sm:$0xf]
      %v726 = vld [vmem:[%s611 + $0xc] sm:$0xf]
      %v727 = vld [vmem:[%s611 + $0x10] sm:$0xf]
      %v728 = vld [vmem:[%s611 + $0x14] sm:$0xf]
      %v729 = vld [vmem:[%s611 + $0x18] sm:$0xf]
      %v730 = vld [vmem:[%s611 + $0x1c] sm:$0xf]
      %v731 = vld [vmem:[%s611 + $0x20] sm:$0xf]
      %v732 = vld [vmem:[%s611 + $0x24] sm:$0xf]
      %v733 = vld [vmem:[%s611 + $0x28] sm:$0xf]
      %v734 = vld [vmem:[%s611 + $0x2c] sm:$0xf]
      %v735 = vld [vmem:[%s611 + $0x30] sm:$0xf]
      %v736 = vld [vmem:[%s611 + $0x34] sm:$0xf]
      %v737 = vld [vmem:[%s611 + $0x38] sm:$0xf]
      %v738 = vld [vmem:[%s611 + $0x3c] sm:$0xf]
      %v739 = vld [vmem:[%s611 + $0x40] sm:$0xf]
      %v740 = vld [vmem:[%s611 + $0x44] sm:$0xf]
      %v741 = vld [vmem:[%s611 + $0x48] sm:$0xf]
      %v742 = vld [vmem:[%s611 + $0x4c] sm:$0xf]
      %v743 = vld [vmem:[%s611 + $0x50] sm:$0xf]
      %v744 = vld [vmem:[%s611 + $0x54] sm:$0xf]
      %v745 = vld [vmem:[%s611 + $0x58] sm:$0xf]
      %v746 = vld [vmem:[%s611 + $0x5c] sm:$0xf]
      %v747 = vld [vmem:[%s611 + $0x60] sm:$0xf]
      %v748 = vld [vmem:[%s611 + $0x64] sm:$0xf]
      %v749 = vld [vmem:[%s611 + $0x68] sm:$0xf]
      %v750 = vld [vmem:[%s611 + $0x6c] sm:$0xf]
      %v751 = vld [vmem:[%s611 + $0x70] sm:$0xf]
      %v752 = vld [vmem:[%s611 + $0x74] sm:$0xf]
      %v753 = vld [vmem:[%s611 + $0x78] sm:$0xf]
      %v754 = vld [vmem:[%s611 + $0x7c] sm:$0xf]
      %v787 = vunpack.c.l.b16 %v717
      %v788 = vunpack.c.l.b16 %v718
      %v789 = vunpack.c.l.b16 %v723
      %v790 = vunpack.c.l.b16 %v724
      %v791 = vunpack.c.l.b16 %v725
      %v792 = vunpack.c.l.b16 %v726
      %v793 = vunpack.c.l.b16 %v727
      %v794 = vunpack.c.l.b16 %v728
      %v795 = vunpack.c.l.b16 %v729
      %v796 = vunpack.c.l.b16 %v730
      %v797 = vunpack.c.l.b16 %v731
      %v798 = vunpack.c.l.b16 %v732
      %v799 = vunpack.c.l.b16 %v733
      %v800 = vunpack.c.l.b16 %v734
      %v801 = vunpack.c.l.b16 %v735
      %v802 = vunpack.c.l.b16 %v736
      %v803 = vunpack.c.l.b16 %v737
      %v804 = vunpack.c.l.b16 %v738
      %v805 = vunpack.c.l.b16 %v739
      %v806 = vunpack.c.l.b16 %v740
      %v807 = vunpack.c.l.b16 %v741
      %v808 = vunpack.c.l.b16 %v742
      %v809 = vunpack.c.l.b16 %v743
      %v810 = vunpack.c.l.b16 %v744
      %v811 = vunpack.c.l.b16 %v745
      %v812 = vunpack.c.l.b16 %v746
      %v813 = vunpack.c.l.b16 %v747
      %v814 = vunpack.c.l.b16 %v748
      %v815 = vunpack.c.l.b16 %v749
      %v816 = vunpack.c.l.b16 %v750
      %v817 = vunpack.c.l.b16 %v751
      %v818 = vunpack.c.l.b16 %v752
      %v819 = vpack.c.b16 %v788, %v787
      %v820 = vpack.c.b16 %v790, %v789
      %v821 = vpack.c.b16 %v792, %v791
      %v822 = vpack.c.b16 %v794, %v793
      %v823 = vpack.c.b16 %v796, %v795
      %v824 = vpack.c.b16 %v798, %v797
      %v825 = vpack.c.b16 %v800, %v799
      %v826 = vpack.c.b16 %v802, %v801
      %v827 = vpack.c.b16 %v804, %v803
      %v828 = vpack.c.b16 %v806, %v805
      %v829 = vpack.c.b16 %v808, %v807
      %v830 = vpack.c.b16 %v810, %v809
      %v831 = vpack.c.b16 %v812, %v811
      %v832 = vpack.c.b16 %v814, %v813
      %v833 = vpack.c.b16 %v816, %v815
      %v834 = vpack.c.b16 %v818, %v817
      %v853 = vunpack.c.l.b16 %v753
      %v854 = vunpack.c.l.b16 %v754
      %v855 = vpack.c.b16 %v854, %v853
      %v859 = vunpack.c.l.b16 %v721
      %v860 = vunpack.c.l.b16 %v722
      %v861 = vpack.c.b16 %v860, %v859
      %v863 = vld [vmem:[%s6] sm:$0xff]
      %v864 = vld [vmem:[%s6 + $0x8] sm:$0xf]
      %v865 = vld [vmem:[%s6 + $0xc] sm:$0xff]
      %v866 = vld [vmem:[%s6 + $0x14] sm:$0xf]
      %v867 = vld [vmem:[%s6 + $0x18] sm:$0xff]
      %v868 = vld [vmem:[%s6 + $0x20] sm:$0xf]
      %v869 = vld [vmem:[%s6 + $0x24] sm:$0xff]
      %v870 = vld [vmem:[%s6 + $0x2c] sm:$0xf]
      %v871 = vld [vmem:[%s6 + $0x30] sm:$0xff]
      %v872 = vld [vmem:[%s6 + $0x38] sm:$0xf]
      %v873 = vld [vmem:[%s6 + $0x3c] sm:$0xff]
      %v874 = vld [vmem:[%s6 + $0x44] sm:$0xf]
      %v875 = vld [vmem:[%s6 + $0x48] sm:$0xff]
      %v876 = vld [vmem:[%s6 + $0x50] sm:$0xf]
      %v877 = vld [vmem:[%s6 + $0x54] sm:$0xff]
      %v878 = vld [vmem:[%s6 + $0x5c] sm:$0xf]
      %v879 = vld [vmem:[%s6 + $0x60] sm:$0xff]
      %v880 = vld [vmem:[%s6 + $0x68] sm:$0xf]
      %v881 = vld [vmem:[%s6 + $0x6c] sm:$0xff]
      %v882 = vld [vmem:[%s6 + $0x74] sm:$0xf]
      %v883 = vld [vmem:[%s6 + $0x78] sm:$0xff]
      %v884 = vld [vmem:[%s6 + $0x80] sm:$0xf]
      %v885 = vld [vmem:[%s6 + $0x84] sm:$0xff]
      %v886 = vld [vmem:[%s6 + $0x8c] sm:$0xf]
      %v887 = vld [vmem:[%s6 + $0x90] sm:$0xff]
      %v888 = vld [vmem:[%s6 + $0x98] sm:$0xf]
      %v889 = vld [vmem:[%s6 + $0x9c] sm:$0xff]
      %v890 = vld [vmem:[%s6 + $0xa4] sm:$0xf]
      %v891 = vld [vmem:[%s6 + $0xa8] sm:$0xff]
      %v892 = vld [vmem:[%s6 + $0xb0] sm:$0xf]
      %v893 = vld [vmem:[%s6 + $0xb4] sm:$0xff]
      %v894 = vld [vmem:[%s6 + $0xbc] sm:$0xf]
      %v895 = vld [vmem:[%s6 + $0xc0] sm:$0xff]
      %v896 = vld [vmem:[%s6 + $0xc8] sm:$0xf]
      %v897 = vld [vmem:[%s6 + $0xcc] sm:$0xff]
      %v898 = vld [vmem:[%s6 + $0xd4] sm:$0xf]
      %v899 = vld [vmem:[%s6 + $0xd8] sm:$0xff]
      %v900 = vld [vmem:[%s6 + $0xe0] sm:$0xf]
      %v901 = vld [vmem:[%s6 + $0xe4] sm:$0xff]
      %v902 = vld [vmem:[%s6 + $0xec] sm:$0xf]
      %v903 = vld [vmem:[%s6 + $0xf0] sm:$0xff]
      %v904 = vld [vmem:[%s6 + $0xf8] sm:$0xf]
      %v905 = vld [vmem:[%s6 + $0xfc] sm:$0xff]
      %v906 = vld [vmem:[%s6 + $0x104] sm:$0xf]
      %v907 = vld [vmem:[%s6 + $0x108] sm:$0xff]
      %v908 = vld [vmem:[%s6 + $0x110] sm:$0xf]
      %v909 = vld [vmem:[%s6 + $0x114] sm:$0xff]
      %v910 = vld [vmem:[%s6 + $0x11c] sm:$0xf]
      %v911 = vld [vmem:[%s6 + $0x120] sm:$0xff]
      %v912 = vld [vmem:[%s6 + $0x128] sm:$0xf]
      %v913 = vld [vmem:[%s6 + $0x12c] sm:$0xff]
      %v914 = vld [vmem:[%s6 + $0x134] sm:$0xf]
      %v915 = vld [vmem:[%s6 + $0x138] sm:$0xff]
      %v916 = vld [vmem:[%s6 + $0x140] sm:$0xf]
      %v917 = vld [vmem:[%s6 + $0x144] sm:$0xff]
      %v918 = vld [vmem:[%s6 + $0x14c] sm:$0xf]
      %v919 = vld [vmem:[%s6 + $0x150] sm:$0xff]
      %v920 = vld [vmem:[%s6 + $0x158] sm:$0xf]
      %v921 = vld [vmem:[%s6 + $0x15c] sm:$0xff]
      %v922 = vld [vmem:[%s6 + $0x164] sm:$0xf]
      %v923 = vld [vmem:[%s6 + $0x168] sm:$0xff]
      %v924 = vld [vmem:[%s6 + $0x170] sm:$0xf]
      %v925 = vld [vmem:[%s6 + $0x174] sm:$0xff]
      %v926 = vld [vmem:[%s6 + $0x17c] sm:$0xf]
      %v927 = vld [vmem:[%s6 + $0x180] sm:$0xff]
      %v928 = vld [vmem:[%s6 + $0x188] sm:$0xf]
      %v929 = vld [vmem:[%s6 + $0x18c] sm:$0xff]
      %v930 = vld [vmem:[%s6 + $0x194] sm:$0xf]
      %v931 = vld [vmem:[%s6 + $0x198] sm:$0xff]
      %v932 = vld [vmem:[%s6 + $0x1a0] sm:$0xf]
      %v933 = vld [vmem:[%s6 + $0x1a4] sm:$0xff]
      %v934 = vld [vmem:[%s6 + $0x1ac] sm:$0xf]
      %v935 = vld [vmem:[%s6 + $0x1b0] sm:$0xff]
      %v936 = vld [vmem:[%s6 + $0x1b8] sm:$0xf]
      %v937 = vld [vmem:[%s6 + $0x1bc] sm:$0xff]
      %v938 = vld [vmem:[%s6 + $0x1c4] sm:$0xf]
      %v939 = vld [vmem:[%s6 + $0x1c8] sm:$0xff]
      %v940 = vld [vmem:[%s6 + $0x1d0] sm:$0xf]
      %v941 = vld [vmem:[%s6 + $0x1d4] sm:$0xff]
      %v942 = vld [vmem:[%s6 + $0x1dc] sm:$0xf]
      %v943 = vld [vmem:[%s6 + $0x1e0] sm:$0xff]
      %v944 = vld [vmem:[%s6 + $0x1e8] sm:$0xf]
      %v945 = vld [vmem:[%s6 + $0x1ec] sm:$0xff]
      %v946 = vld [vmem:[%s6 + $0x1f4] sm:$0xf]
      %v947 = vld [vmem:[%s6 + $0x1f8] sm:$0xff]
      %v948 = vld [vmem:[%s6 + $0x200] sm:$0xf]
      %v949 = vld [vmem:[%s6 + $0x204] sm:$0xff]
      %v950 = vld [vmem:[%s6 + $0x20c] sm:$0xf]
      %v951 = vld [vmem:[%s6 + $0x210] sm:$0xff]
      %v952 = vld [vmem:[%s6 + $0x218] sm:$0xf]
      %v953 = vld [vmem:[%s6 + $0x21c] sm:$0xff]
      %v954 = vld [vmem:[%s6 + $0x224] sm:$0xf]
      %v955 = vld [vmem:[%s6 + $0x228] sm:$0xff]
      %v956 = vld [vmem:[%s6 + $0x230] sm:$0xf]
      %v957 = vld [vmem:[%s6 + $0x234] sm:$0xff]
      %v958 = vld [vmem:[%s6 + $0x23c] sm:$0xf]
      %v1055 = vunpack.c.l.b16 %v863
      %v1056 = vunpack.c.h.b16 %v863
      %v1057 = vunpack.c.l.b16 %v864
      %v1058 = vunpack.c.l.b16 %v865
      %v1059 = vunpack.c.h.b16 %v865
      %v1060 = vunpack.c.l.b16 %v866
      %v1061 = vunpack.c.l.b16 %v867
      %v1062 = vunpack.c.h.b16 %v867
      %v1063 = vunpack.c.l.b16 %v868
      %v1064 = vunpack.c.l.b16 %v869
      %v1065 = vunpack.c.h.b16 %v869
      %v1066 = vunpack.c.l.b16 %v870
      %v1067 = vunpack.c.l.b16 %v871
      %v1068 = vunpack.c.h.b16 %v871
      %v1069 = vunpack.c.l.b16 %v872
      %v1070 = vunpack.c.l.b16 %v873
      %v1071 = vunpack.c.h.b16 %v873
      %v1072 = vunpack.c.l.b16 %v874
      %v1073 = vunpack.c.l.b16 %v875
      %v1074 = vunpack.c.h.b16 %v875
      %v1075 = vunpack.c.l.b16 %v876
      %v1076 = vunpack.c.l.b16 %v877
      %v1077 = vunpack.c.h.b16 %v877
      %v1078 = vunpack.c.l.b16 %v878
      %v1079 = vunpack.c.l.b16 %v879
      %v1080 = vunpack.c.h.b16 %v879
      %v1081 = vunpack.c.l.b16 %v880
      %v1082 = vunpack.c.l.b16 %v881
      %v1083 = vunpack.c.h.b16 %v881
      %v1084 = vunpack.c.l.b16 %v882
      %v1085 = vunpack.c.l.b16 %v883
      %v1086 = vunpack.c.h.b16 %v883
      %v1087 = vunpack.c.l.b16 %v884
      %v1088 = vunpack.c.l.b16 %v885
      %v1089 = vunpack.c.h.b16 %v885
      %v1090 = vunpack.c.l.b16 %v886
      %v1091 = vunpack.c.l.b16 %v887
      %v1092 = vunpack.c.h.b16 %v887
      %v1093 = vunpack.c.l.b16 %v888
      %v1094 = vunpack.c.l.b16 %v889
      %v1095 = vunpack.c.h.b16 %v889
      %v1096 = vunpack.c.l.b16 %v890
      %v1097 = vunpack.c.l.b16 %v891
      %v1098 = vunpack.c.h.b16 %v891
      %v1099 = vunpack.c.l.b16 %v892
      %v1100 = vunpack.c.l.b16 %v893
      %v1101 = vunpack.c.h.b16 %v893
      %v1102 = vunpack.c.l.b16 %v894
      %v1103 = vunpack.c.l.b16 %v895
      %v1104 = vunpack.c.h.b16 %v895
      %v1105 = vunpack.c.l.b16 %v896
      %v1106 = vunpack.c.l.b16 %v897
      %v1107 = vunpack.c.h.b16 %v897
      %v1108 = vunpack.c.l.b16 %v898
      %v1109 = vunpack.c.l.b16 %v899
      %v1110 = vunpack.c.h.b16 %v899
      %v1111 = vunpack.c.l.b16 %v900
      %v1112 = vunpack.c.l.b16 %v901
      %v1113 = vunpack.c.h.b16 %v901
      %v1114 = vunpack.c.l.b16 %v902
      %v1115 = vunpack.c.l.b16 %v903
      %v1116 = vunpack.c.h.b16 %v903
      %v1117 = vunpack.c.l.b16 %v904
      %v1118 = vunpack.c.l.b16 %v905
      %v1119 = vunpack.c.h.b16 %v905
      %v1120 = vunpack.c.l.b16 %v906
      %v1121 = vunpack.c.l.b16 %v907
      %v1122 = vunpack.c.h.b16 %v907
      %v1123 = vunpack.c.l.b16 %v908
      %v1124 = vunpack.c.l.b16 %v909
      %v1125 = vunpack.c.h.b16 %v909
      %v1126 = vunpack.c.l.b16 %v910
      %v1127 = vunpack.c.l.b16 %v911
      %v1128 = vunpack.c.h.b16 %v911
      %v1129 = vunpack.c.l.b16 %v912
      %v1130 = vunpack.c.l.b16 %v913
      %v1131 = vunpack.c.h.b16 %v913
      %v1132 = vunpack.c.l.b16 %v914
      %v1133 = vunpack.c.l.b16 %v915
      %v1134 = vunpack.c.h.b16 %v915
      %v1135 = vunpack.c.l.b16 %v916
      %v1136 = vunpack.c.l.b16 %v917
      %v1137 = vunpack.c.h.b16 %v917
      %v1138 = vunpack.c.l.b16 %v918
      %v1139 = vunpack.c.l.b16 %v919
      %v1140 = vunpack.c.h.b16 %v919
      %v1141 = vunpack.c.l.b16 %v920
      %v1142 = vunpack.c.l.b16 %v921
      %v1143 = vunpack.c.h.b16 %v921
      %v1144 = vunpack.c.l.b16 %v922
      %v1145 = vunpack.c.l.b16 %v923
      %v1146 = vunpack.c.h.b16 %v923
      %v1147 = vunpack.c.l.b16 %v924
      %v1148 = vunpack.c.l.b16 %v925
      %v1149 = vunpack.c.h.b16 %v925
      %v1150 = vunpack.c.l.b16 %v926
      %v1151 = vunpack.c.l.b16 %v927
      %v1152 = vunpack.c.h.b16 %v927
      %v1153 = vunpack.c.l.b16 %v928
      %v1154 = vunpack.c.l.b16 %v929
      %v1155 = vunpack.c.h.b16 %v929
      %v1156 = vunpack.c.l.b16 %v930
      %v1157 = vunpack.c.l.b16 %v931
      %v1158 = vunpack.c.h.b16 %v931
      %v1159 = vunpack.c.l.b16 %v932
      %v1160 = vunpack.c.l.b16 %v933
      %v1161 = vunpack.c.h.b16 %v933
      %v1162 = vunpack.c.l.b16 %v934
      %v1163 = vunpack.c.l.b16 %v935
      %v1164 = vunpack.c.h.b16 %v935
      %v1165 = vunpack.c.l.b16 %v936
      %v1166 = vunpack.c.l.b16 %v937
      %v1167 = vunpack.c.h.b16 %v937
      %v1168 = vunpack.c.l.b16 %v938
      %v1169 = vunpack.c.l.b16 %v939
      %v1170 = vunpack.c.h.b16 %v939
      %v1171 = vunpack.c.l.b16 %v940
      %v1172 = vunpack.c.l.b16 %v941
      %v1173 = vunpack.c.h.b16 %v941
      %v1174 = vunpack.c.l.b16 %v942
      %v1175 = vunpack.c.l.b16 %v943
      %v1176 = vunpack.c.h.b16 %v943
      %v1177 = vunpack.c.l.b16 %v944
      %v1178 = vunpack.c.l.b16 %v945
      %v1179 = vunpack.c.h.b16 %v945
      %v1180 = vunpack.c.l.b16 %v946
      %v1181 = vunpack.c.l.b16 %v947
      %v1182 = vunpack.c.h.b16 %v947
      %v1183 = vunpack.c.l.b16 %v948
      %v1184 = vunpack.c.l.b16 %v949
      %v1185 = vunpack.c.h.b16 %v949
      %v1186 = vunpack.c.l.b16 %v950
      %v1187 = vunpack.c.l.b16 %v951
      %v1188 = vunpack.c.h.b16 %v951
      %v1189 = vunpack.c.l.b16 %v952
      %v1190 = vunpack.c.l.b16 %v953
      %v1191 = vunpack.c.h.b16 %v953
      %v1192 = vunpack.c.l.b16 %v954
      %v1193 = vunpack.c.l.b16 %v955
      %v1194 = vunpack.c.h.b16 %v955
      %v1195 = vunpack.c.l.b16 %v956
      %v1196 = vunpack.c.l.b16 %v957
      %v1197 = vunpack.c.h.b16 %v957
      %v1198 = vunpack.c.l.b16 %v958
      %v1199 = vpack.c.b16 %v1058, %v1055
      %v1200 = vpack.c.b16 %v1059, %v1056
      %v1201 = vpack.c.b16 %v1060, %v1057
      %v1202 = vpack.c.b16 %v1064, %v1061
      %v1203 = vpack.c.b16 %v1065, %v1062
      %v1204 = vpack.c.b16 %v1066, %v1063
      %v1205 = vpack.c.b16 %v1070, %v1067
      %v1206 = vpack.c.b16 %v1071, %v1068
      %v1207 = vpack.c.b16 %v1072, %v1069
      %v1208 = vpack.c.b16 %v1076, %v1073
      %v1209 = vpack.c.b16 %v1077, %v1074
      %v1210 = vpack.c.b16 %v1078, %v1075
      %v1211 = vpack.c.b16 %v1082, %v1079
      %v1212 = vpack.c.b16 %v1083, %v1080
      %v1213 = vpack.c.b16 %v1084, %v1081
      %v1214 = vpack.c.b16 %v1088, %v1085
      %v1215 = vpack.c.b16 %v1089, %v1086
      %v1216 = vpack.c.b16 %v1090, %v1087
      %v1217 = vpack.c.b16 %v1094, %v1091
      %v1218 = vpack.c.b16 %v1095, %v1092
      %v1219 = vpack.c.b16 %v1096, %v1093
      %v1220 = vpack.c.b16 %v1100, %v1097
      %v1221 = vpack.c.b16 %v1101, %v1098
      %v1222 = vpack.c.b16 %v1102, %v1099
      %v1223 = vpack.c.b16 %v1106, %v1103
      %v1224 = vpack.c.b16 %v1107, %v1104
      %v1225 = vpack.c.b16 %v1108, %v1105
      %v1226 = vpack.c.b16 %v1112, %v1109
      %v1227 = vpack.c.b16 %v1113, %v1110
      %v1228 = vpack.c.b16 %v1114, %v1111
      %v1229 = vpack.c.b16 %v1118, %v1115
      %v1230 = vpack.c.b16 %v1119, %v1116
      %v1231 = vpack.c.b16 %v1120, %v1117
      %v1232 = vpack.c.b16 %v1124, %v1121
      %v1233 = vpack.c.b16 %v1125, %v1122
      %v1234 = vpack.c.b16 %v1126, %v1123
      %v1235 = vpack.c.b16 %v1130, %v1127
      %v1236 = vpack.c.b16 %v1131, %v1128
      %v1237 = vpack.c.b16 %v1132, %v1129
      %v1238 = vpack.c.b16 %v1136, %v1133
      %v1239 = vpack.c.b16 %v1137, %v1134
      %v1240 = vpack.c.b16 %v1138, %v1135
      %v1241 = vpack.c.b16 %v1142, %v1139
      %v1242 = vpack.c.b16 %v1143, %v1140
      %v1243 = vpack.c.b16 %v1144, %v1141
      %v1244 = vpack.c.b16 %v1148, %v1145
      %v1245 = vpack.c.b16 %v1149, %v1146
      %v1246 = vpack.c.b16 %v1150, %v1147
      %v1247 = vpack.c.b16 %v1154, %v1151
      %v1248 = vpack.c.b16 %v1155, %v1152
      %v1249 = vpack.c.b16 %v1156, %v1153
      %v1250 = vpack.c.b16 %v1160, %v1157
      %v1251 = vpack.c.b16 %v1161, %v1158
      %v1252 = vpack.c.b16 %v1162, %v1159
      %v1253 = vpack.c.b16 %v1166, %v1163
      %v1254 = vpack.c.b16 %v1167, %v1164
      %v1255 = vpack.c.b16 %v1168, %v1165
      %v1256 = vpack.c.b16 %v1172, %v1169
      %v1257 = vpack.c.b16 %v1173, %v1170
      %v1258 = vpack.c.b16 %v1174, %v1171
      %v1259 = vpack.c.b16 %v1178, %v1175
      %v1260 = vpack.c.b16 %v1179, %v1176
      %v1261 = vpack.c.b16 %v1180, %v1177
      %v1262 = vpack.c.b16 %v1184, %v1181
      %v1263 = vpack.c.b16 %v1185, %v1182
      %v1264 = vpack.c.b16 %v1186, %v1183
      %v1265 = vpack.c.b16 %v1190, %v1187
      %v1266 = vpack.c.b16 %v1191, %v1188
      %v1267 = vpack.c.b16 %v1192, %v1189
      %v1268 = vpack.c.b16 %v1196, %v1193
      %v1269 = vpack.c.b16 %v1197, %v1194
      %v1270 = vpack.c.b16 %v1198, %v1195
      %1343 = vmatprep.subr.bf16.mxu0 %v1200
      %1344 = vmatpush1.bf16.msra.mxu0 %v1199
      %1345 = vmatprep.subr.bf16.mxu0 %v1203
      %1346 = vmatpush1.bf16.msra.mxu0 %v1202
      %1347 = vmatprep.subr.bf16.mxu0 %v1206
      %1348 = vmatpush1.bf16.msra.mxu0 %v1205
      %1349 = vmatprep.subr.bf16.mxu0 %v1209
      %1350 = vmatpush1.bf16.msra.mxu0 %v1208
      %1351 = vmatprep.subr.bf16.mxu0 %v1212
      %1352 = vmatpush1.bf16.msra.mxu0 %v1211
      %1353 = vmatprep.subr.bf16.mxu0 %v1215
      %1354 = vmatpush1.bf16.msra.mxu0 %v1214
      %1355 = vmatprep.subr.bf16.mxu0 %v1218
      %1356 = vmatpush1.bf16.msra.mxu0 %v1217
      %1357 = vmatprep.subr.bf16.mxu0 %v1221
      %1358 = vmatpush1.bf16.msra.mxu0 %v1220
      %1359 = vmatprep.subr.bf16.mxu0 %v1224
      %1360 = vmatpush1.bf16.msra.mxu0 %v1223
      %1361 = vmatprep.subr.bf16.mxu0 %v1227
      %1362 = vmatpush1.bf16.msra.mxu0 %v1226
      %1363 = vmatprep.subr.bf16.mxu0 %v1230
      %1364 = vmatpush1.bf16.msra.mxu0 %v1229
      %1365 = vmatprep.subr.bf16.mxu0 %v1233
      %1366 = vmatpush1.bf16.msra.mxu0 %v1232
      %1367 = vmatprep.subr.bf16.mxu0 %v1236
      %1368 = vmatpush1.bf16.msra.mxu0 %v1235
      %1369 = vmatprep.subr.bf16.mxu0 %v1239
      %1370 = vmatpush1.bf16.msra.mxu0 %v1238
      %1371 = vmatprep.subr.bf16.mxu0 %v1242
      %1372 = vmatpush1.bf16.msra.mxu0 %v1241
      %1373 = vmatprep.subr.bf16.mxu0 %v1245
      %1374 = vmatpush1.bf16.msra.mxu0 %v1244
      %1375 = vmatprep.mubr.bf16.mxu0 %v820
      %1376 = vmatmul.mubr.bf16.gmra.mrb[0].mxu0 %v819
      %v1377 = vpop.f32.mrb[0].mxu0
      %v1378 = vadd.f32 0.0, %v1377
      %v1379 = vpop.f32.mrb[0].mxu0
      %v1380 = vadd.f32 0.0, %v1379
      %v1381 = vpop.f32.mrb[0].mxu0
      %v1382 = vadd.f32 0.0, %v1381
      %v1383 = vpop.f32.mrb[0].mxu0
      %v1384 = vadd.f32 0.0, %v1383
      %1385 = vmatprep.mubr.bf16.mxu0 %v821
      %1386 = vmatmul.mubr.bf16.gmra.mrb[0].mxu0 %v820
      %v1387 = vpop.f32.mrb[0].mxu0
      %v1388 = vadd.f32 0.0, %v1387
      %v1389 = vpop.f32.mrb[0].mxu0
      %v1390 = vadd.f32 0.0, %v1389
      %v1391 = vpop.f32.mrb[0].mxu0
      %v1392 = vadd.f32 0.0, %v1391
      %v1393 = vpop.f32.mrb[0].mxu0
      %v1394 = vadd.f32 0.0, %v1393
      %1395 = vmatprep.mubr.bf16.mxu0 %v822
      %1396 = vmatmul.mubr.bf16.gmra.mrb[0].mxu0 %v821
      %v1397 = vpop.f32.mrb[0].mxu0
      %v1398 = vadd.f32 0.0, %v1397
      %v1399 = vpop.f32.mrb[0].mxu0
      %v1400 = vadd.f32 0.0, %v1399
      %v1401 = vpop.f32.mrb[0].mxu0
      %v1402 = vadd.f32 0.0, %v1401
      %v1403 = vpop.f32.mrb[0].mxu0
      %v1404 = vadd.f32 0.0, %v1403
      %1405 = vmatprep.mubr.bf16.mxu0 %v823
      %1406 = vmatmul.mubr.bf16.gmra.mrb[0].mxu0 %v822
      %v1407 = vpop.f32.mrb[0].mxu0
      %v1408 = vadd.f32 0.0, %v1407
      %v1409 = vpop.f32.mrb[0].mxu0
      %v1410 = vadd.f32 0.0, %v1409
      %v1411 = vpop.f32.mrb[0].mxu0
      %v1412 = vadd.f32 0.0, %v1411
      %v1413 = vpop.f32.mrb[0].mxu0
      %v1414 = vadd.f32 0.0, %v1413
      %1415 = vmatprep.mubr.bf16.mxu0 %v824
      %1416 = vmatmul.mubr.bf16.gmra.mrb[0].mxu0 %v823
      %v1417 = vpop.f32.mrb[0].mxu0
      %v1418 = vadd.f32 0.0, %v1417
      %v1419 = vpop.f32.mrb[0].mxu0
      %v1420 = vadd.f32 0.0, %v1419
      %v1421 = vpop.f32.mrb[0].mxu0
      %v1422 = vadd.f32 0.0, %v1421
      %v1423 = vpop.f32.mrb[0].mxu0
      %v1424 = vadd.f32 0.0, %v1423
      %1425 = vmatprep.mubr.bf16.mxu0 %v825
      %1426 = vmatmul.mubr.bf16.gmra.mrb[0].mxu0 %v824
      %v1427 = vpop.f32.mrb[0].mxu0
      %v1428 = vadd.f32 0.0, %v1427
      %v1429 = vpop.f32.mrb[0].mxu0
      %v1430 = vadd.f32 0.0, %v1429
      %v1431 = vpop.f32.mrb[0].mxu0
      %v1432 = vadd.f32 0.0, %v1431
      %v1433 = vpop.f32.mrb[0].mxu0
      %v1434 = vadd.f32 0.0, %v1433
      %1435 = vmatprep.mubr.bf16.mxu0 %v826
      %1436 = vmatmul.mubr.bf16.gmra.mrb[0].mxu0 %v825
      %v1437 = vpop.f32.mrb[0].mxu0
      %v1438 = vadd.f32 0.0, %v1437
      %v1439 = vpop.f32.mrb[0].mxu0
      %v1440 = vadd.f32 0.0, %v1439
      %v1441 = vpop.f32.mrb[0].mxu0
      %v1442 = vadd.f32 0.0, %v1441
      %v1443 = vpop.f32.mrb[0].mxu0
      %v1444 = vadd.f32 0.0, %v1443
      %1445 = vmatprep.mubr.bf16.mxu0 %v827
      %1446 = vmatmul.mubr.bf16.gmra.mrb[0].mxu0 %v826
      %v1447 = vpop.f32.mrb[0].mxu0
      %v1448 = vadd.f32 0.0, %v1447
      %v1449 = vpop.f32.mrb[0].mxu0
      %v1450 = vadd.f32 0.0, %v1449
      %v1451 = vpop.f32.mrb[0].mxu0
      %v1452 = vadd.f32 0.0, %v1451
      %v1453 = vpop.f32.mrb[0].mxu0
      %v1454 = vadd.f32 0.0, %v1453
      %1455 = vmatprep.mubr.bf16.mxu0 %v828
      %1456 = vmatmul.mubr.bf16.gmra.mrb[0].mxu0 %v827
      %v1457 = vpop.f32.mrb[0].mxu0
      %v1458 = vadd.f32 0.0, %v1457
      %v1459 = vpop.f32.mrb[0].mxu0
      %v1460 = vadd.f32 0.0, %v1459
      %v1461 = vpop.f32.mrb[0].mxu0
      %v1462 = vadd.f32 0.0, %v1461
      %v1463 = vpop.f32.mrb[0].mxu0
      %v1464 = vadd.f32 0.0, %v1463
      %1465 = vmatprep.mubr.bf16.mxu0 %v829
      %1466 = vmatmul.mubr.bf16.gmra.mrb[0].mxu0 %v828
      %v1467 = vpop.f32.mrb[0].mxu0
      %v1468 = vadd.f32 0.0, %v1467
      %v1469 = vpop.f32.mrb[0].mxu0
      %v1470 = vadd.f32 0.0, %v1469
      %v1471 = vpop.f32.mrb[0].mxu0
      %v1472 = vadd.f32 0.0, %v1471
      %v1473 = vpop.f32.mrb[0].mxu0
      %v1474 = vadd.f32 0.0, %v1473
      %1475 = vmatprep.mubr.bf16.mxu0 %v830
      %1476 = vmatmul.mubr.bf16.gmra.mrb[0].mxu0 %v829
      %v1477 = vpop.f32.mrb[0].mxu0
      %v1478 = vadd.f32 0.0, %v1477
      %v1479 = vpop.f32.mrb[0].mxu0
      %v1480 = vadd.f32 0.0, %v1479
      %v1481 = vpop.f32.mrb[0].mxu0
      %v1482 = vadd.f32 0.0, %v1481
      %v1483 = vpop.f32.mrb[0].mxu0
      %v1484 = vadd.f32 0.0, %v1483
      %1485 = vmatprep.mubr.bf16.mxu0 %v831
      %1486 = vmatmul.mubr.bf16.gmra.mrb[0].mxu0 %v830
      %v1487 = vpop.f32.mrb[0].mxu0
      %v1488 = vadd.f32 0.0, %v1487
      %v1489 = vpop.f32.mrb[0].mxu0
      %v1490 = vadd.f32 0.0, %v1489
      %v1491 = vpop.f32.mrb[0].mxu0
      %v1492 = vadd.f32 0.0, %v1491
      %v1493 = vpop.f32.mrb[0].mxu0
      %v1494 = vadd.f32 0.0, %v1493
      %1495 = vmatprep.mubr.bf16.mxu0 %v832
      %1496 = vmatmul.mubr.bf16.gmra.mrb[0].mxu0 %v831
      %v1497 = vpop.f32.mrb[0].mxu0
      %v1498 = vadd.f32 0.0, %v1497
      %v1499 = vpop.f32.mrb[0].mxu0
      %v1500 = vadd.f32 0.0, %v1499
      %v1501 = vpop.f32.mrb[0].mxu0
      %v1502 = vadd.f32 0.0, %v1501
      %v1503 = vpop.f32.mrb[0].mxu0
      %v1504 = vadd.f32 0.0, %v1503
      %1505 = vmatprep.mubr.bf16.mxu0 %v833
      %1506 = vmatmul.mubr.bf16.gmra.mrb[0].mxu0 %v832
      %v1507 = vpop.f32.mrb[0].mxu0
      %v1508 = vadd.f32 0.0, %v1507
      %v1509 = vpop.f32.mrb[0].mxu0
      %v1510 = vadd.f32 0.0, %v1509
      %v1511 = vpop.f32.mrb[0].mxu0
      %v1512 = vadd.f32 0.0, %v1511
      %v1513 = vpop.f32.mrb[0].mxu0
      %v1514 = vadd.f32 0.0, %v1513
      %1515 = vmatprep.mubr.bf16.mxu0 %v834
      %1516 = vmatmul.mubr.bf16.gmra.mrb[0].mxu0 %v833
      %v1517 = vpop.f32.mrb[0].mxu0
      %v1518 = vadd.f32 0.0, %v1517
      %v1519 = vpop.f32.mrb[0].mxu0
      %v1520 = vadd.f32 0.0, %v1519
      %v1521 = vpop.f32.mrb[0].mxu0
      %v1522 = vadd.f32 0.0, %v1521
      %v1523 = vpop.f32.mrb[0].mxu0
      %v1524 = vadd.f32 0.0, %v1523
      %1525 = vmatprep.mubr.bf16.mxu0 %v855
      %1526 = vmatmul.mubr.bf16.gmra.mrb[0].mxu0 %v834
      %v1527 = vpop.f32.mrb[0].mxu0
      %v1528 = vadd.f32 0.0, %v1527
      %v1529 = vpop.f32.mrb[0].mxu0
      %v1530 = vadd.f32 0.0, %v1529
      %v1531 = vpop.f32.mrb[0].mxu0
      %v1532 = vadd.f32 0.0, %v1531
      %v1533 = vpop.f32.mrb[0].mxu0
      %v1534 = vadd.f32 0.0, %v1533
      %1535 = vdwg.mxu0
      %1536 = vmatprep.subr.bf16.mxu0 %v1248
      %1537 = vmatpush1.bf16.msra.mxu0 %v1247
      %1538 = vmatprep.subr.bf16.mxu0 %v1251
      %1539 = vmatpush1.bf16.msra.mxu0 %v1250
      %1540 = vmatprep.subr.bf16.mxu0 %v1254
      %1541 = vmatpush1.bf16.msra.mxu0 %v1253
      %1542 = vmatprep.subr.bf16.mxu0 %v1257
      %1543 = vmatpush1.bf16.msra.mxu0 %v1256
      %1544 = vmatprep.subr.bf16.mxu0 %v1260
      %1545 = vmatpush1.bf16.msra.mxu0 %v1259
      %1546 = vmatprep.subr.bf16.mxu0 %v1263
      %1547 = vmatpush1.bf16.msra.mxu0 %v1262
      %1548 = vmatprep.subr.bf16.mxu0 %v1266
      %1549 = vmatpush1.bf16.msra.mxu0 %v1265
      %1550 = vmatprep.subr.bf16.mxu0 %v1269
      %1551 = vmatpush1.bf16.msra.mxu0 %v1268
      %1552 = vmatprep.subr.bf16.mxu0 0
      %1553 = vmatpush1.bf16.msra.mxu0 0
      %1554 = vmatprep.subr.bf16.mxu0 0
      %1555 = vmatpush1.bf16.msra.mxu0 0
      %1556 = vmatprep.subr.bf16.mxu0 0
      %1557 = vmatpush1.bf16.msra.mxu0 0
      %1558 = vmatprep.subr.bf16.mxu0 0
      %1559 = vmatpush1.bf16.msra.mxu0 0
      %1560 = vmatprep.subr.bf16.mxu0 0
      %1561 = vmatpush1.bf16.msra.mxu0 0
      %1562 = vmatprep.subr.bf16.mxu0 0
      %1563 = vmatpush1.bf16.msra.mxu0 0
      %1564 = vmatprep.subr.bf16.mxu0 0
      %1565 = vmatpush1.bf16.msra.mxu0 0
      %1566 = vmatprep.subr.bf16.mxu0 0
      %1567 = vmatpush1.bf16.msra.mxu0 0
      %1568 = vmatprep.mubr.bf16.mxu0 0
      %1569 = vmatmul.mubr.bf16.gmra.mrb[0].mxu0 %v821
      %v1570 = vpop.f32.mrb[0].mxu0
      %v1571 = vadd.f32 %v1378, %v1570
      %v1572 = vpop.f32.mrb[0].mxu0
      %v1573 = vadd.f32 %v1380, %v1572
      %v1574 = vpop.f32.mrb[0].mxu0
      %v1575 = vadd.f32 %v1382, %v1574
      %v1576 = vpop.f32.mrb[0].mxu0
      %v1577 = vadd.f32 %v1384, %v1576
      %1578 = vmatprep.mubr.bf16.mxu0 0
      %1579 = vmatmul.mubr.bf16.gmra.mrb[0].mxu0 %v822
      %v1580 = vpop.f32.mrb[0].mxu0
      %v1581 = vadd.f32 %v1388, %v1580
      %v1582 = vpop.f32.mrb[0].mxu0
      %v1583 = vadd.f32 %v1390, %v1582
      %v1584 = vpop.f32.mrb[0].mxu0
      %v1585 = vadd.f32 %v1392, %v1584
      %v1586 = vpop.f32.mrb[0].mxu0
      %v1587 = vadd.f32 %v1394, %v1586
      %1588 = vmatprep.mubr.bf16.mxu0 0
      %1589 = vmatmul.mubr.bf16.gmra.mrb[0].mxu0 %v823
      %v1590 = vpop.f32.mrb[0].mxu0
      %v1591 = vadd.f32 %v1398, %v1590
      %v1592 = vpop.f32.mrb[0].mxu0
      %v1593 = vadd.f32 %v1400, %v1592
      %v1594 = vpop.f32.mrb[0].mxu0
      %v1595 = vadd.f32 %v1402, %v1594
      %v1596 = vpop.f32.mrb[0].mxu0
      %v1597 = vadd.f32 %v1404, %v1596
      %1598 = vmatprep.mubr.bf16.mxu0 0
      %1599 = vmatmul.mubr.bf16.gmra.mrb[0].mxu0 %v824
      %v1600 = vpop.f32.mrb[0].mxu0
      %v1601 = vadd.f32 %v1408, %v1600
      %v1602 = vpop.f32.mrb[0].mxu0
      %v1603 = vadd.f32 %v1410, %v1602
      %v1604 = vpop.f32.mrb[0].mxu0
      %v1605 = vadd.f32 %v1412, %v1604
      %v1606 = vpop.f32.mrb[0].mxu0
      %v1607 = vadd.f32 %v1414, %v1606
      %1608 = vmatprep.mubr.bf16.mxu0 0
      %1609 = vmatmul.mubr.bf16.gmra.mrb[0].mxu0 %v825
      %v1610 = vpop.f32.mrb[0].mxu0
      %v1611 = vadd.f32 %v1418, %v1610
      %v1612 = vpop.f32.mrb[0].mxu0
      %v1613 = vadd.f32 %v1420, %v1612
      %v1614 = vpop.f32.mrb[0].mxu0
      %v1615 = vadd.f32 %v1422, %v1614
      %v1616 = vpop.f32.mrb[0].mxu0
      %v1617 = vadd.f32 %v1424, %v1616
      %1618 = vmatprep.mubr.bf16.mxu0 0
      %1619 = vmatmul.mubr.bf16.gmra.mrb[0].mxu0 %v826
      %v1620 = vpop.f32.mrb[0].mxu0
      %v1621 = vadd.f32 %v1428, %v1620
      %v1622 = vpop.f32.mrb[0].mxu0
      %v1623 = vadd.f32 %v1430, %v1622
      %v1624 = vpop.f32.mrb[0].mxu0
      %v1625 = vadd.f32 %v1432, %v1624
      %v1626 = vpop.f32.mrb[0].mxu0
      %v1627 = vadd.f32 %v1434, %v1626
      %1628 = vmatprep.mubr.bf16.mxu0 0
      %1629 = vmatmul.mubr.bf16.gmra.mrb[0].mxu0 %v827
      %v1630 = vpop.f32.mrb[0].mxu0
      %v1631 = vadd.f32 %v1438, %v1630
      %v1632 = vpop.f32.mrb[0].mxu0
      %v1633 = vadd.f32 %v1440, %v1632
      %v1634 = vpop.f32.mrb[0].mxu0
      %v1635 = vadd.f32 %v1442, %v1634
      %v1636 = vpop.f32.mrb[0].mxu0
      %v1637 = vadd.f32 %v1444, %v1636
      %1638 = vmatprep.mubr.bf16.mxu0 0
      %1639 = vmatmul.mubr.bf16.gmra.mrb[0].mxu0 %v828
      %v1640 = vpop.f32.mrb[0].mxu0
      %v1641 = vadd.f32 %v1448, %v1640
      %v1642 = vpop.f32.mrb[0].mxu0
      %v1643 = vadd.f32 %v1450, %v1642
      %v1644 = vpop.f32.mrb[0].mxu0
      %v1645 = vadd.f32 %v1452, %v1644
      %v1646 = vpop.f32.mrb[0].mxu0
      %v1647 = vadd.f32 %v1454, %v1646
      %1648 = vmatprep.mubr.bf16.mxu0 0
      %1649 = vmatmul.mubr.bf16.gmra.mrb[0].mxu0 %v829
      %v1650 = vpop.f32.mrb[0].mxu0
      %v1651 = vadd.f32 %v1458, %v1650
      %v1652 = vpop.f32.mrb[0].mxu0
      %v1653 = vadd.f32 %v1460, %v1652
      %v1654 = vpop.f32.mrb[0].mxu0
      %v1655 = vadd.f32 %v1462, %v1654
      %v1656 = vpop.f32.mrb[0].mxu0
      %v1657 = vadd.f32 %v1464, %v1656
      %1658 = vmatprep.mubr.bf16.mxu0 0
      %1659 = vmatmul.mubr.bf16.gmra.mrb[0].mxu0 %v830
      %v1660 = vpop.f32.mrb[0].mxu0
      %v1661 = vadd.f32 %v1468, %v1660
      %v1662 = vpop.f32.mrb[0].mxu0
      %v1663 = vadd.f32 %v1470, %v1662
      %v1664 = vpop.f32.mrb[0].mxu0
      %v1665 = vadd.f32 %v1472, %v1664
      %v1666 = vpop.f32.mrb[0].mxu0
      %v1667 = vadd.f32 %v1474, %v1666
      %1668 = vmatprep.mubr.bf16.mxu0 0
      %1669 = vmatmul.mubr.bf16.gmra.mrb[0].mxu0 %v831
      %v1670 = vpop.f32.mrb[0].mxu0
      %v1671 = vadd.f32 %v1478, %v1670
      %v1672 = vpop.f32.mrb[0].mxu0
      %v1673 = vadd.f32 %v1480, %v1672
      %v1674 = vpop.f32.mrb[0].mxu0
      %v1675 = vadd.f32 %v1482, %v1674
      %v1676 = vpop.f32.mrb[0].mxu0
      %v1677 = vadd.f32 %v1484, %v1676
      %1678 = vmatprep.mubr.bf16.mxu0 0
      %1679 = vmatmul.mubr.bf16.gmra.mrb[0].mxu0 %v832
      %v1680 = vpop.f32.mrb[0].mxu0
      %v1681 = vadd.f32 %v1488, %v1680
      %v1682 = vpop.f32.mrb[0].mxu0
      %v1683 = vadd.f32 %v1490, %v1682
      %v1684 = vpop.f32.mrb[0].mxu0
      %v1685 = vadd.f32 %v1492, %v1684
      %v1686 = vpop.f32.mrb[0].mxu0
      %v1687 = vadd.f32 %v1494, %v1686
      %1688 = vmatprep.mubr.bf16.mxu0 0
      %1689 = vmatmul.mubr.bf16.gmra.mrb[0].mxu0 %v833
      %v1690 = vpop.f32.mrb[0].mxu0
      %v1691 = vadd.f32 %v1498, %v1690
      %v1692 = vpop.f32.mrb[0].mxu0
      %v1693 = vadd.f32 %v1500, %v1692
      %v1694 = vpop.f32.mrb[0].mxu0
      %v1695 = vadd.f32 %v1502, %v1694
      %v1696 = vpop.f32.mrb[0].mxu0
      %v1697 = vadd.f32 %v1504, %v1696
      %1698 = vmatprep.mubr.bf16.mxu0 0
      %1699 = vmatmul.mubr.bf16.gmra.mrb[0].mxu0 %v834
      %v1700 = vpop.f32.mrb[0].mxu0
      %v1701 = vadd.f32 %v1508, %v1700
      %v1702 = vpop.f32.mrb[0].mxu0
      %v1703 = vadd.f32 %v1510, %v1702
      %v1704 = vpop.f32.mrb[0].mxu0
      %v1705 = vadd.f32 %v1512, %v1704
      %v1706 = vpop.f32.mrb[0].mxu0
      %v1707 = vadd.f32 %v1514, %v1706
      %1708 = vmatprep.mubr.bf16.mxu0 0
      %1709 = vmatmul.mubr.bf16.gmra.mrb[0].mxu0 %v855
      %v1710 = vpop.f32.mrb[0].mxu0
      %v1711 = vadd.f32 %v1518, %v1710
      %v1712 = vpop.f32.mrb[0].mxu0
      %v1713 = vadd.f32 %v1520, %v1712
      %v1714 = vpop.f32.mrb[0].mxu0
      %v1715 = vadd.f32 %v1522, %v1714
      %v1716 = vpop.f32.mrb[0].mxu0
      %v1717 = vadd.f32 %v1524, %v1716
      %1718 = vmatprep.mubr.bf16.mxu0 0
      %1719 = vmatmul.mubr.bf16.gmra.mrb[0].mxu0 %v861
      %v1720 = vpop.f32.mrb[0].mxu0
      %v1721 = vadd.f32 %v1528, %v1720
      %v1722 = vpop.f32.mrb[0].mxu0
      %v1723 = vadd.f32 %v1530, %v1722
      %v1724 = vpop.f32.mrb[0].mxu0
      %v1725 = vadd.f32 %v1532, %v1724
      %v1726 = vpop.f32.mrb[0].mxu0
      %v1727 = vadd.f32 %v1534, %v1726
      %1728 = vdwg.mxu0
      %1729 = vmatprep.subr.bf16.mxu0 0
      %1730 = vmatpush1.bf16.msra.mxu0 %v1201
      %1731 = vmatprep.subr.bf16.mxu0 0
      %1732 = vmatpush1.bf16.msra.mxu0 %v1204
      %1733 = vmatprep.subr.bf16.mxu0 0
      %1734 = vmatpush1.bf16.msra.mxu0 %v1207
      %1735 = vmatprep.subr.bf16.mxu0 0
      %1736 = vmatpush1.bf16.msra.mxu0 %v1210
      %1737 = vmatprep.subr.bf16.mxu0 0
      %1738 = vmatpush1.bf16.msra.mxu0 %v1213
      %1739 = vmatprep.subr.bf16.mxu0 0
      %1740 = vmatpush1.bf16.msra.mxu0 %v1216
      %1741 = vmatprep.subr.bf16.mxu0 0
      %1742 = vmatpush1.bf16.msra.mxu0 %v1219
      %1743 = vmatprep.subr.bf16.mxu0 0
      %1744 = vmatpush1.bf16.msra.mxu0 %v1222
      %1745 = vmatprep.subr.bf16.mxu0 0
      %1746 = vmatpush1.bf16.msra.mxu0 %v1225
      %1747 = vmatprep.subr.bf16.mxu0 0
      %1748 = vmatpush1.bf16.msra.mxu0 %v1228
      %1749 = vmatprep.subr.bf16.mxu0 0
      %1750 = vmatpush1.bf16.msra.mxu0 %v1231
      %1751 = vmatprep.subr.bf16.mxu0 0
      %1752 = vmatpush1.bf16.msra.mxu0 %v1234
      %1753 = vmatprep.subr.bf16.mxu0 0
      %1754 = vmatpush1.bf16.msra.mxu0 %v1237
      %1755 = vmatprep.subr.bf16.mxu0 0
      %1756 = vmatpush1.bf16.msra.mxu0 %v1240
      %1757 = vmatprep.subr.bf16.mxu0 0
      %1758 = vmatpush1.bf16.msra.mxu0 %v1243
      %1759 = vmatprep.subr.bf16.mxu0 0
      %1760 = vmatpush1.bf16.msra.mxu0 %v1246
      %1761 = vmatprep.mubr.bf16.mxu0 %v820
      %1762 = vmatmul.mubr.bf16.gmra.mrb[0].mxu0 %v819
      %v1763 = vpop.f32.mrb[0].mxu0
      %v1764 = vadd.f32 0.0, %v1763
      %v1765 = vpop.f32.mrb[0].mxu0
      %v1766 = vpop.f32.mrb[0].mxu0
      %v1767 = vadd.f32 0.0, %v1766
      %v1768 = vpop.f32.mrb[0].mxu0
      %1769 = vmatprep.mubr.bf16.mxu0 %v821
      %1770 = vmatmul.mubr.bf16.gmra.mrb[0].mxu0 %v820
      %v1771 = vpop.f32.mrb[0].mxu0
      %v1772 = vadd.f32 0.0, %v1771
      %v1773 = vpop.f32.mrb[0].mxu0
      %v1774 = vpop.f32.mrb[0].mxu0
      %v1775 = vadd.f32 0.0, %v1774
      %v1776 = vpop.f32.mrb[0].mxu0
      %1777 = vmatprep.mubr.bf16.mxu0 %v822
      %1778 = vmatmul.mubr.bf16.gmra.mrb[0].mxu0 %v821
      %v1779 = vpop.f32.mrb[0].mxu0
      %v1780 = vadd.f32 0.0, %v1779
      %v1781 = vpop.f32.mrb[0].mxu0
      %v1782 = vpop.f32.mrb[0].mxu0
      %v1783 = vadd.f32 0.0, %v1782
      %v1784 = vpop.f32.mrb[0].mxu0
      %1785 = vmatprep.mubr.bf16.mxu0 %v823
      %1786 = vmatmul.mubr.bf16.gmra.mrb[0].mxu0 %v822
      %v1787 = vpop.f32.mrb[0].mxu0
      %v1788 = vadd.f32 0.0, %v1787
      %v1789 = vpop.f32.mrb[0].mxu0
      %v1790 = vpop.f32.mrb[0].mxu0
      %v1791 = vadd.f32 0.0, %v1790
      %v1792 = vpop.f32.mrb[0].mxu0
      %1793 = vmatprep.mubr.bf16.mxu0 %v824
      %1794 = vmatmul.mubr.bf16.gmra.mrb[0].mxu0 %v823
      %v1795 = vpop.f32.mrb[0].mxu0
      %v1796 = vadd.f32 0.0, %v1795
      %v1797 = vpop.f32.mrb[0].mxu0
      %v1798 = vpop.f32.mrb[0].mxu0
      %v1799 = vadd.f32 0.0, %v1798
      %v1800 = vpop.f32.mrb[0].mxu0
      %1801 = vmatprep.mubr.bf16.mxu0 %v825
      %1802 = vmatmul.mubr.bf16.gmra.mrb[0].mxu0 %v824
      %v1803 = vpop.f32.mrb[0].mxu0
      %v1804 = vadd.f32 0.0, %v1803
      %v1805 = vpop.f32.mrb[0].mxu0
      %v1806 = vpop.f32.mrb[0].mxu0
      %v1807 = vadd.f32 0.0, %v1806
      %v1808 = vpop.f32.mrb[0].mxu0
      %1809 = vmatprep.mubr.bf16.mxu0 %v826
      %1810 = vmatmul.mubr.bf16.gmra.mrb[0].mxu0 %v825
      %v1811 = vpop.f32.mrb[0].mxu0
      %v1812 = vadd.f32 0.0, %v1811
      %v1813 = vpop.f32.mrb[0].mxu0
      %v1814 = vpop.f32.mrb[0].mxu0
      %v1815 = vadd.f32 0.0, %v1814
      %v1816 = vpop.f32.mrb[0].mxu0
      %1817 = vmatprep.mubr.bf16.mxu0 %v827
      %1818 = vmatmul.mubr.bf16.gmra.mrb[0].mxu0 %v826
      %v1819 = vpop.f32.mrb[0].mxu0
      %v1820 = vadd.f32 0.0, %v1819
      %v1821 = vpop.f32.mrb[0].mxu0
      %v1822 = vpop.f32.mrb[0].mxu0
      %v1823 = vadd.f32 0.0, %v1822
      %v1824 = vpop.f32.mrb[0].mxu0
      %1825 = vmatprep.mubr.bf16.mxu0 %v828
      %1826 = vmatmul.mubr.bf16.gmra.mrb[0].mxu0 %v827
      %v1827 = vpop.f32.mrb[0].mxu0
      %v1828 = vadd.f32 0.0, %v1827
      %v1829 = vpop.f32.mrb[0].mxu0
      %v1830 = vpop.f32.mrb[0].mxu0
      %v1831 = vadd.f32 0.0, %v1830
      %v1832 = vpop.f32.mrb[0].mxu0
      %1833 = vmatprep.mubr.bf16.mxu0 %v829
      %1834 = vmatmul.mubr.bf16.gmra.mrb[0].mxu0 %v828
      %v1835 = vpop.f32.mrb[0].mxu0
      %v1836 = vadd.f32 0.0, %v1835
      %v1837 = vpop.f32.mrb[0].mxu0
      %v1838 = vpop.f32.mrb[0].mxu0
      %v1839 = vadd.f32 0.0, %v1838
      %v1840 = vpop.f32.mrb[0].mxu0
      %1841 = vmatprep.mubr.bf16.mxu0 %v830
      %1842 = vmatmul.mubr.bf16.gmra.mrb[0].mxu0 %v829
      %v1843 = vpop.f32.mrb[0].mxu0
      %v1844 = vadd.f32 0.0, %v1843
      %v1845 = vpop.f32.mrb[0].mxu0
      %v1846 = vpop.f32.mrb[0].mxu0
      %v1847 = vadd.f32 0.0, %v1846
      %v1848 = vpop.f32.mrb[0].mxu0
      %1849 = vmatprep.mubr.bf16.mxu0 %v831
      %1850 = vmatmul.mubr.bf16.gmra.mrb[0].mxu0 %v830
      %v1851 = vpop.f32.mrb[0].mxu0
      %v1852 = vadd.f32 0.0, %v1851
      %v1853 = vpop.f32.mrb[0].mxu0
      %v1854 = vpop.f32.mrb[0].mxu0
      %v1855 = vadd.f32 0.0, %v1854
      %v1856 = vpop.f32.mrb[0].mxu0
      %1857 = vmatprep.mubr.bf16.mxu0 %v832
      %1858 = vmatmul.mubr.bf16.gmra.mrb[0].mxu0 %v831
      %v1859 = vpop.f32.mrb[0].mxu0
      %v1860 = vadd.f32 0.0, %v1859
      %v1861 = vpop.f32.mrb[0].mxu0
      %v1862 = vpop.f32.mrb[0].mxu0
      %v1863 = vadd.f32 0.0, %v1862
      %v1864 = vpop.f32.mrb[0].mxu0
      %1865 = vmatprep.mubr.bf16.mxu0 %v833
      %1866 = vmatmul.mubr.bf16.gmra.mrb[0].mxu0 %v832
      %v1867 = vpop.f32.mrb[0].mxu0
      %v1868 = vadd.f32 0.0, %v1867
      %v1869 = vpop.f32.mrb[0].mxu0
      %v1870 = vpop.f32.mrb[0].mxu0
      %v1871 = vadd.f32 0.0, %v1870
      %v1872 = vpop.f32.mrb[0].mxu0
      %1873 = vmatprep.mubr.bf16.mxu0 %v834
      %1874 = vmatmul.mubr.bf16.gmra.mrb[0].mxu0 %v833
      %v1875 = vpop.f32.mrb[0].mxu0
      %v1876 = vadd.f32 0.0, %v1875
      %v1877 = vpop.f32.mrb[0].mxu0
      %v1878 = vpop.f32.mrb[0].mxu0
      %v1879 = vadd.f32 0.0, %v1878
      %v1880 = vpop.f32.mrb[0].mxu0
      %1881 = vmatprep.mubr.bf16.mxu0 %v855
      %1882 = vmatmul.mubr.bf16.gmra.mrb[0].mxu0 %v834
      %v1883 = vpop.f32.mrb[0].mxu0
      %v1884 = vadd.f32 0.0, %v1883
      %v1885 = vpop.f32.mrb[0].mxu0
      %v1886 = vpop.f32.mrb[0].mxu0
      %v1887 = vadd.f32 0.0, %v1886
      %v1888 = vpop.f32.mrb[0].mxu0
      %1889 = vdwg.mxu0
      %1890 = vmatprep.subr.bf16.mxu0 0
      %1891 = vmatpush1.bf16.msra.mxu0 %v1249
      %1892 = vmatprep.subr.bf16.mxu0 0
      %1893 = vmatpush1.bf16.msra.mxu0 %v1252
      %1894 = vmatprep.subr.bf16.mxu0 0
      %1895 = vmatpush1.bf16.msra.mxu0 %v1255
      %1896 = vmatprep.subr.bf16.mxu0 0
      %1897 = vmatpush1.bf16.msra.mxu0 %v1258
      %1898 = vmatprep.subr.bf16.mxu0 0
      %1899 = vmatpush1.bf16.msra.mxu0 %v1261
      %1900 = vmatprep.subr.bf16.mxu0 0
      %1901 = vmatpush1.bf16.msra.mxu0 %v1264
      %1902 = vmatprep.subr.bf16.mxu0 0
      %1903 = vmatpush1.bf16.msra.mxu0 %v1267
      %1904 = vmatprep.subr.bf16.mxu0 0
      %1905 = vmatpush1.bf16.msra.mxu0 %v1270
      %1906 = vmatprep.subr.bf16.mxu0 0
      %1907 = vmatpush1.bf16.msra.mxu0 0
      %1908 = vmatprep.subr.bf16.mxu0 0
      %1909 = vmatpush1.bf16.msra.mxu0 0
      %1910 = vmatprep.subr.bf16.mxu0 0
      %1911 = vmatpush1.bf16.msra.mxu0 0
      %1912 = vmatprep.subr.bf16.mxu0 0
      %1913 = vmatpush1.bf16.msra.mxu0 0
      %1914 = vmatprep.subr.bf16.mxu0 0
      %1915 = vmatpush1.bf16.msra.mxu0 0
      %1916 = vmatprep.subr.bf16.mxu0 0
      %1917 = vmatpush1.bf16.msra.mxu0 0
      %1918 = vmatprep.subr.bf16.mxu0 0
      %1919 = vmatpush1.bf16.msra.mxu0 0
      %1920 = vmatprep.subr.bf16.mxu0 0
      %1921 = vmatpush1.bf16.msra.mxu0 0
      %1922 = vmatprep.mubr.bf16.mxu0 0
      %1923 = vmatmul.mubr.bf16.gmra.mrb[0].mxu0 %v821
      %v1924 = vpop.f32.mrb[0].mxu0
      %v1925 = vadd.f32 %v1764, %v1924
      %v1926 = vpop.f32.mrb[0].mxu0
      %v1927 = vpop.f32.mrb[0].mxu0
      %v1928 = vadd.f32 %v1767, %v1927
      %v1929 = vpop.f32.mrb[0].mxu0
      %1930 = vmatprep.mubr.bf16.mxu0 0
      %1931 = vmatmul.mubr.bf16.gmra.mrb[0].mxu0 %v822
      %v1932 = vpop.f32.mrb[0].mxu0
      %v1933 = vadd.f32 %v1772, %v1932
      %v1934 = vpop.f32.mrb[0].mxu0
      %v1935 = vpop.f32.mrb[0].mxu0
      %v1936 = vadd.f32 %v1775, %v1935
      %v1937 = vpop.f32.mrb[0].mxu0
      %1938 = vmatprep.mubr.bf16.mxu0 0
      %1939 = vmatmul.mubr.bf16.gmra.mrb[0].mxu0 %v823
      %v1940 = vpop.f32.mrb[0].mxu0
      %v1941 = vadd.f32 %v1780, %v1940
      %v1942 = vpop.f32.mrb[0].mxu0
      %v1943 = vpop.f32.mrb[0].mxu0
      %v1944 = vadd.f32 %v1783, %v1943
      %v1945 = vpop.f32.mrb[0].mxu0
      %1946 = vmatprep.mubr.bf16.mxu0 0
      %1947 = vmatmul.mubr.bf16.gmra.mrb[0].mxu0 %v824
      %v1948 = vpop.f32.mrb[0].mxu0
      %v1949 = vadd.f32 %v1788, %v1948
      %v1950 = vpop.f32.mrb[0].mxu0
      %v1951 = vpop.f32.mrb[0].mxu0
      %v1952 = vadd.f32 %v1791, %v1951
      %v1953 = vpop.f32.mrb[0].mxu0
      %1954 = vmatprep.mubr.bf16.mxu0 0
      %1955 = vmatmul.mubr.bf16.gmra.mrb[0].mxu0 %v825
      %v1956 = vpop.f32.mrb[0].mxu0
      %v1957 = vadd.f32 %v1796, %v1956
      %v1958 = vpop.f32.mrb[0].mxu0
      %v1959 = vpop.f32.mrb[0].mxu0
      %v1960 = vadd.f32 %v1799, %v1959
      %v1961 = vpop.f32.mrb[0].mxu0
      %1962 = vmatprep.mubr.bf16.mxu0 0
      %1963 = vmatmul.mubr.bf16.gmra.mrb[0].mxu0 %v826
      %v1964 = vpop.f32.mrb[0].mxu0
      %v1965 = vadd.f32 %v1804, %v1964
      %v1966 = vpop.f32.mrb[0].mxu0
      %v1967 = vpop.f32.mrb[0].mxu0
      %v1968 = vadd.f32 %v1807, %v1967
      %v1969 = vpop.f32.mrb[0].mxu0
      %1970 = vmatprep.mubr.bf16.mxu0 0
      %1971 = vmatmul.mubr.bf16.gmra.mrb[0].mxu0 %v827
      %v1972 = vpop.f32.mrb[0].mxu0
      %v1973 = vadd.f32 %v1812, %v1972
      %v1974 = vpop.f32.mrb[0].mxu0
      %v1975 = vpop.f32.mrb[0].mxu0
      %v1976 = vadd.f32 %v1815, %v1975
      %v1977 = vpop.f32.mrb[0].mxu0
      %1978 = vmatprep.mubr.bf16.mxu0 0
      %1979 = vmatmul.mubr.bf16.gmra.mrb[0].mxu0 %v828
      %v1980 = vpop.f32.mrb[0].mxu0
      %v1981 = vadd.f32 %v1820, %v1980
      %v1982 = vpop.f32.mrb[0].mxu0
      %v1983 = vpop.f32.mrb[0].mxu0
      %v1984 = vadd.f32 %v1823, %v1983
      %v1985 = vpop.f32.mrb[0].mxu0
      %1986 = vmatprep.mubr.bf16.mxu0 0
      %1987 = vmatmul.mubr.bf16.gmra.mrb[0].mxu0 %v829
      %v1988 = vpop.f32.mrb[0].mxu0
      %v1989 = vadd.f32 %v1828, %v1988
      %v1990 = vpop.f32.mrb[0].mxu0
      %v1991 = vpop.f32.mrb[0].mxu0
      %v1992 = vadd.f32 %v1831, %v1991
      %v1993 = vpop.f32.mrb[0].mxu0
      %1994 = vmatprep.mubr.bf16.mxu0 0
      %1995 = vmatmul.mubr.bf16.gmra.mrb[0].mxu0 %v830
      %v1996 = vpop.f32.mrb[0].mxu0
      %v1997 = vadd.f32 %v1836, %v1996
      %v1998 = vpop.f32.mrb[0].mxu0
      %v1999 = vpop.f32.mrb[0].mxu0
      %v2000 = vadd.f32 %v1839, %v1999
      %v2001 = vpop.f32.mrb[0].mxu0
      %2002 = vmatprep.mubr.bf16.mxu0 0
      %2003 = vmatmul.mubr.bf16.gmra.mrb[0].mxu0 %v831
      %v2004 = vpop.f32.mrb[0].mxu0
      %v2005 = vadd.f32 %v1844, %v2004
      %v2006 = vpop.f32.mrb[0].mxu0
      %v2007 = vpop.f32.mrb[0].mxu0
      %v2008 = vadd.f32 %v1847, %v2007
      %v2009 = vpop.f32.mrb[0].mxu0
      %2010 = vmatprep.mubr.bf16.mxu0 0
      %2011 = vmatmul.mubr.bf16.gmra.mrb[0].mxu0 %v832
      %v2012 = vpop.f32.mrb[0].mxu0
      %v2013 = vadd.f32 %v1852, %v2012
      %v2014 = vpop.f32.mrb[0].mxu0
      %v2015 = vpop.f32.mrb[0].mxu0
      %v2016 = vadd.f32 %v1855, %v2015
      %v2017 = vpop.f32.mrb[0].mxu0
      %2018 = vmatprep.mubr.bf16.mxu0 0
      %2019 = vmatmul.mubr.bf16.gmra.mrb[0].mxu0 %v833
      %v2020 = vpop.f32.mrb[0].mxu0
      %v2021 = vadd.f32 %v1860, %v2020
      %v2022 = vpop.f32.mrb[0].mxu0
      %v2023 = vpop.f32.mrb[0].mxu0
      %v2024 = vadd.f32 %v1863, %v2023
      %v2025 = vpop.f32.mrb[0].mxu0
      %2026 = vmatprep.mubr.bf16.mxu0 0
      %2027 = vmatmul.mubr.bf16.gmra.mrb[0].mxu0 %v834
      %v2028 = vpop.f32.mrb[0].mxu0
      %v2029 = vadd.f32 %v1868, %v2028
      %v2030 = vpop.f32.mrb[0].mxu0
      %v2031 = vpop.f32.mrb[0].mxu0
      %v2032 = vadd.f32 %v1871, %v2031
      %v2033 = vpop.f32.mrb[0].mxu0
      %2034 = vmatprep.mubr.bf16.mxu0 0
      %2035 = vmatmul.mubr.bf16.gmra.mrb[0].mxu0 %v855
      %v2036 = vpop.f32.mrb[0].mxu0
      %v2037 = vadd.f32 %v1876, %v2036
      %v2038 = vpop.f32.mrb[0].mxu0
      %v2039 = vpop.f32.mrb[0].mxu0
      %v2040 = vadd.f32 %v1879, %v2039
      %v2041 = vpop.f32.mrb[0].mxu0
      %2042 = vmatprep.mubr.bf16.mxu0 0
      %2043 = vmatmul.mubr.bf16.gmra.mrb[0].mxu0 %v861
      %v2044 = vpop.f32.mrb[0].mxu0
      %v2045 = vadd.f32 %v1884, %v2044
      %v2046 = vpop.f32.mrb[0].mxu0
      %v2047 = vpop.f32.mrb[0].mxu0
      %v2048 = vadd.f32 %v1887, %v2047
      %v2049 = vpop.f32.mrb[0].mxu0
      %2050 = vdwg.mxu0
      %vm2083 = vcmask 1040384
      %v2084 = vrot.slane %v1571, 7
      %v2085 = vrot.slane %v1575, 7
      %v2086 = vsel %vm2083, %v2084, %v2085
      %v2087 = vrot.slane %v1581, 7
      %v2088 = vsel %vm2083, %v2085, %v2087
      %v2089 = vrot.slane %v1585, 7
      %v2090 = vsel %vm2083, %v2087, %v2089
      %v2091 = vrot.slane %v1591, 7
      %v2092 = vsel %vm2083, %v2089, %v2091
      %v2093 = vrot.slane %v1595, 7
      %v2094 = vsel %vm2083, %v2091, %v2093
      %v2095 = vrot.slane %v1601, 7
      %v2096 = vsel %vm2083, %v2093, %v2095
      %v2097 = vrot.slane %v1605, 7
      %v2098 = vsel %vm2083, %v2095, %v2097
      %v2099 = vrot.slane %v1611, 7
      %v2100 = vsel %vm2083, %v2097, %v2099
      %v2101 = vrot.slane %v1615, 7
      %v2102 = vsel %vm2083, %v2099, %v2101
      %v2103 = vrot.slane %v1621, 7
      %v2104 = vsel %vm2083, %v2101, %v2103
      %v2105 = vrot.slane %v1625, 7
      %v2106 = vsel %vm2083, %v2103, %v2105
      %v2107 = vrot.slane %v1631, 7
      %v2108 = vsel %vm2083, %v2105, %v2107
      %v2109 = vrot.slane %v1635, 7
      %v2110 = vsel %vm2083, %v2107, %v2109
      %v2111 = vrot.slane %v1641, 7
      %v2112 = vsel %vm2083, %v2109, %v2111
      %v2113 = vrot.slane %v1645, 7
      %v2114 = vsel %vm2083, %v2111, %v2113
      %v2115 = vrot.slane %v1651, 7
      %v2116 = vsel %vm2083, %v2113, %v2115
      %v2117 = vrot.slane %v1655, 7
      %v2118 = vsel %vm2083, %v2115, %v2117
      %v2119 = vrot.slane %v1661, 7
      %v2120 = vsel %vm2083, %v2117, %v2119
      %v2121 = vrot.slane %v1665, 7
      %v2122 = vsel %vm2083, %v2119, %v2121
      %v2123 = vrot.slane %v1671, 7
      %v2124 = vsel %vm2083, %v2121, %v2123
      %v2125 = vrot.slane %v1675, 7
      %v2126 = vsel %vm2083, %v2123, %v2125
      %v2127 = vrot.slane %v1681, 7
      %v2128 = vsel %vm2083, %v2125, %v2127
      %v2129 = vrot.slane %v1685, 7
      %v2130 = vsel %vm2083, %v2127, %v2129
      %v2131 = vrot.slane %v1691, 7
      %v2132 = vsel %vm2083, %v2129, %v2131
      %v2133 = vrot.slane %v1695, 7
      %v2134 = vsel %vm2083, %v2131, %v2133
      %v2135 = vrot.slane %v1701, 7
      %v2136 = vsel %vm2083, %v2133, %v2135
      %v2137 = vrot.slane %v1705, 7
      %v2138 = vsel %vm2083, %v2135, %v2137
      %v2139 = vrot.slane %v1711, 7
      %v2140 = vsel %vm2083, %v2137, %v2139
      %v2141 = vrot.slane %v1715, 7
      %v2142 = vsel %vm2083, %v2139, %v2141
      %v2143 = vrot.slane %v1721, 7
      %v2144 = vsel %vm2083, %v2141, %v2143
      %v2145 = vrot.slane %v1725, 7
      %v2146 = vsel %vm2083, %v2143, %v2145
      %v2179 = vsel %vm2083, 0.0, %v2084
      %vm2212 = vcmask 1046528
      %v2213 = vrot.slane %v1925, 1
      %v2214 = vrot.slane %v1928, 1
      %v2215 = vsel %vm2212, %v2213, %v2214
      %v2216 = vrot.slane %v1933, 1
      %v2217 = vsel %vm2212, %v2214, %v2216
      %v2218 = vrot.slane %v1936, 1
      %v2219 = vsel %vm2212, %v2216, %v2218
      %v2220 = vrot.slane %v1941, 1
      %v2221 = vsel %vm2212, %v2218, %v2220
      %v2222 = vrot.slane %v1944, 1
      %v2223 = vsel %vm2212, %v2220, %v2222
      %v2224 = vrot.slane %v1949, 1
      %v2225 = vsel %vm2212, %v2222, %v2224
      %v2226 = vrot.slane %v1952, 1
      %v2227 = vsel %vm2212, %v2224, %v2226
      %v2228 = vrot.slane %v1957, 1
      %v2229 = vsel %vm2212, %v2226, %v2228
      %v2230 = vrot.slane %v1960, 1
      %v2231 = vsel %vm2212, %v2228, %v2230
      %v2232 = vrot.slane %v1965, 1
      %v2233 = vsel %vm2212, %v2230, %v2232
      %v2234 = vrot.slane %v1968, 1
      %v2235 = vsel %vm2212, %v2232, %v2234
      %v2236 = vrot.slane %v1973, 1
      %v2237 = vsel %vm2212, %v2234, %v2236
      %v2238 = vrot.slane %v1976, 1
      %v2239 = vsel %vm2212, %v2236, %v2238
      %v2240 = vrot.slane %v1981, 1
      %v2241 = vsel %vm2212, %v2238, %v2240
      %v2242 = vrot.slane %v1984, 1
      %v2243 = vsel %vm2212, %v2240, %v2242
      %v2244 = vrot.slane %v1989, 1
      %v2245 = vsel %vm2212, %v2242, %v2244
      %v2246 = vrot.slane %v1992, 1
      %v2247 = vsel %vm2212, %v2244, %v2246
      %v2248 = vrot.slane %v1997, 1
      %v2249 = vsel %vm2212, %v2246, %v2248
      %v2250 = vrot.slane %v2000, 1
      %v2251 = vsel %vm2212, %v2248, %v2250
      %v2252 = vrot.slane %v2005, 1
      %v2253 = vsel %vm2212, %v2250, %v2252
      %v2254 = vrot.slane %v2008, 1
      %v2255 = vsel %vm2212, %v2252, %v2254
      %v2256 = vrot.slane %v2013, 1
      %v2257 = vsel %vm2212, %v2254, %v2256
      %v2258 = vrot.slane %v2016, 1
      %v2259 = vsel %vm2212, %v2256, %v2258
      %v2260 = vrot.slane %v2021, 1
      %v2261 = vsel %vm2212, %v2258, %v2260
      %v2262 = vrot.slane %v2024, 1
      %v2263 = vsel %vm2212, %v2260, %v2262
      %v2264 = vrot.slane %v2029, 1
      %v2265 = vsel %vm2212, %v2262, %v2264
      %v2266 = vrot.slane %v2032, 1
      %v2267 = vsel %vm2212, %v2264, %v2266
      %v2268 = vrot.slane %v2037, 1
      %v2269 = vsel %vm2212, %v2266, %v2268
      %v2270 = vrot.slane %v2040, 1
      %v2271 = vsel %vm2212, %v2268, %v2270
      %v2272 = vrot.slane %v2045, 1
      %v2273 = vsel %vm2212, %v2270, %v2272
      %v2274 = vrot.slane %v2048, 1
      %v2275 = vsel %vm2212, %v2272, %v2274
      %v2308 = vsel %vm2212, %v2274, 0.0
      %v2309 = vlaneseq
      %v2310 = vshrl.u32 %v2309, 7
      %v2311 = vadd.s32 %v2310, 8
      %vm2312 = vcmp.ne.s32.totalorder %v2310, 0
      %vm2313 = vcmp.ne.s32.totalorder %v2311, 0
      %v2314 = vsel %vm2312, 1, 0
      %v2315 = vsel %vm2313, 1, 0
      %vm2316 = vcmp.eq.s32.totalorder %v2314, 1
      %vm2317 = vcmp.eq.s32.totalorder %v2315, 1
      %v2318 = vsel %vm2316, %v2179, 0.0
      %v2319 = vsel %vm2317, %v2086, 0.0
      %v2320 = vsel %vm2316, %v2088, 0.0
      %v2321 = vsel %vm2317, %v2090, 0.0
      %v2322 = vsel %vm2316, %v2092, 0.0
      %v2323 = vsel %vm2317, %v2094, 0.0
      %v2324 = vsel %vm2316, %v2096, 0.0
      %v2325 = vsel %vm2317, %v2098, 0.0
      %v2326 = vsel %vm2316, %v2100, 0.0
      %v2327 = vsel %vm2317, %v2102, 0.0
      %v2328 = vsel %vm2316, %v2104, 0.0
      %v2329 = vsel %vm2317, %v2106, 0.0
      %v2330 = vsel %vm2316, %v2108, 0.0
      %v2331 = vsel %vm2317, %v2110, 0.0
      %v2332 = vsel %vm2316, %v2112, 0.0
      %v2333 = vsel %vm2317, %v2114, 0.0
      %v2334 = vsel %vm2316, %v2116, 0.0
      %v2335 = vsel %vm2317, %v2118, 0.0
      %v2336 = vsel %vm2316, %v2120, 0.0
      %v2337 = vsel %vm2317, %v2122, 0.0
      %v2338 = vsel %vm2316, %v2124, 0.0
      %v2339 = vsel %vm2317, %v2126, 0.0
      %v2340 = vsel %vm2316, %v2128, 0.0
      %v2341 = vsel %vm2317, %v2130, 0.0
      %v2342 = vsel %vm2316, %v2132, 0.0
      %v2343 = vsel %vm2317, %v2134, 0.0
      %v2344 = vsel %vm2316, %v2136, 0.0
      %v2345 = vsel %vm2317, %v2138, 0.0
      %v2346 = vsel %vm2316, %v2140, 0.0
      %v2347 = vsel %vm2317, %v2142, 0.0
      %v2348 = vsel %vm2316, %v2144, 0.0
      %v2349 = vsel %vm2317, %v2146, 0.0
      %v2350 = vadd.f32 %v1573, %v2318
      %v2351 = vadd.f32 %v1577, %v2319
      %v2352 = vadd.f32 %v1583, %v2320
      %v2353 = vadd.f32 %v1587, %v2321
      %v2354 = vadd.f32 %v1593, %v2322
      %v2355 = vadd.f32 %v1597, %v2323
      %v2356 = vadd.f32 %v1603, %v2324
      %v2357 = vadd.f32 %v1607, %v2325
      %v2358 = vadd.f32 %v1613, %v2326
      %v2359 = vadd.f32 %v1617, %v2327
      %v2360 = vadd.f32 %v1623, %v2328
      %v2361 = vadd.f32 %v1627, %v2329
      %v2362 = vadd.f32 %v1633, %v2330
      %v2363 = vadd.f32 %v1637, %v2331
      %v2364 = vadd.f32 %v1643, %v2332
      %v2365 = vadd.f32 %v1647, %v2333
      %v2366 = vadd.f32 %v1653, %v2334
      %v2367 = vadd.f32 %v1657, %v2335
      %v2368 = vadd.f32 %v1663, %v2336
      %v2369 = vadd.f32 %v1667, %v2337
      %v2370 = vadd.f32 %v1673, %v2338
      %v2371 = vadd.f32 %v1677, %v2339
      %v2372 = vadd.f32 %v1683, %v2340
      %v2373 = vadd.f32 %v1687, %v2341
      %v2374 = vadd.f32 %v1693, %v2342
      %v2375 = vadd.f32 %v1697, %v2343
      %v2376 = vadd.f32 %v1703, %v2344
      %v2377 = vadd.f32 %v1707, %v2345
      %v2378 = vadd.f32 %v1713, %v2346
      %v2379 = vadd.f32 %v1717, %v2347
      %v2380 = vadd.f32 %v1723, %v2348
      %v2381 = vadd.f32 %v1727, %v2349
      %vm2382 = vcmp.ne.s32.totalorder %v2310, 15
      %vm2383 = vcmp.ne.s32.totalorder %v2311, 15
      %v2384 = vsel %vm2382, 1, 0
      %v2385 = vsel %vm2383, 1, 0
      %vm2386 = vcmp.eq.s32.totalorder %v2384, 1
      %vm2387 = vcmp.eq.s32.totalorder %v2385, 1
      %v2388 = vsel %vm2386, %v2215, 0.0
      %v2389 = vsel %vm2387, %v2217, 0.0
      %v2390 = vsel %vm2386, %v2219, 0.0
      %v2391 = vsel %vm2387, %v2221, 0.0
      %v2392 = vsel %vm2386, %v2223, 0.0
      %v2393 = vsel %vm2387, %v2225, 0.0
      %v2394 = vsel %vm2386, %v2227, 0.0
      %v2395 = vsel %vm2387, %v2229, 0.0
      %v2396 = vsel %vm2386, %v2231, 0.0
      %v2397 = vsel %vm2387, %v2233, 0.0
      %v2398 = vsel %vm2386, %v2235, 0.0
      %v2399 = vsel %vm2387, %v2237, 0.0
      %v2400 = vsel %vm2386, %v2239, 0.0
      %v2401 = vsel %vm2387, %v2241, 0.0
      %v2402 = vsel %vm2386, %v2243, 0.0
      %v2403 = vsel %vm2387, %v2245, 0.0
      %v2404 = vsel %vm2386, %v2247, 0.0
      %v2405 = vsel %vm2387, %v2249, 0.0
      %v2406 = vsel %vm2386, %v2251, 0.0
      %v2407 = vsel %vm2387, %v2253, 0.0
      %v2408 = vsel %vm2386, %v2255, 0.0
      %v2409 = vsel %vm2387, %v2257, 0.0
      %v2410 = vsel %vm2386, %v2259, 0.0
      %v2411 = vsel %vm2387, %v2261, 0.0
      %v2412 = vsel %vm2386, %v2263, 0.0
      %v2413 = vsel %vm2387, %v2265, 0.0
      %v2414 = vsel %vm2386, %v2267, 0.0
      %v2415 = vsel %vm2387, %v2269, 0.0
      %v2416 = vsel %vm2386, %v2271, 0.0
      %v2417 = vsel %vm2387, %v2273, 0.0
      %v2418 = vsel %vm2386, %v2275, 0.0
      %v2419 = vsel %vm2387, %v2308, 0.0
      %v2420 = vadd.f32 %v2350, %v2388
      %v2421 = vadd.f32 %v2351, %v2389
      %v2422 = vadd.f32 %v2352, %v2390
      %v2423 = vadd.f32 %v2353, %v2391
      %v2424 = vadd.f32 %v2354, %v2392
      %v2425 = vadd.f32 %v2355, %v2393
      %v2426 = vadd.f32 %v2356, %v2394
      %v2427 = vadd.f32 %v2357, %v2395
      %v2428 = vadd.f32 %v2358, %v2396
      %v2429 = vadd.f32 %v2359, %v2397
      %v2430 = vadd.f32 %v2360, %v2398
      %v2431 = vadd.f32 %v2361, %v2399
      %v2432 = vadd.f32 %v2362, %v2400
      %v2433 = vadd.f32 %v2363, %v2401
      %v2434 = vadd.f32 %v2364, %v2402
      %v2435 = vadd.f32 %v2365, %v2403
      %v2436 = vadd.f32 %v2366, %v2404
      %v2437 = vadd.f32 %v2367, %v2405
      %v2438 = vadd.f32 %v2368, %v2406
      %v2439 = vadd.f32 %v2369, %v2407
      %v2440 = vadd.f32 %v2370, %v2408
      %v2441 = vadd.f32 %v2371, %v2409
      %v2442 = vadd.f32 %v2372, %v2410
      %v2443 = vadd.f32 %v2373, %v2411
      %v2444 = vadd.f32 %v2374, %v2412
      %v2445 = vadd.f32 %v2375, %v2413
      %v2446 = vadd.f32 %v2376, %v2414
      %v2447 = vadd.f32 %v2377, %v2415
      %v2448 = vadd.f32 %v2378, %v2416
      %v2449 = vadd.f32 %v2379, %v2417
      %v2450 = vadd.f32 %v2380, %v2418
      %v2451 = vadd.f32 %v2381, %v2419
      %v2452 = vld [vmem:[%s670] sm:$0xff]
      %v2453 = vld [vmem:[%s670 + $0x8] sm:$0xff]
      %v2454 = vsel %vm716, 0.0, %v2452
      %v2455 = vsel %vm716, 0.0, %v2453
      %v2456 = vld [vmem:[%s687] sm:$0xff]
      %v2457 = vld [vmem:[%s687 + $0x8] sm:$0xff]
      %v2458 = vsel %vm716, 0.0, %v2456
      %v2459 = vsel %vm716, 0.0, %v2457
      %v2460 = vld [vmem:[%s656] sm:$0xff]
      %v2461 = vld [vmem:[%s656 + $0x8] sm:$0xff]
      %v2462 = vld [vmem:[%s656 + $0x10] sm:$0xff]
      %v2463 = vld [vmem:[%s656 + $0x18] sm:$0xff]
      %v2464 = vld [vmem:[%s656 + $0x20] sm:$0xff]
      %v2465 = vld [vmem:[%s656 + $0x28] sm:$0xff]
      %v2466 = vld [vmem:[%s656 + $0x30] sm:$0xff]
      %v2467 = vld [vmem:[%s656 + $0x38] sm:$0xff]
      %v2468 = vld [vmem:[%s656 + $0x40] sm:$0xff]
      %v2469 = vld [vmem:[%s656 + $0x48] sm:$0xff]
      %v2470 = vld [vmem:[%s656 + $0x50] sm:$0xff]
      %v2471 = vld [vmem:[%s656 + $0x58] sm:$0xff]
      %v2472 = vld [vmem:[%s656 + $0x60] sm:$0xff]
      %v2473 = vld [vmem:[%s656 + $0x68] sm:$0xff]
      %v2474 = vld [vmem:[%s656 + $0x70] sm:$0xff]
      %v2475 = vld [vmem:[%s656 + $0x78] sm:$0xff]
      %v2476 = vld [vmem:[%s656 + $0x80] sm:$0xff]
      %v2477 = vld [vmem:[%s656 + $0x88] sm:$0xff]
      %v2478 = vld [vmem:[%s656 + $0x90] sm:$0xff]
      %v2479 = vld [vmem:[%s656 + $0x98] sm:$0xff]
      %v2480 = vld [vmem:[%s656 + $0xa0] sm:$0xff]
      %v2481 = vld [vmem:[%s656 + $0xa8] sm:$0xff]
      %v2482 = vld [vmem:[%s656 + $0xb0] sm:$0xff]
      %v2483 = vld [vmem:[%s656 + $0xb8] sm:$0xff]
      %v2484 = vld [vmem:[%s656 + $0xc0] sm:$0xff]
      %v2485 = vld [vmem:[%s656 + $0xc8] sm:$0xff]
      %v2486 = vld [vmem:[%s656 + $0xd0] sm:$0xff]
      %v2487 = vld [vmem:[%s656 + $0xd8] sm:$0xff]
      %v2488 = vld [vmem:[%s656 + $0xe0] sm:$0xff]
      %v2489 = vld [vmem:[%s656 + $0xe8] sm:$0xff]
      %v2490 = vld [vmem:[%s656 + $0xf0] sm:$0xff]
      %v2491 = vld [vmem:[%s656 + $0xf8] sm:$0xff]
      %v2492 = vpack.c.bf16 %v2455, %v2454
      %v2493 = vpack.c.bf16 %v2461, %v2460
      %v2494 = vpack.c.bf16 %v2463, %v2462
      %v2495 = vpack.c.bf16 %v2465, %v2464
      %v2496 = vpack.c.bf16 %v2467, %v2466
      %v2497 = vpack.c.bf16 %v2469, %v2468
      %v2498 = vpack.c.bf16 %v2471, %v2470
      %v2499 = vpack.c.bf16 %v2473, %v2472
      %v2500 = vpack.c.bf16 %v2475, %v2474
      %v2501 = vpack.c.bf16 %v2477, %v2476
      %v2502 = vpack.c.bf16 %v2479, %v2478
      %v2503 = vpack.c.bf16 %v2481, %v2480
      %v2504 = vpack.c.bf16 %v2483, %v2482
      %v2505 = vpack.c.bf16 %v2485, %v2484
      %v2506 = vpack.c.bf16 %v2487, %v2486
      %v2507 = vpack.c.bf16 %v2489, %v2488
      %v2508 = vpack.c.bf16 %v2491, %v2490
      %v2509 = vpack.c.bf16 %v2459, %v2458
      %v2510 = vld [vmem:[%s7] sm:$0xff]
      %v2511 = vld [vmem:[%s7 + $0x8] sm:$0xf]
      %v2512 = vld [vmem:[%s7 + $0xc] sm:$0xff]
      %v2513 = vld [vmem:[%s7 + $0x14] sm:$0xf]
      %v2514 = vld [vmem:[%s7 + $0x18] sm:$0xff]
      %v2515 = vld [vmem:[%s7 + $0x20] sm:$0xf]
      %v2516 = vld [vmem:[%s7 + $0x24] sm:$0xff]
      %v2517 = vld [vmem:[%s7 + $0x2c] sm:$0xf]
      %v2518 = vld [vmem:[%s7 + $0x30] sm:$0xff]
      %v2519 = vld [vmem:[%s7 + $0x38] sm:$0xf]
      %v2520 = vld [vmem:[%s7 + $0x3c] sm:$0xff]
      %v2521 = vld [vmem:[%s7 + $0x44] sm:$0xf]
      %v2522 = vld [vmem:[%s7 + $0x48] sm:$0xff]
      %v2523 = vld [vmem:[%s7 + $0x50] sm:$0xf]
      %v2524 = vld [vmem:[%s7 + $0x54] sm:$0xff]
      %v2525 = vld [vmem:[%s7 + $0x5c] sm:$0xf]
      %v2526 = vld [vmem:[%s7 + $0x60] sm:$0xff]
      %v2527 = vld [vmem:[%s7 + $0x68] sm:$0xf]
      %v2528 = vld [vmem:[%s7 + $0x6c] sm:$0xff]
      %v2529 = vld [vmem:[%s7 + $0x74] sm:$0xf]
      %v2530 = vld [vmem:[%s7 + $0x78] sm:$0xff]
      %v2531 = vld [vmem:[%s7 + $0x80] sm:$0xf]
      %v2532 = vld [vmem:[%s7 + $0x84] sm:$0xff]
      %v2533 = vld [vmem:[%s7 + $0x8c] sm:$0xf]
      %v2534 = vld [vmem:[%s7 + $0x90] sm:$0xff]
      %v2535 = vld [vmem:[%s7 + $0x98] sm:$0xf]
      %v2536 = vld [vmem:[%s7 + $0x9c] sm:$0xff]
      %v2537 = vld [vmem:[%s7 + $0xa4] sm:$0xf]
      %v2538 = vld [vmem:[%s7 + $0xa8] sm:$0xff]
      %v2539 = vld [vmem:[%s7 + $0xb0] sm:$0xf]
      %v2540 = vld [vmem:[%s7 + $0xb4] sm:$0xff]
      %v2541 = vld [vmem:[%s7 + $0xbc] sm:$0xf]
      %v2542 = vld [vmem:[%s7 + $0xc0] sm:$0xff]
      %v2543 = vld [vmem:[%s7 + $0xc8] sm:$0xf]
      %v2544 = vld [vmem:[%s7 + $0xcc] sm:$0xff]
      %v2545 = vld [vmem:[%s7 + $0xd4] sm:$0xf]
      %v2546 = vld [vmem:[%s7 + $0xd8] sm:$0xff]
      %v2547 = vld [vmem:[%s7 + $0xe0] sm:$0xf]
      %v2548 = vld [vmem:[%s7 + $0xe4] sm:$0xff]
      %v2549 = vld [vmem:[%s7 + $0xec] sm:$0xf]
      %v2550 = vld [vmem:[%s7 + $0xf0] sm:$0xff]
      %v2551 = vld [vmem:[%s7 + $0xf8] sm:$0xf]
      %v2552 = vld [vmem:[%s7 + $0xfc] sm:$0xff]
      %v2553 = vld [vmem:[%s7 + $0x104] sm:$0xf]
      %v2554 = vld [vmem:[%s7 + $0x108] sm:$0xff]
      %v2555 = vld [vmem:[%s7 + $0x110] sm:$0xf]
      %v2556 = vld [vmem:[%s7 + $0x114] sm:$0xff]
      %v2557 = vld [vmem:[%s7 + $0x11c] sm:$0xf]
      %v2558 = vld [vmem:[%s7 + $0x120] sm:$0xff]
      %v2559 = vld [vmem:[%s7 + $0x128] sm:$0xf]
      %v2560 = vld [vmem:[%s7 + $0x12c] sm:$0xff]
      %v2561 = vld [vmem:[%s7 + $0x134] sm:$0xf]
      %v2562 = vld [vmem:[%s7 + $0x138] sm:$0xff]
      %v2563 = vld [vmem:[%s7 + $0x140] sm:$0xf]
      %v2564 = vld [vmem:[%s7 + $0x144] sm:$0xff]
      %v2565 = vld [vmem:[%s7 + $0x14c] sm:$0xf]
      %v2566 = vld [vmem:[%s7 + $0x150] sm:$0xff]
      %v2567 = vld [vmem:[%s7 + $0x158] sm:$0xf]
      %v2568 = vld [vmem:[%s7 + $0x15c] sm:$0xff]
      %v2569 = vld [vmem:[%s7 + $0x164] sm:$0xf]
      %v2570 = vld [vmem:[%s7 + $0x168] sm:$0xff]
      %v2571 = vld [vmem:[%s7 + $0x170] sm:$0xf]
      %v2572 = vld [vmem:[%s7 + $0x174] sm:$0xff]
      %v2573 = vld [vmem:[%s7 + $0x17c] sm:$0xf]
      %v2574 = vld [vmem:[%s7 + $0x180] sm:$0xff]
      %v2575 = vld [vmem:[%s7 + $0x188] sm:$0xf]
      %v2576 = vld [vmem:[%s7 + $0x18c] sm:$0xff]
      %v2577 = vld [vmem:[%s7 + $0x194] sm:$0xf]
      %v2578 = vld [vmem:[%s7 + $0x198] sm:$0xff]
      %v2579 = vld [vmem:[%s7 + $0x1a0] sm:$0xf]
      %v2580 = vld [vmem:[%s7 + $0x1a4] sm:$0xff]
      %v2581 = vld [vmem:[%s7 + $0x1ac] sm:$0xf]
      %v2582 = vld [vmem:[%s7 + $0x1b0] sm:$0xff]
      %v2583 = vld [vmem:[%s7 + $0x1b8] sm:$0xf]
      %v2584 = vld [vmem:[%s7 + $0x1bc] sm:$0xff]
      %v2585 = vld [vmem:[%s7 + $0x1c4] sm:$0xf]
      %v2586 = vld [vmem:[%s7 + $0x1c8] sm:$0xff]
      %v2587 = vld [vmem:[%s7 + $0x1d0] sm:$0xf]
      %v2588 = vld [vmem:[%s7 + $0x1d4] sm:$0xff]
      %v2589 = vld [vmem:[%s7 + $0x1dc] sm:$0xf]
      %v2590 = vld [vmem:[%s7 + $0x1e0] sm:$0xff]
      %v2591 = vld [vmem:[%s7 + $0x1e8] sm:$0xf]
      %v2592 = vld [vmem:[%s7 + $0x1ec] sm:$0xff]
      %v2593 = vld [vmem:[%s7 + $0x1f4] sm:$0xf]
      %v2594 = vld [vmem:[%s7 + $0x1f8] sm:$0xff]
      %v2595 = vld [vmem:[%s7 + $0x200] sm:$0xf]
      %v2596 = vld [vmem:[%s7 + $0x204] sm:$0xff]
      %v2597 = vld [vmem:[%s7 + $0x20c] sm:$0xf]
      %v2598 = vld [vmem:[%s7 + $0x210] sm:$0xff]
      %v2599 = vld [vmem:[%s7 + $0x218] sm:$0xf]
      %v2600 = vld [vmem:[%s7 + $0x21c] sm:$0xff]
      %v2601 = vld [vmem:[%s7 + $0x224] sm:$0xf]
      %v2602 = vld [vmem:[%s7 + $0x228] sm:$0xff]
      %v2603 = vld [vmem:[%s7 + $0x230] sm:$0xf]
      %v2604 = vld [vmem:[%s7 + $0x234] sm:$0xff]
      %v2605 = vld [vmem:[%s7 + $0x23c] sm:$0xf]
      %v2702 = vunpack.c.l.b16 %v2510
      %v2703 = vunpack.c.h.b16 %v2510
      %v2704 = vunpack.c.l.b16 %v2511
      %v2705 = vunpack.c.l.b16 %v2512
      %v2706 = vunpack.c.h.b16 %v2512
      %v2707 = vunpack.c.l.b16 %v2513
      %v2708 = vunpack.c.l.b16 %v2514
      %v2709 = vunpack.c.h.b16 %v2514
      %v2710 = vunpack.c.l.b16 %v2515
      %v2711 = vunpack.c.l.b16 %v2516
      %v2712 = vunpack.c.h.b16 %v2516
      %v2713 = vunpack.c.l.b16 %v2517
      %v2714 = vunpack.c.l.b16 %v2518
      %v2715 = vunpack.c.h.b16 %v2518
      %v2716 = vunpack.c.l.b16 %v2519
      %v2717 = vunpack.c.l.b16 %v2520
      %v2718 = vunpack.c.h.b16 %v2520
      %v2719 = vunpack.c.l.b16 %v2521
      %v2720 = vunpack.c.l.b16 %v2522
      %v2721 = vunpack.c.h.b16 %v2522
      %v2722 = vunpack.c.l.b16 %v2523
      %v2723 = vunpack.c.l.b16 %v2524
      %v2724 = vunpack.c.h.b16 %v2524
      %v2725 = vunpack.c.l.b16 %v2525
      %v2726 = vunpack.c.l.b16 %v2526
      %v2727 = vunpack.c.h.b16 %v2526
      %v2728 = vunpack.c.l.b16 %v2527
      %v2729 = vunpack.c.l.b16 %v2528
      %v2730 = vunpack.c.h.b16 %v2528
      %v2731 = vunpack.c.l.b16 %v2529
      %v2732 = vunpack.c.l.b16 %v2530
      %v2733 = vunpack.c.h.b16 %v2530
      %v2734 = vunpack.c.l.b16 %v2531
      %v2735 = vunpack.c.l.b16 %v2532
      %v2736 = vunpack.c.h.b16 %v2532
      %v2737 = vunpack.c.l.b16 %v2533
      %v2738 = vunpack.c.l.b16 %v2534
      %v2739 = vunpack.c.h.b16 %v2534
      %v2740 = vunpack.c.l.b16 %v2535
      %v2741 = vunpack.c.l.b16 %v2536
      %v2742 = vunpack.c.h.b16 %v2536
      %v2743 = vunpack.c.l.b16 %v2537
      %v2744 = vunpack.c.l.b16 %v2538
      %v2745 = vunpack.c.h.b16 %v2538
      %v2746 = vunpack.c.l.b16 %v2539
      %v2747 = vunpack.c.l.b16 %v2540
      %v2748 = vunpack.c.h.b16 %v2540
      %v2749 = vunpack.c.l.b16 %v2541
      %v2750 = vunpack.c.l.b16 %v2542
      %v2751 = vunpack.c.h.b16 %v2542
      %v2752 = vunpack.c.l.b16 %v2543
      %v2753 = vunpack.c.l.b16 %v2544
      %v2754 = vunpack.c.h.b16 %v2544
      %v2755 = vunpack.c.l.b16 %v2545
      %v2756 = vunpack.c.l.b16 %v2546
      %v2757 = vunpack.c.h.b16 %v2546
      %v2758 = vunpack.c.l.b16 %v2547
      %v2759 = vunpack.c.l.b16 %v2548
      %v2760 = vunpack.c.h.b16 %v2548
      %v2761 = vunpack.c.l.b16 %v2549
      %v2762 = vunpack.c.l.b16 %v2550
      %v2763 = vunpack.c.h.b16 %v2550
      %v2764 = vunpack.c.l.b16 %v2551
      %v2765 = vunpack.c.l.b16 %v2552
      %v2766 = vunpack.c.h.b16 %v2552
      %v2767 = vunpack.c.l.b16 %v2553
      %v2768 = vunpack.c.l.b16 %v2554
      %v2769 = vunpack.c.h.b16 %v2554
      %v2770 = vunpack.c.l.b16 %v2555
      %v2771 = vunpack.c.l.b16 %v2556
      %v2772 = vunpack.c.h.b16 %v2556
      %v2773 = vunpack.c.l.b16 %v2557
      %v2774 = vunpack.c.l.b16 %v2558
      %v2775 = vunpack.c.h.b16 %v2558
      %v2776 = vunpack.c.l.b16 %v2559
      %v2777 = vunpack.c.l.b16 %v2560
      %v2778 = vunpack.c.h.b16 %v2560
      %v2779 = vunpack.c.l.b16 %v2561
      %v2780 = vunpack.c.l.b16 %v2562
      %v2781 = vunpack.c.h.b16 %v2562
      %v2782 = vunpack.c.l.b16 %v2563
      %v2783 = vunpack.c.l.b16 %v2564
      %v2784 = vunpack.c.h.b16 %v2564
      %v2785 = vunpack.c.l.b16 %v2565
      %v2786 = vunpack.c.l.b16 %v2566
      %v2787 = vunpack.c.h.b16 %v2566
      %v2788 = vunpack.c.l.b16 %v2567
      %v2789 = vunpack.c.l.b16 %v2568
      %v2790 = vunpack.c.h.b16 %v2568
      %v2791 = vunpack.c.l.b16 %v2569
      %v2792 = vunpack.c.l.b16 %v2570
      %v2793 = vunpack.c.h.b16 %v2570
      %v2794 = vunpack.c.l.b16 %v2571
      %v2795 = vunpack.c.l.b16 %v2572
      %v2796 = vunpack.c.h.b16 %v2572
      %v2797 = vunpack.c.l.b16 %v2573
      %v2798 = vunpack.c.l.b16 %v2574
      %v2799 = vunpack.c.h.b16 %v2574
      %v2800 = vunpack.c.l.b16 %v2575
      %v2801 = vunpack.c.l.b16 %v2576
      %v2802 = vunpack.c.h.b16 %v2576
      %v2803 = vunpack.c.l.b16 %v2577
      %v2804 = vunpack.c.l.b16 %v2578
      %v2805 = vunpack.c.h.b16 %v2578
      %v2806 = vunpack.c.l.b16 %v2579
      %v2807 = vunpack.c.l.b16 %v2580
      %v2808 = vunpack.c.h.b16 %v2580
      %v2809 = vunpack.c.l.b16 %v2581
      %v2810 = vunpack.c.l.b16 %v2582
      %v2811 = vunpack.c.h.b16 %v2582
      %v2812 = vunpack.c.l.b16 %v2583
      %v2813 = vunpack.c.l.b16 %v2584
      %v2814 = vunpack.c.h.b16 %v2584
      %v2815 = vunpack.c.l.b16 %v2585
      %v2816 = vunpack.c.l.b16 %v2586
      %v2817 = vunpack.c.h.b16 %v2586
      %v2818 = vunpack.c.l.b16 %v2587
      %v2819 = vunpack.c.l.b16 %v2588
      %v2820 = vunpack.c.h.b16 %v2588
      %v2821 = vunpack.c.l.b16 %v2589
      %v2822 = vunpack.c.l.b16 %v2590
      %v2823 = vunpack.c.h.b16 %v2590
      %v2824 = vunpack.c.l.b16 %v2591
      %v2825 = vunpack.c.l.b16 %v2592
      %v2826 = vunpack.c.h.b16 %v2592
      %v2827 = vunpack.c.l.b16 %v2593
      %v2828 = vunpack.c.l.b16 %v2594
      %v2829 = vunpack.c.h.b16 %v2594
      %v2830 = vunpack.c.l.b16 %v2595
      %v2831 = vunpack.c.l.b16 %v2596
      %v2832 = vunpack.c.h.b16 %v2596
      %v2833 = vunpack.c.l.b16 %v2597
      %v2834 = vunpack.c.l.b16 %v2598
      %v2835 = vunpack.c.h.b16 %v2598
      %v2836 = vunpack.c.l.b16 %v2599
      %v2837 = vunpack.c.l.b16 %v2600
      %v2838 = vunpack.c.h.b16 %v2600
      %v2839 = vunpack.c.l.b16 %v2601
      %v2840 = vunpack.c.l.b16 %v2602
      %v2841 = vunpack.c.h.b16 %v2602
      %v2842 = vunpack.c.l.b16 %v2603
      %v2843 = vunpack.c.l.b16 %v2604
      %v2844 = vunpack.c.h.b16 %v2604
      %v2845 = vunpack.c.l.b16 %v2605
      %v2846 = vpack.c.b16 %v2705, %v2702
      %v2847 = vpack.c.b16 %v2706, %v2703
      %v2848 = vpack.c.b16 %v2707, %v2704
      %v2849 = vpack.c.b16 %v2711, %v2708
      %v2850 = vpack.c.b16 %v2712, %v2709
      %v2851 = vpack.c.b16 %v2713, %v2710
      %v2852 = vpack.c.b16 %v2717, %v2714
      %v2853 = vpack.c.b16 %v2718, %v2715
      %v2854 = vpack.c.b16 %v2719, %v2716
      %v2855 = vpack.c.b16 %v2723, %v2720
      %v2856 = vpack.c.b16 %v2724, %v2721
      %v2857 = vpack.c.b16 %v2725, %v2722
      %v2858 = vpack.c.b16 %v2729, %v2726
      %v2859 = vpack.c.b16 %v2730, %v2727
      %v2860 = vpack.c.b16 %v2731, %v2728
      %v2861 = vpack.c.b16 %v2735, %v2732
      %v2862 = vpack.c.b16 %v2736, %v2733
      %v2863 = vpack.c.b16 %v2737, %v2734
      %v2864 = vpack.c.b16 %v2741, %v2738
      %v2865 = vpack.c.b16 %v2742, %v2739
      %v2866 = vpack.c.b16 %v2743, %v2740
      %v2867 = vpack.c.b16 %v2747, %v2744
      %v2868 = vpack.c.b16 %v2748, %v2745
      %v2869 = vpack.c.b16 %v2749, %v2746
      %v2870 = vpack.c.b16 %v2753, %v2750
      %v2871 = vpack.c.b16 %v2754, %v2751
      %v2872 = vpack.c.b16 %v2755, %v2752
      %v2873 = vpack.c.b16 %v2759, %v2756
      %v2874 = vpack.c.b16 %v2760, %v2757
      %v2875 = vpack.c.b16 %v2761, %v2758
      %v2876 = vpack.c.b16 %v2765, %v2762
      %v2877 = vpack.c.b16 %v2766, %v2763
      %v2878 = vpack.c.b16 %v2767, %v2764
      %v2879 = vpack.c.b16 %v2771, %v2768
      %v2880 = vpack.c.b16 %v2772, %v2769
      %v2881 = vpack.c.b16 %v2773, %v2770
      %v2882 = vpack.c.b16 %v2777, %v2774
      %v2883 = vpack.c.b16 %v2778, %v2775
      %v2884 = vpack.c.b16 %v2779, %v2776
      %v2885 = vpack.c.b16 %v2783, %v2780
      %v2886 = vpack.c.b16 %v2784, %v2781
      %v2887 = vpack.c.b16 %v2785, %v2782
      %v2888 = vpack.c.b16 %v2789, %v2786
      %v2889 = vpack.c.b16 %v2790, %v2787
      %v2890 = vpack.c.b16 %v2791, %v2788
      %v2891 = vpack.c.b16 %v2795, %v2792
      %v2892 = vpack.c.b16 %v2796, %v2793
      %v2893 = vpack.c.b16 %v2797, %v2794
      %v2894 = vpack.c.b16 %v2801, %v2798
      %v2895 = vpack.c.b16 %v2802, %v2799
      %v2896 = vpack.c.b16 %v2803, %v2800
      %v2897 = vpack.c.b16 %v2807, %v2804
      %v2898 = vpack.c.b16 %v2808, %v2805
      %v2899 = vpack.c.b16 %v2809, %v2806
      %v2900 = vpack.c.b16 %v2813, %v2810
      %v2901 = vpack.c.b16 %v2814, %v2811
      %v2902 = vpack.c.b16 %v2815, %v2812
      %v2903 = vpack.c.b16 %v2819, %v2816
      %v2904 = vpack.c.b16 %v2820, %v2817
      %v2905 = vpack.c.b16 %v2821, %v2818
      %v2906 = vpack.c.b16 %v2825, %v2822
      %v2907 = vpack.c.b16 %v2826, %v2823
      %v2908 = vpack.c.b16 %v2827, %v2824
      %v2909 = vpack.c.b16 %v2831, %v2828
      %v2910 = vpack.c.b16 %v2832, %v2829
      %v2911 = vpack.c.b16 %v2833, %v2830
      %v2912 = vpack.c.b16 %v2837, %v2834
      %v2913 = vpack.c.b16 %v2838, %v2835
      %v2914 = vpack.c.b16 %v2839, %v2836
      %v2915 = vpack.c.b16 %v2843, %v2840
      %v2916 = vpack.c.b16 %v2844, %v2841
      %v2917 = vpack.c.b16 %v2845, %v2842
      %2990 = vmatprep.subr.bf16.mxu0 %v2847
      %2991 = vmatpush1.bf16.msra.mxu0 %v2846
      %2992 = vmatprep.subr.bf16.mxu0 %v2850
      %2993 = vmatpush1.bf16.msra.mxu0 %v2849
      %2994 = vmatprep.subr.bf16.mxu0 %v2853
      %2995 = vmatpush1.bf16.msra.mxu0 %v2852
      %2996 = vmatprep.subr.bf16.mxu0 %v2856
      %2997 = vmatpush1.bf16.msra.mxu0 %v2855
      %2998 = vmatprep.subr.bf16.mxu0 %v2859
      %2999 = vmatpush1.bf16.msra.mxu0 %v2858
      %3000 = vmatprep.subr.bf16.mxu0 %v2862
      %3001 = vmatpush1.bf16.msra.mxu0 %v2861
      %3002 = vmatprep.subr.bf16.mxu0 %v2865
      %3003 = vmatpush1.bf16.msra.mxu0 %v2864
      %3004 = vmatprep.subr.bf16.mxu0 %v2868
      %3005 = vmatpush1.bf16.msra.mxu0 %v2867
      %3006 = vmatprep.subr.bf16.mxu0 %v2871
      %3007 = vmatpush1.bf16.msra.mxu0 %v2870
      %3008 = vmatprep.subr.bf16.mxu0 %v2874
      %3009 = vmatpush1.bf16.msra.mxu0 %v2873
      %3010 = vmatprep.subr.bf16.mxu0 %v2877
      %3011 = vmatpush1.bf16.msra.mxu0 %v2876
      %3012 = vmatprep.subr.bf16.mxu0 %v2880
      %3013 = vmatpush1.bf16.msra.mxu0 %v2879
      %3014 = vmatprep.subr.bf16.mxu0 %v2883
      %3015 = vmatpush1.bf16.msra.mxu0 %v2882
      %3016 = vmatprep.subr.bf16.mxu0 %v2886
      %3017 = vmatpush1.bf16.msra.mxu0 %v2885
      %3018 = vmatprep.subr.bf16.mxu0 %v2889
      %3019 = vmatpush1.bf16.msra.mxu0 %v2888
      %3020 = vmatprep.subr.bf16.mxu0 %v2892
      %3021 = vmatpush1.bf16.msra.mxu0 %v2891
      %3022 = vmatprep.mubr.bf16.mxu0 %v2493
      %3023 = vmatmul.mubr.bf16.gmra.mrb[0].mxu0 %v2492
      %v3024 = vpop.f32.mrb[0].mxu0
      %v3025 = vadd.f32 0.0, %v3024
      %v3026 = vpop.f32.mrb[0].mxu0
      %v3027 = vadd.f32 0.0, %v3026
      %v3028 = vpop.f32.mrb[0].mxu0
      %v3029 = vadd.f32 0.0, %v3028
      %v3030 = vpop.f32.mrb[0].mxu0
      %v3031 = vadd.f32 0.0, %v3030
      %3032 = vmatprep.mubr.bf16.mxu0 %v2494
      %3033 = vmatmul.mubr.bf16.gmra.mrb[0].mxu0 %v2493
      %v3034 = vpop.f32.mrb[0].mxu0
      %v3035 = vadd.f32 0.0, %v3034
      %v3036 = vpop.f32.mrb[0].mxu0
      %v3037 = vadd.f32 0.0, %v3036
      %v3038 = vpop.f32.mrb[0].mxu0
      %v3039 = vadd.f32 0.0, %v3038
      %v3040 = vpop.f32.mrb[0].mxu0
      %v3041 = vadd.f32 0.0, %v3040
      %3042 = vmatprep.mubr.bf16.mxu0 %v2495
      %3043 = vmatmul.mubr.bf16.gmra.mrb[0].mxu0 %v2494
      %v3044 = vpop.f32.mrb[0].mxu0
      %v3045 = vadd.f32 0.0, %v3044
      %v3046 = vpop.f32.mrb[0].mxu0
      %v3047 = vadd.f32 0.0, %v3046
      %v3048 = vpop.f32.mrb[0].mxu0
      %v3049 = vadd.f32 0.0, %v3048
      %v3050 = vpop.f32.mrb[0].mxu0
      %v3051 = vadd.f32 0.0, %v3050
      %3052 = vmatprep.mubr.bf16.mxu0 %v2496
      %3053 = vmatmul.mubr.bf16.gmra.mrb[0].mxu0 %v2495
      %v3054 = vpop.f32.mrb[0].mxu0
      %v3055 = vadd.f32 0.0, %v3054
      %v3056 = vpop.f32.mrb[0].mxu0
      %v3057 = vadd.f32 0.0, %v3056
      %v3058 = vpop.f32.mrb[0].mxu0
      %v3059 = vadd.f32 0.0, %v3058
      %v3060 = vpop.f32.mrb[0].mxu0
      %v3061 = vadd.f32 0.0, %v3060
      %3062 = vmatprep.mubr.bf16.mxu0 %v2497
      %3063 = vmatmul.mubr.bf16.gmra.mrb[0].mxu0 %v2496
      %v3064 = vpop.f32.mrb[0].mxu0
      %v3065 = vadd.f32 0.0, %v3064
      %v3066 = vpop.f32.mrb[0].mxu0
      %v3067 = vadd.f32 0.0, %v3066
      %v3068 = vpop.f32.mrb[0].mxu0
      %v3069 = vadd.f32 0.0, %v3068
      %v3070 = vpop.f32.mrb[0].mxu0
      %v3071 = vadd.f32 0.0, %v3070
      %3072 = vmatprep.mubr.bf16.mxu0 %v2498
      %3073 = vmatmul.mubr.bf16.gmra.mrb[0].mxu0 %v2497
      %v3074 = vpop.f32.mrb[0].mxu0
      %v3075 = vadd.f32 0.0, %v3074
      %v3076 = vpop.f32.mrb[0].mxu0
      %v3077 = vadd.f32 0.0, %v3076
      %v3078 = vpop.f32.mrb[0].mxu0
      %v3079 = vadd.f32 0.0, %v3078
      %v3080 = vpop.f32.mrb[0].mxu0
      %v3081 = vadd.f32 0.0, %v3080
      %3082 = vmatprep.mubr.bf16.mxu0 %v2499
      %3083 = vmatmul.mubr.bf16.gmra.mrb[0].mxu0 %v2498
      %v3084 = vpop.f32.mrb[0].mxu0
      %v3085 = vadd.f32 0.0, %v3084
      %v3086 = vpop.f32.mrb[0].mxu0
      %v3087 = vadd.f32 0.0, %v3086
      %v3088 = vpop.f32.mrb[0].mxu0
      %v3089 = vadd.f32 0.0, %v3088
      %v3090 = vpop.f32.mrb[0].mxu0
      %v3091 = vadd.f32 0.0, %v3090
      %3092 = vmatprep.mubr.bf16.mxu0 %v2500
      %3093 = vmatmul.mubr.bf16.gmra.mrb[0].mxu0 %v2499
      %v3094 = vpop.f32.mrb[0].mxu0
      %v3095 = vadd.f32 0.0, %v3094
      %v3096 = vpop.f32.mrb[0].mxu0
      %v3097 = vadd.f32 0.0, %v3096
      %v3098 = vpop.f32.mrb[0].mxu0
      %v3099 = vadd.f32 0.0, %v3098
      %v3100 = vpop.f32.mrb[0].mxu0
      %v3101 = vadd.f32 0.0, %v3100
      %3102 = vmatprep.mubr.bf16.mxu0 %v2501
      %3103 = vmatmul.mubr.bf16.gmra.mrb[0].mxu0 %v2500
      %v3104 = vpop.f32.mrb[0].mxu0
      %v3105 = vadd.f32 0.0, %v3104
      %v3106 = vpop.f32.mrb[0].mxu0
      %v3107 = vadd.f32 0.0, %v3106
      %v3108 = vpop.f32.mrb[0].mxu0
      %v3109 = vadd.f32 0.0, %v3108
      %v3110 = vpop.f32.mrb[0].mxu0
      %v3111 = vadd.f32 0.0, %v3110
      %3112 = vmatprep.mubr.bf16.mxu0 %v2502
      %3113 = vmatmul.mubr.bf16.gmra.mrb[0].mxu0 %v2501
      %v3114 = vpop.f32.mrb[0].mxu0
      %v3115 = vadd.f32 0.0, %v3114
      %v3116 = vpop.f32.mrb[0].mxu0
      %v3117 = vadd.f32 0.0, %v3116
      %v3118 = vpop.f32.mrb[0].mxu0
      %v3119 = vadd.f32 0.0, %v3118
      %v3120 = vpop.f32.mrb[0].mxu0
      %v3121 = vadd.f32 0.0, %v3120
      %3122 = vmatprep.mubr.bf16.mxu0 %v2503
      %3123 = vmatmul.mubr.bf16.gmra.mrb[0].mxu0 %v2502
      %v3124 = vpop.f32.mrb[0].mxu0
      %v3125 = vadd.f32 0.0, %v3124
      %v3126 = vpop.f32.mrb[0].mxu0
      %v3127 = vadd.f32 0.0, %v3126
      %v3128 = vpop.f32.mrb[0].mxu0
      %v3129 = vadd.f32 0.0, %v3128
      %v3130 = vpop.f32.mrb[0].mxu0
      %v3131 = vadd.f32 0.0, %v3130
      %3132 = vmatprep.mubr.bf16.mxu0 %v2504
      %3133 = vmatmul.mubr.bf16.gmra.mrb[0].mxu0 %v2503
      %v3134 = vpop.f32.mrb[0].mxu0
      %v3135 = vadd.f32 0.0, %v3134
      %v3136 = vpop.f32.mrb[0].mxu0
      %v3137 = vadd.f32 0.0, %v3136
      %v3138 = vpop.f32.mrb[0].mxu0
      %v3139 = vadd.f32 0.0, %v3138
      %v3140 = vpop.f32.mrb[0].mxu0
      %v3141 = vadd.f32 0.0, %v3140
      %3142 = vmatprep.mubr.bf16.mxu0 %v2505
      %3143 = vmatmul.mubr.bf16.gmra.mrb[0].mxu0 %v2504
      %v3144 = vpop.f32.mrb[0].mxu0
      %v3145 = vadd.f32 0.0, %v3144
      %v3146 = vpop.f32.mrb[0].mxu0
      %v3147 = vadd.f32 0.0, %v3146
      %v3148 = vpop.f32.mrb[0].mxu0
      %v3149 = vadd.f32 0.0, %v3148
      %v3150 = vpop.f32.mrb[0].mxu0
      %v3151 = vadd.f32 0.0, %v3150
      %3152 = vmatprep.mubr.bf16.mxu0 %v2506
      %3153 = vmatmul.mubr.bf16.gmra.mrb[0].mxu0 %v2505
      %v3154 = vpop.f32.mrb[0].mxu0
      %v3155 = vadd.f32 0.0, %v3154
      %v3156 = vpop.f32.mrb[0].mxu0
      %v3157 = vadd.f32 0.0, %v3156
      %v3158 = vpop.f32.mrb[0].mxu0
      %v3159 = vadd.f32 0.0, %v3158
      %v3160 = vpop.f32.mrb[0].mxu0
      %v3161 = vadd.f32 0.0, %v3160
      %3162 = vmatprep.mubr.bf16.mxu0 %v2507
      %3163 = vmatmul.mubr.bf16.gmra.mrb[0].mxu0 %v2506
      %v3164 = vpop.f32.mrb[0].mxu0
      %v3165 = vadd.f32 0.0, %v3164
      %v3166 = vpop.f32.mrb[0].mxu0
      %v3167 = vadd.f32 0.0, %v3166
      %v3168 = vpop.f32.mrb[0].mxu0
      %v3169 = vadd.f32 0.0, %v3168
      %v3170 = vpop.f32.mrb[0].mxu0
      %v3171 = vadd.f32 0.0, %v3170
      %3172 = vmatprep.mubr.bf16.mxu0 %v2508
      %3173 = vmatmul.mubr.bf16.gmra.mrb[0].mxu0 %v2507
      %v3174 = vpop.f32.mrb[0].mxu0
      %v3175 = vadd.f32 0.0, %v3174
      %v3176 = vpop.f32.mrb[0].mxu0
      %v3177 = vadd.f32 0.0, %v3176
      %v3178 = vpop.f32.mrb[0].mxu0
      %v3179 = vadd.f32 0.0, %v3178
      %v3180 = vpop.f32.mrb[0].mxu0
      %v3181 = vadd.f32 0.0, %v3180
      %3182 = vdwg.mxu0
      %3183 = vmatprep.subr.bf16.mxu0 %v2895
      %3184 = vmatpush1.bf16.msra.mxu0 %v2894
      %3185 = vmatprep.subr.bf16.mxu0 %v2898
      %3186 = vmatpush1.bf16.msra.mxu0 %v2897
      %3187 = vmatprep.subr.bf16.mxu0 %v2901
      %3188 = vmatpush1.bf16.msra.mxu0 %v2900
      %3189 = vmatprep.subr.bf16.mxu0 %v2904
      %3190 = vmatpush1.bf16.msra.mxu0 %v2903
      %3191 = vmatprep.subr.bf16.mxu0 %v2907
      %3192 = vmatpush1.bf16.msra.mxu0 %v2906
      %3193 = vmatprep.subr.bf16.mxu0 %v2910
      %3194 = vmatpush1.bf16.msra.mxu0 %v2909
      %3195 = vmatprep.subr.bf16.mxu0 %v2913
      %3196 = vmatpush1.bf16.msra.mxu0 %v2912
      %3197 = vmatprep.subr.bf16.mxu0 %v2916
      %3198 = vmatpush1.bf16.msra.mxu0 %v2915
      %3199 = vmatprep.subr.bf16.mxu0 0
      %3200 = vmatpush1.bf16.msra.mxu0 0
      %3201 = vmatprep.subr.bf16.mxu0 0
      %3202 = vmatpush1.bf16.msra.mxu0 0
      %3203 = vmatprep.subr.bf16.mxu0 0
      %3204 = vmatpush1.bf16.msra.mxu0 0
      %3205 = vmatprep.subr.bf16.mxu0 0
      %3206 = vmatpush1.bf16.msra.mxu0 0
      %3207 = vmatprep.subr.bf16.mxu0 0
      %3208 = vmatpush1.bf16.msra.mxu0 0
      %3209 = vmatprep.subr.bf16.mxu0 0
      %3210 = vmatpush1.bf16.msra.mxu0 0
      %3211 = vmatprep.subr.bf16.mxu0 0
      %3212 = vmatpush1.bf16.msra.mxu0 0
      %3213 = vmatprep.subr.bf16.mxu0 0
      %3214 = vmatpush1.bf16.msra.mxu0 0
      %3215 = vmatprep.mubr.bf16.mxu0 0
      %3216 = vmatmul.mubr.bf16.gmra.mrb[0].mxu0 %v2494
      %v3217 = vpop.f32.mrb[0].mxu0
      %v3218 = vadd.f32 %v3025, %v3217
      %v3219 = vpop.f32.mrb[0].mxu0
      %v3220 = vadd.f32 %v3027, %v3219
      %v3221 = vpop.f32.mrb[0].mxu0
      %v3222 = vadd.f32 %v3029, %v3221
      %v3223 = vpop.f32.mrb[0].mxu0
      %v3224 = vadd.f32 %v3031, %v3223
      %3225 = vmatprep.mubr.bf16.mxu0 0
      %3226 = vmatmul.mubr.bf16.gmra.mrb[0].mxu0 %v2495
      %v3227 = vpop.f32.mrb[0].mxu0
      %v3228 = vadd.f32 %v3035, %v3227
      %v3229 = vpop.f32.mrb[0].mxu0
      %v3230 = vadd.f32 %v3037, %v3229
      %v3231 = vpop.f32.mrb[0].mxu0
      %v3232 = vadd.f32 %v3039, %v3231
      %v3233 = vpop.f32.mrb[0].mxu0
      %v3234 = vadd.f32 %v3041, %v3233
      %3235 = vmatprep.mubr.bf16.mxu0 0
      %3236 = vmatmul.mubr.bf16.gmra.mrb[0].mxu0 %v2496
      %v3237 = vpop.f32.mrb[0].mxu0
      %v3238 = vadd.f32 %v3045, %v3237
      %v3239 = vpop.f32.mrb[0].mxu0
      %v3240 = vadd.f32 %v3047, %v3239
      %v3241 = vpop.f32.mrb[0].mxu0
      %v3242 = vadd.f32 %v3049, %v3241
      %v3243 = vpop.f32.mrb[0].mxu0
      %v3244 = vadd.f32 %v3051, %v3243
      %3245 = vmatprep.mubr.bf16.mxu0 0
      %3246 = vmatmul.mubr.bf16.gmra.mrb[0].mxu0 %v2497
      %v3247 = vpop.f32.mrb[0].mxu0
      %v3248 = vadd.f32 %v3055, %v3247
      %v3249 = vpop.f32.mrb[0].mxu0
      %v3250 = vadd.f32 %v3057, %v3249
      %v3251 = vpop.f32.mrb[0].mxu0
      %v3252 = vadd.f32 %v3059, %v3251
      %v3253 = vpop.f32.mrb[0].mxu0
      %v3254 = vadd.f32 %v3061, %v3253
      %3255 = vmatprep.mubr.bf16.mxu0 0
      %3256 = vmatmul.mubr.bf16.gmra.mrb[0].mxu0 %v2498
      %v3257 = vpop.f32.mrb[0].mxu0
      %v3258 = vadd.f32 %v3065, %v3257
      %v3259 = vpop.f32.mrb[0].mxu0
      %v3260 = vadd.f32 %v3067, %v3259
      %v3261 = vpop.f32.mrb[0].mxu0
      %v3262 = vadd.f32 %v3069, %v3261
      %v3263 = vpop.f32.mrb[0].mxu0
      %v3264 = vadd.f32 %v3071, %v3263
      %3265 = vmatprep.mubr.bf16.mxu0 0
      %3266 = vmatmul.mubr.bf16.gmra.mrb[0].mxu0 %v2499
      %v3267 = vpop.f32.mrb[0].mxu0
      %v3268 = vadd.f32 %v3075, %v3267
      %v3269 = vpop.f32.mrb[0].mxu0
      %v3270 = vadd.f32 %v3077, %v3269
      %v3271 = vpop.f32.mrb[0].mxu0
      %v3272 = vadd.f32 %v3079, %v3271
      %v3273 = vpop.f32.mrb[0].mxu0
      %v3274 = vadd.f32 %v3081, %v3273
      %3275 = vmatprep.mubr.bf16.mxu0 0
      %3276 = vmatmul.mubr.bf16.gmra.mrb[0].mxu0 %v2500
      %v3277 = vpop.f32.mrb[0].mxu0
      %v3278 = vadd.f32 %v3085, %v3277
      %v3279 = vpop.f32.mrb[0].mxu0
      %v3280 = vadd.f32 %v3087, %v3279
      %v3281 = vpop.f32.mrb[0].mxu0
      %v3282 = vadd.f32 %v3089, %v3281
      %v3283 = vpop.f32.mrb[0].mxu0
      %v3284 = vadd.f32 %v3091, %v3283
      %3285 = vmatprep.mubr.bf16.mxu0 0
      %3286 = vmatmul.mubr.bf16.gmra.mrb[0].mxu0 %v2501
      %v3287 = vpop.f32.mrb[0].mxu0
      %v3288 = vadd.f32 %v3095, %v3287
      %v3289 = vpop.f32.mrb[0].mxu0
      %v3290 = vadd.f32 %v3097, %v3289
      %v3291 = vpop.f32.mrb[0].mxu0
      %v3292 = vadd.f32 %v3099, %v3291
      %v3293 = vpop.f32.mrb[0].mxu0
      %v3294 = vadd.f32 %v3101, %v3293
      %3295 = vmatprep.mubr.bf16.mxu0 0
      %3296 = vmatmul.mubr.bf16.gmra.mrb[0].mxu0 %v2502
      %v3297 = vpop.f32.mrb[0].mxu0
      %v3298 = vadd.f32 %v3105, %v3297
      %v3299 = vpop.f32.mrb[0].mxu0
      %v3300 = vadd.f32 %v3107, %v3299
      %v3301 = vpop.f32.mrb[0].mxu0
      %v3302 = vadd.f32 %v3109, %v3301
      %v3303 = vpop.f32.mrb[0].mxu0
      %v3304 = vadd.f32 %v3111, %v3303
      %3305 = vmatprep.mubr.bf16.mxu0 0
      %3306 = vmatmul.mubr.bf16.gmra.mrb[0].mxu0 %v2503
      %v3307 = vpop.f32.mrb[0].mxu0
      %v3308 = vadd.f32 %v3115, %v3307
      %v3309 = vpop.f32.mrb[0].mxu0
      %v3310 = vadd.f32 %v3117, %v3309
      %v3311 = vpop.f32.mrb[0].mxu0
      %v3312 = vadd.f32 %v3119, %v3311
      %v3313 = vpop.f32.mrb[0].mxu0
      %v3314 = vadd.f32 %v3121, %v3313
      %3315 = vmatprep.mubr.bf16.mxu0 0
      %3316 = vmatmul.mubr.bf16.gmra.mrb[0].mxu0 %v2504
      %v3317 = vpop.f32.mrb[0].mxu0
      %v3318 = vadd.f32 %v3125, %v3317
      %v3319 = vpop.f32.mrb[0].mxu0
      %v3320 = vadd.f32 %v3127, %v3319
      %v3321 = vpop.f32.mrb[0].mxu0
      %v3322 = vadd.f32 %v3129, %v3321
      %v3323 = vpop.f32.mrb[0].mxu0
      %v3324 = vadd.f32 %v3131, %v3323
      %3325 = vmatprep.mubr.bf16.mxu0 0
      %3326 = vmatmul.mubr.bf16.gmra.mrb[0].mxu0 %v2505
      %v3327 = vpop.f32.mrb[0].mxu0
      %v3328 = vadd.f32 %v3135, %v3327
      %v3329 = vpop.f32.mrb[0].mxu0
      %v3330 = vadd.f32 %v3137, %v3329
      %v3331 = vpop.f32.mrb[0].mxu0
      %v3332 = vadd.f32 %v3139, %v3331
      %v3333 = vpop.f32.mrb[0].mxu0
      %v3334 = vadd.f32 %v3141, %v3333
      %3335 = vmatprep.mubr.bf16.mxu0 0
      %3336 = vmatmul.mubr.bf16.gmra.mrb[0].mxu0 %v2506
      %v3337 = vpop.f32.mrb[0].mxu0
      %v3338 = vadd.f32 %v3145, %v3337
      %v3339 = vpop.f32.mrb[0].mxu0
      %v3340 = vadd.f32 %v3147, %v3339
      %v3341 = vpop.f32.mrb[0].mxu0
      %v3342 = vadd.f32 %v3149, %v3341
      %v3343 = vpop.f32.mrb[0].mxu0
      %v3344 = vadd.f32 %v3151, %v3343
      %3345 = vmatprep.mubr.bf16.mxu0 0
      %3346 = vmatmul.mubr.bf16.gmra.mrb[0].mxu0 %v2507
      %v3347 = vpop.f32.mrb[0].mxu0
      %v3348 = vadd.f32 %v3155, %v3347
      %v3349 = vpop.f32.mrb[0].mxu0
      %v3350 = vadd.f32 %v3157, %v3349
      %v3351 = vpop.f32.mrb[0].mxu0
      %v3352 = vadd.f32 %v3159, %v3351
      %v3353 = vpop.f32.mrb[0].mxu0
      %v3354 = vadd.f32 %v3161, %v3353
      %3355 = vmatprep.mubr.bf16.mxu0 0
      %3356 = vmatmul.mubr.bf16.gmra.mrb[0].mxu0 %v2508
      %v3357 = vpop.f32.mrb[0].mxu0
      %v3358 = vadd.f32 %v3165, %v3357
      %v3359 = vpop.f32.mrb[0].mxu0
      %v3360 = vadd.f32 %v3167, %v3359
      %v3361 = vpop.f32.mrb[0].mxu0
      %v3362 = vadd.f32 %v3169, %v3361
      %v3363 = vpop.f32.mrb[0].mxu0
      %v3364 = vadd.f32 %v3171, %v3363
      %3365 = vmatprep.mubr.bf16.mxu0 0
      %3366 = vmatmul.mubr.bf16.gmra.mrb[0].mxu0 %v2509
      %v3367 = vpop.f32.mrb[0].mxu0
      %v3368 = vadd.f32 %v3175, %v3367
      %v3369 = vpop.f32.mrb[0].mxu0
      %v3370 = vadd.f32 %v3177, %v3369
      %v3371 = vpop.f32.mrb[0].mxu0
      %v3372 = vadd.f32 %v3179, %v3371
      %v3373 = vpop.f32.mrb[0].mxu0
      %v3374 = vadd.f32 %v3181, %v3373
      %3375 = vdwg.mxu0
      %3376 = vmatprep.subr.bf16.mxu0 0
      %3377 = vmatpush1.bf16.msra.mxu0 %v2848
      %3378 = vmatprep.subr.bf16.mxu0 0
      %3379 = vmatpush1.bf16.msra.mxu0 %v2851
      %3380 = vmatprep.subr.bf16.mxu0 0
      %3381 = vmatpush1.bf16.msra.mxu0 %v2854
      %3382 = vmatprep.subr.bf16.mxu0 0
      %3383 = vmatpush1.bf16.msra.mxu0 %v2857
      %3384 = vmatprep.subr.bf16.mxu0 0
      %3385 = vmatpush1.bf16.msra.mxu0 %v2860
      %3386 = vmatprep.subr.bf16.mxu0 0
      %3387 = vmatpush1.bf16.msra.mxu0 %v2863
      %3388 = vmatprep.subr.bf16.mxu0 0
      %3389 = vmatpush1.bf16.msra.mxu0 %v2866
      %3390 = vmatprep.subr.bf16.mxu0 0
      %3391 = vmatpush1.bf16.msra.mxu0 %v2869
      %3392 = vmatprep.subr.bf16.mxu0 0
      %3393 = vmatpush1.bf16.msra.mxu0 %v2872
      %3394 = vmatprep.subr.bf16.mxu0 0
      %3395 = vmatpush1.bf16.msra.mxu0 %v2875
      %3396 = vmatprep.subr.bf16.mxu0 0
      %3397 = vmatpush1.bf16.msra.mxu0 %v2878
      %3398 = vmatprep.subr.bf16.mxu0 0
      %3399 = vmatpush1.bf16.msra.mxu0 %v2881
      %3400 = vmatprep.subr.bf16.mxu0 0
      %3401 = vmatpush1.bf16.msra.mxu0 %v2884
      %3402 = vmatprep.subr.bf16.mxu0 0
      %3403 = vmatpush1.bf16.msra.mxu0 %v2887
      %3404 = vmatprep.subr.bf16.mxu0 0
      %3405 = vmatpush1.bf16.msra.mxu0 %v2890
      %3406 = vmatprep.subr.bf16.mxu0 0
      %3407 = vmatpush1.bf16.msra.mxu0 %v2893
      %3408 = vmatprep.mubr.bf16.mxu0 %v2493
      %3409 = vmatmul.mubr.bf16.gmra.mrb[0].mxu0 %v2492
      %v3410 = vpop.f32.mrb[0].mxu0
      %v3411 = vadd.f32 0.0, %v3410
      %v3412 = vpop.f32.mrb[0].mxu0
      %v3413 = vpop.f32.mrb[0].mxu0
      %v3414 = vadd.f32 0.0, %v3413
      %v3415 = vpop.f32.mrb[0].mxu0
      %3416 = vmatprep.mubr.bf16.mxu0 %v2494
      %3417 = vmatmul.mubr.bf16.gmra.mrb[0].mxu0 %v2493
      %v3418 = vpop.f32.mrb[0].mxu0
      %v3419 = vadd.f32 0.0, %v3418
      %v3420 = vpop.f32.mrb[0].mxu0
      %v3421 = vpop.f32.mrb[0].mxu0
      %v3422 = vadd.f32 0.0, %v3421
      %v3423 = vpop.f32.mrb[0].mxu0
      %3424 = vmatprep.mubr.bf16.mxu0 %v2495
      %3425 = vmatmul.mubr.bf16.gmra.mrb[0].mxu0 %v2494
      %v3426 = vpop.f32.mrb[0].mxu0
      %v3427 = vadd.f32 0.0, %v3426
      %v3428 = vpop.f32.mrb[0].mxu0
      %v3429 = vpop.f32.mrb[0].mxu0
      %v3430 = vadd.f32 0.0, %v3429
      %v3431 = vpop.f32.mrb[0].mxu0
      %3432 = vmatprep.mubr.bf16.mxu0 %v2496
      %3433 = vmatmul.mubr.bf16.gmra.mrb[0].mxu0 %v2495
      %v3434 = vpop.f32.mrb[0].mxu0
      %v3435 = vadd.f32 0.0, %v3434
      %v3436 = vpop.f32.mrb[0].mxu0
      %v3437 = vpop.f32.mrb[0].mxu0
      %v3438 = vadd.f32 0.0, %v3437
      %v3439 = vpop.f32.mrb[0].mxu0
      %3440 = vmatprep.mubr.bf16.mxu0 %v2497
      %3441 = vmatmul.mubr.bf16.gmra.mrb[0].mxu0 %v2496
      %v3442 = vpop.f32.mrb[0].mxu0
      %v3443 = vadd.f32 0.0, %v3442
      %v3444 = vpop.f32.mrb[0].mxu0
      %v3445 = vpop.f32.mrb[0].mxu0
      %v3446 = vadd.f32 0.0, %v3445
      %v3447 = vpop.f32.mrb[0].mxu0
      %3448 = vmatprep.mubr.bf16.mxu0 %v2498
      %3449 = vmatmul.mubr.bf16.gmra.mrb[0].mxu0 %v2497
      %v3450 = vpop.f32.mrb[0].mxu0
      %v3451 = vadd.f32 0.0, %v3450
      %v3452 = vpop.f32.mrb[0].mxu0
      %v3453 = vpop.f32.mrb[0].mxu0
      %v3454 = vadd.f32 0.0, %v3453
      %v3455 = vpop.f32.mrb[0].mxu0
      %3456 = vmatprep.mubr.bf16.mxu0 %v2499
      %3457 = vmatmul.mubr.bf16.gmra.mrb[0].mxu0 %v2498
      %v3458 = vpop.f32.mrb[0].mxu0
      %v3459 = vadd.f32 0.0, %v3458
      %v3460 = vpop.f32.mrb[0].mxu0
      %v3461 = vpop.f32.mrb[0].mxu0
      %v3462 = vadd.f32 0.0, %v3461
      %v3463 = vpop.f32.mrb[0].mxu0
      %3464 = vmatprep.mubr.bf16.mxu0 %v2500
      %3465 = vmatmul.mubr.bf16.gmra.mrb[0].mxu0 %v2499
      %v3466 = vpop.f32.mrb[0].mxu0
      %v3467 = vadd.f32 0.0, %v3466
      %v3468 = vpop.f32.mrb[0].mxu0
      %v3469 = vpop.f32.mrb[0].mxu0
      %v3470 = vadd.f32 0.0, %v3469
      %v3471 = vpop.f32.mrb[0].mxu0
      %3472 = vmatprep.mubr.bf16.mxu0 %v2501
      %3473 = vmatmul.mubr.bf16.gmra.mrb[0].mxu0 %v2500
      %v3474 = vpop.f32.mrb[0].mxu0
      %v3475 = vadd.f32 0.0, %v3474
      %v3476 = vpop.f32.mrb[0].mxu0
      %v3477 = vpop.f32.mrb[0].mxu0
      %v3478 = vadd.f32 0.0, %v3477
      %v3479 = vpop.f32.mrb[0].mxu0
      %3480 = vmatprep.mubr.bf16.mxu0 %v2502
      %3481 = vmatmul.mubr.bf16.gmra.mrb[0].mxu0 %v2501
      %v3482 = vpop.f32.mrb[0].mxu0
      %v3483 = vadd.f32 0.0, %v3482
      %v3484 = vpop.f32.mrb[0].mxu0
      %v3485 = vpop.f32.mrb[0].mxu0
      %v3486 = vadd.f32 0.0, %v3485
      %v3487 = vpop.f32.mrb[0].mxu0
      %3488 = vmatprep.mubr.bf16.mxu0 %v2503
      %3489 = vmatmul.mubr.bf16.gmra.mrb[0].mxu0 %v2502
      %v3490 = vpop.f32.mrb[0].mxu0
      %v3491 = vadd.f32 0.0, %v3490
      %v3492 = vpop.f32.mrb[0].mxu0
      %v3493 = vpop.f32.mrb[0].mxu0
      %v3494 = vadd.f32 0.0, %v3493
      %v3495 = vpop.f32.mrb[0].mxu0
      %3496 = vmatprep.mubr.bf16.mxu0 %v2504
      %3497 = vmatmul.mubr.bf16.gmra.mrb[0].mxu0 %v2503
      %v3498 = vpop.f32.mrb[0].mxu0
      %v3499 = vadd.f32 0.0, %v3498
      %v3500 = vpop.f32.mrb[0].mxu0
      %v3501 = vpop.f32.mrb[0].mxu0
      %v3502 = vadd.f32 0.0, %v3501
      %v3503 = vpop.f32.mrb[0].mxu0
      %3504 = vmatprep.mubr.bf16.mxu0 %v2505
      %3505 = vmatmul.mubr.bf16.gmra.mrb[0].mxu0 %v2504
      %v3506 = vpop.f32.mrb[0].mxu0
      %v3507 = vadd.f32 0.0, %v3506
      %v3508 = vpop.f32.mrb[0].mxu0
      %v3509 = vpop.f32.mrb[0].mxu0
      %v3510 = vadd.f32 0.0, %v3509
      %v3511 = vpop.f32.mrb[0].mxu0
      %3512 = vmatprep.mubr.bf16.mxu0 %v2506
      %3513 = vmatmul.mubr.bf16.gmra.mrb[0].mxu0 %v2505
      %v3514 = vpop.f32.mrb[0].mxu0
      %v3515 = vadd.f32 0.0, %v3514
      %v3516 = vpop.f32.mrb[0].mxu0
      %v3517 = vpop.f32.mrb[0].mxu0
      %v3518 = vadd.f32 0.0, %v3517
      %v3519 = vpop.f32.mrb[0].mxu0
      %3520 = vmatprep.mubr.bf16.mxu0 %v2507
      %3521 = vmatmul.mubr.bf16.gmra.mrb[0].mxu0 %v2506
      %v3522 = vpop.f32.mrb[0].mxu0
      %v3523 = vadd.f32 0.0, %v3522
      %v3524 = vpop.f32.mrb[0].mxu0
      %v3525 = vpop.f32.mrb[0].mxu0
      %v3526 = vadd.f32 0.0, %v3525
      %v3527 = vpop.f32.mrb[0].mxu0
      %3528 = vmatprep.mubr.bf16.mxu0 %v2508
      %3529 = vmatmul.mubr.bf16.gmra.mrb[0].mxu0 %v2507
      %v3530 = vpop.f32.mrb[0].mxu0
      %v3531 = vadd.f32 0.0, %v3530
      %v3532 = vpop.f32.mrb[0].mxu0
      %v3533 = vpop.f32.mrb[0].mxu0
      %v3534 = vadd.f32 0.0, %v3533
      %v3535 = vpop.f32.mrb[0].mxu0
      %3536 = vdwg.mxu0
      %3537 = vmatprep.subr.bf16.mxu0 0
      %3538 = vmatpush1.bf16.msra.mxu0 %v2896
      %3539 = vmatprep.subr.bf16.mxu0 0
      %3540 = vmatpush1.bf16.msra.mxu0 %v2899
      %3541 = vmatprep.subr.bf16.mxu0 0
      %3542 = vmatpush1.bf16.msra.mxu0 %v2902
      %3543 = vmatprep.subr.bf16.mxu0 0
      %3544 = vmatpush1.bf16.msra.mxu0 %v2905
      %3545 = vmatprep.subr.bf16.mxu0 0
      %3546 = vmatpush1.bf16.msra.mxu0 %v2908
      %3547 = vmatprep.subr.bf16.mxu0 0
      %3548 = vmatpush1.bf16.msra.mxu0 %v2911
      %3549 = vmatprep.subr.bf16.mxu0 0
      %3550 = vmatpush1.bf16.msra.mxu0 %v2914
      %3551 = vmatprep.subr.bf16.mxu0 0
      %3552 = vmatpush1.bf16.msra.mxu0 %v2917
      %3553 = vmatprep.subr.bf16.mxu0 0
      %3554 = vmatpush1.bf16.msra.mxu0 0
      %3555 = vmatprep.subr.bf16.mxu0 0
      %3556 = vmatpush1.bf16.msra.mxu0 0
      %3557 = vmatprep.subr.bf16.mxu0 0
      %3558 = vmatpush1.bf16.msra.mxu0 0
      %3559 = vmatprep.subr.bf16.mxu0 0
      %3560 = vmatpush1.bf16.msra.mxu0 0
      %3561 = vmatprep.subr.bf16.mxu0 0
      %3562 = vmatpush1.bf16.msra.mxu0 0
      %3563 = vmatprep.subr.bf16.mxu0 0
      %3564 = vmatpush1.bf16.msra.mxu0 0
      %3565 = vmatprep.subr.bf16.mxu0 0
      %3566 = vmatpush1.bf16.msra.mxu0 0
      %3567 = vmatprep.subr.bf16.mxu0 0
      %3568 = vmatpush1.bf16.msra.mxu0 0
      %3569 = vmatprep.mubr.bf16.mxu0 0
      %3570 = vmatmul.mubr.bf16.gmra.mrb[0].mxu0 %v2494
      %v3571 = vpop.f32.mrb[0].mxu0
      %v3572 = vadd.f32 %v3411, %v3571
      %v3573 = vpop.f32.mrb[0].mxu0
      %v3574 = vpop.f32.mrb[0].mxu0
      %v3575 = vadd.f32 %v3414, %v3574
      %v3576 = vpop.f32.mrb[0].mxu0
      %3577 = vmatprep.mubr.bf16.mxu0 0
      %3578 = vmatmul.mubr.bf16.gmra.mrb[0].mxu0 %v2495
      %v3579 = vpop.f32.mrb[0].mxu0
      %v3580 = vadd.f32 %v3419, %v3579
      %v3581 = vpop.f32.mrb[0].mxu0
      %v3582 = vpop.f32.mrb[0].mxu0
      %v3583 = vadd.f32 %v3422, %v3582
      %v3584 = vpop.f32.mrb[0].mxu0
      %3585 = vmatprep.mubr.bf16.mxu0 0
      %3586 = vmatmul.mubr.bf16.gmra.mrb[0].mxu0 %v2496
      %v3587 = vpop.f32.mrb[0].mxu0
      %v3588 = vadd.f32 %v3427, %v3587
      %v3589 = vpop.f32.mrb[0].mxu0
      %v3590 = vpop.f32.mrb[0].mxu0
      %v3591 = vadd.f32 %v3430, %v3590
      %v3592 = vpop.f32.mrb[0].mxu0
      %3593 = vmatprep.mubr.bf16.mxu0 0
      %3594 = vmatmul.mubr.bf16.gmra.mrb[0].mxu0 %v2497
      %v3595 = vpop.f32.mrb[0].mxu0
      %v3596 = vadd.f32 %v3435, %v3595
      %v3597 = vpop.f32.mrb[0].mxu0
      %v3598 = vpop.f32.mrb[0].mxu0
      %v3599 = vadd.f32 %v3438, %v3598
      %v3600 = vpop.f32.mrb[0].mxu0
      %3601 = vmatprep.mubr.bf16.mxu0 0
      %3602 = vmatmul.mubr.bf16.gmra.mrb[0].mxu0 %v2498
      %v3603 = vpop.f32.mrb[0].mxu0
      %v3604 = vadd.f32 %v3443, %v3603
      %v3605 = vpop.f32.mrb[0].mxu0
      %v3606 = vpop.f32.mrb[0].mxu0
      %v3607 = vadd.f32 %v3446, %v3606
      %v3608 = vpop.f32.mrb[0].mxu0
      %3609 = vmatprep.mubr.bf16.mxu0 0
      %3610 = vmatmul.mubr.bf16.gmra.mrb[0].mxu0 %v2499
      %v3611 = vpop.f32.mrb[0].mxu0
      %v3612 = vadd.f32 %v3451, %v3611
      %v3613 = vpop.f32.mrb[0].mxu0
      %v3614 = vpop.f32.mrb[0].mxu0
      %v3615 = vadd.f32 %v3454, %v3614
      %v3616 = vpop.f32.mrb[0].mxu0
      %3617 = vmatprep.mubr.bf16.mxu0 0
      %3618 = vmatmul.mubr.bf16.gmra.mrb[0].mxu0 %v2500
      %v3619 = vpop.f32.mrb[0].mxu0
      %v3620 = vadd.f32 %v3459, %v3619
      %v3621 = vpop.f32.mrb[0].mxu0
      %v3622 = vpop.f32.mrb[0].mxu0
      %v3623 = vadd.f32 %v3462, %v3622
      %v3624 = vpop.f32.mrb[0].mxu0
      %3625 = vmatprep.mubr.bf16.mxu0 0
      %3626 = vmatmul.mubr.bf16.gmra.mrb[0].mxu0 %v2501
      %v3627 = vpop.f32.mrb[0].mxu0
      %v3628 = vadd.f32 %v3467, %v3627
      %v3629 = vpop.f32.mrb[0].mxu0
      %v3630 = vpop.f32.mrb[0].mxu0
      %v3631 = vadd.f32 %v3470, %v3630
      %v3632 = vpop.f32.mrb[0].mxu0
      %3633 = vmatprep.mubr.bf16.mxu0 0
      %3634 = vmatmul.mubr.bf16.gmra.mrb[0].mxu0 %v2502
      %v3635 = vpop.f32.mrb[0].mxu0
      %v3636 = vadd.f32 %v3475, %v3635
      %v3637 = vpop.f32.mrb[0].mxu0
      %v3638 = vpop.f32.mrb[0].mxu0
      %v3639 = vadd.f32 %v3478, %v3638
      %v3640 = vpop.f32.mrb[0].mxu0
      %3641 = vmatprep.mubr.bf16.mxu0 0
      %3642 = vmatmul.mubr.bf16.gmra.mrb[0].mxu0 %v2503
      %v3643 = vpop.f32.mrb[0].mxu0
      %v3644 = vadd.f32 %v3483, %v3643
      %v3645 = vpop.f32.mrb[0].mxu0
      %v3646 = vpop.f32.mrb[0].mxu0
      %v3647 = vadd.f32 %v3486, %v3646
      %v3648 = vpop.f32.mrb[0].mxu0
      %3649 = vmatprep.mubr.bf16.mxu0 0
      %3650 = vmatmul.mubr.bf16.gmra.mrb[0].mxu0 %v2504
      %v3651 = vpop.f32.mrb[0].mxu0
      %v3652 = vadd.f32 %v3491, %v3651
      %v3653 = vpop.f32.mrb[0].mxu0
      %v3654 = vpop.f32.mrb[0].mxu0
      %v3655 = vadd.f32 %v3494, %v3654
      %v3656 = vpop.f32.mrb[0].mxu0
      %3657 = vmatprep.mubr.bf16.mxu0 0
      %3658 = vmatmul.mubr.bf16.gmra.mrb[0].mxu0 %v2505
      %v3659 = vpop.f32.mrb[0].mxu0
      %v3660 = vadd.f32 %v3499, %v3659
      %v3661 = vpop.f32.mrb[0].mxu0
      %v3662 = vpop.f32.mrb[0].mxu0
      %v3663 = vadd.f32 %v3502, %v3662
      %v3664 = vpop.f32.mrb[0].mxu0
      %3665 = vmatprep.mubr.bf16.mxu0 0
      %3666 = vmatmul.mubr.bf16.gmra.mrb[0].mxu0 %v2506
      %v3667 = vpop.f32.mrb[0].mxu0
      %v3668 = vadd.f32 %v3507, %v3667
      %v3669 = vpop.f32.mrb[0].mxu0
      %v3670 = vpop.f32.mrb[0].mxu0
      %v3671 = vadd.f32 %v3510, %v3670
      %v3672 = vpop.f32.mrb[0].mxu0
      %3673 = vmatprep.mubr.bf16.mxu0 0
      %3674 = vmatmul.mubr.bf16.gmra.mrb[0].mxu0 %v2507
      %v3675 = vpop.f32.mrb[0].mxu0
      %v3676 = vadd.f32 %v3515, %v3675
      %v3677 = vpop.f32.mrb[0].mxu0
      %v3678 = vpop.f32.mrb[0].mxu0
      %v3679 = vadd.f32 %v3518, %v3678
      %v3680 = vpop.f32.mrb[0].mxu0
      %3681 = vmatprep.mubr.bf16.mxu0 0
      %3682 = vmatmul.mubr.bf16.gmra.mrb[0].mxu0 %v2508
      %v3683 = vpop.f32.mrb[0].mxu0
      %v3684 = vadd.f32 %v3523, %v3683
      %v3685 = vpop.f32.mrb[0].mxu0
      %v3686 = vpop.f32.mrb[0].mxu0
      %v3687 = vadd.f32 %v3526, %v3686
      %v3688 = vpop.f32.mrb[0].mxu0
      %3689 = vmatprep.mubr.bf16.mxu0 0
      %3690 = vmatmul.mubr.bf16.gmra.mrb[0].mxu0 %v2509
      %v3691 = vpop.f32.mrb[0].mxu0
      %v3692 = vadd.f32 %v3531, %v3691
      %v3693 = vpop.f32.mrb[0].mxu0
      %v3694 = vpop.f32.mrb[0].mxu0
      %v3695 = vadd.f32 %v3534, %v3694
      %v3696 = vpop.f32.mrb[0].mxu0
      %3697 = vdwg.mxu0
      %v3730 = vrot.slane %v3218, 7
      %v3731 = vrot.slane %v3222, 7
      %v3732 = vsel %vm2083, %v3730, %v3731
      %v3733 = vrot.slane %v3228, 7
      %v3734 = vsel %vm2083, %v3731, %v3733
      %v3735 = vrot.slane %v3232, 7
      %v3736 = vsel %vm2083, %v3733, %v3735
      %v3737 = vrot.slane %v3238, 7
      %v3738 = vsel %vm2083, %v3735, %v3737
      %v3739 = vrot.slane %v3242, 7
      %v3740 = vsel %vm2083, %v3737, %v3739
      %v3741 = vrot.slane %v3248, 7
      %v3742 = vsel %vm2083, %v3739, %v3741
      %v3743 = vrot.slane %v3252, 7
      %v3744 = vsel %vm2083, %v3741, %v3743
      %v3745 = vrot.slane %v3258, 7
      %v3746 = vsel %vm2083, %v3743, %v3745
      %v3747 = vrot.slane %v3262, 7
      %v3748 = vsel %vm2083, %v3745, %v3747
      %v3749 = vrot.slane %v3268, 7
      %v3750 = vsel %vm2083, %v3747, %v3749
      %v3751 = vrot.slane %v3272, 7
      %v3752 = vsel %vm2083, %v3749, %v3751
      %v3753 = vrot.slane %v3278, 7
      %v3754 = vsel %vm2083, %v3751, %v3753
      %v3755 = vrot.slane %v3282, 7
      %v3756 = vsel %vm2083, %v3753, %v3755
      %v3757 = vrot.slane %v3288, 7
      %v3758 = vsel %vm2083, %v3755, %v3757
      %v3759 = vrot.slane %v3292, 7
      %v3760 = vsel %vm2083, %v3757, %v3759
      %v3761 = vrot.slane %v3298, 7
      %v3762 = vsel %vm2083, %v3759, %v3761
      %v3763 = vrot.slane %v3302, 7
      %v3764 = vsel %vm2083, %v3761, %v3763
      %v3765 = vrot.slane %v3308, 7
      %v3766 = vsel %vm2083, %v3763, %v3765
      %v3767 = vrot.slane %v3312, 7
      %v3768 = vsel %vm2083, %v3765, %v3767
      %v3769 = vrot.slane %v3318, 7
      %v3770 = vsel %vm2083, %v3767, %v3769
      %v3771 = vrot.slane %v3322, 7
      %v3772 = vsel %vm2083, %v3769, %v3771
      %v3773 = vrot.slane %v3328, 7
      %v3774 = vsel %vm2083, %v3771, %v3773
      %v3775 = vrot.slane %v3332, 7
      %v3776 = vsel %vm2083, %v3773, %v3775
      %v3777 = vrot.slane %v3338, 7
      %v3778 = vsel %vm2083, %v3775, %v3777
      %v3779 = vrot.slane %v3342, 7
      %v3780 = vsel %vm2083, %v3777, %v3779
      %v3781 = vrot.slane %v3348, 7
      %v3782 = vsel %vm2083, %v3779, %v3781
      %v3783 = vrot.slane %v3352, 7
      %v3784 = vsel %vm2083, %v3781, %v3783
      %v3785 = vrot.slane %v3358, 7
      %v3786 = vsel %vm2083, %v3783, %v3785
      %v3787 = vrot.slane %v3362, 7
      %v3788 = vsel %vm2083, %v3785, %v3787
      %v3789 = vrot.slane %v3368, 7
      %v3790 = vsel %vm2083, %v3787, %v3789
      %v3791 = vrot.slane %v3372, 7
      %v3792 = vsel %vm2083, %v3789, %v3791
      %v3825 = vsel %vm2083, 0.0, %v3730
      %v3858 = vrot.slane %v3572, 1
      %v3859 = vrot.slane %v3575, 1
      %v3860 = vsel %vm2212, %v3858, %v3859
      %v3861 = vrot.slane %v3580, 1
      %v3862 = vsel %vm2212, %v3859, %v3861
      %v3863 = vrot.slane %v3583, 1
      %v3864 = vsel %vm2212, %v3861, %v3863
      %v3865 = vrot.slane %v3588, 1
      %v3866 = vsel %vm2212, %v3863, %v3865
      %v3867 = vrot.slane %v3591, 1
      %v3868 = vsel %vm2212, %v3865, %v3867
      %v3869 = vrot.slane %v3596, 1
      %v3870 = vsel %vm2212, %v3867, %v3869
      %v3871 = vrot.slane %v3599, 1
      %v3872 = vsel %vm2212, %v3869, %v3871
      %v3873 = vrot.slane %v3604, 1
      %v3874 = vsel %vm2212, %v3871, %v3873
      %v3875 = vrot.slane %v3607, 1
      %v3876 = vsel %vm2212, %v3873, %v3875
      %v3877 = vrot.slane %v3612, 1
      %v3878 = vsel %vm2212, %v3875, %v3877
      %v3879 = vrot.slane %v3615, 1
      %v3880 = vsel %vm2212, %v3877, %v3879
      %v3881 = vrot.slane %v3620, 1
      %v3882 = vsel %vm2212, %v3879, %v3881
      %v3883 = vrot.slane %v3623, 1
      %v3884 = vsel %vm2212, %v3881, %v3883
      %v3885 = vrot.slane %v3628, 1
      %v3886 = vsel %vm2212, %v3883, %v3885
      %v3887 = vrot.slane %v3631, 1
      %v3888 = vsel %vm2212, %v3885, %v3887
      %v3889 = vrot.slane %v3636, 1
      %v3890 = vsel %vm2212, %v3887, %v3889
      %v3891 = vrot.slane %v3639, 1
      %v3892 = vsel %vm2212, %v3889, %v3891
      %v3893 = vrot.slane %v3644, 1
      %v3894 = vsel %vm2212, %v3891, %v3893
      %v3895 = vrot.slane %v3647, 1
      %v3896 = vsel %vm2212, %v3893, %v3895
      %v3897 = vrot.slane %v3652, 1
      %v3898 = vsel %vm2212, %v3895, %v3897
      %v3899 = vrot.slane %v3655, 1
      %v3900 = vsel %vm2212, %v3897, %v3899
      %v3901 = vrot.slane %v3660, 1
      %v3902 = vsel %vm2212, %v3899, %v3901
      %v3903 = vrot.slane %v3663, 1
      %v3904 = vsel %vm2212, %v3901, %v3903
      %v3905 = vrot.slane %v3668, 1
      %v3906 = vsel %vm2212, %v3903, %v3905
      %v3907 = vrot.slane %v3671, 1
      %v3908 = vsel %vm2212, %v3905, %v3907
      %v3909 = vrot.slane %v3676, 1
      %v3910 = vsel %vm2212, %v3907, %v3909
      %v3911 = vrot.slane %v3679, 1
      %v3912 = vsel %vm2212, %v3909, %v3911
      %v3913 = vrot.slane %v3684, 1
      %v3914 = vsel %vm2212, %v3911, %v3913
      %v3915 = vrot.slane %v3687, 1
      %v3916 = vsel %vm2212, %v3913, %v3915
      %v3917 = vrot.slane %v3692, 1
      %v3918 = vsel %vm2212, %v3915, %v3917
      %v3919 = vrot.slane %v3695, 1
      %v3920 = vsel %vm2212, %v3917, %v3919
      %v3953 = vsel %vm2212, %v3919, 0.0
      %v3954 = vsel %vm2316, %v3825, 0.0
      %v3955 = vsel %vm2317, %v3732, 0.0
      %v3956 = vsel %vm2316, %v3734, 0.0
      %v3957 = vsel %vm2317, %v3736, 0.0
      %v3958 = vsel %vm2316, %v3738, 0.0
      %v3959 = vsel %vm2317, %v3740, 0.0
      %v3960 = vsel %vm2316, %v3742, 0.0
      %v3961 = vsel %vm2317, %v3744, 0.0
      %v3962 = vsel %vm2316, %v3746, 0.0
      %v3963 = vsel %vm2317, %v3748, 0.0
      %v3964 = vsel %vm2316, %v3750, 0.0
      %v3965 = vsel %vm2317, %v3752, 0.0
      %v3966 = vsel %vm2316, %v3754, 0.0
      %v3967 = vsel %vm2317, %v3756, 0.0
      %v3968 = vsel %vm2316, %v3758, 0.0
      %v3969 = vsel %vm2317, %v3760, 0.0
      %v3970 = vsel %vm2316, %v3762, 0.0
      %v3971 = vsel %vm2317, %v3764, 0.0
      %v3972 = vsel %vm2316, %v3766, 0.0
      %v3973 = vsel %vm2317, %v3768, 0.0
      %v3974 = vsel %vm2316, %v3770, 0.0
      %v3975 = vsel %vm2317, %v3772, 0.0
      %v3976 = vsel %vm2316, %v3774, 0.0
      %v3977 = vsel %vm2317, %v3776, 0.0
      %v3978 = vsel %vm2316, %v3778, 0.0
      %v3979 = vsel %vm2317, %v3780, 0.0
      %v3980 = vsel %vm2316, %v3782, 0.0
      %v3981 = vsel %vm2317, %v3784, 0.0
      %v3982 = vsel %vm2316, %v3786, 0.0
      %v3983 = vsel %vm2317, %v3788, 0.0
      %v3984 = vsel %vm2316, %v3790, 0.0
      %v3985 = vsel %vm2317, %v3792, 0.0
      %v3986 = vadd.f32 %v3220, %v3954
      %v3987 = vadd.f32 %v3224, %v3955
      %v3988 = vadd.f32 %v3230, %v3956
      %v3989 = vadd.f32 %v3234, %v3957
      %v3990 = vadd.f32 %v3240, %v3958
      %v3991 = vadd.f32 %v3244, %v3959
      %v3992 = vadd.f32 %v3250, %v3960
      %v3993 = vadd.f32 %v3254, %v3961
      %v3994 = vadd.f32 %v3260, %v3962
      %v3995 = vadd.f32 %v3264, %v3963
      %v3996 = vadd.f32 %v3270, %v3964
      %v3997 = vadd.f32 %v3274, %v3965
      %v3998 = vadd.f32 %v3280, %v3966
      %v3999 = vadd.f32 %v3284, %v3967
      %v4000 = vadd.f32 %v3290, %v3968
      %v4001 = vadd.f32 %v3294, %v3969
      %v4002 = vadd.f32 %v3300, %v3970
      %v4003 = vadd.f32 %v3304, %v3971
      %v4004 = vadd.f32 %v3310, %v3972
      %v4005 = vadd.f32 %v3314, %v3973
      %v4006 = vadd.f32 %v3320, %v3974
      %v4007 = vadd.f32 %v3324, %v3975
      %v4008 = vadd.f32 %v3330, %v3976
      %v4009 = vadd.f32 %v3334, %v3977
      %v4010 = vadd.f32 %v3340, %v3978
      %v4011 = vadd.f32 %v3344, %v3979
      %v4012 = vadd.f32 %v3350, %v3980
      %v4013 = vadd.f32 %v3354, %v3981
      %v4014 = vadd.f32 %v3360, %v3982
      %v4015 = vadd.f32 %v3364, %v3983
      %v4016 = vadd.f32 %v3370, %v3984
      %v4017 = vadd.f32 %v3374, %v3985
      %v4018 = vsel %vm2386, %v3860, 0.0
      %v4019 = vsel %vm2387, %v3862, 0.0
      %v4020 = vsel %vm2386, %v3864, 0.0
      %v4021 = vsel %vm2387, %v3866, 0.0
      %v4022 = vsel %vm2386, %v3868, 0.0
      %v4023 = vsel %vm2387, %v3870, 0.0
      %v4024 = vsel %vm2386, %v3872, 0.0
      %v4025 = vsel %vm2387, %v3874, 0.0
      %v4026 = vsel %vm2386, %v3876, 0.0
      %v4027 = vsel %vm2387, %v3878, 0.0
      %v4028 = vsel %vm2386, %v3880, 0.0
      %v4029 = vsel %vm2387, %v3882, 0.0
      %v4030 = vsel %vm2386, %v3884, 0.0
      %v4031 = vsel %vm2387, %v3886, 0.0
      %v4032 = vsel %vm2386, %v3888, 0.0
      %v4033 = vsel %vm2387, %v3890, 0.0
      %v4034 = vsel %vm2386, %v3892, 0.0
      %v4035 = vsel %vm2387, %v3894, 0.0
      %v4036 = vsel %vm2386, %v3896, 0.0
      %v4037 = vsel %vm2387, %v3898, 0.0
      %v4038 = vsel %vm2386, %v3900, 0.0
      %v4039 = vsel %vm2387, %v3902, 0.0
      %v4040 = vsel %vm2386, %v3904, 0.0
      %v4041 = vsel %vm2387, %v3906, 0.0
      %v4042 = vsel %vm2386, %v3908, 0.0
      %v4043 = vsel %vm2387, %v3910, 0.0
      %v4044 = vsel %vm2386, %v3912, 0.0
      %v4045 = vsel %vm2387, %v3914, 0.0
      %v4046 = vsel %vm2386, %v3916, 0.0
      %v4047 = vsel %vm2387, %v3918, 0.0
      %v4048 = vsel %vm2386, %v3920, 0.0
      %v4049 = vsel %vm2387, %v3953, 0.0
      %v4050 = vadd.f32 %v3986, %v4018
      %v4051 = vadd.f32 %v3987, %v4019
      %v4052 = vadd.f32 %v3988, %v4020
      %v4053 = vadd.f32 %v3989, %v4021
      %v4054 = vadd.f32 %v3990, %v4022
      %v4055 = vadd.f32 %v3991, %v4023
      %v4056 = vadd.f32 %v3992, %v4024
      %v4057 = vadd.f32 %v3993, %v4025
      %v4058 = vadd.f32 %v3994, %v4026
      %v4059 = vadd.f32 %v3995, %v4027
      %v4060 = vadd.f32 %v3996, %v4028
      %v4061 = vadd.f32 %v3997, %v4029
      %v4062 = vadd.f32 %v3998, %v4030
      %v4063 = vadd.f32 %v3999, %v4031
      %v4064 = vadd.f32 %v4000, %v4032
      %v4065 = vadd.f32 %v4001, %v4033
      %v4066 = vadd.f32 %v4002, %v4034
      %v4067 = vadd.f32 %v4003, %v4035
      %v4068 = vadd.f32 %v4004, %v4036
      %v4069 = vadd.f32 %v4005, %v4037
      %v4070 = vadd.f32 %v4006, %v4038
      %v4071 = vadd.f32 %v4007, %v4039
      %v4072 = vadd.f32 %v4008, %v4040
      %v4073 = vadd.f32 %v4009, %v4041
      %v4074 = vadd.f32 %v4010, %v4042
      %v4075 = vadd.f32 %v4011, %v4043
      %v4076 = vadd.f32 %v4012, %v4044
      %v4077 = vadd.f32 %v4013, %v4045
      %v4078 = vadd.f32 %v4014, %v4046
      %v4079 = vadd.f32 %v4015, %v4047
      %v4080 = vadd.f32 %v4016, %v4048
      %v4081 = vadd.f32 %v4017, %v4049
      %v4082 = vadd.f32 %v2420, %v4050
      %v4083 = vadd.f32 %v2421, %v4051
      %v4084 = vadd.f32 %v2422, %v4052
      %v4085 = vadd.f32 %v2423, %v4053
      %v4086 = vadd.f32 %v2424, %v4054
      %v4087 = vadd.f32 %v2425, %v4055
      %v4088 = vadd.f32 %v2426, %v4056
      %v4089 = vadd.f32 %v2427, %v4057
      %v4090 = vadd.f32 %v2428, %v4058
      %v4091 = vadd.f32 %v2429, %v4059
      %v4092 = vadd.f32 %v2430, %v4060
      %v4093 = vadd.f32 %v2431, %v4061
      %v4094 = vadd.f32 %v2432, %v4062
      %v4095 = vadd.f32 %v2433, %v4063
      %v4096 = vadd.f32 %v2434, %v4064
      %v4097 = vadd.f32 %v2435, %v4065
      %v4098 = vadd.f32 %v2436, %v4066
      %v4099 = vadd.f32 %v2437, %v4067
      %v4100 = vadd.f32 %v2438, %v4068
      %v4101 = vadd.f32 %v2439, %v4069
      %v4102 = vadd.f32 %v2440, %v4070
      %v4103 = vadd.f32 %v2441, %v4071
      %v4104 = vadd.f32 %v2442, %v4072
      %v4105 = vadd.f32 %v2443, %v4073
      %v4106 = vadd.f32 %v2444, %v4074
      %v4107 = vadd.f32 %v2445, %v4075
      %v4108 = vadd.f32 %v2446, %v4076
      %v4109 = vadd.f32 %v2447, %v4077
      %v4110 = vadd.f32 %v2448, %v4078
      %v4111 = vadd.f32 %v2449, %v4079
      %v4112 = vadd.f32 %v2450, %v4080
      %v4113 = vadd.f32 %v2451, %v4081
      %v4114 = vld [vmem:[%s8] sm:$0x1]
      %v4116 = vlaneseq
      %v4117 = vshrl.u32 %v4116, 7
      %v4118 = vsub.s32 0, %v4117
      %v4119 = vrot.slane %v4114, %v4118
      %v4121 = vadd.f32 %v4082, %v4119
      %v4122 = vadd.f32 %v4083, %v4119
      %v4123 = vadd.f32 %v4084, %v4119
      %v4124 = vadd.f32 %v4085, %v4119
      %v4125 = vadd.f32 %v4086, %v4119
      %v4126 = vadd.f32 %v4087, %v4119
      %v4127 = vadd.f32 %v4088, %v4119
      %v4128 = vadd.f32 %v4089, %v4119
      %v4129 = vadd.f32 %v4090, %v4119
      %v4130 = vadd.f32 %v4091, %v4119
      %v4131 = vadd.f32 %v4092, %v4119
      %v4132 = vadd.f32 %v4093, %v4119
      %v4133 = vadd.f32 %v4094, %v4119
      %v4134 = vadd.f32 %v4095, %v4119
      %v4135 = vadd.f32 %v4096, %v4119
      %v4136 = vadd.f32 %v4097, %v4119
      %v4137 = vadd.f32 %v4098, %v4119
      %v4138 = vadd.f32 %v4099, %v4119
      %v4139 = vadd.f32 %v4100, %v4119
      %v4140 = vadd.f32 %v4101, %v4119
      %v4141 = vadd.f32 %v4102, %v4119
      %v4142 = vadd.f32 %v4103, %v4119
      %v4143 = vadd.f32 %v4104, %v4119
      %v4144 = vadd.f32 %v4105, %v4119
      %v4145 = vadd.f32 %v4106, %v4119
      %v4146 = vadd.f32 %v4107, %v4119
      %v4147 = vadd.f32 %v4108, %v4119
      %v4148 = vadd.f32 %v4109, %v4119
      %v4149 = vadd.f32 %v4110, %v4119
      %v4150 = vadd.f32 %v4111, %v4119
      %v4151 = vadd.f32 %v4112, %v4119
      %v4152 = vadd.f32 %v4113, %v4119
      %4153 = vst [vmem:[%s701] sm:$0xff] %v4121
      %4154 = vst [vmem:[%s701 + $0x8] sm:$0xff] %v4122
      %4155 = vst [vmem:[%s701 + $0x10] sm:$0xff] %v4123
      %4156 = vst [vmem:[%s701 + $0x18] sm:$0xff] %v4124
      %4157 = vst [vmem:[%s701 + $0x20] sm:$0xff] %v4125
      %4158 = vst [vmem:[%s701 + $0x28] sm:$0xff] %v4126
      %4159 = vst [vmem:[%s701 + $0x30] sm:$0xff] %v4127
      %4160 = vst [vmem:[%s701 + $0x38] sm:$0xff] %v4128
      %4161 = vst [vmem:[%s701 + $0x40] sm:$0xff] %v4129
      %4162 = vst [vmem:[%s701 + $0x48] sm:$0xff] %v4130
      %4163 = vst [vmem:[%s701 + $0x50] sm:$0xff] %v4131
      %4164 = vst [vmem:[%s701 + $0x58] sm:$0xff] %v4132
      %4165 = vst [vmem:[%s701 + $0x60] sm:$0xff] %v4133
      %4166 = vst [vmem:[%s701 + $0x68] sm:$0xff] %v4134
      %4167 = vst [vmem:[%s701 + $0x70] sm:$0xff] %v4135
      %4168 = vst [vmem:[%s701 + $0x78] sm:$0xff] %v4136
      %4169 = vst [vmem:[%s701 + $0x80] sm:$0xff] %v4137
      %4170 = vst [vmem:[%s701 + $0x88] sm:$0xff] %v4138
      %4171 = vst [vmem:[%s701 + $0x90] sm:$0xff] %v4139
      %4172 = vst [vmem:[%s701 + $0x98] sm:$0xff] %v4140
      %4173 = vst [vmem:[%s701 + $0xa0] sm:$0xff] %v4141
      %4174 = vst [vmem:[%s701 + $0xa8] sm:$0xff] %v4142
      %4175 = vst [vmem:[%s701 + $0xb0] sm:$0xff] %v4143
      %4176 = vst [vmem:[%s701 + $0xb8] sm:$0xff] %v4144
      %4177 = vst [vmem:[%s701 + $0xc0] sm:$0xff] %v4145
      %4178 = vst [vmem:[%s701 + $0xc8] sm:$0xff] %v4146
      %4179 = vst [vmem:[%s701 + $0xd0] sm:$0xff] %v4147
      %4180 = vst [vmem:[%s701 + $0xd8] sm:$0xff] %v4148
      %4181 = vst [vmem:[%s701 + $0xe0] sm:$0xff] %v4149
      %4182 = vst [vmem:[%s701 + $0xe8] sm:$0xff] %v4150
      %4183 = vst [vmem:[%s701 + $0xf0] sm:$0xff] %v4151
      %4184 = vst [vmem:[%s701 + $0xf8] sm:$0xff] %v4152
      %v4185 = vadd.f32 %v4121, %v4122
      %v4186 = vadd.f32 %v4185, %v4123
      %v4187 = vadd.f32 %v4186, %v4124
      %v4188 = vadd.f32 %v4187, %v4125
      %v4189 = vadd.f32 %v4188, %v4126
      %v4190 = vadd.f32 %v4189, %v4127
      %v4191 = vadd.f32 %v4190, %v4128
      %v4192 = vadd.f32 %v4191, %v4129
      %v4193 = vadd.f32 %v4192, %v4130
      %v4194 = vadd.f32 %v4193, %v4131
      %v4195 = vadd.f32 %v4194, %v4132
      %v4196 = vadd.f32 %v4195, %v4133
      %v4197 = vadd.f32 %v4196, %v4134
      %v4198 = vadd.f32 %v4197, %v4135
      %v4199 = vadd.f32 %v4198, %v4136
      %v4200 = vadd.f32 %v4199, %v4137
      %v4201 = vadd.f32 %v4200, %v4138
      %v4202 = vadd.f32 %v4201, %v4139
      %v4203 = vadd.f32 %v4202, %v4140
      %v4204 = vadd.f32 %v4203, %v4141
      %v4205 = vadd.f32 %v4204, %v4142
      %v4206 = vadd.f32 %v4205, %v4143
      %v4207 = vadd.f32 %v4206, %v4144
      %v4208 = vadd.f32 %v4207, %v4145
      %v4209 = vadd.f32 %v4208, %v4146
      %v4210 = vadd.f32 %v4209, %v4147
      %v4211 = vadd.f32 %v4210, %v4148
      %v4212 = vadd.f32 %v4211, %v4149
      %v4213 = vadd.f32 %v4212, %v4150
      %v4214 = vadd.f32 %v4213, %v4151
      %v4215 = vadd.f32 %v4214, %v4152
      %v4216 = vrot.slane %v4215, 4
      %v4217 = vadd.f32 %v4215, %v4216
      %v4218 = vrot.slane %v4217, 2
      %v4219 = vadd.f32 %v4217, %v4218
      %v4220 = vrot.slane %v4219, 1
      %v4221 = vadd.f32 %v4219, %v4220
      %v4222 = vmul.f32 %v4121, %v4121
      %v4223 = vmul.f32 %v4122, %v4122
      %v4224 = vmul.f32 %v4123, %v4123
      %v4225 = vmul.f32 %v4124, %v4124
      %v4226 = vmul.f32 %v4125, %v4125
      %v4227 = vmul.f32 %v4126, %v4126
      %v4228 = vmul.f32 %v4127, %v4127
      %v4229 = vmul.f32 %v4128, %v4128
      %v4230 = vmul.f32 %v4129, %v4129
      %v4231 = vmul.f32 %v4130, %v4130
      %v4232 = vmul.f32 %v4131, %v4131
      %v4233 = vmul.f32 %v4132, %v4132
      %v4234 = vmul.f32 %v4133, %v4133
      %v4235 = vmul.f32 %v4134, %v4134
      %v4236 = vmul.f32 %v4135, %v4135
      %v4237 = vmul.f32 %v4136, %v4136
      %v4238 = vmul.f32 %v4137, %v4137
      %v4239 = vmul.f32 %v4138, %v4138
      %v4240 = vmul.f32 %v4139, %v4139
      %v4241 = vmul.f32 %v4140, %v4140
      %v4242 = vmul.f32 %v4141, %v4141
      %v4243 = vmul.f32 %v4142, %v4142
      %v4244 = vmul.f32 %v4143, %v4143
      %v4245 = vmul.f32 %v4144, %v4144
      %v4246 = vmul.f32 %v4145, %v4145
      %v4247 = vmul.f32 %v4146, %v4146
      %v4248 = vmul.f32 %v4147, %v4147
      %v4249 = vmul.f32 %v4148, %v4148
      %v4250 = vmul.f32 %v4149, %v4149
      %v4251 = vmul.f32 %v4150, %v4150
      %v4252 = vmul.f32 %v4151, %v4151
      %v4253 = vmul.f32 %v4152, %v4152
      %v4254 = vadd.f32 %v4222, %v4223
      %v4255 = vadd.f32 %v4254, %v4224
      %v4256 = vadd.f32 %v4255, %v4225
      %v4257 = vadd.f32 %v4256, %v4226
      %v4258 = vadd.f32 %v4257, %v4227
      %v4259 = vadd.f32 %v4258, %v4228
      %v4260 = vadd.f32 %v4259, %v4229
      %v4261 = vadd.f32 %v4260, %v4230
      %v4262 = vadd.f32 %v4261, %v4231
      %v4263 = vadd.f32 %v4262, %v4232
      %v4264 = vadd.f32 %v4263, %v4233
      %v4265 = vadd.f32 %v4264, %v4234
      %v4266 = vadd.f32 %v4265, %v4235
      %v4267 = vadd.f32 %v4266, %v4236
      %v4268 = vadd.f32 %v4267, %v4237
      %v4269 = vadd.f32 %v4268, %v4238
      %v4270 = vadd.f32 %v4269, %v4239
      %v4271 = vadd.f32 %v4270, %v4240
      %v4272 = vadd.f32 %v4271, %v4241
      %v4273 = vadd.f32 %v4272, %v4242
      %v4274 = vadd.f32 %v4273, %v4243
      %v4275 = vadd.f32 %v4274, %v4244
      %v4276 = vadd.f32 %v4275, %v4245
      %v4277 = vadd.f32 %v4276, %v4246
      %v4278 = vadd.f32 %v4277, %v4247
      %v4279 = vadd.f32 %v4278, %v4248
      %v4280 = vadd.f32 %v4279, %v4249
      %v4281 = vadd.f32 %v4280, %v4250
      %v4282 = vadd.f32 %v4281, %v4251
      %v4283 = vadd.f32 %v4282, %v4252
      %v4284 = vadd.f32 %v4283, %v4253
      %v4285 = vrot.slane %v4284, 4
      %v4286 = vadd.f32 %v4284, %v4285
      %v4287 = vrot.slane %v4286, 2
      %v4288 = vadd.f32 %v4286, %v4287
      %v4289 = vrot.slane %v4288, 1
      %v4290 = vadd.f32 %v4288, %v4289
      %v4291 = vsel %vm2083, %v4221, %v4290
      %4292 = vst [vmem:[%s709] sm:$0x3] %v4291
      %s4293 = smul.u32 16, %s27
      %p4294 = scmp.lt.s32.totalorder %s26, 1
      %s4295 = scalar_select %p4294, %s26, 1
      %p4296 = scmp.lt.s32.totalorder %s4293, 15
      %s4297 = scalar_select %p4296, %s4293, 15
      %s4298 = smul.addr %s4297, 2
      %s4299 = smul.addr %s4295, 32
      %s4300 = sadd.s32 %s4298, %s4299
      %s4301 = smul.addr %s4300, 8
      %s4302 = scalar_lea.vmem %s9, %s4301
      %p4303 = scmp.lt.s32.totalorder %s26, 1
      %s4304 = scalar_select %p4303, %s26, 1
      %p4305 = scmp.lt.s32.totalorder %s27, 0
      %s4306 = scalar_select %p4305, %s27, 0
      %s4307 = sadd.s32 %s4306, %s4304
      %s4308 = smul.addr %s4307, 2
      %s4309 = scalar_lea.vmem %s10, %s4308
      // Predicated region
      $region57: #{decoder_block_forward.5} parent=55 // pred_check
        %p4310 = pneg %p317
      $region58: #{decoder_block_forward.5} parent=55 // pred_check_branch
        %4312 = sbr.rel (%p4310) target = $region60
      $region59: #{decoder_block_forward.5} parent=55 // pred_region
        %s4313 = smul.u32 16, %s27
      $region60: #{decoder_block_forward.5} parent=55 // pred_fallthru
        _
      // Predicated region
      $region61: #{decoder_block_forward.5} parent=55 // pred_check
        %p4314 = pneg %p345
      $region62: #{decoder_block_forward.5} parent=55 // pred_check_branch
        %4316 = sbr.rel (%p4314) target = $region64
      $region63: #{decoder_block_forward.5} parent=55 // pred_region
        _
      $region64: #{decoder_block_forward.5} parent=55 // pred_fallthru
        _
    $region56: #{decoder_block_forward.5} parent=5 // pred_fallthru
      _
    %p4317 = scmp.le.s32.totalorder 2, %s17
    // Predicated region
    $region65: #{decoder_block_forward.5} parent=5 // pred_check
      %p4318 = pneg %p4317
    $region66: #{decoder_block_forward.5} parent=5 // pred_check_branch
      %4320 = sbr.rel (%p4318) target = $region68
    $region67: #{decoder_block_forward.5} parent=5 // pred_region
      %s4321 = ssub.s32 %s17, 2
      // Predicated region
      $region69: #{decoder_block_forward.5} parent=67 // pred_check
        %p4322 = pneg %p323
      $region70: #{decoder_block_forward.5} parent=67 // pred_check_branch
        %4324 = sbr.rel (%p4322) target = $region72
      $region71: #{decoder_block_forward.5} parent=67 // pred_region
        %s4325 = smul.u32 16, %s29
        %p4326 = scmp.lt.s32.totalorder %s28, 1
        %s4327 = scalar_select %p4326, %s28, 1
        %p4328 = scmp.lt.s32.totalorder %s4325, 15
        %s4329 = scalar_select %p4328, %s4325, 15
        %s4330 = smul.addr %s4329, 2
        %s4331 = smul.addr %s4327, 32
        %s4332 = sadd.s32 %s4330, %s4331
        %s4333 = smul.addr %s4332, 8
        %s4334 = scalar_lea.vmem %s9, %s4333
      $region72: #{decoder_block_forward.5} parent=67 // pred_fallthru
        _
      // Predicated region
      $region73: #{decoder_block_forward.5} parent=67 // pred_check
        %p4335 = pneg %p351
      $region74: #{decoder_block_forward.5} parent=67 // pred_check_branch
        %4337 = sbr.rel (%p4335) target = $region76
      $region75: #{decoder_block_forward.5} parent=67 // pred_region
        %p4338 = scmp.lt.s32.totalorder %s28, 1
        %s4339 = scalar_select %p4338, %s28, 1
        %p4340 = scmp.lt.s32.totalorder %s29, 0
        %s4341 = scalar_select %p4340, %s29, 0
        %s4342 = sadd.s32 %s4341, %s4339
        %s4343 = smul.addr %s4342, 2
        %s4344 = scalar_lea.vmem %s10, %s4343
      $region76: #{decoder_block_forward.5} parent=67 // pred_fallthru
        _
    $region68: #{decoder_block_forward.5} parent=5 // pred_fallthru
      _
  $region6: #{decoder_block_forward.5} parent=0 // loop_footer
    %s21 = sadd.s32 1, %s17
  $region7: #{decoder_block_forward.5} parent=0 // loop_footer_branch
    %16 = sbr.rel target = $region3
  $region8: #{decoder_block_forward.5} parent=0 // loop_exit
    _

// kernel: decoder_block_forward.6
$region0: #{decoder_block_forward.6}
  #allocation0 [shape = 'u32[]', space=smem, size = 0x4, offset = 0x4, fixed_abs, tag = 'smem constant byte address 0x4 - core index']
  #allocation1 [shape = 'u32[144,128]{1,0:T(1,128)}', space=vmem, size = 0x12000, scoped, tag = 'internal scratch']
  %s0 = inlined_call_operand.vmem [shape: f32[2,16,16,128], index: 0, kind: input, shape index: {}, may-alias: {0,1,2}]
  %s1 = inlined_call_operand.vmem [shape: f32[2,16,16,128], index: 1, kind: input, shape index: {}, may-alias: {0,1,2}]
  %s2 = inlined_call_operand.vmem [shape: f32[2,16,16,128], index: 2, kind: input, shape index: {}, may-alias: {0,1,2}]
  %s3 = inlined_call_operand.vmem [shape: f32[1,128], index: 3, kind: input, shape index: {}]
  %s4 = inlined_call_operand.vmem [shape: f32[1,128], index: 4, kind: input, shape index: {}]
  %s5 = inlined_call_operand.vmem [shape: bf16[384,384], index: 5, kind: input, shape index: {}]
  %s6 = inlined_call_operand.vmem [shape: f32[1,128], index: 6, kind: input, shape index: {}]
  %s7 = inlined_call_operand.vmem [shape: f32[2,16,16,128], index: 7, kind: output, shape index: {0}]
  %s8 = inlined_call_operand.vmem [shape: f32[2,1,2,128], index: 8, kind: output, shape index: {1}]
  %9 = xla_tuple %s7, %s8
  %s10 = sld [smem:[#allocation0]]
  $region69: #{decoder_block_forward.6} parent=0
    _
  %s12 = ssub.s32 1, %s10
  %s13 = scalar_select 0, %s12, %s10
  loop: start=0, step=1, limit=4
  $region2: #{decoder_block_forward.6} parent=0 // loop_pre_header
    _
  $region3: #{decoder_block_forward.6} parent=0 // loop_header
    %s15 = sphi 0, %s19
    %p16 = scmp.ge.s32.totalorder %s15, 4
    %s22 = sphi 0, %s34
    %s23 = sphi 0, %s30
    %s24 = sphi 0, %s22
    %s25 = sphi 0, %s23
    %s26 = sphi 0, %s24
    %s27 = sphi 0, %s25
    %s39 = sphi 0, %s41
    %s42 = sphi 0, %s39
    %s43 = sphi 0, %s42
    %s59 = sphi 0, %s43
    %s75 = sphi 0, %s77
    %s78 = sphi 0, %s75
    %s79 = sphi 0, %s78
    %s95 = sphi 0, %s79
    %s111 = sphi 0, %s113
    %s114 = sphi 0, %s111
    %s115 = sphi 0, %s114
    %s131 = sphi 0, %s115
    %s135 = sphi 0, %s135
    %s137 = sphi 0, %s135
    %s138 = sphi 0, %s137
    %s152 = sphi 0, %s138
    %s156 = sphi 0, %s156
    %s158 = sphi 0, %s156
    %s159 = sphi 0, %s158
    %s173 = sphi 0, %s159
    %s177 = sphi 0, %s177
    %s179 = sphi 0, %s177
    %s180 = sphi 0, %s179
    %s194 = sphi 0, %s180
    %s198 = sphi 0, %s198
    %s200 = sphi 0, %s198
    %s201 = sphi 0, %s200
    %s215 = sphi 0, %s201
    %s223 = sphi 0, %s225
    %s226 = sphi 0, %s223
    %s227 = sphi 0, %s226
    %s243 = sphi 0, %s227
    %s251 = sphi 0, %s253
    %s254 = sphi 0, %s251
    %s255 = sphi 0, %s254
    %s271 = sphi 0, %s255
  $region4: #{decoder_block_forward.6} parent=0 // loop_header_branch
    %18 = sbr.rel (%p16) target = $region8
  $region5: #{decoder_block_forward.6} parent=0 // loop_body
    %s20 = ssub.s32 %s15, 1
    %s21 = ssub.s32 %s15, 2
    %s28 = sadd.s32 1, %s23
    %p29 = scmp.ge.s32.totalorder %s28, 1
    %s30 = scalar_select %p29, 0, %s28
    %s31 = sadd.s32 1, %s22
    %s32 = scalar_select %p29, %s31, %s22
    %p33 = scmp.ge.s32.totalorder %s32, 2
    %s34 = scalar_select %p33, 0, %s32
    %s35 = ssub.s32 %s22, %s34
    %s36 = ssub.s32 %s23, %s30
    %s37 = sor.u32 %s35, %s36
    %p38 = scmp.eq.s32.totalorder %s37, 0
    %s40 = sadd.s32 %s39, 1
    %s41 = scalar_select %p38, %s39, %s40
    %p44 = pneg %p38
    %p45 = scmp.eq.s32.totalorder %s15, 1
    %p46 = por %p44, %p45
    %p47 = scmp.ne.s32.totalorder %s39, %s42
    %p48 = scmp.eq.s32.totalorder %s15, 0
    %p49 = por %p47, %p48
    %p50 = scmp.ne.s32.totalorder %s39, %s42
    %p51 = scmp.eq.s32.totalorder %s20, 1
    %p52 = por %p50, %p51
    %p53 = scmp.ne.s32.totalorder %s42, %s43
    %p54 = scmp.eq.s32.totalorder %s20, 0
    %p55 = por %p53, %p54
    %p56 = scmp.ne.s32.totalorder %s42, %s43
    %p57 = scmp.eq.s32.totalorder %s21, 1
    %p58 = por %p56, %p57
    %p60 = scmp.ne.s32.totalorder %s43, %s59
    %p61 = scmp.eq.s32.totalorder %s21, 0
    %p62 = por %p60, %p61
    %s63 = smul.u32 %s23, 16
    %s64 = ssub.s32 %s63, 1
    %p65 = scmp.gt.s32.totalorder %s64, 0
    %s66 = scalar_select %p65, %s64, 0
    %s67 = smul.u32 %s30, 16
    %s68 = ssub.s32 %s67, 1
    %p69 = scmp.gt.s32.totalorder %s68, 0
    %s70 = scalar_select %p69, %s68, 0
    %s71 = ssub.s32 %s22, %s34
    %s72 = ssub.s32 %s66, %s70
    %s73 = sor.u32 %s71, %s72
    %p74 = scmp.eq.s32.totalorder %s73, 0
    %s76 = sadd.s32 %s75, 1
    %s77 = scalar_select %p74, %s75, %s76
    %p80 = pneg %p74
    %p81 = scmp.eq.s32.totalorder %s15, 1
    %p82 = por %p80, %p81
    %p83 = scmp.ne.s32.totalorder %s75, %s78
    %p84 = scmp.eq.s32.totalorder %s15, 0
    %p85 = por %p83, %p84
    %p86 = scmp.ne.s32.totalorder %s75, %s78
    %p87 = scmp.eq.s32.totalorder %s20, 1
    %p88 = por %p86, %p87
    %p89 = scmp.ne.s32.totalorder %s78, %s79
    %p90 = scmp.eq.s32.totalorder %s20, 0
    %p91 = por %p89, %p90
    %p92 = scmp.ne.s32.totalorder %s78, %s79
    %p93 = scmp.eq.s32.totalorder %s21, 1
    %p94 = por %p92, %p93
    %p96 = scmp.ne.s32.totalorder %s79, %s95
    %p97 = scmp.eq.s32.totalorder %s21, 0
    %p98 = por %p96, %p97
    %s99 = smul.u32 %s23, 16
    %s100 = sadd.s32 %s99, 16
    %p101 = scmp.lt.s32.totalorder %s100, 15
    %s102 = scalar_select %p101, %s100, 15
    %s103 = smul.u32 %s30, 16
    %s104 = sadd.s32 %s103, 16
    %p105 = scmp.lt.s32.totalorder %s104, 15
    %s106 = scalar_select %p105, %s104, 15
    %s107 = ssub.s32 %s22, %s34
    %s108 = ssub.s32 %s102, %s106
    %s109 = sor.u32 %s107, %s108
    %p110 = scmp.eq.s32.totalorder %s109, 0
    %s112 = sadd.s32 %s111, 1
    %s113 = scalar_select %p110, %s111, %s112
    %p116 = pneg %p110
    %p117 = scmp.eq.s32.totalorder %s15, 1
    %p118 = por %p116, %p117
    %p119 = scmp.ne.s32.totalorder %s111, %s114
    %p120 = scmp.eq.s32.totalorder %s15, 0
    %p121 = por %p119, %p120
    %p122 = scmp.ne.s32.totalorder %s111, %s114
    %p123 = scmp.eq.s32.totalorder %s20, 1
    %p124 = por %p122, %p123
    %p125 = scmp.ne.s32.totalorder %s114, %s115
    %p126 = scmp.eq.s32.totalorder %s20, 0
    %p127 = por %p125, %p126
    %p128 = scmp.ne.s32.totalorder %s114, %s115
    %p129 = scmp.eq.s32.totalorder %s21, 1
    %p130 = por %p128, %p129
    %p132 = scmp.ne.s32.totalorder %s115, %s131
    %p133 = scmp.eq.s32.totalorder %s21, 0
    %p134 = por %p132, %p133
    %s136 = sadd.s32 %s135, 1
    %p139 = scmp.eq.s32.totalorder %s15, 1
    %p140 = scmp.ne.s32.totalorder %s135, %s137
    %p141 = scmp.eq.s32.totalorder %s15, 0
    %p142 = por %p140, %p141
    %p143 = scmp.ne.s32.totalorder %s135, %s137
    %p144 = scmp.eq.s32.totalorder %s20, 1
    %p145 = por %p143, %p144
    %p146 = scmp.ne.s32.totalorder %s137, %s138
    %p147 = scmp.eq.s32.totalorder %s20, 0
    %p148 = por %p146, %p147
    %p149 = scmp.ne.s32.totalorder %s137, %s138
    %p150 = scmp.eq.s32.totalorder %s21, 1
    %p151 = por %p149, %p150
    %p153 = scmp.ne.s32.totalorder %s138, %s152
    %p154 = scmp.eq.s32.totalorder %s21, 0
    %p155 = por %p153, %p154
    %s157 = sadd.s32 %s156, 1
    %p160 = scmp.eq.s32.totalorder %s15, 1
    %p161 = scmp.ne.s32.totalorder %s156, %s158
    %p162 = scmp.eq.s32.totalorder %s15, 0
    %p163 = por %p161, %p162
    %p164 = scmp.ne.s32.totalorder %s156, %s158
    %p165 = scmp.eq.s32.totalorder %s20, 1
    %p166 = por %p164, %p165
    %p167 = scmp.ne.s32.totalorder %s158, %s159
    %p168 = scmp.eq.s32.totalorder %s20, 0
    %p169 = por %p167, %p168
    %p170 = scmp.ne.s32.totalorder %s158, %s159
    %p171 = scmp.eq.s32.totalorder %s21, 1
    %p172 = por %p170, %p171
    %p174 = scmp.ne.s32.totalorder %s159, %s173
    %p175 = scmp.eq.s32.totalorder %s21, 0
    %p176 = por %p174, %p175
    %s178 = sadd.s32 %s177, 1
    %p181 = scmp.eq.s32.totalorder %s15, 1
    %p182 = scmp.ne.s32.totalorder %s177, %s179
    %p183 = scmp.eq.s32.totalorder %s15, 0
    %p184 = por %p182, %p183
    %p185 = scmp.ne.s32.totalorder %s177, %s179
    %p186 = scmp.eq.s32.totalorder %s20, 1
    %p187 = por %p185, %p186
    %p188 = scmp.ne.s32.totalorder %s179, %s180
    %p189 = scmp.eq.s32.totalorder %s20, 0
    %p190 = por %p188, %p189
    %p191 = scmp.ne.s32.totalorder %s179, %s180
    %p192 = scmp.eq.s32.totalorder %s21, 1
    %p193 = por %p191, %p192
    %p195 = scmp.ne.s32.totalorder %s180, %s194
    %p196 = scmp.eq.s32.totalorder %s21, 0
    %p197 = por %p195, %p196
    %s199 = sadd.s32 %s198, 1
    %p202 = scmp.eq.s32.totalorder %s15, 1
    %p203 = scmp.ne.s32.totalorder %s198, %s200
    %p204 = scmp.eq.s32.totalorder %s15, 0
    %p205 = por %p203, %p204
    %p206 = scmp.ne.s32.totalorder %s198, %s200
    %p207 = scmp.eq.s32.totalorder %s20, 1
    %p208 = por %p206, %p207
    %p209 = scmp.ne.s32.totalorder %s200, %s201
    %p210 = scmp.eq.s32.totalorder %s20, 0
    %p211 = por %p209, %p210
    %p212 = scmp.ne.s32.totalorder %s200, %s201
    %p213 = scmp.eq.s32.totalorder %s21, 1
    %p214 = por %p212, %p213
    %p216 = scmp.ne.s32.totalorder %s201, %s215
    %p217 = scmp.eq.s32.totalorder %s21, 0
    %p218 = por %p216, %p217
    %s219 = ssub.s32 %s22, %s34
    %s220 = ssub.s32 %s23, %s30
    %s221 = sor.u32 %s219, %s220
    %p222 = scmp.eq.s32.totalorder %s221, 0
    %s224 = sadd.s32 %s223, 1
    %s225 = scalar_select %p222, %s223, %s224
    %p228 = pneg %p222
    %p229 = scmp.eq.s32.totalorder %s15, 1
    %p230 = por %p228, %p229
    %p231 = scmp.ne.s32.totalorder %s223, %s226
    %p232 = scmp.eq.s32.totalorder %s15, 0
    %p233 = por %p231, %p232
    %p234 = scmp.ne.s32.totalorder %s223, %s226
    %p235 = scmp.eq.s32.totalorder %s20, 1
    %p236 = por %p234, %p235
    %p237 = scmp.ne.s32.totalorder %s226, %s227
    %p238 = scmp.eq.s32.totalorder %s20, 0
    %p239 = por %p237, %p238
    %p240 = scmp.ne.s32.totalorder %s226, %s227
    %p241 = scmp.eq.s32.totalorder %s21, 1
    %p242 = por %p240, %p241
    %p244 = scmp.ne.s32.totalorder %s227, %s243
    %p245 = scmp.eq.s32.totalorder %s21, 0
    %p246 = por %p244, %p245
    %s247 = ssub.s32 %s22, %s34
    %s248 = ssub.s32 %s23, %s30
    %s249 = sor.u32 %s247, %s248
    %p250 = scmp.eq.s32.totalorder %s249, 0
    %s252 = sadd.s32 %s251, 1
    %s253 = scalar_select %p250, %s251, %s252
    %p256 = pneg %p250
    %p257 = scmp.eq.s32.totalorder %s15, 1
    %p258 = por %p256, %p257
    %p259 = scmp.ne.s32.totalorder %s251, %s254
    %p260 = scmp.eq.s32.totalorder %s15, 0
    %p261 = por %p259, %p260
    %p262 = scmp.ne.s32.totalorder %s251, %s254
    %p263 = scmp.eq.s32.totalorder %s20, 1
    %p264 = por %p262, %p263
    %p265 = scmp.ne.s32.totalorder %s254, %s255
    %p266 = scmp.eq.s32.totalorder %s20, 0
    %p267 = por %p265, %p266
    %p268 = scmp.ne.s32.totalorder %s254, %s255
    %p269 = scmp.eq.s32.totalorder %s21, 1
    %p270 = por %p268, %p269
    %p272 = scmp.ne.s32.totalorder %s255, %s271
    %p273 = scmp.eq.s32.totalorder %s21, 0
    %p274 = por %p272, %p273
    %p275 = scmp.le.s32.totalorder 1, %s15
    %p276 = scmp.lt.s32.totalorder %s15, 3
    %p277 = pnand %p275, %p276
    %p278 = pneg %p277
    // Predicated region
    $region9: #{decoder_block_forward.6} parent=5 // pred_check
      _
    $region10: #{decoder_block_forward.6} parent=5 // pred_check_branch
      %280 = sbr.rel (%p277) target = $region12
    $region11: #{decoder_block_forward.6} parent=5 // pred_region
      %s281 = ssub.s32 %s15, 1
      // Predicated region
      $region13: #{decoder_block_forward.6} parent=11 // pred_check
        %p282 = pneg %p148
      $region14: #{decoder_block_forward.6} parent=11 // pred_check_branch
        %284 = sbr.rel (%p282) target = $region16
      $region15: #{decoder_block_forward.6} parent=11 // pred_region
        _
      $region16: #{decoder_block_forward.6} parent=11 // pred_fallthru
        _
      // Predicated region
      $region17: #{decoder_block_forward.6} parent=11 // pred_check
        %p285 = pneg %p169
      $region18: #{decoder_block_forward.6} parent=11 // pred_check_branch
        %287 = sbr.rel (%p285) target = $region20
      $region19: #{decoder_block_forward.6} parent=11 // pred_region
        _
      $region20: #{decoder_block_forward.6} parent=11 // pred_fallthru
        _
      // Predicated region
      $region21: #{decoder_block_forward.6} parent=11 // pred_check
        %p288 = pneg %p190
      $region22: #{decoder_block_forward.6} parent=11 // pred_check_branch
        %290 = sbr.rel (%p288) target = $region24
      $region23: #{decoder_block_forward.6} parent=11 // pred_region
        _
      $region24: #{decoder_block_forward.6} parent=11 // pred_fallthru
        _
      // Predicated region
      $region25: #{decoder_block_forward.6} parent=11 // pred_check
        %p291 = pneg %p211
      $region26: #{decoder_block_forward.6} parent=11 // pred_check_branch
        %293 = sbr.rel (%p291) target = $region28
      $region27: #{decoder_block_forward.6} parent=11 // pred_region
        _
      $region28: #{decoder_block_forward.6} parent=11 // pred_fallthru
        _
    $region12: #{decoder_block_forward.6} parent=5 // pred_fallthru
      _
    %p294 = scmp.lt.s32.totalorder %s15, 2
    // Predicated region
    $region29: #{decoder_block_forward.6} parent=5 // pred_check
      %p295 = pneg %p294
    $region30: #{decoder_block_forward.6} parent=5 // pred_check_branch
      %297 = sbr.rel (%p295) target = $region32
    $region31: #{decoder_block_forward.6} parent=5 // pred_region
      // Predicated region
      $region33: #{decoder_block_forward.6} parent=31 // pred_check
        %p298 = pneg %p49
      $region34: #{decoder_block_forward.6} parent=31 // pred_check_branch
        %300 = sbr.rel (%p298) target = $region36
      $region35: #{decoder_block_forward.6} parent=31 // pred_region
        %s301 = smul.u32 16, %s23
        %p302 = scmp.lt.s32.totalorder %s22, 1
        %s303 = scalar_select %p302, %s22, 1
        %p304 = scmp.lt.s32.totalorder %s301, 15
        %s305 = scalar_select %p304, %s301, 15
        %s306 = smul.addr %s305, 2
        %s307 = smul.addr %s303, 32
        %s308 = sadd.s32 %s306, %s307
        %s309 = smul.addr %s308, 8
        %s310 = scalar_lea.vmem %s0, %s309
        %s311 = smul.u32 16, %s23
      $region36: #{decoder_block_forward.6} parent=31 // pred_fallthru
        _
      // Predicated region
      $region37: #{decoder_block_forward.6} parent=31 // pred_check
        %p312 = pneg %p85
      $region38: #{decoder_block_forward.6} parent=31 // pred_check_branch
        %314 = sbr.rel (%p312) target = $region40
      $region39: #{decoder_block_forward.6} parent=31 // pred_region
        %s315 = smul.u32 %s23, 16
        %s316 = ssub.s32 %s315, 1
        %p317 = scmp.gt.s32.totalorder %s316, 0
        %s318 = scalar_select %p317, %s316, 0
        %p319 = scmp.lt.s32.totalorder %s22, 1
        %s320 = scalar_select %p319, %s22, 1
        %p321 = scmp.lt.s32.totalorder %s318, 15
        %s322 = scalar_select %p321, %s318, 15
        %s323 = smul.addr %s322, 2
        %s324 = smul.addr %s320, 32
        %s325 = sadd.s32 %s323, %s324
        %s326 = smul.addr %s325, 8
        %s327 = scalar_lea.vmem %s1, %s326
        %s328 = smul.u32 %s23, 16
        %s329 = ssub.s32 %s328, 1
        %p330 = scmp.gt.s32.totalorder %s329, 0
        %s331 = scalar_select %p330, %s329, 0
      $region40: #{decoder_block_forward.6} parent=31 // pred_fallthru
        _
      // Predicated region
      $region41: #{decoder_block_forward.6} parent=31 // pred_check
        %p332 = pneg %p121
      $region42: #{decoder_block_forward.6} parent=31 // pred_check_branch
        %334 = sbr.rel (%p332) target = $region44
      $region43: #{decoder_block_forward.6} parent=31 // pred_region
        %s335 = smul.u32 %s23, 16
        %s336 = sadd.s32 %s335, 16
        %p337 = scmp.lt.s32.totalorder %s336, 15
        %s338 = scalar_select %p337, %s336, 15
        %p339 = scmp.lt.s32.totalorder %s22, 1
        %s340 = scalar_select %p339, %s22, 1
        %p341 = scmp.lt.s32.totalorder %s338, 15
        %s342 = scalar_select %p341, %s338, 15
        %s343 = smul.addr %s342, 2
        %s344 = smul.addr %s340, 32
        %s345 = sadd.s32 %s343, %s344
        %s346 = smul.addr %s345, 8
        %s347 = scalar_lea.vmem %s2, %s346
        %s348 = smul.u32 %s23, 16
        %s349 = sadd.s32 %s348, 16
        %p350 = scmp.lt.s32.totalorder %s349, 15
        %s351 = scalar_select %p350, %s349, 15
      $region44: #{decoder_block_forward.6} parent=31 // pred_fallthru
        _
    $region32: #{decoder_block_forward.6} parent=5 // pred_fallthru
      _
    %p352 = scmp.le.s32.totalorder 1, %s15
    %p353 = scmp.lt.s32.totalorder %s15, 3
    %p354 = pnand %p352, %p353
    %p355 = pneg %p354
    // Predicated region
    $region45: #{decoder_block_forward.6} parent=5 // pred_check
      _
    $region46: #{decoder_block_forward.6} parent=5 // pred_check_branch
      %357 = sbr.rel (%p354) target = $region48
    $region47: #{decoder_block_forward.6} parent=5 // pred_region
      %s358 = ssub.s32 %s15, 1
      %s359 = smul.u32 16, %s25
      %p360 = scmp.lt.s32.totalorder %s24, 1
      %s361 = scalar_select %p360, %s24, 1
      %p362 = scmp.lt.s32.totalorder %s359, 15
      %s363 = scalar_select %p362, %s359, 15
      %s364 = smul.addr %s363, 2
      %s365 = smul.addr %s361, 32
      %s366 = sadd.s32 %s364, %s365
      %s367 = smul.addr %s366, 8
      %s368 = scalar_lea.vmem %s0, %s367
      %p369 = pneg %p55
      %p370 = pneg %p52
      %s371 = smul.u32 %s25, 16
      %s372 = ssub.s32 %s371, 1
      %p373 = scmp.gt.s32.totalorder %s372, 0
      %s374 = scalar_select %p373, %s372, 0
      %p375 = scmp.lt.s32.totalorder %s24, 1
      %s376 = scalar_select %p375, %s24, 1
      %p377 = scmp.lt.s32.totalorder %s374, 15
      %s378 = scalar_select %p377, %s374, 15
      %s379 = smul.addr %s378, 2
      %s380 = smul.addr %s376, 32
      %s381 = sadd.s32 %s379, %s380
      %s382 = smul.addr %s381, 8
      %s383 = scalar_lea.vmem %s1, %s382
      %p384 = pneg %p91
      %p385 = pneg %p88
      %s386 = smul.u32 %s25, 16
      %s387 = sadd.s32 %s386, 16
      %p388 = scmp.lt.s32.totalorder %s387, 15
      %s389 = scalar_select %p388, %s387, 15
      %p390 = scmp.lt.s32.totalorder %s24, 1
      %s391 = scalar_select %p390, %s24, 1
      %p392 = scmp.lt.s32.totalorder %s389, 15
      %s393 = scalar_select %p392, %s389, 15
      %s394 = smul.addr %s393, 2
      %s395 = smul.addr %s391, 32
      %s396 = sadd.s32 %s394, %s395
      %s397 = smul.addr %s396, 8
      %s398 = scalar_lea.vmem %s2, %s397
      %p399 = pneg %p127
      %p400 = pneg %p124
      %p401 = pneg %p148
      %p402 = pneg %p145
      %p403 = pneg %p169
      %p404 = pneg %p166
      %p405 = pneg %p190
      %p406 = pneg %p187
      %p407 = pneg %p211
      %p408 = pneg %p208
      %p409 = pneg %p239
      %p410 = pneg %p236
      %s411 = smul.u32 16, %s25
      %p412 = scmp.lt.s32.totalorder %s24, 1
      %s413 = scalar_select %p412, %s24, 1
      %p414 = scmp.lt.s32.totalorder %s411, 15
      %s415 = scalar_select %p414, %s411, 15
      %s416 = smul.addr %s415, 2
      %s417 = smul.addr %s413, 32
      %s418 = sadd.s32 %s416, %s417
      %s419 = smul.addr %s418, 8
      %s420 = scalar_lea.vmem %s7, %s419
      %p421 = pneg %p267
      %p422 = pneg %p264
      %p423 = scmp.lt.s32.totalorder %s24, 1
      %s424 = scalar_select %p423, %s24, 1
      %p425 = scmp.lt.s32.totalorder %s25, 0
      %s426 = scalar_select %p425, %s25, 0
      %s427 = sadd.s32 %s426, %s424
      %s428 = smul.addr %s427, 2
      %s429 = scalar_lea.vmem %s8, %s428
      %s430 = smul.u32 16, %s25
      %p431 = scmp.lt.s32.totalorder %s24, 1
      %s432 = scalar_select %p431, %s24, 1
      %p433 = scmp.lt.s32.totalorder %s430, 15
      %s434 = scalar_select %p433, %s430, 15
      %s435 = smul.addr %s434, 2
      %s436 = smul.addr %s432, 32
      %s437 = sadd.s32 %s435, %s436
      %s438 = smul.addr %s437, 8
      %s439 = scalar_lea.vmem %s0, %s438
      %s440 = smul.u32 16, %s25
      %s441 = smul.u32 %s25, 16
      %s442 = ssub.s32 %s441, 1
      %p443 = scmp.gt.s32.totalorder %s442, 0
      %s444 = scalar_select %p443, %s442, 0
      %p445 = scmp.lt.s32.totalorder %s24, 1
      %s446 = scalar_select %p445, %s24, 1
      %p447 = scmp.lt.s32.totalorder %s444, 15
      %s448 = scalar_select %p447, %s444, 15
      %s449 = smul.addr %s448, 2
      %s450 = smul.addr %s446, 32
      %s451 = sadd.s32 %s449, %s450
      %s452 = smul.addr %s451, 8
      %s453 = scalar_lea.vmem %s1, %s452
      %s454 = smul.u32 %s25, 16
      %s455 = ssub.s32 %s454, 1
      %p456 = scmp.gt.s32.totalorder %s455, 0
      %s457 = scalar_select %p456, %s455, 0
      %s458 = smul.u32 %s25, 16
      %s459 = sadd.s32 %s458, 16
      %p460 = scmp.lt.s32.totalorder %s459, 15
      %s461 = scalar_select %p460, %s459, 15
      %p462 = scmp.lt.s32.totalorder %s24, 1
      %s463 = scalar_select %p462, %s24, 1
      %p464 = scmp.lt.s32.totalorder %s461, 15
      %s465 = scalar_select %p464, %s461, 15
      %s466 = smul.addr %s465, 2
      %s467 = smul.addr %s463, 32
      %s468 = sadd.s32 %s466, %s467
      %s469 = smul.addr %s468, 8
      %s470 = scalar_lea.vmem %s2, %s469
      %s471 = smul.u32 %s25, 16
      %s472 = sadd.s32 %s471, 16
      %p473 = scmp.lt.s32.totalorder %s472, 15
      %s474 = scalar_select %p473, %s472, 15
      %s475 = smul.u32 16, %s25
      %p476 = scmp.lt.s32.totalorder %s24, 1
      %s477 = scalar_select %p476, %s24, 1
      %p478 = scmp.lt.s32.totalorder %s475, 15
      %s479 = scalar_select %p478, %s475, 15
      %s480 = smul.addr %s479, 2
      %s481 = smul.addr %s477, 32
      %s482 = sadd.s32 %s480, %s481
      %s483 = smul.addr %s482, 8
      %s484 = scalar_lea.vmem %s7, %s483
      %s485 = smul.u32 16, %s25
      %p486 = scmp.lt.s32.totalorder %s24, 1
      %s487 = scalar_select %p486, %s24, 1
      %p488 = scmp.lt.s32.totalorder %s25, 0
      %s489 = scalar_select %p488, %s25, 0
      %s490 = sadd.s32 %s489, %s487
      %s491 = smul.addr %s490, 2
      %s492 = scalar_lea.vmem %s8, %s491
      %v494 = vld [vmem:[%s3] sm:$0x1]
      %v495 = vld [vmem:[%s4] sm:$0x1]
      %p496 = scmp.eq.s32.totalorder %s25, 0
      %v497 = vld [vmem:[%s453] sm:$0xff]
      %v498 = vld [vmem:[%s453 + $0x8] sm:$0xff]
      %v500 = vlaneseq
      %v501 = vshrl.u32 %v500, 7
      %v502 = vsub.s32 0, %v501
      %v503 = vrot.slane %v494, %v502
      %v505 = vmul.f32 %v497, %v503
      %v506 = vmul.f32 %v498, %v503
      %v508 = vlaneseq
      %v509 = vshrl.u32 %v508, 7
      %v510 = vsub.s32 0, %v509
      %v511 = vrot.slane %v495, %v510
      %v513 = vadd.f32 %v505, %v511
      %v514 = vadd.f32 %v506, %v511
      %v515 = vmax.f32 %v513, 0.0
      %v516 = vmax.f32 %v514, 0.0
      %s517 = scalar_select %p496, 1, 0
      %v518 = vstv %s517
      %vm519 = vcmp.eq.s32.totalorder %v518, 1
      %v520 = vsel %vm519, 0.0, %v515
      %v521 = vsel %vm519, 0.0, %v516
      %v522 = vld [vmem:[%s470] sm:$0xff]
      %v523 = vld [vmem:[%s470 + $0x8] sm:$0xff]
      %v524 = vmul.f32 %v522, %v503
      %v525 = vmul.f32 %v523, %v503
      %v526 = vadd.f32 %v524, %v511
      %v527 = vadd.f32 %v525, %v511
      %v528 = vmax.f32 %v526, 0.0
      %v529 = vmax.f32 %v527, 0.0
      %v530 = vsel %vm519, 0.0, %v528
      %v531 = vsel %vm519, 0.0, %v529
      %v532 = vld [vmem:[%s439] sm:$0xff]
      %v533 = vld [vmem:[%s439 + $0x8] sm:$0xff]
      %v534 = vld [vmem:[%s439 + $0x10] sm:$0xff]
      %v535 = vld [vmem:[%s439 + $0x18] sm:$0xff]
      %v536 = vld [vmem:[%s439 + $0x20] sm:$0xff]
      %v537 = vld [vmem:[%s439 + $0x28] sm:$0xff]
      %v538 = vld [vmem:[%s439 + $0x30] sm:$0xff]
      %v539 = vld [vmem:[%s439 + $0x38] sm:$0xff]
      %v540 = vld [vmem:[%s439 + $0x40] sm:$0xff]
      %v541 = vld [vmem:[%s439 + $0x48] sm:$0xff]
      %v542 = vld [vmem:[%s439 + $0x50] sm:$0xff]
      %v543 = vld [vmem:[%s439 + $0x58] sm:$0xff]
      %v544 = vld [vmem:[%s439 + $0x60] sm:$0xff]
      %v545 = vld [vmem:[%s439 + $0x68] sm:$0xff]
      %v546 = vld [vmem:[%s439 + $0x70] sm:$0xff]
      %v547 = vld [vmem:[%s439 + $0x78] sm:$0xff]
      %v548 = vld [vmem:[%s439 + $0x80] sm:$0xff]
      %v549 = vld [vmem:[%s439 + $0x88] sm:$0xff]
      %v550 = vld [vmem:[%s439 + $0x90] sm:$0xff]
      %v551 = vld [vmem:[%s439 + $0x98] sm:$0xff]
      %v552 = vld [vmem:[%s439 + $0xa0] sm:$0xff]
      %v553 = vld [vmem:[%s439 + $0xa8] sm:$0xff]
      %v554 = vld [vmem:[%s439 + $0xb0] sm:$0xff]
      %v555 = vld [vmem:[%s439 + $0xb8] sm:$0xff]
      %v556 = vld [vmem:[%s439 + $0xc0] sm:$0xff]
      %v557 = vld [vmem:[%s439 + $0xc8] sm:$0xff]
      %v558 = vld [vmem:[%s439 + $0xd0] sm:$0xff]
      %v559 = vld [vmem:[%s439 + $0xd8] sm:$0xff]
      %v560 = vld [vmem:[%s439 + $0xe0] sm:$0xff]
      %v561 = vld [vmem:[%s439 + $0xe8] sm:$0xff]
      %v562 = vld [vmem:[%s439 + $0xf0] sm:$0xff]
      %v563 = vld [vmem:[%s439 + $0xf8] sm:$0xff]
      %v564 = vmul.f32 %v532, %v503
      %v565 = vmul.f32 %v533, %v503
      %v566 = vmul.f32 %v534, %v503
      %v567 = vmul.f32 %v535, %v503
      %v568 = vmul.f32 %v536, %v503
      %v569 = vmul.f32 %v537, %v503
      %v570 = vmul.f32 %v538, %v503
      %v571 = vmul.f32 %v539, %v503
      %v572 = vmul.f32 %v540, %v503
      %v573 = vmul.f32 %v541, %v503
      %v574 = vmul.f32 %v542, %v503
      %v575 = vmul.f32 %v543, %v503
      %v576 = vmul.f32 %v544, %v503
      %v577 = vmul.f32 %v545, %v503
      %v578 = vmul.f32 %v546, %v503
      %v579 = vmul.f32 %v547, %v503
      %v580 = vmul.f32 %v548, %v503
      %v581 = vmul.f32 %v549, %v503
      %v582 = vmul.f32 %v550, %v503
      %v583 = vmul.f32 %v551, %v503
      %v584 = vmul.f32 %v552, %v503
      %v585 = vmul.f32 %v553, %v503
      %v586 = vmul.f32 %v554, %v503
      %v587 = vmul.f32 %v555, %v503
      %v588 = vmul.f32 %v556, %v503
      %v589 = vmul.f32 %v557, %v503
      %v590 = vmul.f32 %v558, %v503
      %v591 = vmul.f32 %v559, %v503
      %v592 = vmul.f32 %v560, %v503
      %v593 = vmul.f32 %v561, %v503
      %v594 = vmul.f32 %v562, %v503
      %v595 = vmul.f32 %v563, %v503
      %v596 = vadd.f32 %v564, %v511
      %v597 = vadd.f32 %v565, %v511
      %v598 = vadd.f32 %v566, %v511
      %v599 = vadd.f32 %v567, %v511
      %v600 = vadd.f32 %v568, %v511
      %v601 = vadd.f32 %v569, %v511
      %v602 = vadd.f32 %v570, %v511
      %v603 = vadd.f32 %v571, %v511
      %v604 = vadd.f32 %v572, %v511
      %v605 = vadd.f32 %v573, %v511
      %v606 = vadd.f32 %v574, %v511
      %v607 = vadd.f32 %v575, %v511
      %v608 = vadd.f32 %v576, %v511
      %v609 = vadd.f32 %v577, %v511
      %v610 = vadd.f32 %v578, %v511
      %v611 = vadd.f32 %v579, %v511
      %v612 = vadd.f32 %v580, %v511
      %v613 = vadd.f32 %v581, %v511
      %v614 = vadd.f32 %v582, %v511
      %v615 = vadd.f32 %v583, %v511
      %v616 = vadd.f32 %v584, %v511
      %v617 = vadd.f32 %v585, %v511
      %v618 = vadd.f32 %v586, %v511
      %v619 = vadd.f32 %v587, %v511
      %v620 = vadd.f32 %v588, %v511
      %v621 = vadd.f32 %v589, %v511
      %v622 = vadd.f32 %v590, %v511
      %v623 = vadd.f32 %v591, %v511
      %v624 = vadd.f32 %v592, %v511
      %v625 = vadd.f32 %v593, %v511
      %v626 = vadd.f32 %v594, %v511
      %v627 = vadd.f32 %v595, %v511
      %v628 = vmax.f32 %v596, 0.0
      %v629 = vmax.f32 %v597, 0.0
      %v630 = vmax.f32 %v598, 0.0
      %v631 = vmax.f32 %v599, 0.0
      %v632 = vmax.f32 %v600, 0.0
      %v633 = vmax.f32 %v601, 0.0
      %v634 = vmax.f32 %v602, 0.0
      %v635 = vmax.f32 %v603, 0.0
      %v636 = vmax.f32 %v604, 0.0
      %v637 = vmax.f32 %v605, 0.0
      %v638 = vmax.f32 %v606, 0.0
      %v639 = vmax.f32 %v607, 0.0
      %v640 = vmax.f32 %v608, 0.0
      %v641 = vmax.f32 %v609, 0.0
      %v642 = vmax.f32 %v610, 0.0
      %v643 = vmax.f32 %v611, 0.0
      %v644 = vmax.f32 %v612, 0.0
      %v645 = vmax.f32 %v613, 0.0
      %v646 = vmax.f32 %v614, 0.0
      %v647 = vmax.f32 %v615, 0.0
      %v648 = vmax.f32 %v616, 0.0
      %v649 = vmax.f32 %v617, 0.0
      %v650 = vmax.f32 %v618, 0.0
      %v651 = vmax.f32 %v619, 0.0
      %v652 = vmax.f32 %v620, 0.0
      %v653 = vmax.f32 %v621, 0.0
      %v654 = vmax.f32 %v622, 0.0
      %v655 = vmax.f32 %v623, 0.0
      %v656 = vmax.f32 %v624, 0.0
      %v657 = vmax.f32 %v625, 0.0
      %v658 = vmax.f32 %v626, 0.0
      %v659 = vmax.f32 %v627, 0.0
      %v660 = vpack.c.bf16 %v521, %v520
      %v661 = vpack.c.bf16 %v629, %v628
      %v662 = vpack.c.bf16 %v631, %v630
      %v663 = vpack.c.bf16 %v633, %v632
      %v664 = vpack.c.bf16 %v635, %v634
      %v665 = vpack.c.bf16 %v637, %v636
      %v666 = vpack.c.bf16 %v639, %v638
      %v667 = vpack.c.bf16 %v641, %v640
      %v668 = vpack.c.bf16 %v643, %v642
      %v669 = vpack.c.bf16 %v645, %v644
      %v670 = vpack.c.bf16 %v647, %v646
      %v671 = vpack.c.bf16 %v649, %v648
      %v672 = vpack.c.bf16 %v651, %v650
      %v673 = vpack.c.bf16 %v653, %v652
      %v674 = vpack.c.bf16 %v655, %v654
      %v675 = vpack.c.bf16 %v657, %v656
      %v676 = vpack.c.bf16 %v659, %v658
      %v677 = vpack.c.bf16 %v531, %v530
      %v678 = vld [vmem:[%s5] sm:$0xff]
      %v679 = vld [vmem:[%s5 + $0x8] sm:$0xf]
      %v680 = vld [vmem:[%s5 + $0xc] sm:$0xff]
      %v681 = vld [vmem:[%s5 + $0x14] sm:$0xf]
      %v682 = vld [vmem:[%s5 + $0x18] sm:$0xff]
      %v683 = vld [vmem:[%s5 + $0x20] sm:$0xf]
      %v684 = vld [vmem:[%s5 + $0x24] sm:$0xff]
      %v685 = vld [vmem:[%s5 + $0x2c] sm:$0xf]
      %v686 = vld [vmem:[%s5 + $0x30] sm:$0xff]
      %v687 = vld [vmem:[%s5 + $0x38] sm:$0xf]
      %v688 = vld [vmem:[%s5 + $0x3c] sm:$0xff]
      %v689 = vld [vmem:[%s5 + $0x44] sm:$0xf]
      %v690 = vld [vmem:[%s5 + $0x48] sm:$0xff]
      %v691 = vld [vmem:[%s5 + $0x50] sm:$0xf]
      %v692 = vld [vmem:[%s5 + $0x54] sm:$0xff]
      %v693 = vld [vmem:[%s5 + $0x5c] sm:$0xf]
      %v694 = vld [vmem:[%s5 + $0x60] sm:$0xff]
      %v695 = vld [vmem:[%s5 + $0x68] sm:$0xf]
      %v696 = vld [vmem:[%s5 + $0x6c] sm:$0xff]
      %v697 = vld [vmem:[%s5 + $0x74] sm:$0xf]
      %v698 = vld [vmem:[%s5 + $0x78] sm:$0xff]
      %v699 = vld [vmem:[%s5 + $0x80] sm:$0xf]
      %v700 = vld [vmem:[%s5 + $0x84] sm:$0xff]
      %v701 = vld [vmem:[%s5 + $0x8c] sm:$0xf]
      %v702 = vld [vmem:[%s5 + $0x90] sm:$0xff]
      %v703 = vld [vmem:[%s5 + $0x98] sm:$0xf]
      %v704 = vld [vmem:[%s5 + $0x9c] sm:$0xff]
      %v705 = vld [vmem:[%s5 + $0xa4] sm:$0xf]
      %v706 = vld [vmem:[%s5 + $0xa8] sm:$0xff]
      %v707 = vld [vmem:[%s5 + $0xb0] sm:$0xf]
      %v708 = vld [vmem:[%s5 + $0xb4] sm:$0xff]
      %v709 = vld [vmem:[%s5 + $0xbc] sm:$0xf]
      %v710 = vld [vmem:[%s5 + $0xc0] sm:$0xff]
      %v711 = vld [vmem:[%s5 + $0xc8] sm:$0xf]
      %v712 = vld [vmem:[%s5 + $0xcc] sm:$0xff]
      %v713 = vld [vmem:[%s5 + $0xd4] sm:$0xf]
      %v714 = vld [vmem:[%s5 + $0xd8] sm:$0xff]
      %v715 = vld [vmem:[%s5 + $0xe0] sm:$0xf]
      %v716 = vld [vmem:[%s5 + $0xe4] sm:$0xff]
      %v717 = vld [vmem:[%s5 + $0xec] sm:$0xf]
      %v718 = vld [vmem:[%s5 + $0xf0] sm:$0xff]
      %v719 = vld [vmem:[%s5 + $0xf8] sm:$0xf]
      %v720 = vld [vmem:[%s5 + $0xfc] sm:$0xff]
      %v721 = vld [vmem:[%s5 + $0x104] sm:$0xf]
      %v722 = vld [vmem:[%s5 + $0x108] sm:$0xff]
      %v723 = vld [vmem:[%s5 + $0x110] sm:$0xf]
      %v724 = vld [vmem:[%s5 + $0x114] sm:$0xff]
      %v725 = vld [vmem:[%s5 + $0x11c] sm:$0xf]
      %v726 = vld [vmem:[%s5 + $0x120] sm:$0xff]
      %v727 = vld [vmem:[%s5 + $0x128] sm:$0xf]
      %v728 = vld [vmem:[%s5 + $0x12c] sm:$0xff]
      %v729 = vld [vmem:[%s5 + $0x134] sm:$0xf]
      %v730 = vld [vmem:[%s5 + $0x138] sm:$0xff]
      %v731 = vld [vmem:[%s5 + $0x140] sm:$0xf]
      %v732 = vld [vmem:[%s5 + $0x144] sm:$0xff]
      %v733 = vld [vmem:[%s5 + $0x14c] sm:$0xf]
      %v734 = vld [vmem:[%s5 + $0x150] sm:$0xff]
      %v735 = vld [vmem:[%s5 + $0x158] sm:$0xf]
      %v736 = vld [vmem:[%s5 + $0x15c] sm:$0xff]
      %v737 = vld [vmem:[%s5 + $0x164] sm:$0xf]
      %v738 = vld [vmem:[%s5 + $0x168] sm:$0xff]
      %v739 = vld [vmem:[%s5 + $0x170] sm:$0xf]
      %v740 = vld [vmem:[%s5 + $0x174] sm:$0xff]
      %v741 = vld [vmem:[%s5 + $0x17c] sm:$0xf]
      %v742 = vld [vmem:[%s5 + $0x180] sm:$0xff]
      %v743 = vld [vmem:[%s5 + $0x188] sm:$0xf]
      %v744 = vld [vmem:[%s5 + $0x18c] sm:$0xff]
      %v745 = vld [vmem:[%s5 + $0x194] sm:$0xf]
      %v746 = vld [vmem:[%s5 + $0x198] sm:$0xff]
      %v747 = vld [vmem:[%s5 + $0x1a0] sm:$0xf]
      %v748 = vld [vmem:[%s5 + $0x1a4] sm:$0xff]
      %v749 = vld [vmem:[%s5 + $0x1ac] sm:$0xf]
      %v750 = vld [vmem:[%s5 + $0x1b0] sm:$0xff]
      %v751 = vld [vmem:[%s5 + $0x1b8] sm:$0xf]
      %v752 = vld [vmem:[%s5 + $0x1bc] sm:$0xff]
      %v753 = vld [vmem:[%s5 + $0x1c4] sm:$0xf]
      %v754 = vld [vmem:[%s5 + $0x1c8] sm:$0xff]
      %v755 = vld [vmem:[%s5 + $0x1d0] sm:$0xf]
      %v756 = vld [vmem:[%s5 + $0x1d4] sm:$0xff]
      %v757 = vld [vmem:[%s5 + $0x1dc] sm:$0xf]
      %v758 = vld [vmem:[%s5 + $0x1e0] sm:$0xff]
      %v759 = vld [vmem:[%s5 + $0x1e8] sm:$0xf]
      %v760 = vld [vmem:[%s5 + $0x1ec] sm:$0xff]
      %v761 = vld [vmem:[%s5 + $0x1f4] sm:$0xf]
      %v762 = vld [vmem:[%s5 + $0x1f8] sm:$0xff]
      %v763 = vld [vmem:[%s5 + $0x200] sm:$0xf]
      %v764 = vld [vmem:[%s5 + $0x204] sm:$0xff]
      %v765 = vld [vmem:[%s5 + $0x20c] sm:$0xf]
      %v766 = vld [vmem:[%s5 + $0x210] sm:$0xff]
      %v767 = vld [vmem:[%s5 + $0x218] sm:$0xf]
      %v768 = vld [vmem:[%s5 + $0x21c] sm:$0xff]
      %v769 = vld [vmem:[%s5 + $0x224] sm:$0xf]
      %v770 = vld [vmem:[%s5 + $0x228] sm:$0xff]
      %v771 = vld [vmem:[%s5 + $0x230] sm:$0xf]
      %v772 = vld [vmem:[%s5 + $0x234] sm:$0xff]
      %v773 = vld [vmem:[%s5 + $0x23c] sm:$0xf]
      %v870 = vunpack.c.l.b16 %v678
      %v871 = vunpack.c.h.b16 %v678
      %v872 = vunpack.c.l.b16 %v679
      %v873 = vunpack.c.l.b16 %v680
      %v874 = vunpack.c.h.b16 %v680
      %v875 = vunpack.c.l.b16 %v681
      %v876 = vunpack.c.l.b16 %v682
      %v877 = vunpack.c.h.b16 %v682
      %v878 = vunpack.c.l.b16 %v683
      %v879 = vunpack.c.l.b16 %v684
      %v880 = vunpack.c.h.b16 %v684
      %v881 = vunpack.c.l.b16 %v685
      %v882 = vunpack.c.l.b16 %v686
      %v883 = vunpack.c.h.b16 %v686
      %v884 = vunpack.c.l.b16 %v687
      %v885 = vunpack.c.l.b16 %v688
      %v886 = vunpack.c.h.b16 %v688
      %v887 = vunpack.c.l.b16 %v689
      %v888 = vunpack.c.l.b16 %v690
      %v889 = vunpack.c.h.b16 %v690
      %v890 = vunpack.c.l.b16 %v691
      %v891 = vunpack.c.l.b16 %v692
      %v892 = vunpack.c.h.b16 %v692
      %v893 = vunpack.c.l.b16 %v693
      %v894 = vunpack.c.l.b16 %v694
      %v895 = vunpack.c.h.b16 %v694
      %v896 = vunpack.c.l.b16 %v695
      %v897 = vunpack.c.l.b16 %v696
      %v898 = vunpack.c.h.b16 %v696
      %v899 = vunpack.c.l.b16 %v697
      %v900 = vunpack.c.l.b16 %v698
      %v901 = vunpack.c.h.b16 %v698
      %v902 = vunpack.c.l.b16 %v699
      %v903 = vunpack.c.l.b16 %v700
      %v904 = vunpack.c.h.b16 %v700
      %v905 = vunpack.c.l.b16 %v701
      %v906 = vunpack.c.l.b16 %v702
      %v907 = vunpack.c.h.b16 %v702
      %v908 = vunpack.c.l.b16 %v703
      %v909 = vunpack.c.l.b16 %v704
      %v910 = vunpack.c.h.b16 %v704
      %v911 = vunpack.c.l.b16 %v705
      %v912 = vunpack.c.l.b16 %v706
      %v913 = vunpack.c.h.b16 %v706
      %v914 = vunpack.c.l.b16 %v707
      %v915 = vunpack.c.l.b16 %v708
      %v916 = vunpack.c.h.b16 %v708
      %v917 = vunpack.c.l.b16 %v709
      %v918 = vunpack.c.l.b16 %v710
      %v919 = vunpack.c.h.b16 %v710
      %v920 = vunpack.c.l.b16 %v711
      %v921 = vunpack.c.l.b16 %v712
      %v922 = vunpack.c.h.b16 %v712
      %v923 = vunpack.c.l.b16 %v713
      %v924 = vunpack.c.l.b16 %v714
      %v925 = vunpack.c.h.b16 %v714
      %v926 = vunpack.c.l.b16 %v715
      %v927 = vunpack.c.l.b16 %v716
      %v928 = vunpack.c.h.b16 %v716
      %v929 = vunpack.c.l.b16 %v717
      %v930 = vunpack.c.l.b16 %v718
      %v931 = vunpack.c.h.b16 %v718
      %v932 = vunpack.c.l.b16 %v719
      %v933 = vunpack.c.l.b16 %v720
      %v934 = vunpack.c.h.b16 %v720
      %v935 = vunpack.c.l.b16 %v721
      %v936 = vunpack.c.l.b16 %v722
      %v937 = vunpack.c.h.b16 %v722
      %v938 = vunpack.c.l.b16 %v723
      %v939 = vunpack.c.l.b16 %v724
      %v940 = vunpack.c.h.b16 %v724
      %v941 = vunpack.c.l.b16 %v725
      %v942 = vunpack.c.l.b16 %v726
      %v943 = vunpack.c.h.b16 %v726
      %v944 = vunpack.c.l.b16 %v727
      %v945 = vunpack.c.l.b16 %v728
      %v946 = vunpack.c.h.b16 %v728
      %v947 = vunpack.c.l.b16 %v729
      %v948 = vunpack.c.l.b16 %v730
      %v949 = vunpack.c.h.b16 %v730
      %v950 = vunpack.c.l.b16 %v731
      %v951 = vunpack.c.l.b16 %v732
      %v952 = vunpack.c.h.b16 %v732
      %v953 = vunpack.c.l.b16 %v733
      %v954 = vunpack.c.l.b16 %v734
      %v955 = vunpack.c.h.b16 %v734
      %v956 = vunpack.c.l.b16 %v735
      %v957 = vunpack.c.l.b16 %v736
      %v958 = vunpack.c.h.b16 %v736
      %v959 = vunpack.c.l.b16 %v737
      %v960 = vunpack.c.l.b16 %v738
      %v961 = vunpack.c.h.b16 %v738
      %v962 = vunpack.c.l.b16 %v739
      %v963 = vunpack.c.l.b16 %v740
      %v964 = vunpack.c.h.b16 %v740
      %v965 = vunpack.c.l.b16 %v741
      %v966 = vunpack.c.l.b16 %v742
      %v967 = vunpack.c.h.b16 %v742
      %v968 = vunpack.c.l.b16 %v743
      %v969 = vunpack.c.l.b16 %v744
      %v970 = vunpack.c.h.b16 %v744
      %v971 = vunpack.c.l.b16 %v745
      %v972 = vunpack.c.l.b16 %v746
      %v973 = vunpack.c.h.b16 %v746
      %v974 = vunpack.c.l.b16 %v747
      %v975 = vunpack.c.l.b16 %v748
      %v976 = vunpack.c.h.b16 %v748
      %v977 = vunpack.c.l.b16 %v749
      %v978 = vunpack.c.l.b16 %v750
      %v979 = vunpack.c.h.b16 %v750
      %v980 = vunpack.c.l.b16 %v751
      %v981 = vunpack.c.l.b16 %v752
      %v982 = vunpack.c.h.b16 %v752
      %v983 = vunpack.c.l.b16 %v753
      %v984 = vunpack.c.l.b16 %v754
      %v985 = vunpack.c.h.b16 %v754
      %v986 = vunpack.c.l.b16 %v755
      %v987 = vunpack.c.l.b16 %v756
      %v988 = vunpack.c.h.b16 %v756
      %v989 = vunpack.c.l.b16 %v757
      %v990 = vunpack.c.l.b16 %v758
      %v991 = vunpack.c.h.b16 %v758
      %v992 = vunpack.c.l.b16 %v759
      %v993 = vunpack.c.l.b16 %v760
      %v994 = vunpack.c.h.b16 %v760
      %v995 = vunpack.c.l.b16 %v761
      %v996 = vunpack.c.l.b16 %v762
      %v997 = vunpack.c.h.b16 %v762
      %v998 = vunpack.c.l.b16 %v763
      %v999 = vunpack.c.l.b16 %v764
      %v1000 = vunpack.c.h.b16 %v764
      %v1001 = vunpack.c.l.b16 %v765
      %v1002 = vunpack.c.l.b16 %v766
      %v1003 = vunpack.c.h.b16 %v766
      %v1004 = vunpack.c.l.b16 %v767
      %v1005 = vunpack.c.l.b16 %v768
      %v1006 = vunpack.c.h.b16 %v768
      %v1007 = vunpack.c.l.b16 %v769
      %v1008 = vunpack.c.l.b16 %v770
      %v1009 = vunpack.c.h.b16 %v770
      %v1010 = vunpack.c.l.b16 %v771
      %v1011 = vunpack.c.l.b16 %v772
      %v1012 = vunpack.c.h.b16 %v772
      %v1013 = vunpack.c.l.b16 %v773
      %v1014 = vpack.c.b16 %v873, %v870
      %v1015 = vpack.c.b16 %v874, %v871
      %v1016 = vpack.c.b16 %v875, %v872
      %v1017 = vpack.c.b16 %v879, %v876
      %v1018 = vpack.c.b16 %v880, %v877
      %v1019 = vpack.c.b16 %v881, %v878
      %v1020 = vpack.c.b16 %v885, %v882
      %v1021 = vpack.c.b16 %v886, %v883
      %v1022 = vpack.c.b16 %v887, %v884
      %v1023 = vpack.c.b16 %v891, %v888
      %v1024 = vpack.c.b16 %v892, %v889
      %v1025 = vpack.c.b16 %v893, %v890
      %v1026 = vpack.c.b16 %v897, %v894
      %v1027 = vpack.c.b16 %v898, %v895
      %v1028 = vpack.c.b16 %v899, %v896
      %v1029 = vpack.c.b16 %v903, %v900
      %v1030 = vpack.c.b16 %v904, %v901
      %v1031 = vpack.c.b16 %v905, %v902
      %v1032 = vpack.c.b16 %v909, %v906
      %v1033 = vpack.c.b16 %v910, %v907
      %v1034 = vpack.c.b16 %v911, %v908
      %v1035 = vpack.c.b16 %v915, %v912
      %v1036 = vpack.c.b16 %v916, %v913
      %v1037 = vpack.c.b16 %v917, %v914
      %v1038 = vpack.c.b16 %v921, %v918
      %v1039 = vpack.c.b16 %v922, %v919
      %v1040 = vpack.c.b16 %v923, %v920
      %v1041 = vpack.c.b16 %v927, %v924
      %v1042 = vpack.c.b16 %v928, %v925
      %v1043 = vpack.c.b16 %v929, %v926
      %v1044 = vpack.c.b16 %v933, %v930
      %v1045 = vpack.c.b16 %v934, %v931
      %v1046 = vpack.c.b16 %v935, %v932
      %v1047 = vpack.c.b16 %v939, %v936
      %v1048 = vpack.c.b16 %v940, %v937
      %v1049 = vpack.c.b16 %v941, %v938
      %v1050 = vpack.c.b16 %v945, %v942
      %v1051 = vpack.c.b16 %v946, %v943
      %v1052 = vpack.c.b16 %v947, %v944
      %v1053 = vpack.c.b16 %v951, %v948
      %v1054 = vpack.c.b16 %v952, %v949
      %v1055 = vpack.c.b16 %v953, %v950
      %v1056 = vpack.c.b16 %v957, %v954
      %v1057 = vpack.c.b16 %v958, %v955
      %v1058 = vpack.c.b16 %v959, %v956
      %v1059 = vpack.c.b16 %v963, %v960
      %v1060 = vpack.c.b16 %v964, %v961
      %v1061 = vpack.c.b16 %v965, %v962
      %v1062 = vpack.c.b16 %v969, %v966
      %v1063 = vpack.c.b16 %v970, %v967
      %v1064 = vpack.c.b16 %v971, %v968
      %v1065 = vpack.c.b16 %v975, %v972
      %v1066 = vpack.c.b16 %v976, %v973
      %v1067 = vpack.c.b16 %v977, %v974
      %v1068 = vpack.c.b16 %v981, %v978
      %v1069 = vpack.c.b16 %v982, %v979
      %v1070 = vpack.c.b16 %v983, %v980
      %v1071 = vpack.c.b16 %v987, %v984
      %v1072 = vpack.c.b16 %v988, %v985
      %v1073 = vpack.c.b16 %v989, %v986
      %v1074 = vpack.c.b16 %v993, %v990
      %v1075 = vpack.c.b16 %v994, %v991
      %v1076 = vpack.c.b16 %v995, %v992
      %v1077 = vpack.c.b16 %v999, %v996
      %v1078 = vpack.c.b16 %v1000, %v997
      %v1079 = vpack.c.b16 %v1001, %v998
      %v1080 = vpack.c.b16 %v1005, %v1002
      %v1081 = vpack.c.b16 %v1006, %v1003
      %v1082 = vpack.c.b16 %v1007, %v1004
      %v1083 = vpack.c.b16 %v1011, %v1008
      %v1084 = vpack.c.b16 %v1012, %v1009
      %v1085 = vpack.c.b16 %v1013, %v1010
      %1158 = vmatprep.subr.bf16.mxu0 %v1015
      %1159 = vmatpush1.bf16.msra.mxu0 %v1014
      %1160 = vmatprep.subr.bf16.mxu0 %v1018
      %1161 = vmatpush1.bf16.msra.mxu0 %v1017
      %1162 = vmatprep.subr.bf16.mxu0 %v1021
      %1163 = vmatpush1.bf16.msra.mxu0 %v1020
      %1164 = vmatprep.subr.bf16.mxu0 %v1024
      %1165 = vmatpush1.bf16.msra.mxu0 %v1023
      %1166 = vmatprep.subr.bf16.mxu0 %v1027
      %1167 = vmatpush1.bf16.msra.mxu0 %v1026
      %1168 = vmatprep.subr.bf16.mxu0 %v1030
      %1169 = vmatpush1.bf16.msra.mxu0 %v1029
      %1170 = vmatprep.subr.bf16.mxu0 %v1033
      %1171 = vmatpush1.bf16.msra.mxu0 %v1032
      %1172 = vmatprep.subr.bf16.mxu0 %v1036
      %1173 = vmatpush1.bf16.msra.mxu0 %v1035
      %1174 = vmatprep.subr.bf16.mxu0 %v1039
      %1175 = vmatpush1.bf16.msra.mxu0 %v1038
      %1176 = vmatprep.subr.bf16.mxu0 %v1042
      %1177 = vmatpush1.bf16.msra.mxu0 %v1041
      %1178 = vmatprep.subr.bf16.mxu0 %v1045
      %1179 = vmatpush1.bf16.msra.mxu0 %v1044
      %1180 = vmatprep.subr.bf16.mxu0 %v1048
      %1181 = vmatpush1.bf16.msra.mxu0 %v1047
      %1182 = vmatprep.subr.bf16.mxu0 %v1051
      %1183 = vmatpush1.bf16.msra.mxu0 %v1050
      %1184 = vmatprep.subr.bf16.mxu0 %v1054
      %1185 = vmatpush1.bf16.msra.mxu0 %v1053
      %1186 = vmatprep.subr.bf16.mxu0 %v1057
      %1187 = vmatpush1.bf16.msra.mxu0 %v1056
      %1188 = vmatprep.subr.bf16.mxu0 %v1060
      %1189 = vmatpush1.bf16.msra.mxu0 %v1059
      %1190 = vmatprep.mubr.bf16.mxu0 %v661
      %1191 = vmatmul.mubr.bf16.gmra.mrb[0].mxu0 %v660
      %v1192 = vpop.f32.mrb[0].mxu0
      %v1193 = vadd.f32 0.0, %v1192
      %v1194 = vpop.f32.mrb[0].mxu0
      %v1195 = vadd.f32 0.0, %v1194
      %v1196 = vpop.f32.mrb[0].mxu0
      %v1197 = vadd.f32 0.0, %v1196
      %v1198 = vpop.f32.mrb[0].mxu0
      %v1199 = vadd.f32 0.0, %v1198
      %1200 = vmatprep.mubr.bf16.mxu0 %v662
      %1201 = vmatmul.mubr.bf16.gmra.mrb[0].mxu0 %v661
      %v1202 = vpop.f32.mrb[0].mxu0
      %v1203 = vadd.f32 0.0, %v1202
      %v1204 = vpop.f32.mrb[0].mxu0
      %v1205 = vadd.f32 0.0, %v1204
      %v1206 = vpop.f32.mrb[0].mxu0
      %v1207 = vadd.f32 0.0, %v1206
      %v1208 = vpop.f32.mrb[0].mxu0
      %v1209 = vadd.f32 0.0, %v1208
      %1210 = vmatprep.mubr.bf16.mxu0 %v663
      %1211 = vmatmul.mubr.bf16.gmra.mrb[0].mxu0 %v662
      %v1212 = vpop.f32.mrb[0].mxu0
      %v1213 = vadd.f32 0.0, %v1212
      %v1214 = vpop.f32.mrb[0].mxu0
      %v1215 = vadd.f32 0.0, %v1214
      %v1216 = vpop.f32.mrb[0].mxu0
      %v1217 = vadd.f32 0.0, %v1216
      %v1218 = vpop.f32.mrb[0].mxu0
      %v1219 = vadd.f32 0.0, %v1218
      %1220 = vmatprep.mubr.bf16.mxu0 %v664
      %1221 = vmatmul.mubr.bf16.gmra.mrb[0].mxu0 %v663
      %v1222 = vpop.f32.mrb[0].mxu0
      %v1223 = vadd.f32 0.0, %v1222
      %v1224 = vpop.f32.mrb[0].mxu0
      %v1225 = vadd.f32 0.0, %v1224
      %v1226 = vpop.f32.mrb[0].mxu0
      %v1227 = vadd.f32 0.0, %v1226
      %v1228 = vpop.f32.mrb[0].mxu0
      %v1229 = vadd.f32 0.0, %v1228
      %1230 = vmatprep.mubr.bf16.mxu0 %v665
      %1231 = vmatmul.mubr.bf16.gmra.mrb[0].mxu0 %v664
      %v1232 = vpop.f32.mrb[0].mxu0
      %v1233 = vadd.f32 0.0, %v1232
      %v1234 = vpop.f32.mrb[0].mxu0
      %v1235 = vadd.f32 0.0, %v1234
      %v1236 = vpop.f32.mrb[0].mxu0
      %v1237 = vadd.f32 0.0, %v1236
      %v1238 = vpop.f32.mrb[0].mxu0
      %v1239 = vadd.f32 0.0, %v1238
      %1240 = vmatprep.mubr.bf16.mxu0 %v666
      %1241 = vmatmul.mubr.bf16.gmra.mrb[0].mxu0 %v665
      %v1242 = vpop.f32.mrb[0].mxu0
      %v1243 = vadd.f32 0.0, %v1242
      %v1244 = vpop.f32.mrb[0].mxu0
      %v1245 = vadd.f32 0.0, %v1244
      %v1246 = vpop.f32.mrb[0].mxu0
      %v1247 = vadd.f32 0.0, %v1246
      %v1248 = vpop.f32.mrb[0].mxu0
      %v1249 = vadd.f32 0.0, %v1248
      %1250 = vmatprep.mubr.bf16.mxu0 %v667
      %1251 = vmatmul.mubr.bf16.gmra.mrb[0].mxu0 %v666
      %v1252 = vpop.f32.mrb[0].mxu0
      %v1253 = vadd.f32 0.0, %v1252
      %v1254 = vpop.f32.mrb[0].mxu0
      %v1255 = vadd.f32 0.0, %v1254
      %v1256 = vpop.f32.mrb[0].mxu0
      %v1257 = vadd.f32 0.0, %v1256
      %v1258 = vpop.f32.mrb[0].mxu0
      %v1259 = vadd.f32 0.0, %v1258
      %1260 = vmatprep.mubr.bf16.mxu0 %v668
      %1261 = vmatmul.mubr.bf16.gmra.mrb[0].mxu0 %v667
      %v1262 = vpop.f32.mrb[0].mxu0
      %v1263 = vadd.f32 0.0, %v1262
      %v1264 = vpop.f32.mrb[0].mxu0
      %v1265 = vadd.f32 0.0, %v1264
      %v1266 = vpop.f32.mrb[0].mxu0
      %v1267 = vadd.f32 0.0, %v1266
      %v1268 = vpop.f32.mrb[0].mxu0
      %v1269 = vadd.f32 0.0, %v1268
      %1270 = vmatprep.mubr.bf16.mxu0 %v669
      %1271 = vmatmul.mubr.bf16.gmra.mrb[0].mxu0 %v668
      %v1272 = vpop.f32.mrb[0].mxu0
      %v1273 = vadd.f32 0.0, %v1272
      %v1274 = vpop.f32.mrb[0].mxu0
      %v1275 = vadd.f32 0.0, %v1274
      %v1276 = vpop.f32.mrb[0].mxu0
      %v1277 = vadd.f32 0.0, %v1276
      %v1278 = vpop.f32.mrb[0].mxu0
      %v1279 = vadd.f32 0.0, %v1278
      %1280 = vmatprep.mubr.bf16.mxu0 %v670
      %1281 = vmatmul.mubr.bf16.gmra.mrb[0].mxu0 %v669
      %v1282 = vpop.f32.mrb[0].mxu0
      %v1283 = vadd.f32 0.0, %v1282
      %v1284 = vpop.f32.mrb[0].mxu0
      %v1285 = vadd.f32 0.0, %v1284
      %v1286 = vpop.f32.mrb[0].mxu0
      %v1287 = vadd.f32 0.0, %v1286
      %v1288 = vpop.f32.mrb[0].mxu0
      %v1289 = vadd.f32 0.0, %v1288
      %1290 = vmatprep.mubr.bf16.mxu0 %v671
      %1291 = vmatmul.mubr.bf16.gmra.mrb[0].mxu0 %v670
      %v1292 = vpop.f32.mrb[0].mxu0
      %v1293 = vadd.f32 0.0, %v1292
      %v1294 = vpop.f32.mrb[0].mxu0
      %v1295 = vadd.f32 0.0, %v1294
      %v1296 = vpop.f32.mrb[0].mxu0
      %v1297 = vadd.f32 0.0, %v1296
      %v1298 = vpop.f32.mrb[0].mxu0
      %v1299 = vadd.f32 0.0, %v1298
      %1300 = vmatprep.mubr.bf16.mxu0 %v672
      %1301 = vmatmul.mubr.bf16.gmra.mrb[0].mxu0 %v671
      %v1302 = vpop.f32.mrb[0].mxu0
      %v1303 = vadd.f32 0.0, %v1302
      %v1304 = vpop.f32.mrb[0].mxu0
      %v1305 = vadd.f32 0.0, %v1304
      %v1306 = vpop.f32.mrb[0].mxu0
      %v1307 = vadd.f32 0.0, %v1306
      %v1308 = vpop.f32.mrb[0].mxu0
      %v1309 = vadd.f32 0.0, %v1308
      %1310 = vmatprep.mubr.bf16.mxu0 %v673
      %1311 = vmatmul.mubr.bf16.gmra.mrb[0].mxu0 %v672
      %v1312 = vpop.f32.mrb[0].mxu0
      %v1313 = vadd.f32 0.0, %v1312
      %v1314 = vpop.f32.mrb[0].mxu0
      %v1315 = vadd.f32 0.0, %v1314
      %v1316 = vpop.f32.mrb[0].mxu0
      %v1317 = vadd.f32 0.0, %v1316
      %v1318 = vpop.f32.mrb[0].mxu0
      %v1319 = vadd.f32 0.0, %v1318
      %1320 = vmatprep.mubr.bf16.mxu0 %v674
      %1321 = vmatmul.mubr.bf16.gmra.mrb[0].mxu0 %v673
      %v1322 = vpop.f32.mrb[0].mxu0
      %v1323 = vadd.f32 0.0, %v1322
      %v1324 = vpop.f32.mrb[0].mxu0
      %v1325 = vadd.f32 0.0, %v1324
      %v1326 = vpop.f32.mrb[0].mxu0
      %v1327 = vadd.f32 0.0, %v1326
      %v1328 = vpop.f32.mrb[0].mxu0
      %v1329 = vadd.f32 0.0, %v1328
      %1330 = vmatprep.mubr.bf16.mxu0 %v675
      %1331 = vmatmul.mubr.bf16.gmra.mrb[0].mxu0 %v674
      %v1332 = vpop.f32.mrb[0].mxu0
      %v1333 = vadd.f32 0.0, %v1332
      %v1334 = vpop.f32.mrb[0].mxu0
      %v1335 = vadd.f32 0.0, %v1334
      %v1336 = vpop.f32.mrb[0].mxu0
      %v1337 = vadd.f32 0.0, %v1336
      %v1338 = vpop.f32.mrb[0].mxu0
      %v1339 = vadd.f32 0.0, %v1338
      %1340 = vmatprep.mubr.bf16.mxu0 %v676
      %1341 = vmatmul.mubr.bf16.gmra.mrb[0].mxu0 %v675
      %v1342 = vpop.f32.mrb[0].mxu0
      %v1343 = vadd.f32 0.0, %v1342
      %v1344 = vpop.f32.mrb[0].mxu0
      %v1345 = vadd.f32 0.0, %v1344
      %v1346 = vpop.f32.mrb[0].mxu0
      %v1347 = vadd.f32 0.0, %v1346
      %v1348 = vpop.f32.mrb[0].mxu0
      %v1349 = vadd.f32 0.0, %v1348
      %1350 = vdwg.mxu0
      %1351 = vmatprep.subr.bf16.mxu0 %v1063
      %1352 = vmatpush1.bf16.msra.mxu0 %v1062
      %1353 = vmatprep.subr.bf16.mxu0 %v1066
      %1354 = vmatpush1.bf16.msra.mxu0 %v1065
      %1355 = vmatprep.subr.bf16.mxu0 %v1069
      %1356 = vmatpush1.bf16.msra.mxu0 %v1068
      %1357 = vmatprep.subr.bf16.mxu0 %v1072
      %1358 = vmatpush1.bf16.msra.mxu0 %v1071
      %1359 = vmatprep.subr.bf16.mxu0 %v1075
      %1360 = vmatpush1.bf16.msra.mxu0 %v1074
      %1361 = vmatprep.subr.bf16.mxu0 %v1078
      %1362 = vmatpush1.bf16.msra.mxu0 %v1077
      %1363 = vmatprep.subr.bf16.mxu0 %v1081
      %1364 = vmatpush1.bf16.msra.mxu0 %v1080
      %1365 = vmatprep.subr.bf16.mxu0 %v1084
      %1366 = vmatpush1.bf16.msra.mxu0 %v1083
      %1367 = vmatprep.subr.bf16.mxu0 0
      %1368 = vmatpush1.bf16.msra.mxu0 0
      %1369 = vmatprep.subr.bf16.mxu0 0
      %1370 = vmatpush1.bf16.msra.mxu0 0
      %1371 = vmatprep.subr.bf16.mxu0 0
      %1372 = vmatpush1.bf16.msra.mxu0 0
      %1373 = vmatprep.subr.bf16.mxu0 0
      %1374 = vmatpush1.bf16.msra.mxu0 0
      %1375 = vmatprep.subr.bf16.mxu0 0
      %1376 = vmatpush1.bf16.msra.mxu0 0
      %1377 = vmatprep.subr.bf16.mxu0 0
      %1378 = vmatpush1.bf16.msra.mxu0 0
      %1379 = vmatprep.subr.bf16.mxu0 0
      %1380 = vmatpush1.bf16.msra.mxu0 0
      %1381 = vmatprep.subr.bf16.mxu0 0
      %1382 = vmatpush1.bf16.msra.mxu0 0
      %1383 = vmatprep.mubr.bf16.mxu0 0
      %1384 = vmatmul.mubr.bf16.gmra.mrb[0].mxu0 %v662
      %v1385 = vpop.f32.mrb[0].mxu0
      %v1386 = vadd.f32 %v1193, %v1385
      %v1387 = vpop.f32.mrb[0].mxu0
      %v1388 = vadd.f32 %v1195, %v1387
      %v1389 = vpop.f32.mrb[0].mxu0
      %v1390 = vadd.f32 %v1197, %v1389
      %v1391 = vpop.f32.mrb[0].mxu0
      %v1392 = vadd.f32 %v1199, %v1391
      %1393 = vmatprep.mubr.bf16.mxu0 0
      %1394 = vmatmul.mubr.bf16.gmra.mrb[0].mxu0 %v663
      %v1395 = vpop.f32.mrb[0].mxu0
      %v1396 = vadd.f32 %v1203, %v1395
      %v1397 = vpop.f32.mrb[0].mxu0
      %v1398 = vadd.f32 %v1205, %v1397
      %v1399 = vpop.f32.mrb[0].mxu0
      %v1400 = vadd.f32 %v1207, %v1399
      %v1401 = vpop.f32.mrb[0].mxu0
      %v1402 = vadd.f32 %v1209, %v1401
      %1403 = vmatprep.mubr.bf16.mxu0 0
      %1404 = vmatmul.mubr.bf16.gmra.mrb[0].mxu0 %v664
      %v1405 = vpop.f32.mrb[0].mxu0
      %v1406 = vadd.f32 %v1213, %v1405
      %v1407 = vpop.f32.mrb[0].mxu0
      %v1408 = vadd.f32 %v1215, %v1407
      %v1409 = vpop.f32.mrb[0].mxu0
      %v1410 = vadd.f32 %v1217, %v1409
      %v1411 = vpop.f32.mrb[0].mxu0
      %v1412 = vadd.f32 %v1219, %v1411
      %1413 = vmatprep.mubr.bf16.mxu0 0
      %1414 = vmatmul.mubr.bf16.gmra.mrb[0].mxu0 %v665
      %v1415 = vpop.f32.mrb[0].mxu0
      %v1416 = vadd.f32 %v1223, %v1415
      %v1417 = vpop.f32.mrb[0].mxu0
      %v1418 = vadd.f32 %v1225, %v1417
      %v1419 = vpop.f32.mrb[0].mxu0
      %v1420 = vadd.f32 %v1227, %v1419
      %v1421 = vpop.f32.mrb[0].mxu0
      %v1422 = vadd.f32 %v1229, %v1421
      %1423 = vmatprep.mubr.bf16.mxu0 0
      %1424 = vmatmul.mubr.bf16.gmra.mrb[0].mxu0 %v666
      %v1425 = vpop.f32.mrb[0].mxu0
      %v1426 = vadd.f32 %v1233, %v1425
      %v1427 = vpop.f32.mrb[0].mxu0
      %v1428 = vadd.f32 %v1235, %v1427
      %v1429 = vpop.f32.mrb[0].mxu0
      %v1430 = vadd.f32 %v1237, %v1429
      %v1431 = vpop.f32.mrb[0].mxu0
      %v1432 = vadd.f32 %v1239, %v1431
      %1433 = vmatprep.mubr.bf16.mxu0 0
      %1434 = vmatmul.mubr.bf16.gmra.mrb[0].mxu0 %v667
      %v1435 = vpop.f32.mrb[0].mxu0
      %v1436 = vadd.f32 %v1243, %v1435
      %v1437 = vpop.f32.mrb[0].mxu0
      %v1438 = vadd.f32 %v1245, %v1437
      %v1439 = vpop.f32.mrb[0].mxu0
      %v1440 = vadd.f32 %v1247, %v1439
      %v1441 = vpop.f32.mrb[0].mxu0
      %v1442 = vadd.f32 %v1249, %v1441
      %1443 = vmatprep.mubr.bf16.mxu0 0
      %1444 = vmatmul.mubr.bf16.gmra.mrb[0].mxu0 %v668
      %v1445 = vpop.f32.mrb[0].mxu0
      %v1446 = vadd.f32 %v1253, %v1445
      %v1447 = vpop.f32.mrb[0].mxu0
      %v1448 = vadd.f32 %v1255, %v1447
      %v1449 = vpop.f32.mrb[0].mxu0
      %v1450 = vadd.f32 %v1257, %v1449
      %v1451 = vpop.f32.mrb[0].mxu0
      %v1452 = vadd.f32 %v1259, %v1451
      %1453 = vmatprep.mubr.bf16.mxu0 0
      %1454 = vmatmul.mubr.bf16.gmra.mrb[0].mxu0 %v669
      %v1455 = vpop.f32.mrb[0].mxu0
      %v1456 = vadd.f32 %v1263, %v1455
      %v1457 = vpop.f32.mrb[0].mxu0
      %v1458 = vadd.f32 %v1265, %v1457
      %v1459 = vpop.f32.mrb[0].mxu0
      %v1460 = vadd.f32 %v1267, %v1459
      %v1461 = vpop.f32.mrb[0].mxu0
      %v1462 = vadd.f32 %v1269, %v1461
      %1463 = vmatprep.mubr.bf16.mxu0 0
      %1464 = vmatmul.mubr.bf16.gmra.mrb[0].mxu0 %v670
      %v1465 = vpop.f32.mrb[0].mxu0
      %v1466 = vadd.f32 %v1273, %v1465
      %v1467 = vpop.f32.mrb[0].mxu0
      %v1468 = vadd.f32 %v1275, %v1467
      %v1469 = vpop.f32.mrb[0].mxu0
      %v1470 = vadd.f32 %v1277, %v1469
      %v1471 = vpop.f32.mrb[0].mxu0
      %v1472 = vadd.f32 %v1279, %v1471
      %1473 = vmatprep.mubr.bf16.mxu0 0
      %1474 = vmatmul.mubr.bf16.gmra.mrb[0].mxu0 %v671
      %v1475 = vpop.f32.mrb[0].mxu0
      %v1476 = vadd.f32 %v1283, %v1475
      %v1477 = vpop.f32.mrb[0].mxu0
      %v1478 = vadd.f32 %v1285, %v1477
      %v1479 = vpop.f32.mrb[0].mxu0
      %v1480 = vadd.f32 %v1287, %v1479
      %v1481 = vpop.f32.mrb[0].mxu0
      %v1482 = vadd.f32 %v1289, %v1481
      %1483 = vmatprep.mubr.bf16.mxu0 0
      %1484 = vmatmul.mubr.bf16.gmra.mrb[0].mxu0 %v672
      %v1485 = vpop.f32.mrb[0].mxu0
      %v1486 = vadd.f32 %v1293, %v1485
      %v1487 = vpop.f32.mrb[0].mxu0
      %v1488 = vadd.f32 %v1295, %v1487
      %v1489 = vpop.f32.mrb[0].mxu0
      %v1490 = vadd.f32 %v1297, %v1489
      %v1491 = vpop.f32.mrb[0].mxu0
      %v1492 = vadd.f32 %v1299, %v1491
      %1493 = vmatprep.mubr.bf16.mxu0 0
      %1494 = vmatmul.mubr.bf16.gmra.mrb[0].mxu0 %v673
      %v1495 = vpop.f32.mrb[0].mxu0
      %v1496 = vadd.f32 %v1303, %v1495
      %v1497 = vpop.f32.mrb[0].mxu0
      %v1498 = vadd.f32 %v1305, %v1497
      %v1499 = vpop.f32.mrb[0].mxu0
      %v1500 = vadd.f32 %v1307, %v1499
      %v1501 = vpop.f32.mrb[0].mxu0
      %v1502 = vadd.f32 %v1309, %v1501
      %1503 = vmatprep.mubr.bf16.mxu0 0
      %1504 = vmatmul.mubr.bf16.gmra.mrb[0].mxu0 %v674
      %v1505 = vpop.f32.mrb[0].mxu0
      %v1506 = vadd.f32 %v1313, %v1505
      %v1507 = vpop.f32.mrb[0].mxu0
      %v1508 = vadd.f32 %v1315, %v1507
      %v1509 = vpop.f32.mrb[0].mxu0
      %v1510 = vadd.f32 %v1317, %v1509
      %v1511 = vpop.f32.mrb[0].mxu0
      %v1512 = vadd.f32 %v1319, %v1511
      %1513 = vmatprep.mubr.bf16.mxu0 0
      %1514 = vmatmul.mubr.bf16.gmra.mrb[0].mxu0 %v675
      %v1515 = vpop.f32.mrb[0].mxu0
      %v1516 = vadd.f32 %v1323, %v1515
      %v1517 = vpop.f32.mrb[0].mxu0
      %v1518 = vadd.f32 %v1325, %v1517
      %v1519 = vpop.f32.mrb[0].mxu0
      %v1520 = vadd.f32 %v1327, %v1519
      %v1521 = vpop.f32.mrb[0].mxu0
      %v1522 = vadd.f32 %v1329, %v1521
      %1523 = vmatprep.mubr.bf16.mxu0 0
      %1524 = vmatmul.mubr.bf16.gmra.mrb[0].mxu0 %v676
      %v1525 = vpop.f32.mrb[0].mxu0
      %v1526 = vadd.f32 %v1333, %v1525
      %v1527 = vpop.f32.mrb[0].mxu0
      %v1528 = vadd.f32 %v1335, %v1527
      %v1529 = vpop.f32.mrb[0].mxu0
      %v1530 = vadd.f32 %v1337, %v1529
      %v1531 = vpop.f32.mrb[0].mxu0
      %v1532 = vadd.f32 %v1339, %v1531
      %1533 = vmatprep.mubr.bf16.mxu0 0
      %1534 = vmatmul.mubr.bf16.gmra.mrb[0].mxu0 %v677
      %v1535 = vpop.f32.mrb[0].mxu0
      %v1536 = vadd.f32 %v1343, %v1535
      %v1537 = vpop.f32.mrb[0].mxu0
      %v1538 = vadd.f32 %v1345, %v1537
      %v1539 = vpop.f32.mrb[0].mxu0
      %v1540 = vadd.f32 %v1347, %v1539
      %v1541 = vpop.f32.mrb[0].mxu0
      %v1542 = vadd.f32 %v1349, %v1541
      %1543 = vdwg.mxu0
      %1544 = vmatprep.subr.bf16.mxu0 0
      %1545 = vmatpush1.bf16.msra.mxu0 %v1016
      %1546 = vmatprep.subr.bf16.mxu0 0
      %1547 = vmatpush1.bf16.msra.mxu0 %v1019
      %1548 = vmatprep.subr.bf16.mxu0 0
      %1549 = vmatpush1.bf16.msra.mxu0 %v1022
      %1550 = vmatprep.subr.bf16.mxu0 0
      %1551 = vmatpush1.bf16.msra.mxu0 %v1025
      %1552 = vmatprep.subr.bf16.mxu0 0
      %1553 = vmatpush1.bf16.msra.mxu0 %v1028
      %1554 = vmatprep.subr.bf16.mxu0 0
      %1555 = vmatpush1.bf16.msra.mxu0 %v1031
      %1556 = vmatprep.subr.bf16.mxu0 0
      %1557 = vmatpush1.bf16.msra.mxu0 %v1034
      %1558 = vmatprep.subr.bf16.mxu0 0
      %1559 = vmatpush1.bf16.msra.mxu0 %v1037
      %1560 = vmatprep.subr.bf16.mxu0 0
      %1561 = vmatpush1.bf16.msra.mxu0 %v1040
      %1562 = vmatprep.subr.bf16.mxu0 0
      %1563 = vmatpush1.bf16.msra.mxu0 %v1043
      %1564 = vmatprep.subr.bf16.mxu0 0
      %1565 = vmatpush1.bf16.msra.mxu0 %v1046
      %1566 = vmatprep.subr.bf16.mxu0 0
      %1567 = vmatpush1.bf16.msra.mxu0 %v1049
      %1568 = vmatprep.subr.bf16.mxu0 0
      %1569 = vmatpush1.bf16.msra.mxu0 %v1052
      %1570 = vmatprep.subr.bf16.mxu0 0
      %1571 = vmatpush1.bf16.msra.mxu0 %v1055
      %1572 = vmatprep.subr.bf16.mxu0 0
      %1573 = vmatpush1.bf16.msra.mxu0 %v1058
      %1574 = vmatprep.subr.bf16.mxu0 0
      %1575 = vmatpush1.bf16.msra.mxu0 %v1061
      %1576 = vmatprep.mubr.bf16.mxu0 %v661
      %1577 = vmatmul.mubr.bf16.gmra.mrb[0].mxu0 %v660
      %v1578 = vpop.f32.mrb[0].mxu0
      %v1579 = vadd.f32 0.0, %v1578
      %v1580 = vpop.f32.mrb[0].mxu0
      %v1581 = vpop.f32.mrb[0].mxu0
      %v1582 = vadd.f32 0.0, %v1581
      %v1583 = vpop.f32.mrb[0].mxu0
      %1584 = vmatprep.mubr.bf16.mxu0 %v662
      %1585 = vmatmul.mubr.bf16.gmra.mrb[0].mxu0 %v661
      %v1586 = vpop.f32.mrb[0].mxu0
      %v1587 = vadd.f32 0.0, %v1586
      %v1588 = vpop.f32.mrb[0].mxu0
      %v1589 = vpop.f32.mrb[0].mxu0
      %v1590 = vadd.f32 0.0, %v1589
      %v1591 = vpop.f32.mrb[0].mxu0
      %1592 = vmatprep.mubr.bf16.mxu0 %v663
      %1593 = vmatmul.mubr.bf16.gmra.mrb[0].mxu0 %v662
      %v1594 = vpop.f32.mrb[0].mxu0
      %v1595 = vadd.f32 0.0, %v1594
      %v1596 = vpop.f32.mrb[0].mxu0
      %v1597 = vpop.f32.mrb[0].mxu0
      %v1598 = vadd.f32 0.0, %v1597
      %v1599 = vpop.f32.mrb[0].mxu0
      %1600 = vmatprep.mubr.bf16.mxu0 %v664
      %1601 = vmatmul.mubr.bf16.gmra.mrb[0].mxu0 %v663
      %v1602 = vpop.f32.mrb[0].mxu0
      %v1603 = vadd.f32 0.0, %v1602
      %v1604 = vpop.f32.mrb[0].mxu0
      %v1605 = vpop.f32.mrb[0].mxu0
      %v1606 = vadd.f32 0.0, %v1605
      %v1607 = vpop.f32.mrb[0].mxu0
      %1608 = vmatprep.mubr.bf16.mxu0 %v665
      %1609 = vmatmul.mubr.bf16.gmra.mrb[0].mxu0 %v664
      %v1610 = vpop.f32.mrb[0].mxu0
      %v1611 = vadd.f32 0.0, %v1610
      %v1612 = vpop.f32.mrb[0].mxu0
      %v1613 = vpop.f32.mrb[0].mxu0
      %v1614 = vadd.f32 0.0, %v1613
      %v1615 = vpop.f32.mrb[0].mxu0
      %1616 = vmatprep.mubr.bf16.mxu0 %v666
      %1617 = vmatmul.mubr.bf16.gmra.mrb[0].mxu0 %v665
      %v1618 = vpop.f32.mrb[0].mxu0
      %v1619 = vadd.f32 0.0, %v1618
      %v1620 = vpop.f32.mrb[0].mxu0
      %v1621 = vpop.f32.mrb[0].mxu0
      %v1622 = vadd.f32 0.0, %v1621
      %v1623 = vpop.f32.mrb[0].mxu0
      %1624 = vmatprep.mubr.bf16.mxu0 %v667
      %1625 = vmatmul.mubr.bf16.gmra.mrb[0].mxu0 %v666
      %v1626 = vpop.f32.mrb[0].mxu0
      %v1627 = vadd.f32 0.0, %v1626
      %v1628 = vpop.f32.mrb[0].mxu0
      %v1629 = vpop.f32.mrb[0].mxu0
      %v1630 = vadd.f32 0.0, %v1629
      %v1631 = vpop.f32.mrb[0].mxu0
      %1632 = vmatprep.mubr.bf16.mxu0 %v668
      %1633 = vmatmul.mubr.bf16.gmra.mrb[0].mxu0 %v667
      %v1634 = vpop.f32.mrb[0].mxu0
      %v1635 = vadd.f32 0.0, %v1634
      %v1636 = vpop.f32.mrb[0].mxu0
      %v1637 = vpop.f32.mrb[0].mxu0
      %v1638 = vadd.f32 0.0, %v1637
      %v1639 = vpop.f32.mrb[0].mxu0
      %1640 = vmatprep.mubr.bf16.mxu0 %v669
      %1641 = vmatmul.mubr.bf16.gmra.mrb[0].mxu0 %v668
      %v1642 = vpop.f32.mrb[0].mxu0
      %v1643 = vadd.f32 0.0, %v1642
      %v1644 = vpop.f32.mrb[0].mxu0
      %v1645 = vpop.f32.mrb[0].mxu0
      %v1646 = vadd.f32 0.0, %v1645
      %v1647 = vpop.f32.mrb[0].mxu0
      %1648 = vmatprep.mubr.bf16.mxu0 %v670
      %1649 = vmatmul.mubr.bf16.gmra.mrb[0].mxu0 %v669
      %v1650 = vpop.f32.mrb[0].mxu0
      %v1651 = vadd.f32 0.0, %v1650
      %v1652 = vpop.f32.mrb[0].mxu0
      %v1653 = vpop.f32.mrb[0].mxu0
      %v1654 = vadd.f32 0.0, %v1653
      %v1655 = vpop.f32.mrb[0].mxu0
      %1656 = vmatprep.mubr.bf16.mxu0 %v671
      %1657 = vmatmul.mubr.bf16.gmra.mrb[0].mxu0 %v670
      %v1658 = vpop.f32.mrb[0].mxu0
      %v1659 = vadd.f32 0.0, %v1658
      %v1660 = vpop.f32.mrb[0].mxu0
      %v1661 = vpop.f32.mrb[0].mxu0
      %v1662 = vadd.f32 0.0, %v1661
      %v1663 = vpop.f32.mrb[0].mxu0
      %1664 = vmatprep.mubr.bf16.mxu0 %v672
      %1665 = vmatmul.mubr.bf16.gmra.mrb[0].mxu0 %v671
      %v1666 = vpop.f32.mrb[0].mxu0
      %v1667 = vadd.f32 0.0, %v1666
      %v1668 = vpop.f32.mrb[0].mxu0
      %v1669 = vpop.f32.mrb[0].mxu0
      %v1670 = vadd.f32 0.0, %v1669
      %v1671 = vpop.f32.mrb[0].mxu0
      %1672 = vmatprep.mubr.bf16.mxu0 %v673
      %1673 = vmatmul.mubr.bf16.gmra.mrb[0].mxu0 %v672
      %v1674 = vpop.f32.mrb[0].mxu0
      %v1675 = vadd.f32 0.0, %v1674
      %v1676 = vpop.f32.mrb[0].mxu0
      %v1677 = vpop.f32.mrb[0].mxu0
      %v1678 = vadd.f32 0.0, %v1677
      %v1679 = vpop.f32.mrb[0].mxu0
      %1680 = vmatprep.mubr.bf16.mxu0 %v674
      %1681 = vmatmul.mubr.bf16.gmra.mrb[0].mxu0 %v673
      %v1682 = vpop.f32.mrb[0].mxu0
      %v1683 = vadd.f32 0.0, %v1682
      %v1684 = vpop.f32.mrb[0].mxu0
      %v1685 = vpop.f32.mrb[0].mxu0
      %v1686 = vadd.f32 0.0, %v1685
      %v1687 = vpop.f32.mrb[0].mxu0
      %1688 = vmatprep.mubr.bf16.mxu0 %v675
      %1689 = vmatmul.mubr.bf16.gmra.mrb[0].mxu0 %v674
      %v1690 = vpop.f32.mrb[0].mxu0
      %v1691 = vadd.f32 0.0, %v1690
      %v1692 = vpop.f32.mrb[0].mxu0
      %v1693 = vpop.f32.mrb[0].mxu0
      %v1694 = vadd.f32 0.0, %v1693
      %v1695 = vpop.f32.mrb[0].mxu0
      %1696 = vmatprep.mubr.bf16.mxu0 %v676
      %1697 = vmatmul.mubr.bf16.gmra.mrb[0].mxu0 %v675
      %v1698 = vpop.f32.mrb[0].mxu0
      %v1699 = vadd.f32 0.0, %v1698
      %v1700 = vpop.f32.mrb[0].mxu0
      %v1701 = vpop.f32.mrb[0].mxu0
      %v1702 = vadd.f32 0.0, %v1701
      %v1703 = vpop.f32.mrb[0].mxu0
      %1704 = vdwg.mxu0
      %1705 = vmatprep.subr.bf16.mxu0 0
      %1706 = vmatpush1.bf16.msra.mxu0 %v1064
      %1707 = vmatprep.subr.bf16.mxu0 0
      %1708 = vmatpush1.bf16.msra.mxu0 %v1067
      %1709 = vmatprep.subr.bf16.mxu0 0
      %1710 = vmatpush1.bf16.msra.mxu0 %v1070
      %1711 = vmatprep.subr.bf16.mxu0 0
      %1712 = vmatpush1.bf16.msra.mxu0 %v1073
      %1713 = vmatprep.subr.bf16.mxu0 0
      %1714 = vmatpush1.bf16.msra.mxu0 %v1076
      %1715 = vmatprep.subr.bf16.mxu0 0
      %1716 = vmatpush1.bf16.msra.mxu0 %v1079
      %1717 = vmatprep.subr.bf16.mxu0 0
      %1718 = vmatpush1.bf16.msra.mxu0 %v1082
      %1719 = vmatprep.subr.bf16.mxu0 0
      %1720 = vmatpush1.bf16.msra.mxu0 %v1085
      %1721 = vmatprep.subr.bf16.mxu0 0
      %1722 = vmatpush1.bf16.msra.mxu0 0
      %1723 = vmatprep.subr.bf16.mxu0 0
      %1724 = vmatpush1.bf16.msra.mxu0 0
      %1725 = vmatprep.subr.bf16.mxu0 0
      %1726 = vmatpush1.bf16.msra.mxu0 0
      %1727 = vmatprep.subr.bf16.mxu0 0
      %1728 = vmatpush1.bf16.msra.mxu0 0
      %1729 = vmatprep.subr.bf16.mxu0 0
      %1730 = vmatpush1.bf16.msra.mxu0 0
      %1731 = vmatprep.subr.bf16.mxu0 0
      %1732 = vmatpush1.bf16.msra.mxu0 0
      %1733 = vmatprep.subr.bf16.mxu0 0
      %1734 = vmatpush1.bf16.msra.mxu0 0
      %1735 = vmatprep.subr.bf16.mxu0 0
      %1736 = vmatpush1.bf16.msra.mxu0 0
      %1737 = vmatprep.mubr.bf16.mxu0 0
      %1738 = vmatmul.mubr.bf16.gmra.mrb[0].mxu0 %v662
      %v1739 = vpop.f32.mrb[0].mxu0
      %v1740 = vadd.f32 %v1579, %v1739
      %v1741 = vpop.f32.mrb[0].mxu0
      %v1742 = vpop.f32.mrb[0].mxu0
      %v1743 = vadd.f32 %v1582, %v1742
      %v1744 = vpop.f32.mrb[0].mxu0
      %1745 = vmatprep.mubr.bf16.mxu0 0
      %1746 = vmatmul.mubr.bf16.gmra.mrb[0].mxu0 %v663
      %v1747 = vpop.f32.mrb[0].mxu0
      %v1748 = vadd.f32 %v1587, %v1747
      %v1749 = vpop.f32.mrb[0].mxu0
      %v1750 = vpop.f32.mrb[0].mxu0
      %v1751 = vadd.f32 %v1590, %v1750
      %v1752 = vpop.f32.mrb[0].mxu0
      %1753 = vmatprep.mubr.bf16.mxu0 0
      %1754 = vmatmul.mubr.bf16.gmra.mrb[0].mxu0 %v664
      %v1755 = vpop.f32.mrb[0].mxu0
      %v1756 = vadd.f32 %v1595, %v1755
      %v1757 = vpop.f32.mrb[0].mxu0
      %v1758 = vpop.f32.mrb[0].mxu0
      %v1759 = vadd.f32 %v1598, %v1758
      %v1760 = vpop.f32.mrb[0].mxu0
      %1761 = vmatprep.mubr.bf16.mxu0 0
      %1762 = vmatmul.mubr.bf16.gmra.mrb[0].mxu0 %v665
      %v1763 = vpop.f32.mrb[0].mxu0
      %v1764 = vadd.f32 %v1603, %v1763
      %v1765 = vpop.f32.mrb[0].mxu0
      %v1766 = vpop.f32.mrb[0].mxu0
      %v1767 = vadd.f32 %v1606, %v1766
      %v1768 = vpop.f32.mrb[0].mxu0
      %1769 = vmatprep.mubr.bf16.mxu0 0
      %1770 = vmatmul.mubr.bf16.gmra.mrb[0].mxu0 %v666
      %v1771 = vpop.f32.mrb[0].mxu0
      %v1772 = vadd.f32 %v1611, %v1771
      %v1773 = vpop.f32.mrb[0].mxu0
      %v1774 = vpop.f32.mrb[0].mxu0
      %v1775 = vadd.f32 %v1614, %v1774
      %v1776 = vpop.f32.mrb[0].mxu0
      %1777 = vmatprep.mubr.bf16.mxu0 0
      %1778 = vmatmul.mubr.bf16.gmra.mrb[0].mxu0 %v667
      %v1779 = vpop.f32.mrb[0].mxu0
      %v1780 = vadd.f32 %v1619, %v1779
      %v1781 = vpop.f32.mrb[0].mxu0
      %v1782 = vpop.f32.mrb[0].mxu0
      %v1783 = vadd.f32 %v1622, %v1782
      %v1784 = vpop.f32.mrb[0].mxu0
      %1785 = vmatprep.mubr.bf16.mxu0 0
      %1786 = vmatmul.mubr.bf16.gmra.mrb[0].mxu0 %v668
      %v1787 = vpop.f32.mrb[0].mxu0
      %v1788 = vadd.f32 %v1627, %v1787
      %v1789 = vpop.f32.mrb[0].mxu0
      %v1790 = vpop.f32.mrb[0].mxu0
      %v1791 = vadd.f32 %v1630, %v1790
      %v1792 = vpop.f32.mrb[0].mxu0
      %1793 = vmatprep.mubr.bf16.mxu0 0
      %1794 = vmatmul.mubr.bf16.gmra.mrb[0].mxu0 %v669
      %v1795 = vpop.f32.mrb[0].mxu0
      %v1796 = vadd.f32 %v1635, %v1795
      %v1797 = vpop.f32.mrb[0].mxu0
      %v1798 = vpop.f32.mrb[0].mxu0
      %v1799 = vadd.f32 %v1638, %v1798
      %v1800 = vpop.f32.mrb[0].mxu0
      %1801 = vmatprep.mubr.bf16.mxu0 0
      %1802 = vmatmul.mubr.bf16.gmra.mrb[0].mxu0 %v670
      %v1803 = vpop.f32.mrb[0].mxu0
      %v1804 = vadd.f32 %v1643, %v1803
      %v1805 = vpop.f32.mrb[0].mxu0
      %v1806 = vpop.f32.mrb[0].mxu0
      %v1807 = vadd.f32 %v1646, %v1806
      %v1808 = vpop.f32.mrb[0].mxu0
      %1809 = vmatprep.mubr.bf16.mxu0 0
      %1810 = vmatmul.mubr.bf16.gmra.mrb[0].mxu0 %v671
      %v1811 = vpop.f32.mrb[0].mxu0
      %v1812 = vadd.f32 %v1651, %v1811
      %v1813 = vpop.f32.mrb[0].mxu0
      %v1814 = vpop.f32.mrb[0].mxu0
      %v1815 = vadd.f32 %v1654, %v1814
      %v1816 = vpop.f32.mrb[0].mxu0
      %1817 = vmatprep.mubr.bf16.mxu0 0
      %1818 = vmatmul.mubr.bf16.gmra.mrb[0].mxu0 %v672
      %v1819 = vpop.f32.mrb[0].mxu0
      %v1820 = vadd.f32 %v1659, %v1819
      %v1821 = vpop.f32.mrb[0].mxu0
      %v1822 = vpop.f32.mrb[0].mxu0
      %v1823 = vadd.f32 %v1662, %v1822
      %v1824 = vpop.f32.mrb[0].mxu0
      %1825 = vmatprep.mubr.bf16.mxu0 0
      %1826 = vmatmul.mubr.bf16.gmra.mrb[0].mxu0 %v673
      %v1827 = vpop.f32.mrb[0].mxu0
      %v1828 = vadd.f32 %v1667, %v1827
      %v1829 = vpop.f32.mrb[0].mxu0
      %v1830 = vpop.f32.mrb[0].mxu0
      %v1831 = vadd.f32 %v1670, %v1830
      %v1832 = vpop.f32.mrb[0].mxu0
      %1833 = vmatprep.mubr.bf16.mxu0 0
      %1834 = vmatmul.mubr.bf16.gmra.mrb[0].mxu0 %v674
      %v1835 = vpop.f32.mrb[0].mxu0
      %v1836 = vadd.f32 %v1675, %v1835
      %v1837 = vpop.f32.mrb[0].mxu0
      %v1838 = vpop.f32.mrb[0].mxu0
      %v1839 = vadd.f32 %v1678, %v1838
      %v1840 = vpop.f32.mrb[0].mxu0
      %1841 = vmatprep.mubr.bf16.mxu0 0
      %1842 = vmatmul.mubr.bf16.gmra.mrb[0].mxu0 %v675
      %v1843 = vpop.f32.mrb[0].mxu0
      %v1844 = vadd.f32 %v1683, %v1843
      %v1845 = vpop.f32.mrb[0].mxu0
      %v1846 = vpop.f32.mrb[0].mxu0
      %v1847 = vadd.f32 %v1686, %v1846
      %v1848 = vpop.f32.mrb[0].mxu0
      %1849 = vmatprep.mubr.bf16.mxu0 0
      %1850 = vmatmul.mubr.bf16.gmra.mrb[0].mxu0 %v676
      %v1851 = vpop.f32.mrb[0].mxu0
      %v1852 = vadd.f32 %v1691, %v1851
      %v1853 = vpop.f32.mrb[0].mxu0
      %v1854 = vpop.f32.mrb[0].mxu0
      %v1855 = vadd.f32 %v1694, %v1854
      %v1856 = vpop.f32.mrb[0].mxu0
      %1857 = vmatprep.mubr.bf16.mxu0 0
      %1858 = vmatmul.mubr.bf16.gmra.mrb[0].mxu0 %v677
      %v1859 = vpop.f32.mrb[0].mxu0
      %v1860 = vadd.f32 %v1699, %v1859
      %v1861 = vpop.f32.mrb[0].mxu0
      %v1862 = vpop.f32.mrb[0].mxu0
      %v1863 = vadd.f32 %v1702, %v1862
      %v1864 = vpop.f32.mrb[0].mxu0
      %1865 = vdwg.mxu0
      %vm1898 = vcmask 1040384
      %v1899 = vrot.slane %v1386, 7
      %v1900 = vrot.slane %v1390, 7
      %v1901 = vsel %vm1898, %v1899, %v1900
      %v1902 = vrot.slane %v1396, 7
      %v1903 = vsel %vm1898, %v1900, %v1902
      %v1904 = vrot.slane %v1400, 7
      %v1905 = vsel %vm1898, %v1902, %v1904
      %v1906 = vrot.slane %v1406, 7
      %v1907 = vsel %vm1898, %v1904, %v1906
      %v1908 = vrot.slane %v1410, 7
      %v1909 = vsel %vm1898, %v1906, %v1908
      %v1910 = vrot.slane %v1416, 7
      %v1911 = vsel %vm1898, %v1908, %v1910
      %v1912 = vrot.slane %v1420, 7
      %v1913 = vsel %vm1898, %v1910, %v1912
      %v1914 = vrot.slane %v1426, 7
      %v1915 = vsel %vm1898, %v1912, %v1914
      %v1916 = vrot.slane %v1430, 7
      %v1917 = vsel %vm1898, %v1914, %v1916
      %v1918 = vrot.slane %v1436, 7
      %v1919 = vsel %vm1898, %v1916, %v1918
      %v1920 = vrot.slane %v1440, 7
      %v1921 = vsel %vm1898, %v1918, %v1920
      %v1922 = vrot.slane %v1446, 7
      %v1923 = vsel %vm1898, %v1920, %v1922
      %v1924 = vrot.slane %v1450, 7
      %v1925 = vsel %vm1898, %v1922, %v1924
      %v1926 = vrot.slane %v1456, 7
      %v1927 = vsel %vm1898, %v1924, %v1926
      %v1928 = vrot.slane %v1460, 7
      %v1929 = vsel %vm1898, %v1926, %v1928
      %v1930 = vrot.slane %v1466, 7
      %v1931 = vsel %vm1898, %v1928, %v1930
      %v1932 = vrot.slane %v1470, 7
      %v1933 = vsel %vm1898, %v1930, %v1932
      %v1934 = vrot.slane %v1476, 7
      %v1935 = vsel %vm1898, %v1932, %v1934
      %v1936 = vrot.slane %v1480, 7
      %v1937 = vsel %vm1898, %v1934, %v1936
      %v1938 = vrot.slane %v1486, 7
      %v1939 = vsel %vm1898, %v1936, %v1938
      %v1940 = vrot.slane %v1490, 7
      %v1941 = vsel %vm1898, %v1938, %v1940
      %v1942 = vrot.slane %v1496, 7
      %v1943 = vsel %vm1898, %v1940, %v1942
      %v1944 = vrot.slane %v1500, 7
      %v1945 = vsel %vm1898, %v1942, %v1944
      %v1946 = vrot.slane %v1506, 7
      %v1947 = vsel %vm1898, %v1944, %v1946
      %v1948 = vrot.slane %v1510, 7
      %v1949 = vsel %vm1898, %v1946, %v1948
      %v1950 = vrot.slane %v1516, 7
      %v1951 = vsel %vm1898, %v1948, %v1950
      %v1952 = vrot.slane %v1520, 7
      %v1953 = vsel %vm1898, %v1950, %v1952
      %v1954 = vrot.slane %v1526, 7
      %v1955 = vsel %vm1898, %v1952, %v1954
      %v1956 = vrot.slane %v1530, 7
      %v1957 = vsel %vm1898, %v1954, %v1956
      %v1958 = vrot.slane %v1536, 7
      %v1959 = vsel %vm1898, %v1956, %v1958
      %v1960 = vrot.slane %v1540, 7
      %v1961 = vsel %vm1898, %v1958, %v1960
      %v1994 = vsel %vm1898, 0.0, %v1899
      %vm2027 = vcmask 1046528
      %v2028 = vrot.slane %v1740, 1
      %v2029 = vrot.slane %v1743, 1
      %v2030 = vsel %vm2027, %v2028, %v2029
      %v2031 = vrot.slane %v1748, 1
      %v2032 = vsel %vm2027, %v2029, %v2031
      %v2033 = vrot.slane %v1751, 1
      %v2034 = vsel %vm2027, %v2031, %v2033
      %v2035 = vrot.slane %v1756, 1
      %v2036 = vsel %vm2027, %v2033, %v2035
      %v2037 = vrot.slane %v1759, 1
      %v2038 = vsel %vm2027, %v2035, %v2037
      %v2039 = vrot.slane %v1764, 1
      %v2040 = vsel %vm2027, %v2037, %v2039
      %v2041 = vrot.slane %v1767, 1
      %v2042 = vsel %vm2027, %v2039, %v2041
      %v2043 = vrot.slane %v1772, 1
      %v2044 = vsel %vm2027, %v2041, %v2043
      %v2045 = vrot.slane %v1775, 1
      %v2046 = vsel %vm2027, %v2043, %v2045
      %v2047 = vrot.slane %v1780, 1
      %v2048 = vsel %vm2027, %v2045, %v2047
      %v2049 = vrot.slane %v1783, 1
      %v2050 = vsel %vm2027, %v2047, %v2049
      %v2051 = vrot.slane %v1788, 1
      %v2052 = vsel %vm2027, %v2049, %v2051
      %v2053 = vrot.slane %v1791, 1
      %v2054 = vsel %vm2027, %v2051, %v2053
      %v2055 = vrot.slane %v1796, 1
      %v2056 = vsel %vm2027, %v2053, %v2055
      %v2057 = vrot.slane %v1799, 1
      %v2058 = vsel %vm2027, %v2055, %v2057
      %v2059 = vrot.slane %v1804, 1
      %v2060 = vsel %vm2027, %v2057, %v2059
      %v2061 = vrot.slane %v1807, 1
      %v2062 = vsel %vm2027, %v2059, %v2061
      %v2063 = vrot.slane %v1812, 1
      %v2064 = vsel %vm2027, %v2061, %v2063
      %v2065 = vrot.slane %v1815, 1
      %v2066 = vsel %vm2027, %v2063, %v2065
      %v2067 = vrot.slane %v1820, 1
      %v2068 = vsel %vm2027, %v2065, %v2067
      %v2069 = vrot.slane %v1823, 1
      %v2070 = vsel %vm2027, %v2067, %v2069
      %v2071 = vrot.slane %v1828, 1
      %v2072 = vsel %vm2027, %v2069, %v2071
      %v2073 = vrot.slane %v1831, 1
      %v2074 = vsel %vm2027, %v2071, %v2073
      %v2075 = vrot.slane %v1836, 1
      %v2076 = vsel %vm2027, %v2073, %v2075
      %v2077 = vrot.slane %v1839, 1
      %v2078 = vsel %vm2027, %v2075, %v2077
      %v2079 = vrot.slane %v1844, 1
      %v2080 = vsel %vm2027, %v2077, %v2079
      %v2081 = vrot.slane %v1847, 1
      %v2082 = vsel %vm2027, %v2079, %v2081
      %v2083 = vrot.slane %v1852, 1
      %v2084 = vsel %vm2027, %v2081, %v2083
      %v2085 = vrot.slane %v1855, 1
      %v2086 = vsel %vm2027, %v2083, %v2085
      %v2087 = vrot.slane %v1860, 1
      %v2088 = vsel %vm2027, %v2085, %v2087
      %v2089 = vrot.slane %v1863, 1
      %v2090 = vsel %vm2027, %v2087, %v2089
      %v2123 = vsel %vm2027, %v2089, 0.0
      %v2124 = vlaneseq
      %v2125 = vshrl.u32 %v2124, 7
      %v2126 = vadd.s32 %v2125, 8
      %vm2127 = vcmp.ne.s32.totalorder %v2125, 0
      %vm2128 = vcmp.ne.s32.totalorder %v2126, 0
      %v2129 = vsel %vm2127, 1, 0
      %v2130 = vsel %vm2128, 1, 0
      %vm2131 = vcmp.eq.s32.totalorder %v2129, 1
      %vm2132 = vcmp.eq.s32.totalorder %v2130, 1
      %v2133 = vsel %vm2131, %v1994, 0.0
      %v2134 = vsel %vm2132, %v1901, 0.0
      %v2135 = vsel %vm2131, %v1903, 0.0
      %v2136 = vsel %vm2132, %v1905, 0.0
      %v2137 = vsel %vm2131, %v1907, 0.0
      %v2138 = vsel %vm2132, %v1909, 0.0
      %v2139 = vsel %vm2131, %v1911, 0.0
      %v2140 = vsel %vm2132, %v1913, 0.0
      %v2141 = vsel %vm2131, %v1915, 0.0
      %v2142 = vsel %vm2132, %v1917, 0.0
      %v2143 = vsel %vm2131, %v1919, 0.0
      %v2144 = vsel %vm2132, %v1921, 0.0
      %v2145 = vsel %vm2131, %v1923, 0.0
      %v2146 = vsel %vm2132, %v1925, 0.0
      %v2147 = vsel %vm2131, %v1927, 0.0
      %v2148 = vsel %vm2132, %v1929, 0.0
      %v2149 = vsel %vm2131, %v1931, 0.0
      %v2150 = vsel %vm2132, %v1933, 0.0
      %v2151 = vsel %vm2131, %v1935, 0.0
      %v2152 = vsel %vm2132, %v1937, 0.0
      %v2153 = vsel %vm2131, %v1939, 0.0
      %v2154 = vsel %vm2132, %v1941, 0.0
      %v2155 = vsel %vm2131, %v1943, 0.0
      %v2156 = vsel %vm2132, %v1945, 0.0
      %v2157 = vsel %vm2131, %v1947, 0.0
      %v2158 = vsel %vm2132, %v1949, 0.0
      %v2159 = vsel %vm2131, %v1951, 0.0
      %v2160 = vsel %vm2132, %v1953, 0.0
      %v2161 = vsel %vm2131, %v1955, 0.0
      %v2162 = vsel %vm2132, %v1957, 0.0
      %v2163 = vsel %vm2131, %v1959, 0.0
      %v2164 = vsel %vm2132, %v1961, 0.0
      %v2165 = vadd.f32 %v1388, %v2133
      %v2166 = vadd.f32 %v1392, %v2134
      %v2167 = vadd.f32 %v1398, %v2135
      %v2168 = vadd.f32 %v1402, %v2136
      %v2169 = vadd.f32 %v1408, %v2137
      %v2170 = vadd.f32 %v1412, %v2138
      %v2171 = vadd.f32 %v1418, %v2139
      %v2172 = vadd.f32 %v1422, %v2140
      %v2173 = vadd.f32 %v1428, %v2141
      %v2174 = vadd.f32 %v1432, %v2142
      %v2175 = vadd.f32 %v1438, %v2143
      %v2176 = vadd.f32 %v1442, %v2144
      %v2177 = vadd.f32 %v1448, %v2145
      %v2178 = vadd.f32 %v1452, %v2146
      %v2179 = vadd.f32 %v1458, %v2147
      %v2180 = vadd.f32 %v1462, %v2148
      %v2181 = vadd.f32 %v1468, %v2149
      %v2182 = vadd.f32 %v1472, %v2150
      %v2183 = vadd.f32 %v1478, %v2151
      %v2184 = vadd.f32 %v1482, %v2152
      %v2185 = vadd.f32 %v1488, %v2153
      %v2186 = vadd.f32 %v1492, %v2154
      %v2187 = vadd.f32 %v1498, %v2155
      %v2188 = vadd.f32 %v1502, %v2156
      %v2189 = vadd.f32 %v1508, %v2157
      %v2190 = vadd.f32 %v1512, %v2158
      %v2191 = vadd.f32 %v1518, %v2159
      %v2192 = vadd.f32 %v1522, %v2160
      %v2193 = vadd.f32 %v1528, %v2161
      %v2194 = vadd.f32 %v1532, %v2162
      %v2195 = vadd.f32 %v1538, %v2163
      %v2196 = vadd.f32 %v1542, %v2164
      %vm2197 = vcmp.ne.s32.totalorder %v2125, 15
      %vm2198 = vcmp.ne.s32.totalorder %v2126, 15
      %v2199 = vsel %vm2197, 1, 0
      %v2200 = vsel %vm2198, 1, 0
      %vm2201 = vcmp.eq.s32.totalorder %v2199, 1
      %vm2202 = vcmp.eq.s32.totalorder %v2200, 1
      %v2203 = vsel %vm2201, %v2030, 0.0
      %v2204 = vsel %vm2202, %v2032, 0.0
      %v2205 = vsel %vm2201, %v2034, 0.0
      %v2206 = vsel %vm2202, %v2036, 0.0
      %v2207 = vsel %vm2201, %v2038, 0.0
      %v2208 = vsel %vm2202, %v2040, 0.0
      %v2209 = vsel %vm2201, %v2042, 0.0
      %v2210 = vsel %vm2202, %v2044, 0.0
      %v2211 = vsel %vm2201, %v2046, 0.0
      %v2212 = vsel %vm2202, %v2048, 0.0
      %v2213 = vsel %vm2201, %v2050, 0.0
      %v2214 = vsel %vm2202, %v2052, 0.0
      %v2215 = vsel %vm2201, %v2054, 0.0
      %v2216 = vsel %vm2202, %v2056, 0.0
      %v2217 = vsel %vm2201, %v2058, 0.0
      %v2218 = vsel %vm2202, %v2060, 0.0
      %v2219 = vsel %vm2201, %v2062, 0.0
      %v2220 = vsel %vm2202, %v2064, 0.0
      %v2221 = vsel %vm2201, %v2066, 0.0
      %v2222 = vsel %vm2202, %v2068, 0.0
      %v2223 = vsel %vm2201, %v2070, 0.0
      %v2224 = vsel %vm2202, %v2072, 0.0
      %v2225 = vsel %vm2201, %v2074, 0.0
      %v2226 = vsel %vm2202, %v2076, 0.0
      %v2227 = vsel %vm2201, %v2078, 0.0
      %v2228 = vsel %vm2202, %v2080, 0.0
      %v2229 = vsel %vm2201, %v2082, 0.0
      %v2230 = vsel %vm2202, %v2084, 0.0
      %v2231 = vsel %vm2201, %v2086, 0.0
      %v2232 = vsel %vm2202, %v2088, 0.0
      %v2233 = vsel %vm2201, %v2090, 0.0
      %v2234 = vsel %vm2202, %v2123, 0.0
      %v2235 = vadd.f32 %v2165, %v2203
      %v2236 = vadd.f32 %v2166, %v2204
      %v2237 = vadd.f32 %v2167, %v2205
      %v2238 = vadd.f32 %v2168, %v2206
      %v2239 = vadd.f32 %v2169, %v2207
      %v2240 = vadd.f32 %v2170, %v2208
      %v2241 = vadd.f32 %v2171, %v2209
      %v2242 = vadd.f32 %v2172, %v2210
      %v2243 = vadd.f32 %v2173, %v2211
      %v2244 = vadd.f32 %v2174, %v2212
      %v2245 = vadd.f32 %v2175, %v2213
      %v2246 = vadd.f32 %v2176, %v2214
      %v2247 = vadd.f32 %v2177, %v2215
      %v2248 = vadd.f32 %v2178, %v2216
      %v2249 = vadd.f32 %v2179, %v2217
      %v2250 = vadd.f32 %v2180, %v2218
      %v2251 = vadd.f32 %v2181, %v2219
      %v2252 = vadd.f32 %v2182, %v2220
      %v2253 = vadd.f32 %v2183, %v2221
      %v2254 = vadd.f32 %v2184, %v2222
      %v2255 = vadd.f32 %v2185, %v2223
      %v2256 = vadd.f32 %v2186, %v2224
      %v2257 = vadd.f32 %v2187, %v2225
      %v2258 = vadd.f32 %v2188, %v2226
      %v2259 = vadd.f32 %v2189, %v2227
      %v2260 = vadd.f32 %v2190, %v2228
      %v2261 = vadd.f32 %v2191, %v2229
      %v2262 = vadd.f32 %v2192, %v2230
      %v2263 = vadd.f32 %v2193, %v2231
      %v2264 = vadd.f32 %v2194, %v2232
      %v2265 = vadd.f32 %v2195, %v2233
      %v2266 = vadd.f32 %v2196, %v2234
      %v2267 = vld [vmem:[%s6] sm:$0x1]
      %v2269 = vlaneseq
      %v2270 = vshrl.u32 %v2269, 7
      %v2271 = vsub.s32 0, %v2270
      %v2272 = vrot.slane %v2267, %v2271
      %v2274 = vadd.f32 %v2235, %v2272
      %v2275 = vadd.f32 %v2236, %v2272
      %v2276 = vadd.f32 %v2237, %v2272
      %v2277 = vadd.f32 %v2238, %v2272
      %v2278 = vadd.f32 %v2239, %v2272
      %v2279 = vadd.f32 %v2240, %v2272
      %v2280 = vadd.f32 %v2241, %v2272
      %v2281 = vadd.f32 %v2242, %v2272
      %v2282 = vadd.f32 %v2243, %v2272
      %v2283 = vadd.f32 %v2244, %v2272
      %v2284 = vadd.f32 %v2245, %v2272
      %v2285 = vadd.f32 %v2246, %v2272
      %v2286 = vadd.f32 %v2247, %v2272
      %v2287 = vadd.f32 %v2248, %v2272
      %v2288 = vadd.f32 %v2249, %v2272
      %v2289 = vadd.f32 %v2250, %v2272
      %v2290 = vadd.f32 %v2251, %v2272
      %v2291 = vadd.f32 %v2252, %v2272
      %v2292 = vadd.f32 %v2253, %v2272
      %v2293 = vadd.f32 %v2254, %v2272
      %v2294 = vadd.f32 %v2255, %v2272
      %v2295 = vadd.f32 %v2256, %v2272
      %v2296 = vadd.f32 %v2257, %v2272
      %v2297 = vadd.f32 %v2258, %v2272
      %v2298 = vadd.f32 %v2259, %v2272
      %v2299 = vadd.f32 %v2260, %v2272
      %v2300 = vadd.f32 %v2261, %v2272
      %v2301 = vadd.f32 %v2262, %v2272
      %v2302 = vadd.f32 %v2263, %v2272
      %v2303 = vadd.f32 %v2264, %v2272
      %v2304 = vadd.f32 %v2265, %v2272
      %v2305 = vadd.f32 %v2266, %v2272
      %2306 = vst [vmem:[%s484] sm:$0xff] %v2274
      %2307 = vst [vmem:[%s484 + $0x8] sm:$0xff] %v2275
      %2308 = vst [vmem:[%s484 + $0x10] sm:$0xff] %v2276
      %2309 = vst [vmem:[%s484 + $0x18] sm:$0xff] %v2277
      %2310 = vst [vmem:[%s484 + $0x20] sm:$0xff] %v2278
      %2311 = vst [vmem:[%s484 + $0x28] sm:$0xff] %v2279
      %2312 = vst [vmem:[%s484 + $0x30] sm:$0xff] %v2280
      %2313 = vst [vmem:[%s484 + $0x38] sm:$0xff] %v2281
      %2314 = vst [vmem:[%s484 + $0x40] sm:$0xff] %v2282
      %2315 = vst [vmem:[%s484 + $0x48] sm:$0xff] %v2283
      %2316 = vst [vmem:[%s484 + $0x50] sm:$0xff] %v2284
      %2317 = vst [vmem:[%s484 + $0x58] sm:$0xff] %v2285
      %2318 = vst [vmem:[%s484 + $0x60] sm:$0xff] %v2286
      %2319 = vst [vmem:[%s484 + $0x68] sm:$0xff] %v2287
      %2320 = vst [vmem:[%s484 + $0x70] sm:$0xff] %v2288
      %2321 = vst [vmem:[%s484 + $0x78] sm:$0xff] %v2289
      %2322 = vst [vmem:[%s484 + $0x80] sm:$0xff] %v2290
      %2323 = vst [vmem:[%s484 + $0x88] sm:$0xff] %v2291
      %2324 = vst [vmem:[%s484 + $0x90] sm:$0xff] %v2292
      %2325 = vst [vmem:[%s484 + $0x98] sm:$0xff] %v2293
      %2326 = vst [vmem:[%s484 + $0xa0] sm:$0xff] %v2294
      %2327 = vst [vmem:[%s484 + $0xa8] sm:$0xff] %v2295
      %2328 = vst [vmem:[%s484 + $0xb0] sm:$0xff] %v2296
      %2329 = vst [vmem:[%s484 + $0xb8] sm:$0xff] %v2297
      %2330 = vst [vmem:[%s484 + $0xc0] sm:$0xff] %v2298
      %2331 = vst [vmem:[%s484 + $0xc8] sm:$0xff] %v2299
      %2332 = vst [vmem:[%s484 + $0xd0] sm:$0xff] %v2300
      %2333 = vst [vmem:[%s484 + $0xd8] sm:$0xff] %v2301
      %2334 = vst [vmem:[%s484 + $0xe0] sm:$0xff] %v2302
      %2335 = vst [vmem:[%s484 + $0xe8] sm:$0xff] %v2303
      %2336 = vst [vmem:[%s484 + $0xf0] sm:$0xff] %v2304
      %2337 = vst [vmem:[%s484 + $0xf8] sm:$0xff] %v2305
      %v2338 = vadd.f32 %v2274, %v2275
      %v2339 = vadd.f32 %v2338, %v2276
      %v2340 = vadd.f32 %v2339, %v2277
      %v2341 = vadd.f32 %v2340, %v2278
      %v2342 = vadd.f32 %v2341, %v2279
      %v2343 = vadd.f32 %v2342, %v2280
      %v2344 = vadd.f32 %v2343, %v2281
      %v2345 = vadd.f32 %v2344, %v2282
      %v2346 = vadd.f32 %v2345, %v2283
      %v2347 = vadd.f32 %v2346, %v2284
      %v2348 = vadd.f32 %v2347, %v2285
      %v2349 = vadd.f32 %v2348, %v2286
      %v2350 = vadd.f32 %v2349, %v2287
      %v2351 = vadd.f32 %v2350, %v2288
      %v2352 = vadd.f32 %v2351, %v2289
      %v2353 = vadd.f32 %v2352, %v2290
      %v2354 = vadd.f32 %v2353, %v2291
      %v2355 = vadd.f32 %v2354, %v2292
      %v2356 = vadd.f32 %v2355, %v2293
      %v2357 = vadd.f32 %v2356, %v2294
      %v2358 = vadd.f32 %v2357, %v2295
      %v2359 = vadd.f32 %v2358, %v2296
      %v2360 = vadd.f32 %v2359, %v2297
      %v2361 = vadd.f32 %v2360, %v2298
      %v2362 = vadd.f32 %v2361, %v2299
      %v2363 = vadd.f32 %v2362, %v2300
      %v2364 = vadd.f32 %v2363, %v2301
      %v2365 = vadd.f32 %v2364, %v2302
      %v2366 = vadd.f32 %v2365, %v2303
      %v2367 = vadd.f32 %v2366, %v2304
      %v2368 = vadd.f32 %v2367, %v2305
      %v2369 = vrot.slane %v2368, 4
      %v2370 = vadd.f32 %v2368, %v2369
      %v2371 = vrot.slane %v2370, 2
      %v2372 = vadd.f32 %v2370, %v2371
      %v2373 = vrot.slane %v2372, 1
      %v2374 = vadd.f32 %v2372, %v2373
      %v2375 = vmul.f32 %v2274, %v2274
      %v2376 = vmul.f32 %v2275, %v2275
      %v2377 = vmul.f32 %v2276, %v2276
      %v2378 = vmul.f32 %v2277, %v2277
      %v2379 = vmul.f32 %v2278, %v2278
      %v2380 = vmul.f32 %v2279, %v2279
      %v2381 = vmul.f32 %v2280, %v2280
      %v2382 = vmul.f32 %v2281, %v2281
      %v2383 = vmul.f32 %v2282, %v2282
      %v2384 = vmul.f32 %v2283, %v2283
      %v2385 = vmul.f32 %v2284, %v2284
      %v2386 = vmul.f32 %v2285, %v2285
      %v2387 = vmul.f32 %v2286, %v2286
      %v2388 = vmul.f32 %v2287, %v2287
      %v2389 = vmul.f32 %v2288, %v2288
      %v2390 = vmul.f32 %v2289, %v2289
      %v2391 = vmul.f32 %v2290, %v2290
      %v2392 = vmul.f32 %v2291, %v2291
      %v2393 = vmul.f32 %v2292, %v2292
      %v2394 = vmul.f32 %v2293, %v2293
      %v2395 = vmul.f32 %v2294, %v2294
      %v2396 = vmul.f32 %v2295, %v2295
      %v2397 = vmul.f32 %v2296, %v2296
      %v2398 = vmul.f32 %v2297, %v2297
      %v2399 = vmul.f32 %v2298, %v2298
      %v2400 = vmul.f32 %v2299, %v2299
      %v2401 = vmul.f32 %v2300, %v2300
      %v2402 = vmul.f32 %v2301, %v2301
      %v2403 = vmul.f32 %v2302, %v2302
      %v2404 = vmul.f32 %v2303, %v2303
      %v2405 = vmul.f32 %v2304, %v2304
      %v2406 = vmul.f32 %v2305, %v2305
      %v2407 = vadd.f32 %v2375, %v2376
      %v2408 = vadd.f32 %v2407, %v2377
      %v2409 = vadd.f32 %v2408, %v2378
      %v2410 = vadd.f32 %v2409, %v2379
      %v2411 = vadd.f32 %v2410, %v2380
      %v2412 = vadd.f32 %v2411, %v2381
      %v2413 = vadd.f32 %v2412, %v2382
      %v2414 = vadd.f32 %v2413, %v2383
      %v2415 = vadd.f32 %v2414, %v2384
      %v2416 = vadd.f32 %v2415, %v2385
      %v2417 = vadd.f32 %v2416, %v2386
      %v2418 = vadd.f32 %v2417, %v2387
      %v2419 = vadd.f32 %v2418, %v2388
      %v2420 = vadd.f32 %v2419, %v2389
      %v2421 = vadd.f32 %v2420, %v2390
      %v2422 = vadd.f32 %v2421, %v2391
      %v2423 = vadd.f32 %v2422, %v2392
      %v2424 = vadd.f32 %v2423, %v2393
      %v2425 = vadd.f32 %v2424, %v2394
      %v2426 = vadd.f32 %v2425, %v2395
      %v2427 = vadd.f32 %v2426, %v2396
      %v2428 = vadd.f32 %v2427, %v2397
      %v2429 = vadd.f32 %v2428, %v2398
      %v2430 = vadd.f32 %v2429, %v2399
      %v2431 = vadd.f32 %v2430, %v2400
      %v2432 = vadd.f32 %v2431, %v2401
      %v2433 = vadd.f32 %v2432, %v2402
      %v2434 = vadd.f32 %v2433, %v2403
      %v2435 = vadd.f32 %v2434, %v2404
      %v2436 = vadd.f32 %v2435, %v2405
      %v2437 = vadd.f32 %v2436, %v2406
      %v2438 = vrot.slane %v2437, 4
      %v2439 = vadd.f32 %v2437, %v2438
      %v2440 = vrot.slane %v2439, 2
      %v2441 = vadd.f32 %v2439, %v2440
      %v2442 = vrot.slane %v2441, 1
      %v2443 = vadd.f32 %v2441, %v2442
      %v2444 = vsel %vm1898, %v2374, %v2443
      %2445 = vst [vmem:[%s492] sm:$0x3] %v2444
      %s2446 = smul.u32 16, %s25
      %p2447 = scmp.lt.s32.totalorder %s24, 1
      %s2448 = scalar_select %p2447, %s24, 1
      %p2449 = scmp.lt.s32.totalorder %s2446, 15
      %s2450 = scalar_select %p2449, %s2446, 15
      %s2451 = smul.addr %s2450, 2
      %s2452 = smul.addr %s2448, 32
      %s2453 = sadd.s32 %s2451, %s2452
      %s2454 = smul.addr %s2453, 8
      %s2455 = scalar_lea.vmem %s7, %s2454
      %p2456 = scmp.lt.s32.totalorder %s24, 1
      %s2457 = scalar_select %p2456, %s24, 1
      %p2458 = scmp.lt.s32.totalorder %s25, 0
      %s2459 = scalar_select %p2458, %s25, 0
      %s2460 = sadd.s32 %s2459, %s2457
      %s2461 = smul.addr %s2460, 2
      %s2462 = scalar_lea.vmem %s8, %s2461
      // Predicated region
      $region49: #{decoder_block_forward.6} parent=47 // pred_check
        %p2463 = pneg %p236
      $region50: #{decoder_block_forward.6} parent=47 // pred_check_branch
        %2465 = sbr.rel (%p2463) target = $region52
      $region51: #{decoder_block_forward.6} parent=47 // pred_region
        %s2466 = smul.u32 16, %s25
      $region52: #{decoder_block_forward.6} parent=47 // pred_fallthru
        _
      // Predicated region
      $region53: #{decoder_block_forward.6} parent=47 // pred_check
        %p2467 = pneg %p264
      $region54: #{decoder_block_forward.6} parent=47 // pred_check_branch
        %2469 = sbr.rel (%p2467) target = $region56
      $region55: #{decoder_block_forward.6} parent=47 // pred_region
        _
      $region56: #{decoder_block_forward.6} parent=47 // pred_fallthru
        _
    $region48: #{decoder_block_forward.6} parent=5 // pred_fallthru
      _
    %p2470 = scmp.le.s32.totalorder 2, %s15
    // Predicated region
    $region57: #{decoder_block_forward.6} parent=5 // pred_check
      %p2471 = pneg %p2470
    $region58: #{decoder_block_forward.6} parent=5 // pred_check_branch
      %2473 = sbr.rel (%p2471) target = $region60
    $region59: #{decoder_block_forward.6} parent=5 // pred_region
      %s2474 = ssub.s32 %s15, 2
      // Predicated region
      $region61: #{decoder_block_forward.6} parent=59 // pred_check
        %p2475 = pneg %p242
      $region62: #{decoder_block_forward.6} parent=59 // pred_check_branch
        %2477 = sbr.rel (%p2475) target = $region64
      $region63: #{decoder_block_forward.6} parent=59 // pred_region
        %s2478 = smul.u32 16, %s27
        %p2479 = scmp.lt.s32.totalorder %s26, 1
        %s2480 = scalar_select %p2479, %s26, 1
        %p2481 = scmp.lt.s32.totalorder %s2478, 15
        %s2482 = scalar_select %p2481, %s2478, 15
        %s2483 = smul.addr %s2482, 2
        %s2484 = smul.addr %s2480, 32
        %s2485 = sadd.s32 %s2483, %s2484
        %s2486 = smul.addr %s2485, 8
        %s2487 = scalar_lea.vmem %s7, %s2486
      $region64: #{decoder_block_forward.6} parent=59 // pred_fallthru
        _
      // Predicated region
      $region65: #{decoder_block_forward.6} parent=59 // pred_check
        %p2488 = pneg %p270
      $region66: #{decoder_block_forward.6} parent=59 // pred_check_branch
        %2490 = sbr.rel (%p2488) target = $region68
      $region67: #{decoder_block_forward.6} parent=59 // pred_region
        %p2491 = scmp.lt.s32.totalorder %s26, 1
        %s2492 = scalar_select %p2491, %s26, 1
        %p2493 = scmp.lt.s32.totalorder %s27, 0
        %s2494 = scalar_select %p2493, %s27, 0
        %s2495 = sadd.s32 %s2494, %s2492
        %s2496 = smul.addr %s2495, 2
        %s2497 = scalar_lea.vmem %s8, %s2496
      $region68: #{decoder_block_forward.6} parent=59 // pred_fallthru
        _
    $region60: #{decoder_block_forward.6} parent=5 // pred_fallthru
      _
  $region6: #{decoder_block_forward.6} parent=0 // loop_footer
    %s19 = sadd.s32 1, %s15
  $region7: #{decoder_block_forward.6} parent=0 // loop_footer_branch
    %14 = sbr.rel target = $region3
  $region8: #{decoder_block_forward.6} parent=0 // loop_exit
    _

</llo_original>
